<compile_context>
chip_gen: v7x
topology: tpu7x:2x2x1
jax: 0.10.0
libtpu: 0.0.40
codegen_flags: <defaults>
</compile_context>

<pallas_src>
import functools

import jax
import jax.numpy as jnp
from jax.experimental import pallas as pl
from jax.experimental.pallas import tpu as pltpu


def _round_up(x, m):
    return (x + m - 1) // m * m


# ----------------------------------------------------------------------------
# Pallas kernel: one NeuralLogicRuleLayer on a lane-dense (In, TB) batch tile.
# Batch is on the lane axis (TB >= 128); features live on sublanes.  All
# sigmoids are pre-applied in the wrapper, so the kernel body is pure VPU work.
# ----------------------------------------------------------------------------
def nlrl_kernel(x_ref, wat_ref, wot_ref, neg_ref, gate_ref, o_ref, *, nnf):
    x = x_ref[...].astype(jnp.float32)                # (In, TB)

    if not nnf:
        n = neg_ref[...].astype(jnp.float32)          # (In, 1), sigmoid pre-applied
        # soft negation: x' = (1-n)*x + n*(1-x) = n + (1-2n)*x
        x = n + (1.0 - 2.0 * n) * x

    m_and = wat_ref[...].astype(jnp.float32)          # (Out, In), sigmoid pre-applied
    m_or = wot_ref[...].astype(jnp.float32)           # (Out, In), sigmoid pre-applied

    out_dim, in_dim = m_and.shape
    tb = x.shape[-1]

    acc_and = jnp.ones((out_dim, tb), jnp.float32)
    acc_or = jnp.ones((out_dim, tb), jnp.float32)

    # Accumulating product over the In axis: avoids any (TB, In, Out) temp and
    # keeps the reduction on plain VPU multiplies.  In is small & static here,
    # so a full unroll is fine.
    # TODO(synk): for very large In, tile In as a trailing 'arbitrary' grid axis
    #             with pl.when-guarded accumulator init instead of unrolling.
    for i in range(in_dim):
        xi = x[i:i + 1, :]                            # (1, TB)  sublane slice
        xic = 1.0 - xi
        wa = m_and[:, i:i + 1]                        # (Out, 1) static lane slice
        wo = m_or[:, i:i + 1]
        acc_and = acc_and * (1.0 - wa * xic)          # soft AND factor
        acc_or = acc_or * (1.0 - wo * xi)             # soft OR  factor

    g = gate_ref[...].astype(jnp.float32)             # (Out, 1), sigmoid pre-applied
    y = (1.0 - g) * acc_and + g * (1.0 - acc_or)
    o_ref[...] = y.astype(o_ref.dtype)                # lane-dense (Out, TB) store


def _nlrl_layer_t(x_t, params, *, nnf, tb):
    """One layer in transposed layout. x_t: (In, Bp) -> (Out, Bp), Bp % tb == 0."""
    in_dim, bp = x_t.shape
    out_dim = params["w_and"].shape[1]
    assert bp % tb == 0 and tb % 128 == 0

    # Hoist grid-invariant transcendentals (sigmoids) out of the per-tile body
    # and pre-transpose the weights so per-input columns line up with the
    # (Out, TB) accumulators.
    m_and_t = jax.nn.sigmoid(params["w_and"]).T.astype(jnp.float32)   # (Out, In)
    m_or_t = jax.nn.sigmoid(params["w_or"]).T.astype(jnp.float32)     # (Out, In)
    neg = jax.nn.sigmoid(params["neg"]).reshape(in_dim, 1).astype(jnp.float32)
    gate = jax.nn.sigmoid(params["gate"]).reshape(out_dim, 1).astype(jnp.float32)

    kernel = functools.partial(nlrl_kernel, nnf=nnf)
    return pl.pallas_call(
        kernel,
        out_shape=jax.ShapeDtypeStruct((out_dim, bp), x_t.dtype),
        grid_spec=pltpu.PrefetchScalarGridSpec(
            num_scalar_prefetch=0,
            grid=(bp // tb,),
            in_specs=[
                pl.BlockSpec((in_dim, tb), lambda i: (0, i)),        # x tile (lane-dense)
                pl.BlockSpec((out_dim, in_dim), lambda i: (0, 0)),   # sigmoid(W_and)^T
                pl.BlockSpec((out_dim, in_dim), lambda i: (0, 0)),   # sigmoid(W_or)^T
                pl.BlockSpec((in_dim, 1), lambda i: (0, 0)),         # sigmoid(neg)
                pl.BlockSpec((out_dim, 1), lambda i: (0, 0)),        # sigmoid(gate)
            ],
            out_specs=pl.BlockSpec((out_dim, tb), lambda i: (0, i)),
        ),
        compiler_params=pltpu.CompilerParams(
            dimension_semantics=("parallel",),
            vmem_limit_bytes=32 * 1024 * 1024,
        ),
    )(x_t, m_and_t, m_or_t, neg, gate)


# ----------------------------------------------------------------------------
# Network construction / forward (glue in plain JAX).
# ----------------------------------------------------------------------------
def init_nlrl_params(key, in_features, out_features):
    k1, k2, k3, k4 = jax.random.split(key, 4)
    return {
        "w_and": jax.random.normal(k1, (in_features, out_features), jnp.float32) * 0.5,
        "w_or": jax.random.normal(k2, (in_features, out_features), jnp.float32) * 0.5,
        "neg": jax.random.normal(k3, (in_features,), jnp.float32) * 0.5,
        "gate": jax.random.normal(k4, (out_features,), jnp.float32) * 0.5,
    }


def init_network(key, input_size, out_size, layers, hidden_dim):
    keys = jax.random.split(key, max(layers, 2))
    params = []
    if layers == 1:
        params.append(init_nlrl_params(keys[0], input_size, out_size))  # nlrl1; proj=Identity
    else:
        params.append(init_nlrl_params(keys[0], input_size, hidden_dim))      # nlrl1
        for i in range(2, layers):
            params.append(init_nlrl_params(keys[i - 1], hidden_dim, hidden_dim))  # nlrl_i
        params.append(init_nlrl_params(keys[layers - 1], hidden_dim, out_size))   # proj
    return params


def neural_logic_network(x, params, *, nnf=False, tb=512):
    """x: (..., in) -> (..., out). Leading dims are flattened into a batch.

    Internally runs in transposed (features, batch) layout so the batch sits on
    the 128-wide lane axis; batch is padded up to a multiple of the lane tile.
    """
    lead = x.shape[:-1]
    x2 = x.reshape(-1, x.shape[-1])
    b = x2.shape[0]

    tb_eff = max(128, min(_round_up(tb, 128), _round_up(b, 128)))
    bp = _round_up(b, tb_eff)

    x_t = jnp.pad(x2.T, ((0, 0), (0, bp - b)))       # (In, Bp), zero-padded batch
    for p in params:
        x_t = _nlrl_layer_t(x_t, p, nnf=nnf, tb=tb_eff)
    out = x_t[:, :b].T                               # (B, Out)
    return out.reshape(*lead, out.shape[-1])


# Pure-JAX reference for verification.
def _nlrl_ref(x, p, nnf=False):
    if not nnf:
        n = jax.nn.sigmoid(p["neg"])
        x = (1.0 - n) * x + n * (1.0 - x)
    m_and = jax.nn.sigmoid(p["w_and"])
    m_or = jax.nn.sigmoid(p["w_or"])
    xe = x[:, :, None]
    and_out = jnp.prod(1.0 - m_and[None] * (1.0 - xe), axis=1)
    or_out = 1.0 - jnp.prod(1.0 - m_or[None] * xe, axis=1)
    g = jax.nn.sigmoid(p["gate"])
    return (1.0 - g) * and_out + g * or_out


def _network_ref(x, params, nnf=False):
    for p in params:
        x = _nlrl_ref(x, p, nnf=nnf)
    return x


if __name__ == "__main__":
    # Small shapes implied by the module: input_size=16, hidden_dim=32,
    # out_size=8, layers=3, nnf=False.  batch=256 with tb=128 gives a 2-step
    # "parallel" grid (keeps both v7x TensorCores busy) while staying small.
    input_size, out_size, layers, hidden_dim = 16, 8, 3, 32
    batch = 256

    key = jax.random.PRNGKey(0)
    k_x, k_p = jax.random.split(key)
    # Truth-valued inputs in [0, 1].
    x = jax.random.uniform(k_x, (batch, input_size), jnp.float32)
    params = init_network(k_p, input_size, out_size, layers, hidden_dim)

    fwd = jax.jit(functools.partial(neural_logic_network, nnf=False, tb=128))
    out = jax.block_until_ready(fwd(x, params))

    ref = _network_ref(x, params, nnf=False)
    assert out.shape == (batch, out_size), out.shape
    assert jnp.allclose(out, ref, atol=2e-5, rtol=2e-5), (
        float(jnp.max(jnp.abs(out - ref)))
    )
    print("KERNEL_OK")
</pallas_src>

<mosaic_0001>
module attributes {stable_mosaic.version = 11 : i64} {
  func.func @nlrl_kernel(%arg0: i32, %arg1: memref<16x128xf32, #tpu.memory_space<vmem>>, %arg2: memref<32x16xf32, #tpu.memory_space<vmem>>, %arg3: memref<32x16xf32, #tpu.memory_space<vmem>>, %arg4: memref<16x1xf32, #tpu.memory_space<vmem>>, %arg5: memref<32x1xf32, #tpu.memory_space<vmem>>, %arg6: memref<32x128xf32, #tpu.memory_space<vmem>>) attributes {dimension_semantics = [#tpu.dimension_semantics<parallel>], iteration_bounds = array<i64: 2>, scalar_prefetch = 0 : i64, scratch_operands = 0 : i64, tpu.core_type = #tpu.core_type<tc>, window_params = [{transform_indices = @transform_0, window_bounds = array<i64: 16, 128>}, {pipeline_mode = #tpu.pipeline_mode<synchronous>, transform_indices = @transform_1, window_bounds = array<i64: 32, 16>}, {pipeline_mode = #tpu.pipeline_mode<synchronous>, transform_indices = @transform_2, window_bounds = array<i64: 32, 16>}, {pipeline_mode = #tpu.pipeline_mode<synchronous>, transform_indices = @transform_3, window_bounds = array<i64: 16, 1>}, {pipeline_mode = #tpu.pipeline_mode<synchronous>, transform_indices = @transform_4, window_bounds = array<i64: 32, 1>}, {transform_indices = @transform_5, window_bounds = array<i64: 32, 128>}]} {
    %c0 = arith.constant 0 : index
    %c0_0 = arith.constant 0 : index
    %0 = vector.load %arg1[%c0, %c0_0] : memref<16x128xf32, #tpu.memory_space<vmem>>, vector<16x128xf32>
    %c0_1 = arith.constant 0 : index
    %c0_2 = arith.constant 0 : index
    %1 = vector.load %arg4[%c0_1, %c0_2] : memref<16x1xf32, #tpu.memory_space<vmem>>, vector<16x1xf32>
    %cst = arith.constant 2.000000e+00 : f32
    %2 = vector.broadcast %cst : f32 to vector<16x1xf32>
    %3 = arith.mulf %2, %1 : vector<16x1xf32>
    %cst_3 = arith.constant 1.000000e+00 : f32
    %4 = vector.broadcast %cst_3 : f32 to vector<16x1xf32>
    %5 = arith.subf %4, %3 : vector<16x1xf32>
    %6 = vector.broadcast %5 : vector<16x1xf32> to vector<16x128xf32>
    %7 = arith.mulf %6, %0 : vector<16x128xf32>
    %8 = vector.broadcast %1 : vector<16x1xf32> to vector<16x128xf32>
    %9 = arith.addf %8, %7 : vector<16x128xf32>
    %c0_4 = arith.constant 0 : index
    %c0_5 = arith.constant 0 : index
    %10 = vector.load %arg2[%c0_4, %c0_5] : memref<32x16xf32, #tpu.memory_space<vmem>>, vector<32x16xf32>
    %c0_6 = arith.constant 0 : index
    %c0_7 = arith.constant 0 : index
    %11 = vector.load %arg3[%c0_6, %c0_7] : memref<32x16xf32, #tpu.memory_space<vmem>>, vector<32x16xf32>
    %cst_8 = arith.constant 1.000000e+00 : f32
    %12 = vector.broadcast %cst_8 : f32 to vector<32x128xf32>
    %cst_9 = arith.constant 1.000000e+00 : f32
    %13 = vector.broadcast %cst_9 : f32 to vector<32x128xf32>
    %14 = vector.extract_strided_slice %9 {offsets = [0, 0], sizes = [1, 128], strides = [1, 1]} : vector<16x128xf32> to vector<1x128xf32>
    %cst_10 = arith.constant 1.000000e+00 : f32
    %15 = vector.broadcast %cst_10 : f32 to vector<1x128xf32>
    %16 = arith.subf %15, %14 : vector<1x128xf32>
    %17 = vector.extract_strided_slice %10 {offsets = [0, 0], sizes = [32, 1], strides = [1, 1]} : vector<32x16xf32> to vector<32x1xf32>
    %18 = vector.extract_strided_slice %11 {offsets = [0, 0], sizes = [32, 1], strides = [1, 1]} : vector<32x16xf32> to vector<32x1xf32>
    %19 = vector.broadcast %17 : vector<32x1xf32> to vector<32x128xf32>
    %20 = vector.broadcast %16 : vector<1x128xf32> to vector<32x128xf32>
    %21 = arith.mulf %19, %20 : vector<32x128xf32>
    %cst_11 = arith.constant 1.000000e+00 : f32
    %22 = vector.broadcast %cst_11 : f32 to vector<32x128xf32>
    %23 = arith.subf %22, %21 : vector<32x128xf32>
    %24 = arith.mulf %12, %23 : vector<32x128xf32>
    %25 = vector.broadcast %18 : vector<32x1xf32> to vector<32x128xf32>
    %26 = vector.broadcast %14 : vector<1x128xf32> to vector<32x128xf32>
    %27 = arith.mulf %25, %26 : vector<32x128xf32>
    %cst_12 = arith.constant 1.000000e+00 : f32
    %28 = vector.broadcast %cst_12 : f32 to vector<32x128xf32>
    %29 = arith.subf %28, %27 : vector<32x128xf32>
    %30 = arith.mulf %13, %29 : vector<32x128xf32>
    %31 = vector.extract_strided_slice %9 {offsets = [1, 0], sizes = [1, 128], strides = [1, 1]} : vector<16x128xf32> to vector<1x128xf32>
    %cst_13 = arith.constant 1.000000e+00 : f32
    %32 = vector.broadcast %cst_13 : f32 to vector<1x128xf32>
    %33 = arith.subf %32, %31 : vector<1x128xf32>
    %34 = vector.extract_strided_slice %10 {offsets = [0, 1], sizes = [32, 1], strides = [1, 1]} : vector<32x16xf32> to vector<32x1xf32>
    %35 = vector.extract_strided_slice %11 {offsets = [0, 1], sizes = [32, 1], strides = [1, 1]} : vector<32x16xf32> to vector<32x1xf32>
    %36 = vector.broadcast %34 : vector<32x1xf32> to vector<32x128xf32>
    %37 = vector.broadcast %33 : vector<1x128xf32> to vector<32x128xf32>
    %38 = arith.mulf %36, %37 : vector<32x128xf32>
    %cst_14 = arith.constant 1.000000e+00 : f32
    %39 = vector.broadcast %cst_14 : f32 to vector<32x128xf32>
    %40 = arith.subf %39, %38 : vector<32x128xf32>
    %41 = arith.mulf %24, %40 : vector<32x128xf32>
    %42 = vector.broadcast %35 : vector<32x1xf32> to vector<32x128xf32>
    %43 = vector.broadcast %31 : vector<1x128xf32> to vector<32x128xf32>
    %44 = arith.mulf %42, %43 : vector<32x128xf32>
    %cst_15 = arith.constant 1.000000e+00 : f32
    %45 = vector.broadcast %cst_15 : f32 to vector<32x128xf32>
    %46 = arith.subf %45, %44 : vector<32x128xf32>
    %47 = arith.mulf %30, %46 : vector<32x128xf32>
    %48 = vector.extract_strided_slice %9 {offsets = [2, 0], sizes = [1, 128], strides = [1, 1]} : vector<16x128xf32> to vector<1x128xf32>
    %cst_16 = arith.constant 1.000000e+00 : f32
    %49 = vector.broadcast %cst_16 : f32 to vector<1x128xf32>
    %50 = arith.subf %49, %48 : vector<1x128xf32>
    %51 = vector.extract_strided_slice %10 {offsets = [0, 2], sizes = [32, 1], strides = [1, 1]} : vector<32x16xf32> to vector<32x1xf32>
    %52 = vector.extract_strided_slice %11 {offsets = [0, 2], sizes = [32, 1], strides = [1, 1]} : vector<32x16xf32> to vector<32x1xf32>
    %53 = vector.broadcast %51 : vector<32x1xf32> to vector<32x128xf32>
    %54 = vector.broadcast %50 : vector<1x128xf32> to vector<32x128xf32>
    %55 = arith.mulf %53, %54 : vector<32x128xf32>
    %cst_17 = arith.constant 1.000000e+00 : f32
    %56 = vector.broadcast %cst_17 : f32 to vector<32x128xf32>
    %57 = arith.subf %56, %55 : vector<32x128xf32>
    %58 = arith.mulf %41, %57 : vector<32x128xf32>
    %59 = vector.broadcast %52 : vector<32x1xf32> to vector<32x128xf32>
    %60 = vector.broadcast %48 : vector<1x128xf32> to vector<32x128xf32>
    %61 = arith.mulf %59, %60 : vector<32x128xf32>
    %cst_18 = arith.constant 1.000000e+00 : f32
    %62 = vector.broadcast %cst_18 : f32 to vector<32x128xf32>
    %63 = arith.subf %62, %61 : vector<32x128xf32>
    %64 = arith.mulf %47, %63 : vector<32x128xf32>
    %65 = vector.extract_strided_slice %9 {offsets = [3, 0], sizes = [1, 128], strides = [1, 1]} : vector<16x128xf32> to vector<1x128xf32>
    %cst_19 = arith.constant 1.000000e+00 : f32
    %66 = vector.broadcast %cst_19 : f32 to vector<1x128xf32>
    %67 = arith.subf %66, %65 : vector<1x128xf32>
    %68 = vector.extract_strided_slice %10 {offsets = [0, 3], sizes = [32, 1], strides = [1, 1]} : vector<32x16xf32> to vector<32x1xf32>
    %69 = vector.extract_strided_slice %11 {offsets = [0, 3], sizes = [32, 1], strides = [1, 1]} : vector<32x16xf32> to vector<32x1xf32>
    %70 = vector.broadcast %68 : vector<32x1xf32> to vector<32x128xf32>
    %71 = vector.broadcast %67 : vector<1x128xf32> to vector<32x128xf32>
    %72 = arith.mulf %70, %71 : vector<32x128xf32>
    %cst_20 = arith.constant 1.000000e+00 : f32
    %73 = vector.broadcast %cst_20 : f32 to vector<32x128xf32>
    %74 = arith.subf %73, %72 : vector<32x128xf32>
    %75 = arith.mulf %58, %74 : vector<32x128xf32>
    %76 = vector.broadcast %69 : vector<32x1xf32> to vector<32x128xf32>
    %77 = vector.broadcast %65 : vector<1x128xf32> to vector<32x128xf32>
    %78 = arith.mulf %76, %77 : vector<32x128xf32>
    %cst_21 = arith.constant 1.000000e+00 : f32
    %79 = vector.broadcast %cst_21 : f32 to vector<32x128xf32>
    %80 = arith.subf %79, %78 : vector<32x128xf32>
    %81 = arith.mulf %64, %80 : vector<32x128xf32>
    %82 = vector.extract_strided_slice %9 {offsets = [4, 0], sizes = [1, 128], strides = [1, 1]} : vector<16x128xf32> to vector<1x128xf32>
    %cst_22 = arith.constant 1.000000e+00 : f32
    %83 = vector.broadcast %cst_22 : f32 to vector<1x128xf32>
    %84 = arith.subf %83, %82 : vector<1x128xf32>
    %85 = vector.extract_strided_slice %10 {offsets = [0, 4], sizes = [32, 1], strides = [1, 1]} : vector<32x16xf32> to vector<32x1xf32>
    %86 = vector.extract_strided_slice %11 {offsets = [0, 4], sizes = [32, 1], strides = [1, 1]} : vector<32x16xf32> to vector<32x1xf32>
    %87 = vector.broadcast %85 : vector<32x1xf32> to vector<32x128xf32>
    %88 = vector.broadcast %84 : vector<1x128xf32> to vector<32x128xf32>
    %89 = arith.mulf %87, %88 : vector<32x128xf32>
    %cst_23 = arith.constant 1.000000e+00 : f32
    %90 = vector.broadcast %cst_23 : f32 to vector<32x128xf32>
    %91 = arith.subf %90, %89 : vector<32x128xf32>
    %92 = arith.mulf %75, %91 : vector<32x128xf32>
    %93 = vector.broadcast %86 : vector<32x1xf32> to vector<32x128xf32>
    %94 = vector.broadcast %82 : vector<1x128xf32> to vector<32x128xf32>
    %95 = arith.mulf %93, %94 : vector<32x128xf32>
    %cst_24 = arith.constant 1.000000e+00 : f32
    %96 = vector.broadcast %cst_24 : f32 to vector<32x128xf32>
    %97 = arith.subf %96, %95 : vector<32x128xf32>
    %98 = arith.mulf %81, %97 : vector<32x128xf32>
    %99 = vector.extract_strided_slice %9 {offsets = [5, 0], sizes = [1, 128], strides = [1, 1]} : vector<16x128xf32> to vector<1x128xf32>
    %cst_25 = arith.constant 1.000000e+00 : f32
    %100 = vector.broadcast %cst_25 : f32 to vector<1x128xf32>
    %101 = arith.subf %100, %99 : vector<1x128xf32>
    %102 = vector.extract_strided_slice %10 {offsets = [0, 5], sizes = [32, 1], strides = [1, 1]} : vector<32x16xf32> to vector<32x1xf32>
    %103 = vector.extract_strided_slice %11 {offsets = [0, 5], sizes = [32, 1], strides = [1, 1]} : vector<32x16xf32> to vector<32x1xf32>
    %104 = vector.broadcast %102 : vector<32x1xf32> to vector<32x128xf32>
    %105 = vector.broadcast %101 : vector<1x128xf32> to vector<32x128xf32>
    %106 = arith.mulf %104, %105 : vector<32x128xf32>
    %cst_26 = arith.constant 1.000000e+00 : f32
    %107 = vector.broadcast %cst_26 : f32 to vector<32x128xf32>
    %108 = arith.subf %107, %106 : vector<32x128xf32>
    %109 = arith.mulf %92, %108 : vector<32x128xf32>
    %110 = vector.broadcast %103 : vector<32x1xf32> to vector<32x128xf32>
    %111 = vector.broadcast %99 : vector<1x128xf32> to vector<32x128xf32>
    %112 = arith.mulf %110, %111 : vector<32x128xf32>
    %cst_27 = arith.constant 1.000000e+00 : f32
    %113 = vector.broadcast %cst_27 : f32 to vector<32x128xf32>
    %114 = arith.subf %113, %112 : vector<32x128xf32>
    %115 = arith.mulf %98, %114 : vector<32x128xf32>
    %116 = vector.extract_strided_slice %9 {offsets = [6, 0], sizes = [1, 128], strides = [1, 1]} : vector<16x128xf32> to vector<1x128xf32>
    %cst_28 = arith.constant 1.000000e+00 : f32
    %117 = vector.broadcast %cst_28 : f32 to vector<1x128xf32>
    %118 = arith.subf %117, %116 : vector<1x128xf32>
    %119 = vector.extract_strided_slice %10 {offsets = [0, 6], sizes = [32, 1], strides = [1, 1]} : vector<32x16xf32> to vector<32x1xf32>
    %120 = vector.extract_strided_slice %11 {offsets = [0, 6], sizes = [32, 1], strides = [1, 1]} : vector<32x16xf32> to vector<32x1xf32>
    %121 = vector.broadcast %119 : vector<32x1xf32> to vector<32x128xf32>
    %122 = vector.broadcast %118 : vector<1x128xf32> to vector<32x128xf32>
    %123 = arith.mulf %121, %122 : vector<32x128xf32>
    %cst_29 = arith.constant 1.000000e+00 : f32
    %124 = vector.broadcast %cst_29 : f32 to vector<32x128xf32>
    %125 = arith.subf %124, %123 : vector<32x128xf32>
    %126 = arith.mulf %109, %125 : vector<32x128xf32>
    %127 = vector.broadcast %120 : vector<32x1xf32> to vector<32x128xf32>
    %128 = vector.broadcast %116 : vector<1x128xf32> to vector<32x128xf32>
    %129 = arith.mulf %127, %128 : vector<32x128xf32>
    %cst_30 = arith.constant 1.000000e+00 : f32
    %130 = vector.broadcast %cst_30 : f32 to vector<32x128xf32>
    %131 = arith.subf %130, %129 : vector<32x128xf32>
    %132 = arith.mulf %115, %131 : vector<32x128xf32>
    %133 = vector.extract_strided_slice %9 {offsets = [7, 0], sizes = [1, 128], strides = [1, 1]} : vector<16x128xf32> to vector<1x128xf32>
    %cst_31 = arith.constant 1.000000e+00 : f32
    %134 = vector.broadcast %cst_31 : f32 to vector<1x128xf32>
    %135 = arith.subf %134, %133 : vector<1x128xf32>
    %136 = vector.extract_strided_slice %10 {offsets = [0, 7], sizes = [32, 1], strides = [1, 1]} : vector<32x16xf32> to vector<32x1xf32>
    %137 = vector.extract_strided_slice %11 {offsets = [0, 7], sizes = [32, 1], strides = [1, 1]} : vector<32x16xf32> to vector<32x1xf32>
    %138 = vector.broadcast %136 : vector<32x1xf32> to vector<32x128xf32>
    %139 = vector.broadcast %135 : vector<1x128xf32> to vector<32x128xf32>
    %140 = arith.mulf %138, %139 : vector<32x128xf32>
    %cst_32 = arith.constant 1.000000e+00 : f32
    %141 = vector.broadcast %cst_32 : f32 to vector<32x128xf32>
    %142 = arith.subf %141, %140 : vector<32x128xf32>
    %143 = arith.mulf %126, %142 : vector<32x128xf32>
    %144 = vector.broadcast %137 : vector<32x1xf32> to vector<32x128xf32>
    %145 = vector.broadcast %133 : vector<1x128xf32> to vector<32x128xf32>
    %146 = arith.mulf %144, %145 : vector<32x128xf32>
    %cst_33 = arith.constant 1.000000e+00 : f32
    %147 = vector.broadcast %cst_33 : f32 to vector<32x128xf32>
    %148 = arith.subf %147, %146 : vector<32x128xf32>
    %149 = arith.mulf %132, %148 : vector<32x128xf32>
    %150 = vector.extract_strided_slice %9 {offsets = [8, 0], sizes = [1, 128], strides = [1, 1]} : vector<16x128xf32> to vector<1x128xf32>
    %cst_34 = arith.constant 1.000000e+00 : f32
    %151 = vector.broadcast %cst_34 : f32 to vector<1x128xf32>
    %152 = arith.subf %151, %150 : vector<1x128xf32>
    %153 = vector.extract_strided_slice %10 {offsets = [0, 8], sizes = [32, 1], strides = [1, 1]} : vector<32x16xf32> to vector<32x1xf32>
    %154 = vector.extract_strided_slice %11 {offsets = [0, 8], sizes = [32, 1], strides = [1, 1]} : vector<32x16xf32> to vector<32x1xf32>
    %155 = vector.broadcast %153 : vector<32x1xf32> to vector<32x128xf32>
    %156 = vector.broadcast %152 : vector<1x128xf32> to vector<32x128xf32>
    %157 = arith.mulf %155, %156 : vector<32x128xf32>
    %cst_35 = arith.constant 1.000000e+00 : f32
    %158 = vector.broadcast %cst_35 : f32 to vector<32x128xf32>
    %159 = arith.subf %158, %157 : vector<32x128xf32>
    %160 = arith.mulf %143, %159 : vector<32x128xf32>
    %161 = vector.broadcast %154 : vector<32x1xf32> to vector<32x128xf32>
    %162 = vector.broadcast %150 : vector<1x128xf32> to vector<32x128xf32>
    %163 = arith.mulf %161, %162 : vector<32x128xf32>
    %cst_36 = arith.constant 1.000000e+00 : f32
    %164 = vector.broadcast %cst_36 : f32 to vector<32x128xf32>
    %165 = arith.subf %164, %163 : vector<32x128xf32>
    %166 = arith.mulf %149, %165 : vector<32x128xf32>
    %167 = vector.extract_strided_slice %9 {offsets = [9, 0], sizes = [1, 128], strides = [1, 1]} : vector<16x128xf32> to vector<1x128xf32>
    %cst_37 = arith.constant 1.000000e+00 : f32
    %168 = vector.broadcast %cst_37 : f32 to vector<1x128xf32>
    %169 = arith.subf %168, %167 : vector<1x128xf32>
    %170 = vector.extract_strided_slice %10 {offsets = [0, 9], sizes = [32, 1], strides = [1, 1]} : vector<32x16xf32> to vector<32x1xf32>
    %171 = vector.extract_strided_slice %11 {offsets = [0, 9], sizes = [32, 1], strides = [1, 1]} : vector<32x16xf32> to vector<32x1xf32>
    %172 = vector.broadcast %170 : vector<32x1xf32> to vector<32x128xf32>
    %173 = vector.broadcast %169 : vector<1x128xf32> to vector<32x128xf32>
    %174 = arith.mulf %172, %173 : vector<32x128xf32>
    %cst_38 = arith.constant 1.000000e+00 : f32
    %175 = vector.broadcast %cst_38 : f32 to vector<32x128xf32>
    %176 = arith.subf %175, %174 : vector<32x128xf32>
    %177 = arith.mulf %160, %176 : vector<32x128xf32>
    %178 = vector.broadcast %171 : vector<32x1xf32> to vector<32x128xf32>
    %179 = vector.broadcast %167 : vector<1x128xf32> to vector<32x128xf32>
    %180 = arith.mulf %178, %179 : vector<32x128xf32>
    %cst_39 = arith.constant 1.000000e+00 : f32
    %181 = vector.broadcast %cst_39 : f32 to vector<32x128xf32>
    %182 = arith.subf %181, %180 : vector<32x128xf32>
    %183 = arith.mulf %166, %182 : vector<32x128xf32>
    %184 = vector.extract_strided_slice %9 {offsets = [10, 0], sizes = [1, 128], strides = [1, 1]} : vector<16x128xf32> to vector<1x128xf32>
    %cst_40 = arith.constant 1.000000e+00 : f32
    %185 = vector.broadcast %cst_40 : f32 to vector<1x128xf32>
    %186 = arith.subf %185, %184 : vector<1x128xf32>
    %187 = vector.extract_strided_slice %10 {offsets = [0, 10], sizes = [32, 1], strides = [1, 1]} : vector<32x16xf32> to vector<32x1xf32>
    %188 = vector.extract_strided_slice %11 {offsets = [0, 10], sizes = [32, 1], strides = [1, 1]} : vector<32x16xf32> to vector<32x1xf32>
    %189 = vector.broadcast %187 : vector<32x1xf32> to vector<32x128xf32>
    %190 = vector.broadcast %186 : vector<1x128xf32> to vector<32x128xf32>
    %191 = arith.mulf %189, %190 : vector<32x128xf32>
    %cst_41 = arith.constant 1.000000e+00 : f32
    %192 = vector.broadcast %cst_41 : f32 to vector<32x128xf32>
    %193 = arith.subf %192, %191 : vector<32x128xf32>
    %194 = arith.mulf %177, %193 : vector<32x128xf32>
    %195 = vector.broadcast %188 : vector<32x1xf32> to vector<32x128xf32>
    %196 = vector.broadcast %184 : vector<1x128xf32> to vector<32x128xf32>
    %197 = arith.mulf %195, %196 : vector<32x128xf32>
    %cst_42 = arith.constant 1.000000e+00 : f32
    %198 = vector.broadcast %cst_42 : f32 to vector<32x128xf32>
    %199 = arith.subf %198, %197 : vector<32x128xf32>
    %200 = arith.mulf %183, %199 : vector<32x128xf32>
    %201 = vector.extract_strided_slice %9 {offsets = [11, 0], sizes = [1, 128], strides = [1, 1]} : vector<16x128xf32> to vector<1x128xf32>
    %cst_43 = arith.constant 1.000000e+00 : f32
    %202 = vector.broadcast %cst_43 : f32 to vector<1x128xf32>
    %203 = arith.subf %202, %201 : vector<1x128xf32>
    %204 = vector.extract_strided_slice %10 {offsets = [0, 11], sizes = [32, 1], strides = [1, 1]} : vector<32x16xf32> to vector<32x1xf32>
    %205 = vector.extract_strided_slice %11 {offsets = [0, 11], sizes = [32, 1], strides = [1, 1]} : vector<32x16xf32> to vector<32x1xf32>
    %206 = vector.broadcast %204 : vector<32x1xf32> to vector<32x128xf32>
    %207 = vector.broadcast %203 : vector<1x128xf32> to vector<32x128xf32>
    %208 = arith.mulf %206, %207 : vector<32x128xf32>
    %cst_44 = arith.constant 1.000000e+00 : f32
    %209 = vector.broadcast %cst_44 : f32 to vector<32x128xf32>
    %210 = arith.subf %209, %208 : vector<32x128xf32>
    %211 = arith.mulf %194, %210 : vector<32x128xf32>
    %212 = vector.broadcast %205 : vector<32x1xf32> to vector<32x128xf32>
    %213 = vector.broadcast %201 : vector<1x128xf32> to vector<32x128xf32>
    %214 = arith.mulf %212, %213 : vector<32x128xf32>
    %cst_45 = arith.constant 1.000000e+00 : f32
    %215 = vector.broadcast %cst_45 : f32 to vector<32x128xf32>
    %216 = arith.subf %215, %214 : vector<32x128xf32>
    %217 = arith.mulf %200, %216 : vector<32x128xf32>
    %218 = vector.extract_strided_slice %9 {offsets = [12, 0], sizes = [1, 128], strides = [1, 1]} : vector<16x128xf32> to vector<1x128xf32>
    %cst_46 = arith.constant 1.000000e+00 : f32
    %219 = vector.broadcast %cst_46 : f32 to vector<1x128xf32>
    %220 = arith.subf %219, %218 : vector<1x128xf32>
    %221 = vector.extract_strided_slice %10 {offsets = [0, 12], sizes = [32, 1], strides = [1, 1]} : vector<32x16xf32> to vector<32x1xf32>
    %222 = vector.extract_strided_slice %11 {offsets = [0, 12], sizes = [32, 1], strides = [1, 1]} : vector<32x16xf32> to vector<32x1xf32>
    %223 = vector.broadcast %221 : vector<32x1xf32> to vector<32x128xf32>
    %224 = vector.broadcast %220 : vector<1x128xf32> to vector<32x128xf32>
    %225 = arith.mulf %223, %224 : vector<32x128xf32>
    %cst_47 = arith.constant 1.000000e+00 : f32
    %226 = vector.broadcast %cst_47 : f32 to vector<32x128xf32>
    %227 = arith.subf %226, %225 : vector<32x128xf32>
    %228 = arith.mulf %211, %227 : vector<32x128xf32>
    %229 = vector.broadcast %222 : vector<32x1xf32> to vector<32x128xf32>
    %230 = vector.broadcast %218 : vector<1x128xf32> to vector<32x128xf32>
    %231 = arith.mulf %229, %230 : vector<32x128xf32>
    %cst_48 = arith.constant 1.000000e+00 : f32
    %232 = vector.broadcast %cst_48 : f32 to vector<32x128xf32>
    %233 = arith.subf %232, %231 : vector<32x128xf32>
    %234 = arith.mulf %217, %233 : vector<32x128xf32>
    %235 = vector.extract_strided_slice %9 {offsets = [13, 0], sizes = [1, 128], strides = [1, 1]} : vector<16x128xf32> to vector<1x128xf32>
    %cst_49 = arith.constant 1.000000e+00 : f32
    %236 = vector.broadcast %cst_49 : f32 to vector<1x128xf32>
    %237 = arith.subf %236, %235 : vector<1x128xf32>
    %238 = vector.extract_strided_slice %10 {offsets = [0, 13], sizes = [32, 1], strides = [1, 1]} : vector<32x16xf32> to vector<32x1xf32>
    %239 = vector.extract_strided_slice %11 {offsets = [0, 13], sizes = [32, 1], strides = [1, 1]} : vector<32x16xf32> to vector<32x1xf32>
    %240 = vector.broadcast %238 : vector<32x1xf32> to vector<32x128xf32>
    %241 = vector.broadcast %237 : vector<1x128xf32> to vector<32x128xf32>
    %242 = arith.mulf %240, %241 : vector<32x128xf32>
    %cst_50 = arith.constant 1.000000e+00 : f32
    %243 = vector.broadcast %cst_50 : f32 to vector<32x128xf32>
    %244 = arith.subf %243, %242 : vector<32x128xf32>
    %245 = arith.mulf %228, %244 : vector<32x128xf32>
    %246 = vector.broadcast %239 : vector<32x1xf32> to vector<32x128xf32>
    %247 = vector.broadcast %235 : vector<1x128xf32> to vector<32x128xf32>
    %248 = arith.mulf %246, %247 : vector<32x128xf32>
    %cst_51 = arith.constant 1.000000e+00 : f32
    %249 = vector.broadcast %cst_51 : f32 to vector<32x128xf32>
    %250 = arith.subf %249, %248 : vector<32x128xf32>
    %251 = arith.mulf %234, %250 : vector<32x128xf32>
    %252 = vector.extract_strided_slice %9 {offsets = [14, 0], sizes = [1, 128], strides = [1, 1]} : vector<16x128xf32> to vector<1x128xf32>
    %cst_52 = arith.constant 1.000000e+00 : f32
    %253 = vector.broadcast %cst_52 : f32 to vector<1x128xf32>
    %254 = arith.subf %253, %252 : vector<1x128xf32>
    %255 = vector.extract_strided_slice %10 {offsets = [0, 14], sizes = [32, 1], strides = [1, 1]} : vector<32x16xf32> to vector<32x1xf32>
    %256 = vector.extract_strided_slice %11 {offsets = [0, 14], sizes = [32, 1], strides = [1, 1]} : vector<32x16xf32> to vector<32x1xf32>
    %257 = vector.broadcast %255 : vector<32x1xf32> to vector<32x128xf32>
    %258 = vector.broadcast %254 : vector<1x128xf32> to vector<32x128xf32>
    %259 = arith.mulf %257, %258 : vector<32x128xf32>
    %cst_53 = arith.constant 1.000000e+00 : f32
    %260 = vector.broadcast %cst_53 : f32 to vector<32x128xf32>
    %261 = arith.subf %260, %259 : vector<32x128xf32>
    %262 = arith.mulf %245, %261 : vector<32x128xf32>
    %263 = vector.broadcast %256 : vector<32x1xf32> to vector<32x128xf32>
    %264 = vector.broadcast %252 : vector<1x128xf32> to vector<32x128xf32>
    %265 = arith.mulf %263, %264 : vector<32x128xf32>
    %cst_54 = arith.constant 1.000000e+00 : f32
    %266 = vector.broadcast %cst_54 : f32 to vector<32x128xf32>
    %267 = arith.subf %266, %265 : vector<32x128xf32>
    %268 = arith.mulf %251, %267 : vector<32x128xf32>
    %269 = vector.extract_strided_slice %9 {offsets = [15, 0], sizes = [1, 128], strides = [1, 1]} : vector<16x128xf32> to vector<1x128xf32>
    %cst_55 = arith.constant 1.000000e+00 : f32
    %270 = vector.broadcast %cst_55 : f32 to vector<1x128xf32>
    %271 = arith.subf %270, %269 : vector<1x128xf32>
    %272 = vector.extract_strided_slice %10 {offsets = [0, 15], sizes = [32, 1], strides = [1, 1]} : vector<32x16xf32> to vector<32x1xf32>
    %273 = vector.extract_strided_slice %11 {offsets = [0, 15], sizes = [32, 1], strides = [1, 1]} : vector<32x16xf32> to vector<32x1xf32>
    %274 = vector.broadcast %272 : vector<32x1xf32> to vector<32x128xf32>
    %275 = vector.broadcast %271 : vector<1x128xf32> to vector<32x128xf32>
    %276 = arith.mulf %274, %275 : vector<32x128xf32>
    %cst_56 = arith.constant 1.000000e+00 : f32
    %277 = vector.broadcast %cst_56 : f32 to vector<32x128xf32>
    %278 = arith.subf %277, %276 : vector<32x128xf32>
    %279 = arith.mulf %262, %278 : vector<32x128xf32>
    %280 = vector.broadcast %273 : vector<32x1xf32> to vector<32x128xf32>
    %281 = vector.broadcast %269 : vector<1x128xf32> to vector<32x128xf32>
    %282 = arith.mulf %280, %281 : vector<32x128xf32>
    %cst_57 = arith.constant 1.000000e+00 : f32
    %283 = vector.broadcast %cst_57 : f32 to vector<32x128xf32>
    %284 = arith.subf %283, %282 : vector<32x128xf32>
    %285 = arith.mulf %268, %284 : vector<32x128xf32>
    %c0_58 = arith.constant 0 : index
    %c0_59 = arith.constant 0 : index
    %286 = vector.load %arg5[%c0_58, %c0_59] : memref<32x1xf32, #tpu.memory_space<vmem>>, vector<32x1xf32>
    %cst_60 = arith.constant 1.000000e+00 : f32
    %287 = vector.broadcast %cst_60 : f32 to vector<32x1xf32>
    %288 = arith.subf %287, %286 : vector<32x1xf32>
    %289 = vector.broadcast %288 : vector<32x1xf32> to vector<32x128xf32>
    %290 = arith.mulf %289, %279 : vector<32x128xf32>
    %cst_61 = arith.constant 1.000000e+00 : f32
    %291 = vector.broadcast %cst_61 : f32 to vector<32x128xf32>
    %292 = arith.subf %291, %285 : vector<32x128xf32>
    %293 = vector.broadcast %286 : vector<32x1xf32> to vector<32x128xf32>
    %294 = arith.mulf %293, %292 : vector<32x128xf32>
    %295 = arith.addf %290, %294 : vector<32x128xf32>
    %c0_62 = arith.constant 0 : index
    %c0_63 = arith.constant 0 : index
    %296 = vector.load %arg6[%c0_62, %c0_63] : memref<32x128xf32, #tpu.memory_space<vmem>>, vector<32x128xf32>
    tpu.vector_store %arg6[%c0_62, %c0_63], %295 {strides = array<i32>} : memref<32x128xf32, #tpu.memory_space<vmem>>, vector<32x128xf32>,
    return
  }
  func.func @transform_0(%arg0: i32) -> (i32, i32) {
    %c0_i32 = arith.constant 0 : i32
    %c0_i32_0 = arith.constant 0 : i32
    return %c0_i32, %arg0 : i32, i32
  }
  func.func @transform_1(%arg0: i32) -> (i32, i32) {
    %c0_i32 = arith.constant 0 : i32
    %c0_i32_0 = arith.constant 0 : i32
    %c0_i32_1 = arith.constant 0 : i32
    return %c0_i32, %c0_i32_0 : i32, i32
  }
  func.func @transform_2(%arg0: i32) -> (i32, i32) {
    %c0_i32 = arith.constant 0 : i32
    %c0_i32_0 = arith.constant 0 : i32
    %c0_i32_1 = arith.constant 0 : i32
    return %c0_i32, %c0_i32_0 : i32, i32
  }
  func.func @transform_3(%arg0: i32) -> (i32, i32) {
    %c0_i32 = arith.constant 0 : i32
    %c0_i32_0 = arith.constant 0 : i32
    %c0_i32_1 = arith.constant 0 : i32
    return %c0_i32, %c0_i32_0 : i32, i32
  }
  func.func @transform_4(%arg0: i32) -> (i32, i32) {
    %c0_i32 = arith.constant 0 : i32
    %c0_i32_0 = arith.constant 0 : i32
    %c0_i32_1 = arith.constant 0 : i32
    return %c0_i32, %c0_i32_0 : i32, i32
  }
  func.func @transform_5(%arg0: i32) -> (i32, i32) {
    %c0_i32 = arith.constant 0 : i32
    %c0_i32_0 = arith.constant 0 : i32
    return %c0_i32, %arg0 : i32, i32
  }
}

module attributes {stable_mosaic.version = 11 : i64} {
  func.func @nlrl_kernel(%arg0: i32, %arg1: memref<32x128xf32, #tpu.memory_space<vmem>>, %arg2: memref<32x32xf32, #tpu.memory_space<vmem>>, %arg3: memref<32x32xf32, #tpu.memory_space<vmem>>, %arg4: memref<32x1xf32, #tpu.memory_space<vmem>>, %arg5: memref<32x1xf32, #tpu.memory_space<vmem>>, %arg6: memref<32x128xf32, #tpu.memory_space<vmem>>) attributes {dimension_semantics = [#tpu.dimension_semantics<parallel>], iteration_bounds = array<i64: 2>, scalar_prefetch = 0 : i64, scratch_operands = 0 : i64, tpu.core_type = #tpu.core_type<tc>, window_params = [{transform_indices = @transform_0, window_bounds = array<i64: 32, 128>}, {pipeline_mode = #tpu.pipeline_mode<synchronous>, transform_indices = @transform_1, window_bounds = array<i64: 32, 32>}, {pipeline_mode = #tpu.pipeline_mode<synchronous>, transform_indices = @transform_2, window_bounds = array<i64: 32, 32>}, {pipeline_mode = #tpu.pipeline_mode<synchronous>, transform_indices = @transform_3, window_bounds = array<i64: 32, 1>}, {pipeline_mode = #tpu.pipeline_mode<synchronous>, transform_indices = @transform_4, window_bounds = array<i64: 32, 1>}, {transform_indices = @transform_5, window_bounds = array<i64: 32, 128>}]} {
    %c0 = arith.constant 0 : index
    %c0_0 = arith.constant 0 : index
    %0 = vector.load %arg1[%c0, %c0_0] : memref<32x128xf32, #tpu.memory_space<vmem>>, vector<32x128xf32>
    %c0_1 = arith.constant 0 : index
    %c0_2 = arith.constant 0 : index
    %1 = vector.load %arg4[%c0_1, %c0_2] : memref<32x1xf32, #tpu.memory_space<vmem>>, vector<32x1xf32>
    %cst = arith.constant 2.000000e+00 : f32
    %2 = vector.broadcast %cst : f32 to vector<32x1xf32>
    %3 = arith.mulf %2, %1 : vector<32x1xf32>
    %cst_3 = arith.constant 1.000000e+00 : f32
    %4 = vector.broadcast %cst_3 : f32 to vector<32x1xf32>
    %5 = arith.subf %4, %3 : vector<32x1xf32>
    %6 = vector.broadcast %5 : vector<32x1xf32> to vector<32x128xf32>
    %7 = arith.mulf %6, %0 : vector<32x128xf32>
    %8 = vector.broadcast %1 : vector<32x1xf32> to vector<32x128xf32>
    %9 = arith.addf %8, %7 : vector<32x128xf32>
    %c0_4 = arith.constant 0 : index
    %c0_5 = arith.constant 0 : index
    %10 = vector.load %arg2[%c0_4, %c0_5] : memref<32x32xf32, #tpu.memory_space<vmem>>, vector<32x32xf32>
    %c0_6 = arith.constant 0 : index
    %c0_7 = arith.constant 0 : index
    %11 = vector.load %arg3[%c0_6, %c0_7] : memref<32x32xf32, #tpu.memory_space<vmem>>, vector<32x32xf32>
    %cst_8 = arith.constant 1.000000e+00 : f32
    %12 = vector.broadcast %cst_8 : f32 to vector<32x128xf32>
    %cst_9 = arith.constant 1.000000e+00 : f32
    %13 = vector.broadcast %cst_9 : f32 to vector<32x128xf32>
    %14 = vector.extract_strided_slice %9 {offsets = [0, 0], sizes = [1, 128], strides = [1, 1]} : vector<32x128xf32> to vector<1x128xf32>
    %cst_10 = arith.constant 1.000000e+00 : f32
    %15 = vector.broadcast %cst_10 : f32 to vector<1x128xf32>
    %16 = arith.subf %15, %14 : vector<1x128xf32>
    %17 = vector.extract_strided_slice %10 {offsets = [0, 0], sizes = [32, 1], strides = [1, 1]} : vector<32x32xf32> to vector<32x1xf32>
    %18 = vector.extract_strided_slice %11 {offsets = [0, 0], sizes = [32, 1], strides = [1, 1]} : vector<32x32xf32> to vector<32x1xf32>
    %19 = vector.broadcast %17 : vector<32x1xf32> to vector<32x128xf32>
    %20 = vector.broadcast %16 : vector<1x128xf32> to vector<32x128xf32>
    %21 = arith.mulf %19, %20 : vector<32x128xf32>
    %cst_11 = arith.constant 1.000000e+00 : f32
    %22 = vector.broadcast %cst_11 : f32 to vector<32x128xf32>
    %23 = arith.subf %22, %21 : vector<32x128xf32>
    %24 = arith.mulf %12, %23 : vector<32x128xf32>
    %25 = vector.broadcast %18 : vector<32x1xf32> to vector<32x128xf32>
    %26 = vector.broadcast %14 : vector<1x128xf32> to vector<32x128xf32>
    %27 = arith.mulf %25, %26 : vector<32x128xf32>
    %cst_12 = arith.constant 1.000000e+00 : f32
    %28 = vector.broadcast %cst_12 : f32 to vector<32x128xf32>
    %29 = arith.subf %28, %27 : vector<32x128xf32>
    %30 = arith.mulf %13, %29 : vector<32x128xf32>
    %31 = vector.extract_strided_slice %9 {offsets = [1, 0], sizes = [1, 128], strides = [1, 1]} : vector<32x128xf32> to vector<1x128xf32>
    %cst_13 = arith.constant 1.000000e+00 : f32
    %32 = vector.broadcast %cst_13 : f32 to vector<1x128xf32>
    %33 = arith.subf %32, %31 : vector<1x128xf32>
    %34 = vector.extract_strided_slice %10 {offsets = [0, 1], sizes = [32, 1], strides = [1, 1]} : vector<32x32xf32> to vector<32x1xf32>
    %35 = vector.extract_strided_slice %11 {offsets = [0, 1], sizes = [32, 1], strides = [1, 1]} : vector<32x32xf32> to vector<32x1xf32>
    %36 = vector.broadcast %34 : vector<32x1xf32> to vector<32x128xf32>
    %37 = vector.broadcast %33 : vector<1x128xf32> to vector<32x128xf32>
    %38 = arith.mulf %36, %37 : vector<32x128xf32>
    %cst_14 = arith.constant 1.000000e+00 : f32
    %39 = vector.broadcast %cst_14 : f32 to vector<32x128xf32>
    %40 = arith.subf %39, %38 : vector<32x128xf32>
    %41 = arith.mulf %24, %40 : vector<32x128xf32>
    %42 = vector.broadcast %35 : vector<32x1xf32> to vector<32x128xf32>
    %43 = vector.broadcast %31 : vector<1x128xf32> to vector<32x128xf32>
    %44 = arith.mulf %42, %43 : vector<32x128xf32>
    %cst_15 = arith.constant 1.000000e+00 : f32
    %45 = vector.broadcast %cst_15 : f32 to vector<32x128xf32>
    %46 = arith.subf %45, %44 : vector<32x128xf32>
    %47 = arith.mulf %30, %46 : vector<32x128xf32>
    %48 = vector.extract_strided_slice %9 {offsets = [2, 0], sizes = [1, 128], strides = [1, 1]} : vector<32x128xf32> to vector<1x128xf32>
    %cst_16 = arith.constant 1.000000e+00 : f32
    %49 = vector.broadcast %cst_16 : f32 to vector<1x128xf32>
    %50 = arith.subf %49, %48 : vector<1x128xf32>
    %51 = vector.extract_strided_slice %10 {offsets = [0, 2], sizes = [32, 1], strides = [1, 1]} : vector<32x32xf32> to vector<32x1xf32>
    %52 = vector.extract_strided_slice %11 {offsets = [0, 2], sizes = [32, 1], strides = [1, 1]} : vector<32x32xf32> to vector<32x1xf32>
    %53 = vector.broadcast %51 : vector<32x1xf32> to vector<32x128xf32>
    %54 = vector.broadcast %50 : vector<1x128xf32> to vector<32x128xf32>
    %55 = arith.mulf %53, %54 : vector<32x128xf32>
    %cst_17 = arith.constant 1.000000e+00 : f32
    %56 = vector.broadcast %cst_17 : f32 to vector<32x128xf32>
    %57 = arith.subf %56, %55 : vector<32x128xf32>
    %58 = arith.mulf %41, %57 : vector<32x128xf32>
    %59 = vector.broadcast %52 : vector<32x1xf32> to vector<32x128xf32>
    %60 = vector.broadcast %48 : vector<1x128xf32> to vector<32x128xf32>
    %61 = arith.mulf %59, %60 : vector<32x128xf32>
    %cst_18 = arith.constant 1.000000e+00 : f32
    %62 = vector.broadcast %cst_18 : f32 to vector<32x128xf32>
    %63 = arith.subf %62, %61 : vector<32x128xf32>
    %64 = arith.mulf %47, %63 : vector<32x128xf32>
    %65 = vector.extract_strided_slice %9 {offsets = [3, 0], sizes = [1, 128], strides = [1, 1]} : vector<32x128xf32> to vector<1x128xf32>
    %cst_19 = arith.constant 1.000000e+00 : f32
    %66 = vector.broadcast %cst_19 : f32 to vector<1x128xf32>
    %67 = arith.subf %66, %65 : vector<1x128xf32>
    %68 = vector.extract_strided_slice %10 {offsets = [0, 3], sizes = [32, 1], strides = [1, 1]} : vector<32x32xf32> to vector<32x1xf32>
    %69 = vector.extract_strided_slice %11 {offsets = [0, 3], sizes = [32, 1], strides = [1, 1]} : vector<32x32xf32> to vector<32x1xf32>
    %70 = vector.broadcast %68 : vector<32x1xf32> to vector<32x128xf32>
    %71 = vector.broadcast %67 : vector<1x128xf32> to vector<32x128xf32>
    %72 = arith.mulf %70, %71 : vector<32x128xf32>
    %cst_20 = arith.constant 1.000000e+00 : f32
    %73 = vector.broadcast %cst_20 : f32 to vector<32x128xf32>
    %74 = arith.subf %73, %72 : vector<32x128xf32>
    %75 = arith.mulf %58, %74 : vector<32x128xf32>
    %76 = vector.broadcast %69 : vector<32x1xf32> to vector<32x128xf32>
    %77 = vector.broadcast %65 : vector<1x128xf32> to vector<32x128xf32>
    %78 = arith.mulf %76, %77 : vector<32x128xf32>
    %cst_21 = arith.constant 1.000000e+00 : f32
    %79 = vector.broadcast %cst_21 : f32 to vector<32x128xf32>
    %80 = arith.subf %79, %78 : vector<32x128xf32>
    %81 = arith.mulf %64, %80 : vector<32x128xf32>
    %82 = vector.extract_strided_slice %9 {offsets = [4, 0], sizes = [1, 128], strides = [1, 1]} : vector<32x128xf32> to vector<1x128xf32>
    %cst_22 = arith.constant 1.000000e+00 : f32
    %83 = vector.broadcast %cst_22 : f32 to vector<1x128xf32>
    %84 = arith.subf %83, %82 : vector<1x128xf32>
    %85 = vector.extract_strided_slice %10 {offsets = [0, 4], sizes = [32, 1], strides = [1, 1]} : vector<32x32xf32> to vector<32x1xf32>
    %86 = vector.extract_strided_slice %11 {offsets = [0, 4], sizes = [32, 1], strides = [1, 1]} : vector<32x32xf32> to vector<32x1xf32>
    %87 = vector.broadcast %85 : vector<32x1xf32> to vector<32x128xf32>
    %88 = vector.broadcast %84 : vector<1x128xf32> to vector<32x128xf32>
    %89 = arith.mulf %87, %88 : vector<32x128xf32>
    %cst_23 = arith.constant 1.000000e+00 : f32
    %90 = vector.broadcast %cst_23 : f32 to vector<32x128xf32>
    %91 = arith.subf %90, %89 : vector<32x128xf32>
    %92 = arith.mulf %75, %91 : vector<32x128xf32>
    %93 = vector.broadcast %86 : vector<32x1xf32> to vector<32x128xf32>
    %94 = vector.broadcast %82 : vector<1x128xf32> to vector<32x128xf32>
    %95 = arith.mulf %93, %94 : vector<32x128xf32>
    %cst_24 = arith.constant 1.000000e+00 : f32
    %96 = vector.broadcast %cst_24 : f32 to vector<32x128xf32>
    %97 = arith.subf %96, %95 : vector<32x128xf32>
    %98 = arith.mulf %81, %97 : vector<32x128xf32>
    %99 = vector.extract_strided_slice %9 {offsets = [5, 0], sizes = [1, 128], strides = [1, 1]} : vector<32x128xf32> to vector<1x128xf32>
    %cst_25 = arith.constant 1.000000e+00 : f32
    %100 = vector.broadcast %cst_25 : f32 to vector<1x128xf32>
    %101 = arith.subf %100, %99 : vector<1x128xf32>
    %102 = vector.extract_strided_slice %10 {offsets = [0, 5], sizes = [32, 1], strides = [1, 1]} : vector<32x32xf32> to vector<32x1xf32>
    %103 = vector.extract_strided_slice %11 {offsets = [0, 5], sizes = [32, 1], strides = [1, 1]} : vector<32x32xf32> to vector<32x1xf32>
    %104 = vector.broadcast %102 : vector<32x1xf32> to vector<32x128xf32>
    %105 = vector.broadcast %101 : vector<1x128xf32> to vector<32x128xf32>
    %106 = arith.mulf %104, %105 : vector<32x128xf32>
    %cst_26 = arith.constant 1.000000e+00 : f32
    %107 = vector.broadcast %cst_26 : f32 to vector<32x128xf32>
    %108 = arith.subf %107, %106 : vector<32x128xf32>
    %109 = arith.mulf %92, %108 : vector<32x128xf32>
    %110 = vector.broadcast %103 : vector<32x1xf32> to vector<32x128xf32>
    %111 = vector.broadcast %99 : vector<1x128xf32> to vector<32x128xf32>
    %112 = arith.mulf %110, %111 : vector<32x128xf32>
    %cst_27 = arith.constant 1.000000e+00 : f32
    %113 = vector.broadcast %cst_27 : f32 to vector<32x128xf32>
    %114 = arith.subf %113, %112 : vector<32x128xf32>
    %115 = arith.mulf %98, %114 : vector<32x128xf32>
    %116 = vector.extract_strided_slice %9 {offsets = [6, 0], sizes = [1, 128], strides = [1, 1]} : vector<32x128xf32> to vector<1x128xf32>
    %cst_28 = arith.constant 1.000000e+00 : f32
    %117 = vector.broadcast %cst_28 : f32 to vector<1x128xf32>
    %118 = arith.subf %117, %116 : vector<1x128xf32>
    %119 = vector.extract_strided_slice %10 {offsets = [0, 6], sizes = [32, 1], strides = [1, 1]} : vector<32x32xf32> to vector<32x1xf32>
    %120 = vector.extract_strided_slice %11 {offsets = [0, 6], sizes = [32, 1], strides = [1, 1]} : vector<32x32xf32> to vector<32x1xf32>
    %121 = vector.broadcast %119 : vector<32x1xf32> to vector<32x128xf32>
    %122 = vector.broadcast %118 : vector<1x128xf32> to vector<32x128xf32>
    %123 = arith.mulf %121, %122 : vector<32x128xf32>
    %cst_29 = arith.constant 1.000000e+00 : f32
    %124 = vector.broadcast %cst_29 : f32 to vector<32x128xf32>
    %125 = arith.subf %124, %123 : vector<32x128xf32>
    %126 = arith.mulf %109, %125 : vector<32x128xf32>
    %127 = vector.broadcast %120 : vector<32x1xf32> to vector<32x128xf32>
    %128 = vector.broadcast %116 : vector<1x128xf32> to vector<32x128xf32>
    %129 = arith.mulf %127, %128 : vector<32x128xf32>
    %cst_30 = arith.constant 1.000000e+00 : f32
    %130 = vector.broadcast %cst_30 : f32 to vector<32x128xf32>
    %131 = arith.subf %130, %129 : vector<32x128xf32>
    %132 = arith.mulf %115, %131 : vector<32x128xf32>
    %133 = vector.extract_strided_slice %9 {offsets = [7, 0], sizes = [1, 128], strides = [1, 1]} : vector<32x128xf32> to vector<1x128xf32>
    %cst_31 = arith.constant 1.000000e+00 : f32
    %134 = vector.broadcast %cst_31 : f32 to vector<1x128xf32>
    %135 = arith.subf %134, %133 : vector<1x128xf32>
    %136 = vector.extract_strided_slice %10 {offsets = [0, 7], sizes = [32, 1], strides = [1, 1]} : vector<32x32xf32> to vector<32x1xf32>
    %137 = vector.extract_strided_slice %11 {offsets = [0, 7], sizes = [32, 1], strides = [1, 1]} : vector<32x32xf32> to vector<32x1xf32>
    %138 = vector.broadcast %136 : vector<32x1xf32> to vector<32x128xf32>
    %139 = vector.broadcast %135 : vector<1x128xf32> to vector<32x128xf32>
    %140 = arith.mulf %138, %139 : vector<32x128xf32>
    %cst_32 = arith.constant 1.000000e+00 : f32
    %141 = vector.broadcast %cst_32 : f32 to vector<32x128xf32>
    %142 = arith.subf %141, %140 : vector<32x128xf32>
    %143 = arith.mulf %126, %142 : vector<32x128xf32>
    %144 = vector.broadcast %137 : vector<32x1xf32> to vector<32x128xf32>
    %145 = vector.broadcast %133 : vector<1x128xf32> to vector<32x128xf32>
    %146 = arith.mulf %144, %145 : vector<32x128xf32>
    %cst_33 = arith.constant 1.000000e+00 : f32
    %147 = vector.broadcast %cst_33 : f32 to vector<32x128xf32>
    %148 = arith.subf %147, %146 : vector<32x128xf32>
    %149 = arith.mulf %132, %148 : vector<32x128xf32>
    %150 = vector.extract_strided_slice %9 {offsets = [8, 0], sizes = [1, 128], strides = [1, 1]} : vector<32x128xf32> to vector<1x128xf32>
    %cst_34 = arith.constant 1.000000e+00 : f32
    %151 = vector.broadcast %cst_34 : f32 to vector<1x128xf32>
    %152 = arith.subf %151, %150 : vector<1x128xf32>
    %153 = vector.extract_strided_slice %10 {offsets = [0, 8], sizes = [32, 1], strides = [1, 1]} : vector<32x32xf32> to vector<32x1xf32>
    %154 = vector.extract_strided_slice %11 {offsets = [0, 8], sizes = [32, 1], strides = [1, 1]} : vector<32x32xf32> to vector<32x1xf32>
    %155 = vector.broadcast %153 : vector<32x1xf32> to vector<32x128xf32>
    %156 = vector.broadcast %152 : vector<1x128xf32> to vector<32x128xf32>
    %157 = arith.mulf %155, %156 : vector<32x128xf32>
    %cst_35 = arith.constant 1.000000e+00 : f32
    %158 = vector.broadcast %cst_35 : f32 to vector<32x128xf32>
    %159 = arith.subf %158, %157 : vector<32x128xf32>
    %160 = arith.mulf %143, %159 : vector<32x128xf32>
    %161 = vector.broadcast %154 : vector<32x1xf32> to vector<32x128xf32>
    %162 = vector.broadcast %150 : vector<1x128xf32> to vector<32x128xf32>
    %163 = arith.mulf %161, %162 : vector<32x128xf32>
    %cst_36 = arith.constant 1.000000e+00 : f32
    %164 = vector.broadcast %cst_36 : f32 to vector<32x128xf32>
    %165 = arith.subf %164, %163 : vector<32x128xf32>
    %166 = arith.mulf %149, %165 : vector<32x128xf32>
    %167 = vector.extract_strided_slice %9 {offsets = [9, 0], sizes = [1, 128], strides = [1, 1]} : vector<32x128xf32> to vector<1x128xf32>
    %cst_37 = arith.constant 1.000000e+00 : f32
    %168 = vector.broadcast %cst_37 : f32 to vector<1x128xf32>
    %169 = arith.subf %168, %167 : vector<1x128xf32>
    %170 = vector.extract_strided_slice %10 {offsets = [0, 9], sizes = [32, 1], strides = [1, 1]} : vector<32x32xf32> to vector<32x1xf32>
    %171 = vector.extract_strided_slice %11 {offsets = [0, 9], sizes = [32, 1], strides = [1, 1]} : vector<32x32xf32> to vector<32x1xf32>
    %172 = vector.broadcast %170 : vector<32x1xf32> to vector<32x128xf32>
    %173 = vector.broadcast %169 : vector<1x128xf32> to vector<32x128xf32>
    %174 = arith.mulf %172, %173 : vector<32x128xf32>
    %cst_38 = arith.constant 1.000000e+00 : f32
    %175 = vector.broadcast %cst_38 : f32 to vector<32x128xf32>
    %176 = arith.subf %175, %174 : vector<32x128xf32>
    %177 = arith.mulf %160, %176 : vector<32x128xf32>
    %178 = vector.broadcast %171 : vector<32x1xf32> to vector<32x128xf32>
    %179 = vector.broadcast %167 : vector<1x128xf32> to vector<32x128xf32>
    %180 = arith.mulf %178, %179 : vector<32x128xf32>
    %cst_39 = arith.constant 1.000000e+00 : f32
    %181 = vector.broadcast %cst_39 : f32 to vector<32x128xf32>
    %182 = arith.subf %181, %180 : vector<32x128xf32>
    %183 = arith.mulf %166, %182 : vector<32x128xf32>
    %184 = vector.extract_strided_slice %9 {offsets = [10, 0], sizes = [1, 128], strides = [1, 1]} : vector<32x128xf32> to vector<1x128xf32>
    %cst_40 = arith.constant 1.000000e+00 : f32
    %185 = vector.broadcast %cst_40 : f32 to vector<1x128xf32>
    %186 = arith.subf %185, %184 : vector<1x128xf32>
    %187 = vector.extract_strided_slice %10 {offsets = [0, 10], sizes = [32, 1], strides = [1, 1]} : vector<32x32xf32> to vector<32x1xf32>
    %188 = vector.extract_strided_slice %11 {offsets = [0, 10], sizes = [32, 1], strides = [1, 1]} : vector<32x32xf32> to vector<32x1xf32>
    %189 = vector.broadcast %187 : vector<32x1xf32> to vector<32x128xf32>
    %190 = vector.broadcast %186 : vector<1x128xf32> to vector<32x128xf32>
    %191 = arith.mulf %189, %190 : vector<32x128xf32>
    %cst_41 = arith.constant 1.000000e+00 : f32
    %192 = vector.broadcast %cst_41 : f32 to vector<32x128xf32>
    %193 = arith.subf %192, %191 : vector<32x128xf32>
    %194 = arith.mulf %177, %193 : vector<32x128xf32>
    %195 = vector.broadcast %188 : vector<32x1xf32> to vector<32x128xf32>
    %196 = vector.broadcast %184 : vector<1x128xf32> to vector<32x128xf32>
    %197 = arith.mulf %195, %196 : vector<32x128xf32>
    %cst_42 = arith.constant 1.000000e+00 : f32
    %198 = vector.broadcast %cst_42 : f32 to vector<32x128xf32>
    %199 = arith.subf %198, %197 : vector<32x128xf32>
    %200 = arith.mulf %183, %199 : vector<32x128xf32>
    %201 = vector.extract_strided_slice %9 {offsets = [11, 0], sizes = [1, 128], strides = [1, 1]} : vector<32x128xf32> to vector<1x128xf32>
    %cst_43 = arith.constant 1.000000e+00 : f32
    %202 = vector.broadcast %cst_43 : f32 to vector<1x128xf32>
    %203 = arith.subf %202, %201 : vector<1x128xf32>
    %204 = vector.extract_strided_slice %10 {offsets = [0, 11], sizes = [32, 1], strides = [1, 1]} : vector<32x32xf32> to vector<32x1xf32>
    %205 = vector.extract_strided_slice %11 {offsets = [0, 11], sizes = [32, 1], strides = [1, 1]} : vector<32x32xf32> to vector<32x1xf32>
    %206 = vector.broadcast %204 : vector<32x1xf32> to vector<32x128xf32>
    %207 = vector.broadcast %203 : vector<1x128xf32> to vector<32x128xf32>
    %208 = arith.mulf %206, %207 : vector<32x128xf32>
    %cst_44 = arith.constant 1.000000e+00 : f32
    %209 = vector.broadcast %cst_44 : f32 to vector<32x128xf32>
    %210 = arith.subf %209, %208 : vector<32x128xf32>
    %211 = arith.mulf %194, %210 : vector<32x128xf32>
    %212 = vector.broadcast %205 : vector<32x1xf32> to vector<32x128xf32>
    %213 = vector.broadcast %201 : vector<1x128xf32> to vector<32x128xf32>
    %214 = arith.mulf %212, %213 : vector<32x128xf32>
    %cst_45 = arith.constant 1.000000e+00 : f32
    %215 = vector.broadcast %cst_45 : f32 to vector<32x128xf32>
    %216 = arith.subf %215, %214 : vector<32x128xf32>
    %217 = arith.mulf %200, %216 : vector<32x128xf32>
    %218 = vector.extract_strided_slice %9 {offsets = [12, 0], sizes = [1, 128], strides = [1, 1]} : vector<32x128xf32> to vector<1x128xf32>
    %cst_46 = arith.constant 1.000000e+00 : f32
    %219 = vector.broadcast %cst_46 : f32 to vector<1x128xf32>
    %220 = arith.subf %219, %218 : vector<1x128xf32>
    %221 = vector.extract_strided_slice %10 {offsets = [0, 12], sizes = [32, 1], strides = [1, 1]} : vector<32x32xf32> to vector<32x1xf32>
    %222 = vector.extract_strided_slice %11 {offsets = [0, 12], sizes = [32, 1], strides = [1, 1]} : vector<32x32xf32> to vector<32x1xf32>
    %223 = vector.broadcast %221 : vector<32x1xf32> to vector<32x128xf32>
    %224 = vector.broadcast %220 : vector<1x128xf32> to vector<32x128xf32>
    %225 = arith.mulf %223, %224 : vector<32x128xf32>
    %cst_47 = arith.constant 1.000000e+00 : f32
    %226 = vector.broadcast %cst_47 : f32 to vector<32x128xf32>
    %227 = arith.subf %226, %225 : vector<32x128xf32>
    %228 = arith.mulf %211, %227 : vector<32x128xf32>
    %229 = vector.broadcast %222 : vector<32x1xf32> to vector<32x128xf32>
    %230 = vector.broadcast %218 : vector<1x128xf32> to vector<32x128xf32>
    %231 = arith.mulf %229, %230 : vector<32x128xf32>
    %cst_48 = arith.constant 1.000000e+00 : f32
    %232 = vector.broadcast %cst_48 : f32 to vector<32x128xf32>
    %233 = arith.subf %232, %231 : vector<32x128xf32>
    %234 = arith.mulf %217, %233 : vector<32x128xf32>
    %235 = vector.extract_strided_slice %9 {offsets = [13, 0], sizes = [1, 128], strides = [1, 1]} : vector<32x128xf32> to vector<1x128xf32>
    %cst_49 = arith.constant 1.000000e+00 : f32
    %236 = vector.broadcast %cst_49 : f32 to vector<1x128xf32>
    %237 = arith.subf %236, %235 : vector<1x128xf32>
    %238 = vector.extract_strided_slice %10 {offsets = [0, 13], sizes = [32, 1], strides = [1, 1]} : vector<32x32xf32> to vector<32x1xf32>
    %239 = vector.extract_strided_slice %11 {offsets = [0, 13], sizes = [32, 1], strides = [1, 1]} : vector<32x32xf32> to vector<32x1xf32>
    %240 = vector.broadcast %238 : vector<32x1xf32> to vector<32x128xf32>
    %241 = vector.broadcast %237 : vector<1x128xf32> to vector<32x128xf32>
    %242 = arith.mulf %240, %241 : vector<32x128xf32>
    %cst_50 = arith.constant 1.000000e+00 : f32
    %243 = vector.broadcast %cst_50 : f32 to vector<32x128xf32>
    %244 = arith.subf %243, %242 : vector<32x128xf32>
    %245 = arith.mulf %228, %244 : vector<32x128xf32>
    %246 = vector.broadcast %239 : vector<32x1xf32> to vector<32x128xf32>
    %247 = vector.broadcast %235 : vector<1x128xf32> to vector<32x128xf32>
    %248 = arith.mulf %246, %247 : vector<32x128xf32>
    %cst_51 = arith.constant 1.000000e+00 : f32
    %249 = vector.broadcast %cst_51 : f32 to vector<32x128xf32>
    %250 = arith.subf %249, %248 : vector<32x128xf32>
    %251 = arith.mulf %234, %250 : vector<32x128xf32>
    %252 = vector.extract_strided_slice %9 {offsets = [14, 0], sizes = [1, 128], strides = [1, 1]} : vector<32x128xf32> to vector<1x128xf32>
    %cst_52 = arith.constant 1.000000e+00 : f32
    %253 = vector.broadcast %cst_52 : f32 to vector<1x128xf32>
    %254 = arith.subf %253, %252 : vector<1x128xf32>
    %255 = vector.extract_strided_slice %10 {offsets = [0, 14], sizes = [32, 1], strides = [1, 1]} : vector<32x32xf32> to vector<32x1xf32>
    %256 = vector.extract_strided_slice %11 {offsets = [0, 14], sizes = [32, 1], strides = [1, 1]} : vector<32x32xf32> to vector<32x1xf32>
    %257 = vector.broadcast %255 : vector<32x1xf32> to vector<32x128xf32>
    %258 = vector.broadcast %254 : vector<1x128xf32> to vector<32x128xf32>
    %259 = arith.mulf %257, %258 : vector<32x128xf32>
    %cst_53 = arith.constant 1.000000e+00 : f32
    %260 = vector.broadcast %cst_53 : f32 to vector<32x128xf32>
    %261 = arith.subf %260, %259 : vector<32x128xf32>
    %262 = arith.mulf %245, %261 : vector<32x128xf32>
    %263 = vector.broadcast %256 : vector<32x1xf32> to vector<32x128xf32>
    %264 = vector.broadcast %252 : vector<1x128xf32> to vector<32x128xf32>
    %265 = arith.mulf %263, %264 : vector<32x128xf32>
    %cst_54 = arith.constant 1.000000e+00 : f32
    %266 = vector.broadcast %cst_54 : f32 to vector<32x128xf32>
    %267 = arith.subf %266, %265 : vector<32x128xf32>
    %268 = arith.mulf %251, %267 : vector<32x128xf32>
    %269 = vector.extract_strided_slice %9 {offsets = [15, 0], sizes = [1, 128], strides = [1, 1]} : vector<32x128xf32> to vector<1x128xf32>
    %cst_55 = arith.constant 1.000000e+00 : f32
    %270 = vector.broadcast %cst_55 : f32 to vector<1x128xf32>
    %271 = arith.subf %270, %269 : vector<1x128xf32>
    %272 = vector.extract_strided_slice %10 {offsets = [0, 15], sizes = [32, 1], strides = [1, 1]} : vector<32x32xf32> to vector<32x1xf32>
    %273 = vector.extract_strided_slice %11 {offsets = [0, 15], sizes = [32, 1], strides = [1, 1]} : vector<32x32xf32> to vector<32x1xf32>
    %274 = vector.broadcast %272 : vector<32x1xf32> to vector<32x128xf32>
    %275 = vector.broadcast %271 : vector<1x128xf32> to vector<32x128xf32>
    %276 = arith.mulf %274, %275 : vector<32x128xf32>
    %cst_56 = arith.constant 1.000000e+00 : f32
    %277 = vector.broadcast %cst_56 : f32 to vector<32x128xf32>
    %278 = arith.subf %277, %276 : vector<32x128xf32>
    %279 = arith.mulf %262, %278 : vector<32x128xf32>
    %280 = vector.broadcast %273 : vector<32x1xf32> to vector<32x128xf32>
    %281 = vector.broadcast %269 : vector<1x128xf32> to vector<32x128xf32>
    %282 = arith.mulf %280, %281 : vector<32x128xf32>
    %cst_57 = arith.constant 1.000000e+00 : f32
    %283 = vector.broadcast %cst_57 : f32 to vector<32x128xf32>
    %284 = arith.subf %283, %282 : vector<32x128xf32>
    %285 = arith.mulf %268, %284 : vector<32x128xf32>
    %286 = vector.extract_strided_slice %9 {offsets = [16, 0], sizes = [1, 128], strides = [1, 1]} : vector<32x128xf32> to vector<1x128xf32>
    %cst_58 = arith.constant 1.000000e+00 : f32
    %287 = vector.broadcast %cst_58 : f32 to vector<1x128xf32>
    %288 = arith.subf %287, %286 : vector<1x128xf32>
    %289 = vector.extract_strided_slice %10 {offsets = [0, 16], sizes = [32, 1], strides = [1, 1]} : vector<32x32xf32> to vector<32x1xf32>
    %290 = vector.extract_strided_slice %11 {offsets = [0, 16], sizes = [32, 1], strides = [1, 1]} : vector<32x32xf32> to vector<32x1xf32>
    %291 = vector.broadcast %289 : vector<32x1xf32> to vector<32x128xf32>
    %292 = vector.broadcast %288 : vector<1x128xf32> to vector<32x128xf32>
    %293 = arith.mulf %291, %292 : vector<32x128xf32>
    %cst_59 = arith.constant 1.000000e+00 : f32
    %294 = vector.broadcast %cst_59 : f32 to vector<32x128xf32>
    %295 = arith.subf %294, %293 : vector<32x128xf32>
    %296 = arith.mulf %279, %295 : vector<32x128xf32>
    %297 = vector.broadcast %290 : vector<32x1xf32> to vector<32x128xf32>
    %298 = vector.broadcast %286 : vector<1x128xf32> to vector<32x128xf32>
    %299 = arith.mulf %297, %298 : vector<32x128xf32>
    %cst_60 = arith.constant 1.000000e+00 : f32
    %300 = vector.broadcast %cst_60 : f32 to vector<32x128xf32>
    %301 = arith.subf %300, %299 : vector<32x128xf32>
    %302 = arith.mulf %285, %301 : vector<32x128xf32>
    %303 = vector.extract_strided_slice %9 {offsets = [17, 0], sizes = [1, 128], strides = [1, 1]} : vector<32x128xf32> to vector<1x128xf32>
    %cst_61 = arith.constant 1.000000e+00 : f32
    %304 = vector.broadcast %cst_61 : f32 to vector<1x128xf32>
    %305 = arith.subf %304, %303 : vector<1x128xf32>
    %306 = vector.extract_strided_slice %10 {offsets = [0, 17], sizes = [32, 1], strides = [1, 1]} : vector<32x32xf32> to vector<32x1xf32>
    %307 = vector.extract_strided_slice %11 {offsets = [0, 17], sizes = [32, 1], strides = [1, 1]} : vector<32x32xf32> to vector<32x1xf32>
    %308 = vector.broadcast %306 : vector<32x1xf32> to vector<32x128xf32>
    %309 = vector.broadcast %305 : vector<1x128xf32> to vector<32x128xf32>
    %310 = arith.mulf %308, %309 : vector<32x128xf32>
    %cst_62 = arith.constant 1.000000e+00 : f32
    %311 = vector.broadcast %cst_62 : f32 to vector<32x128xf32>
    %312 = arith.subf %311, %310 : vector<32x128xf32>
    %313 = arith.mulf %296, %312 : vector<32x128xf32>
    %314 = vector.broadcast %307 : vector<32x1xf32> to vector<32x128xf32>
    %315 = vector.broadcast %303 : vector<1x128xf32> to vector<32x128xf32>
    %316 = arith.mulf %314, %315 : vector<32x128xf32>
    %cst_63 = arith.constant 1.000000e+00 : f32
    %317 = vector.broadcast %cst_63 : f32 to vector<32x128xf32>
    %318 = arith.subf %317, %316 : vector<32x128xf32>
    %319 = arith.mulf %302, %318 : vector<32x128xf32>
    %320 = vector.extract_strided_slice %9 {offsets = [18, 0], sizes = [1, 128], strides = [1, 1]} : vector<32x128xf32> to vector<1x128xf32>
    %cst_64 = arith.constant 1.000000e+00 : f32
    %321 = vector.broadcast %cst_64 : f32 to vector<1x128xf32>
    %322 = arith.subf %321, %320 : vector<1x128xf32>
    %323 = vector.extract_strided_slice %10 {offsets = [0, 18], sizes = [32, 1], strides = [1, 1]} : vector<32x32xf32> to vector<32x1xf32>
    %324 = vector.extract_strided_slice %11 {offsets = [0, 18], sizes = [32, 1], strides = [1, 1]} : vector<32x32xf32> to vector<32x1xf32>
    %325 = vector.broadcast %323 : vector<32x1xf32> to vector<32x128xf32>
    %326 = vector.broadcast %322 : vector<1x128xf32> to vector<32x128xf32>
    %327 = arith.mulf %325, %326 : vector<32x128xf32>
    %cst_65 = arith.constant 1.000000e+00 : f32
    %328 = vector.broadcast %cst_65 : f32 to vector<32x128xf32>
    %329 = arith.subf %328, %327 : vector<32x128xf32>
    %330 = arith.mulf %313, %329 : vector<32x128xf32>
    %331 = vector.broadcast %324 : vector<32x1xf32> to vector<32x128xf32>
    %332 = vector.broadcast %320 : vector<1x128xf32> to vector<32x128xf32>
    %333 = arith.mulf %331, %332 : vector<32x128xf32>
    %cst_66 = arith.constant 1.000000e+00 : f32
    %334 = vector.broadcast %cst_66 : f32 to vector<32x128xf32>
    %335 = arith.subf %334, %333 : vector<32x128xf32>
    %336 = arith.mulf %319, %335 : vector<32x128xf32>
    %337 = vector.extract_strided_slice %9 {offsets = [19, 0], sizes = [1, 128], strides = [1, 1]} : vector<32x128xf32> to vector<1x128xf32>
    %cst_67 = arith.constant 1.000000e+00 : f32
    %338 = vector.broadcast %cst_67 : f32 to vector<1x128xf32>
    %339 = arith.subf %338, %337 : vector<1x128xf32>
    %340 = vector.extract_strided_slice %10 {offsets = [0, 19], sizes = [32, 1], strides = [1, 1]} : vector<32x32xf32> to vector<32x1xf32>
    %341 = vector.extract_strided_slice %11 {offsets = [0, 19], sizes = [32, 1], strides = [1, 1]} : vector<32x32xf32> to vector<32x1xf32>
    %342 = vector.broadcast %340 : vector<32x1xf32> to vector<32x128xf32>
    %343 = vector.broadcast %339 : vector<1x128xf32> to vector<32x128xf32>
    %344 = arith.mulf %342, %343 : vector<32x128xf32>
    %cst_68 = arith.constant 1.000000e+00 : f32
    %345 = vector.broadcast %cst_68 : f32 to vector<32x128xf32>
    %346 = arith.subf %345, %344 : vector<32x128xf32>
    %347 = arith.mulf %330, %346 : vector<32x128xf32>
    %348 = vector.broadcast %341 : vector<32x1xf32> to vector<32x128xf32>
    %349 = vector.broadcast %337 : vector<1x128xf32> to vector<32x128xf32>
    %350 = arith.mulf %348, %349 : vector<32x128xf32>
    %cst_69 = arith.constant 1.000000e+00 : f32
    %351 = vector.broadcast %cst_69 : f32 to vector<32x128xf32>
    %352 = arith.subf %351, %350 : vector<32x128xf32>
    %353 = arith.mulf %336, %352 : vector<32x128xf32>
    %354 = vector.extract_strided_slice %9 {offsets = [20, 0], sizes = [1, 128], strides = [1, 1]} : vector<32x128xf32> to vector<1x128xf32>
    %cst_70 = arith.constant 1.000000e+00 : f32
    %355 = vector.broadcast %cst_70 : f32 to vector<1x128xf32>
    %356 = arith.subf %355, %354 : vector<1x128xf32>
    %357 = vector.extract_strided_slice %10 {offsets = [0, 20], sizes = [32, 1], strides = [1, 1]} : vector<32x32xf32> to vector<32x1xf32>
    %358 = vector.extract_strided_slice %11 {offsets = [0, 20], sizes = [32, 1], strides = [1, 1]} : vector<32x32xf32> to vector<32x1xf32>
    %359 = vector.broadcast %357 : vector<32x1xf32> to vector<32x128xf32>
    %360 = vector.broadcast %356 : vector<1x128xf32> to vector<32x128xf32>
    %361 = arith.mulf %359, %360 : vector<32x128xf32>
    %cst_71 = arith.constant 1.000000e+00 : f32
    %362 = vector.broadcast %cst_71 : f32 to vector<32x128xf32>
    %363 = arith.subf %362, %361 : vector<32x128xf32>
    %364 = arith.mulf %347, %363 : vector<32x128xf32>
    %365 = vector.broadcast %358 : vector<32x1xf32> to vector<32x128xf32>
    %366 = vector.broadcast %354 : vector<1x128xf32> to vector<32x128xf32>
    %367 = arith.mulf %365, %366 : vector<32x128xf32>
    %cst_72 = arith.constant 1.000000e+00 : f32
    %368 = vector.broadcast %cst_72 : f32 to vector<32x128xf32>
    %369 = arith.subf %368, %367 : vector<32x128xf32>
    %370 = arith.mulf %353, %369 : vector<32x128xf32>
    %371 = vector.extract_strided_slice %9 {offsets = [21, 0], sizes = [1, 128], strides = [1, 1]} : vector<32x128xf32> to vector<1x128xf32>
    %cst_73 = arith.constant 1.000000e+00 : f32
    %372 = vector.broadcast %cst_73 : f32 to vector<1x128xf32>
    %373 = arith.subf %372, %371 : vector<1x128xf32>
    %374 = vector.extract_strided_slice %10 {offsets = [0, 21], sizes = [32, 1], strides = [1, 1]} : vector<32x32xf32> to vector<32x1xf32>
    %375 = vector.extract_strided_slice %11 {offsets = [0, 21], sizes = [32, 1], strides = [1, 1]} : vector<32x32xf32> to vector<32x1xf32>
    %376 = vector.broadcast %374 : vector<32x1xf32> to vector<32x128xf32>
    %377 = vector.broadcast %373 : vector<1x128xf32> to vector<32x128xf32>
    %378 = arith.mulf %376, %377 : vector<32x128xf32>
    %cst_74 = arith.constant 1.000000e+00 : f32
    %379 = vector.broadcast %cst_74 : f32 to vector<32x128xf32>
    %380 = arith.subf %379, %378 : vector<32x128xf32>
    %381 = arith.mulf %364, %380 : vector<32x128xf32>
    %382 = vector.broadcast %375 : vector<32x1xf32> to vector<32x128xf32>
    %383 = vector.broadcast %371 : vector<1x128xf32> to vector<32x128xf32>
    %384 = arith.mulf %382, %383 : vector<32x128xf32>
    %cst_75 = arith.constant 1.000000e+00 : f32
    %385 = vector.broadcast %cst_75 : f32 to vector<32x128xf32>
    %386 = arith.subf %385, %384 : vector<32x128xf32>
    %387 = arith.mulf %370, %386 : vector<32x128xf32>
    %388 = vector.extract_strided_slice %9 {offsets = [22, 0], sizes = [1, 128], strides = [1, 1]} : vector<32x128xf32> to vector<1x128xf32>
    %cst_76 = arith.constant 1.000000e+00 : f32
    %389 = vector.broadcast %cst_76 : f32 to vector<1x128xf32>
    %390 = arith.subf %389, %388 : vector<1x128xf32>
    %391 = vector.extract_strided_slice %10 {offsets = [0, 22], sizes = [32, 1], strides = [1, 1]} : vector<32x32xf32> to vector<32x1xf32>
    %392 = vector.extract_strided_slice %11 {offsets = [0, 22], sizes = [32, 1], strides = [1, 1]} : vector<32x32xf32> to vector<32x1xf32>
    %393 = vector.broadcast %391 : vector<32x1xf32> to vector<32x128xf32>
    %394 = vector.broadcast %390 : vector<1x128xf32> to vector<32x128xf32>
    %395 = arith.mulf %393, %394 : vector<32x128xf32>
    %cst_77 = arith.constant 1.000000e+00 : f32
    %396 = vector.broadcast %cst_77 : f32 to vector<32x128xf32>
    %397 = arith.subf %396, %395 : vector<32x128xf32>
    %398 = arith.mulf %381, %397 : vector<32x128xf32>
    %399 = vector.broadcast %392 : vector<32x1xf32> to vector<32x128xf32>
    %400 = vector.broadcast %388 : vector<1x128xf32> to vector<32x128xf32>
    %401 = arith.mulf %399, %400 : vector<32x128xf32>
    %cst_78 = arith.constant 1.000000e+00 : f32
    %402 = vector.broadcast %cst_78 : f32 to vector<32x128xf32>
    %403 = arith.subf %402, %401 : vector<32x128xf32>
    %404 = arith.mulf %387, %403 : vector<32x128xf32>
    %405 = vector.extract_strided_slice %9 {offsets = [23, 0], sizes = [1, 128], strides = [1, 1]} : vector<32x128xf32> to vector<1x128xf32>
    %cst_79 = arith.constant 1.000000e+00 : f32
    %406 = vector.broadcast %cst_79 : f32 to vector<1x128xf32>
    %407 = arith.subf %406, %405 : vector<1x128xf32>
    %408 = vector.extract_strided_slice %10 {offsets = [0, 23], sizes = [32, 1], strides = [1, 1]} : vector<32x32xf32> to vector<32x1xf32>
    %409 = vector.extract_strided_slice %11 {offsets = [0, 23], sizes = [32, 1], strides = [1, 1]} : vector<32x32xf32> to vector<32x1xf32>
    %410 = vector.broadcast %408 : vector<32x1xf32> to vector<32x128xf32>
    %411 = vector.broadcast %407 : vector<1x128xf32> to vector<32x128xf32>
    %412 = arith.mulf %410, %411 : vector<32x128xf32>
    %cst_80 = arith.constant 1.000000e+00 : f32
    %413 = vector.broadcast %cst_80 : f32 to vector<32x128xf32>
    %414 = arith.subf %413, %412 : vector<32x128xf32>
    %415 = arith.mulf %398, %414 : vector<32x128xf32>
    %416 = vector.broadcast %409 : vector<32x1xf32> to vector<32x128xf32>
    %417 = vector.broadcast %405 : vector<1x128xf32> to vector<32x128xf32>
    %418 = arith.mulf %416, %417 : vector<32x128xf32>
    %cst_81 = arith.constant 1.000000e+00 : f32
    %419 = vector.broadcast %cst_81 : f32 to vector<32x128xf32>
    %420 = arith.subf %419, %418 : vector<32x128xf32>
    %421 = arith.mulf %404, %420 : vector<32x128xf32>
    %422 = vector.extract_strided_slice %9 {offsets = [24, 0], sizes = [1, 128], strides = [1, 1]} : vector<32x128xf32> to vector<1x128xf32>
    %cst_82 = arith.constant 1.000000e+00 : f32
    %423 = vector.broadcast %cst_82 : f32 to vector<1x128xf32>
    %424 = arith.subf %423, %422 : vector<1x128xf32>
    %425 = vector.extract_strided_slice %10 {offsets = [0, 24], sizes = [32, 1], strides = [1, 1]} : vector<32x32xf32> to vector<32x1xf32>
    %426 = vector.extract_strided_slice %11 {offsets = [0, 24], sizes = [32, 1], strides = [1, 1]} : vector<32x32xf32> to vector<32x1xf32>
    %427 = vector.broadcast %425 : vector<32x1xf32> to vector<32x128xf32>
    %428 = vector.broadcast %424 : vector<1x128xf32> to vector<32x128xf32>
    %429 = arith.mulf %427, %428 : vector<32x128xf32>
    %cst_83 = arith.constant 1.000000e+00 : f32
    %430 = vector.broadcast %cst_83 : f32 to vector<32x128xf32>
    %431 = arith.subf %430, %429 : vector<32x128xf32>
    %432 = arith.mulf %415, %431 : vector<32x128xf32>
    %433 = vector.broadcast %426 : vector<32x1xf32> to vector<32x128xf32>
    %434 = vector.broadcast %422 : vector<1x128xf32> to vector<32x128xf32>
    %435 = arith.mulf %433, %434 : vector<32x128xf32>
    %cst_84 = arith.constant 1.000000e+00 : f32
    %436 = vector.broadcast %cst_84 : f32 to vector<32x128xf32>
    %437 = arith.subf %436, %435 : vector<32x128xf32>
    %438 = arith.mulf %421, %437 : vector<32x128xf32>
    %439 = vector.extract_strided_slice %9 {offsets = [25, 0], sizes = [1, 128], strides = [1, 1]} : vector<32x128xf32> to vector<1x128xf32>
    %cst_85 = arith.constant 1.000000e+00 : f32
    %440 = vector.broadcast %cst_85 : f32 to vector<1x128xf32>
    %441 = arith.subf %440, %439 : vector<1x128xf32>
    %442 = vector.extract_strided_slice %10 {offsets = [0, 25], sizes = [32, 1], strides = [1, 1]} : vector<32x32xf32> to vector<32x1xf32>
    %443 = vector.extract_strided_slice %11 {offsets = [0, 25], sizes = [32, 1], strides = [1, 1]} : vector<32x32xf32> to vector<32x1xf32>
    %444 = vector.broadcast %442 : vector<32x1xf32> to vector<32x128xf32>
    %445 = vector.broadcast %441 : vector<1x128xf32> to vector<32x128xf32>
    %446 = arith.mulf %444, %445 : vector<32x128xf32>
    %cst_86 = arith.constant 1.000000e+00 : f32
    %447 = vector.broadcast %cst_86 : f32 to vector<32x128xf32>
    %448 = arith.subf %447, %446 : vector<32x128xf32>
    %449 = arith.mulf %432, %448 : vector<32x128xf32>
    %450 = vector.broadcast %443 : vector<32x1xf32> to vector<32x128xf32>
    %451 = vector.broadcast %439 : vector<1x128xf32> to vector<32x128xf32>
    %452 = arith.mulf %450, %451 : vector<32x128xf32>
    %cst_87 = arith.constant 1.000000e+00 : f32
    %453 = vector.broadcast %cst_87 : f32 to vector<32x128xf32>
    %454 = arith.subf %453, %452 : vector<32x128xf32>
    %455 = arith.mulf %438, %454 : vector<32x128xf32>
    %456 = vector.extract_strided_slice %9 {offsets = [26, 0], sizes = [1, 128], strides = [1, 1]} : vector<32x128xf32> to vector<1x128xf32>
    %cst_88 = arith.constant 1.000000e+00 : f32
    %457 = vector.broadcast %cst_88 : f32 to vector<1x128xf32>
    %458 = arith.subf %457, %456 : vector<1x128xf32>
    %459 = vector.extract_strided_slice %10 {offsets = [0, 26], sizes = [32, 1], strides = [1, 1]} : vector<32x32xf32> to vector<32x1xf32>
    %460 = vector.extract_strided_slice %11 {offsets = [0, 26], sizes = [32, 1], strides = [1, 1]} : vector<32x32xf32> to vector<32x1xf32>
    %461 = vector.broadcast %459 : vector<32x1xf32> to vector<32x128xf32>
    %462 = vector.broadcast %458 : vector<1x128xf32> to vector<32x128xf32>
    %463 = arith.mulf %461, %462 : vector<32x128xf32>
    %cst_89 = arith.constant 1.000000e+00 : f32
    %464 = vector.broadcast %cst_89 : f32 to vector<32x128xf32>
    %465 = arith.subf %464, %463 : vector<32x128xf32>
    %466 = arith.mulf %449, %465 : vector<32x128xf32>
    %467 = vector.broadcast %460 : vector<32x1xf32> to vector<32x128xf32>
    %468 = vector.broadcast %456 : vector<1x128xf32> to vector<32x128xf32>
    %469 = arith.mulf %467, %468 : vector<32x128xf32>
    %cst_90 = arith.constant 1.000000e+00 : f32
    %470 = vector.broadcast %cst_90 : f32 to vector<32x128xf32>
    %471 = arith.subf %470, %469 : vector<32x128xf32>
    %472 = arith.mulf %455, %471 : vector<32x128xf32>
    %473 = vector.extract_strided_slice %9 {offsets = [27, 0], sizes = [1, 128], strides = [1, 1]} : vector<32x128xf32> to vector<1x128xf32>
    %cst_91 = arith.constant 1.000000e+00 : f32
    %474 = vector.broadcast %cst_91 : f32 to vector<1x128xf32>
    %475 = arith.subf %474, %473 : vector<1x128xf32>
    %476 = vector.extract_strided_slice %10 {offsets = [0, 27], sizes = [32, 1], strides = [1, 1]} : vector<32x32xf32> to vector<32x1xf32>
    %477 = vector.extract_strided_slice %11 {offsets = [0, 27], sizes = [32, 1], strides = [1, 1]} : vector<32x32xf32> to vector<32x1xf32>
    %478 = vector.broadcast %476 : vector<32x1xf32> to vector<32x128xf32>
    %479 = vector.broadcast %475 : vector<1x128xf32> to vector<32x128xf32>
    %480 = arith.mulf %478, %479 : vector<32x128xf32>
    %cst_92 = arith.constant 1.000000e+00 : f32
    %481 = vector.broadcast %cst_92 : f32 to vector<32x128xf32>
    %482 = arith.subf %481, %480 : vector<32x128xf32>
    %483 = arith.mulf %466, %482 : vector<32x128xf32>
    %484 = vector.broadcast %477 : vector<32x1xf32> to vector<32x128xf32>
    %485 = vector.broadcast %473 : vector<1x128xf32> to vector<32x128xf32>
    %486 = arith.mulf %484, %485 : vector<32x128xf32>
    %cst_93 = arith.constant 1.000000e+00 : f32
    %487 = vector.broadcast %cst_93 : f32 to vector<32x128xf32>
    %488 = arith.subf %487, %486 : vector<32x128xf32>
    %489 = arith.mulf %472, %488 : vector<32x128xf32>
    %490 = vector.extract_strided_slice %9 {offsets = [28, 0], sizes = [1, 128], strides = [1, 1]} : vector<32x128xf32> to vector<1x128xf32>
    %cst_94 = arith.constant 1.000000e+00 : f32
    %491 = vector.broadcast %cst_94 : f32 to vector<1x128xf32>
    %492 = arith.subf %491, %490 : vector<1x128xf32>
    %493 = vector.extract_strided_slice %10 {offsets = [0, 28], sizes = [32, 1], strides = [1, 1]} : vector<32x32xf32> to vector<32x1xf32>
    %494 = vector.extract_strided_slice %11 {offsets = [0, 28], sizes = [32, 1], strides = [1, 1]} : vector<32x32xf32> to vector<32x1xf32>
    %495 = vector.broadcast %493 : vector<32x1xf32> to vector<32x128xf32>
    %496 = vector.broadcast %492 : vector<1x128xf32> to vector<32x128xf32>
    %497 = arith.mulf %495, %496 : vector<32x128xf32>
    %cst_95 = arith.constant 1.000000e+00 : f32
    %498 = vector.broadcast %cst_95 : f32 to vector<32x128xf32>
    %499 = arith.subf %498, %497 : vector<32x128xf32>
    %500 = arith.mulf %483, %499 : vector<32x128xf32>
    %501 = vector.broadcast %494 : vector<32x1xf32> to vector<32x128xf32>
    %502 = vector.broadcast %490 : vector<1x128xf32> to vector<32x128xf32>
    %503 = arith.mulf %501, %502 : vector<32x128xf32>
    %cst_96 = arith.constant 1.000000e+00 : f32
    %504 = vector.broadcast %cst_96 : f32 to vector<32x128xf32>
    %505 = arith.subf %504, %503 : vector<32x128xf32>
    %506 = arith.mulf %489, %505 : vector<32x128xf32>
    %507 = vector.extract_strided_slice %9 {offsets = [29, 0], sizes = [1, 128], strides = [1, 1]} : vector<32x128xf32> to vector<1x128xf32>
    %cst_97 = arith.constant 1.000000e+00 : f32
    %508 = vector.broadcast %cst_97 : f32 to vector<1x128xf32>
    %509 = arith.subf %508, %507 : vector<1x128xf32>
    %510 = vector.extract_strided_slice %10 {offsets = [0, 29], sizes = [32, 1], strides = [1, 1]} : vector<32x32xf32> to vector<32x1xf32>
    %511 = vector.extract_strided_slice %11 {offsets = [0, 29], sizes = [32, 1], strides = [1, 1]} : vector<32x32xf32> to vector<32x1xf32>
    %512 = vector.broadcast %510 : vector<32x1xf32> to vector<32x128xf32>
    %513 = vector.broadcast %509 : vector<1x128xf32> to vector<32x128xf32>
    %514 = arith.mulf %512, %513 : vector<32x128xf32>
    %cst_98 = arith.constant 1.000000e+00 : f32
    %515 = vector.broadcast %cst_98 : f32 to vector<32x128xf32>
    %516 = arith.subf %515, %514 : vector<32x128xf32>
    %517 = arith.mulf %500, %516 : vector<32x128xf32>
    %518 = vector.broadcast %511 : vector<32x1xf32> to vector<32x128xf32>
    %519 = vector.broadcast %507 : vector<1x128xf32> to vector<32x128xf32>
    %520 = arith.mulf %518, %519 : vector<32x128xf32>
    %cst_99 = arith.constant 1.000000e+00 : f32
    %521 = vector.broadcast %cst_99 : f32 to vector<32x128xf32>
    %522 = arith.subf %521, %520 : vector<32x128xf32>
    %523 = arith.mulf %506, %522 : vector<32x128xf32>
    %524 = vector.extract_strided_slice %9 {offsets = [30, 0], sizes = [1, 128], strides = [1, 1]} : vector<32x128xf32> to vector<1x128xf32>
    %cst_100 = arith.constant 1.000000e+00 : f32
    %525 = vector.broadcast %cst_100 : f32 to vector<1x128xf32>
    %526 = arith.subf %525, %524 : vector<1x128xf32>
    %527 = vector.extract_strided_slice %10 {offsets = [0, 30], sizes = [32, 1], strides = [1, 1]} : vector<32x32xf32> to vector<32x1xf32>
    %528 = vector.extract_strided_slice %11 {offsets = [0, 30], sizes = [32, 1], strides = [1, 1]} : vector<32x32xf32> to vector<32x1xf32>
    %529 = vector.broadcast %527 : vector<32x1xf32> to vector<32x128xf32>
    %530 = vector.broadcast %526 : vector<1x128xf32> to vector<32x128xf32>
    %531 = arith.mulf %529, %530 : vector<32x128xf32>
    %cst_101 = arith.constant 1.000000e+00 : f32
    %532 = vector.broadcast %cst_101 : f32 to vector<32x128xf32>
    %533 = arith.subf %532, %531 : vector<32x128xf32>
    %534 = arith.mulf %517, %533 : vector<32x128xf32>
    %535 = vector.broadcast %528 : vector<32x1xf32> to vector<32x128xf32>
    %536 = vector.broadcast %524 : vector<1x128xf32> to vector<32x128xf32>
    %537 = arith.mulf %535, %536 : vector<32x128xf32>
    %cst_102 = arith.constant 1.000000e+00 : f32
    %538 = vector.broadcast %cst_102 : f32 to vector<32x128xf32>
    %539 = arith.subf %538, %537 : vector<32x128xf32>
    %540 = arith.mulf %523, %539 : vector<32x128xf32>
    %541 = vector.extract_strided_slice %9 {offsets = [31, 0], sizes = [1, 128], strides = [1, 1]} : vector<32x128xf32> to vector<1x128xf32>
    %cst_103 = arith.constant 1.000000e+00 : f32
    %542 = vector.broadcast %cst_103 : f32 to vector<1x128xf32>
    %543 = arith.subf %542, %541 : vector<1x128xf32>
    %544 = vector.extract_strided_slice %10 {offsets = [0, 31], sizes = [32, 1], strides = [1, 1]} : vector<32x32xf32> to vector<32x1xf32>
    %545 = vector.extract_strided_slice %11 {offsets = [0, 31], sizes = [32, 1], strides = [1, 1]} : vector<32x32xf32> to vector<32x1xf32>
    %546 = vector.broadcast %544 : vector<32x1xf32> to vector<32x128xf32>
    %547 = vector.broadcast %543 : vector<1x128xf32> to vector<32x128xf32>
    %548 = arith.mulf %546, %547 : vector<32x128xf32>
    %cst_104 = arith.constant 1.000000e+00 : f32
    %549 = vector.broadcast %cst_104 : f32 to vector<32x128xf32>
    %550 = arith.subf %549, %548 : vector<32x128xf32>
    %551 = arith.mulf %534, %550 : vector<32x128xf32>
    %552 = vector.broadcast %545 : vector<32x1xf32> to vector<32x128xf32>
    %553 = vector.broadcast %541 : vector<1x128xf32> to vector<32x128xf32>
    %554 = arith.mulf %552, %553 : vector<32x128xf32>
    %cst_105 = arith.constant 1.000000e+00 : f32
    %555 = vector.broadcast %cst_105 : f32 to vector<32x128xf32>
    %556 = arith.subf %555, %554 : vector<32x128xf32>
    %557 = arith.mulf %540, %556 : vector<32x128xf32>
    %c0_106 = arith.constant 0 : index
    %c0_107 = arith.constant 0 : index
    %558 = vector.load %arg5[%c0_106, %c0_107] : memref<32x1xf32, #tpu.memory_space<vmem>>, vector<32x1xf32>
    %cst_108 = arith.constant 1.000000e+00 : f32
    %559 = vector.broadcast %cst_108 : f32 to vector<32x1xf32>
    %560 = arith.subf %559, %558 : vector<32x1xf32>
    %561 = vector.broadcast %560 : vector<32x1xf32> to vector<32x128xf32>
    %562 = arith.mulf %561, %551 : vector<32x128xf32>
    %cst_109 = arith.constant 1.000000e+00 : f32
    %563 = vector.broadcast %cst_109 : f32 to vector<32x128xf32>
    %564 = arith.subf %563, %557 : vector<32x128xf32>
    %565 = vector.broadcast %558 : vector<32x1xf32> to vector<32x128xf32>
    %566 = arith.mulf %565, %564 : vector<32x128xf32>
    %567 = arith.addf %562, %566 : vector<32x128xf32>
    %c0_110 = arith.constant 0 : index
    %c0_111 = arith.constant 0 : index
    %568 = vector.load %arg6[%c0_110, %c0_111] : memref<32x128xf32, #tpu.memory_space<vmem>>, vector<32x128xf32>
    tpu.vector_store %arg6[%c0_110, %c0_111], %567 {strides = array<i32>} : memref<32x128xf32, #tpu.memory_space<vmem>>, vector<32x128xf32>,
    return
  }
  func.func @transform_0(%arg0: i32) -> (i32, i32) {
    %c0_i32 = arith.constant 0 : i32
    %c0_i32_0 = arith.constant 0 : i32
    return %c0_i32, %arg0 : i32, i32
  }
  func.func @transform_1(%arg0: i32) -> (i32, i32) {
    %c0_i32 = arith.constant 0 : i32
    %c0_i32_0 = arith.constant 0 : i32
    %c0_i32_1 = arith.constant 0 : i32
    return %c0_i32, %c0_i32_0 : i32, i32
  }
  func.func @transform_2(%arg0: i32) -> (i32, i32) {
    %c0_i32 = arith.constant 0 : i32
    %c0_i32_0 = arith.constant 0 : i32
    %c0_i32_1 = arith.constant 0 : i32
    return %c0_i32, %c0_i32_0 : i32, i32
  }
  func.func @transform_3(%arg0: i32) -> (i32, i32) {
    %c0_i32 = arith.constant 0 : i32
    %c0_i32_0 = arith.constant 0 : i32
    %c0_i32_1 = arith.constant 0 : i32
    return %c0_i32, %c0_i32_0 : i32, i32
  }
  func.func @transform_4(%arg0: i32) -> (i32, i32) {
    %c0_i32 = arith.constant 0 : i32
    %c0_i32_0 = arith.constant 0 : i32
    %c0_i32_1 = arith.constant 0 : i32
    return %c0_i32, %c0_i32_0 : i32, i32
  }
  func.func @transform_5(%arg0: i32) -> (i32, i32) {
    %c0_i32 = arith.constant 0 : i32
    %c0_i32_0 = arith.constant 0 : i32
    return %c0_i32, %arg0 : i32, i32
  }
}

module attributes {stable_mosaic.version = 11 : i64} {
  func.func @nlrl_kernel(%arg0: i32, %arg1: memref<32x128xf32, #tpu.memory_space<vmem>>, %arg2: memref<8x32xf32, #tpu.memory_space<vmem>>, %arg3: memref<8x32xf32, #tpu.memory_space<vmem>>, %arg4: memref<32x1xf32, #tpu.memory_space<vmem>>, %arg5: memref<8x1xf32, #tpu.memory_space<vmem>>, %arg6: memref<8x128xf32, #tpu.memory_space<vmem>>) attributes {dimension_semantics = [#tpu.dimension_semantics<parallel>], iteration_bounds = array<i64: 2>, scalar_prefetch = 0 : i64, scratch_operands = 0 : i64, tpu.core_type = #tpu.core_type<tc>, window_params = [{transform_indices = @transform_0, window_bounds = array<i64: 32, 128>}, {pipeline_mode = #tpu.pipeline_mode<synchronous>, transform_indices = @transform_1, window_bounds = array<i64: 8, 32>}, {pipeline_mode = #tpu.pipeline_mode<synchronous>, transform_indices = @transform_2, window_bounds = array<i64: 8, 32>}, {pipeline_mode = #tpu.pipeline_mode<synchronous>, transform_indices = @transform_3, window_bounds = array<i64: 32, 1>}, {pipeline_mode = #tpu.pipeline_mode<synchronous>, transform_indices = @transform_4, window_bounds = array<i64: 8, 1>}, {transform_indices = @transform_5, window_bounds = array<i64: 8, 128>}]} {
    %c0 = arith.constant 0 : index
    %c0_0 = arith.constant 0 : index
    %0 = vector.load %arg1[%c0, %c0_0] : memref<32x128xf32, #tpu.memory_space<vmem>>, vector<32x128xf32>
    %c0_1 = arith.constant 0 : index
    %c0_2 = arith.constant 0 : index
    %1 = vector.load %arg4[%c0_1, %c0_2] : memref<32x1xf32, #tpu.memory_space<vmem>>, vector<32x1xf32>
    %cst = arith.constant 2.000000e+00 : f32
    %2 = vector.broadcast %cst : f32 to vector<32x1xf32>
    %3 = arith.mulf %2, %1 : vector<32x1xf32>
    %cst_3 = arith.constant 1.000000e+00 : f32
    %4 = vector.broadcast %cst_3 : f32 to vector<32x1xf32>
    %5 = arith.subf %4, %3 : vector<32x1xf32>
    %6 = vector.broadcast %5 : vector<32x1xf32> to vector<32x128xf32>
    %7 = arith.mulf %6, %0 : vector<32x128xf32>
    %8 = vector.broadcast %1 : vector<32x1xf32> to vector<32x128xf32>
    %9 = arith.addf %8, %7 : vector<32x128xf32>
    %c0_4 = arith.constant 0 : index
    %c0_5 = arith.constant 0 : index
    %10 = vector.load %arg2[%c0_4, %c0_5] : memref<8x32xf32, #tpu.memory_space<vmem>>, vector<8x32xf32>
    %c0_6 = arith.constant 0 : index
    %c0_7 = arith.constant 0 : index
    %11 = vector.load %arg3[%c0_6, %c0_7] : memref<8x32xf32, #tpu.memory_space<vmem>>, vector<8x32xf32>
    %cst_8 = arith.constant 1.000000e+00 : f32
    %12 = vector.broadcast %cst_8 : f32 to vector<8x128xf32>
    %cst_9 = arith.constant 1.000000e+00 : f32
    %13 = vector.broadcast %cst_9 : f32 to vector<8x128xf32>
    %14 = vector.extract_strided_slice %9 {offsets = [0, 0], sizes = [1, 128], strides = [1, 1]} : vector<32x128xf32> to vector<1x128xf32>
    %cst_10 = arith.constant 1.000000e+00 : f32
    %15 = vector.broadcast %cst_10 : f32 to vector<1x128xf32>
    %16 = arith.subf %15, %14 : vector<1x128xf32>
    %17 = vector.extract_strided_slice %10 {offsets = [0, 0], sizes = [8, 1], strides = [1, 1]} : vector<8x32xf32> to vector<8x1xf32>
    %18 = vector.extract_strided_slice %11 {offsets = [0, 0], sizes = [8, 1], strides = [1, 1]} : vector<8x32xf32> to vector<8x1xf32>
    %19 = vector.broadcast %17 : vector<8x1xf32> to vector<8x128xf32>
    %20 = vector.broadcast %16 : vector<1x128xf32> to vector<8x128xf32>
    %21 = arith.mulf %19, %20 : vector<8x128xf32>
    %cst_11 = arith.constant 1.000000e+00 : f32
    %22 = vector.broadcast %cst_11 : f32 to vector<8x128xf32>
    %23 = arith.subf %22, %21 : vector<8x128xf32>
    %24 = arith.mulf %12, %23 : vector<8x128xf32>
    %25 = vector.broadcast %18 : vector<8x1xf32> to vector<8x128xf32>
    %26 = vector.broadcast %14 : vector<1x128xf32> to vector<8x128xf32>
    %27 = arith.mulf %25, %26 : vector<8x128xf32>
    %cst_12 = arith.constant 1.000000e+00 : f32
    %28 = vector.broadcast %cst_12 : f32 to vector<8x128xf32>
    %29 = arith.subf %28, %27 : vector<8x128xf32>
    %30 = arith.mulf %13, %29 : vector<8x128xf32>
    %31 = vector.extract_strided_slice %9 {offsets = [1, 0], sizes = [1, 128], strides = [1, 1]} : vector<32x128xf32> to vector<1x128xf32>
    %cst_13 = arith.constant 1.000000e+00 : f32
    %32 = vector.broadcast %cst_13 : f32 to vector<1x128xf32>
    %33 = arith.subf %32, %31 : vector<1x128xf32>
    %34 = vector.extract_strided_slice %10 {offsets = [0, 1], sizes = [8, 1], strides = [1, 1]} : vector<8x32xf32> to vector<8x1xf32>
    %35 = vector.extract_strided_slice %11 {offsets = [0, 1], sizes = [8, 1], strides = [1, 1]} : vector<8x32xf32> to vector<8x1xf32>
    %36 = vector.broadcast %34 : vector<8x1xf32> to vector<8x128xf32>
    %37 = vector.broadcast %33 : vector<1x128xf32> to vector<8x128xf32>
    %38 = arith.mulf %36, %37 : vector<8x128xf32>
    %cst_14 = arith.constant 1.000000e+00 : f32
    %39 = vector.broadcast %cst_14 : f32 to vector<8x128xf32>
    %40 = arith.subf %39, %38 : vector<8x128xf32>
    %41 = arith.mulf %24, %40 : vector<8x128xf32>
    %42 = vector.broadcast %35 : vector<8x1xf32> to vector<8x128xf32>
    %43 = vector.broadcast %31 : vector<1x128xf32> to vector<8x128xf32>
    %44 = arith.mulf %42, %43 : vector<8x128xf32>
    %cst_15 = arith.constant 1.000000e+00 : f32
    %45 = vector.broadcast %cst_15 : f32 to vector<8x128xf32>
    %46 = arith.subf %45, %44 : vector<8x128xf32>
    %47 = arith.mulf %30, %46 : vector<8x128xf32>
    %48 = vector.extract_strided_slice %9 {offsets = [2, 0], sizes = [1, 128], strides = [1, 1]} : vector<32x128xf32> to vector<1x128xf32>
    %cst_16 = arith.constant 1.000000e+00 : f32
    %49 = vector.broadcast %cst_16 : f32 to vector<1x128xf32>
    %50 = arith.subf %49, %48 : vector<1x128xf32>
    %51 = vector.extract_strided_slice %10 {offsets = [0, 2], sizes = [8, 1], strides = [1, 1]} : vector<8x32xf32> to vector<8x1xf32>
    %52 = vector.extract_strided_slice %11 {offsets = [0, 2], sizes = [8, 1], strides = [1, 1]} : vector<8x32xf32> to vector<8x1xf32>
    %53 = vector.broadcast %51 : vector<8x1xf32> to vector<8x128xf32>
    %54 = vector.broadcast %50 : vector<1x128xf32> to vector<8x128xf32>
    %55 = arith.mulf %53, %54 : vector<8x128xf32>
    %cst_17 = arith.constant 1.000000e+00 : f32
    %56 = vector.broadcast %cst_17 : f32 to vector<8x128xf32>
    %57 = arith.subf %56, %55 : vector<8x128xf32>
    %58 = arith.mulf %41, %57 : vector<8x128xf32>
    %59 = vector.broadcast %52 : vector<8x1xf32> to vector<8x128xf32>
    %60 = vector.broadcast %48 : vector<1x128xf32> to vector<8x128xf32>
    %61 = arith.mulf %59, %60 : vector<8x128xf32>
    %cst_18 = arith.constant 1.000000e+00 : f32
    %62 = vector.broadcast %cst_18 : f32 to vector<8x128xf32>
    %63 = arith.subf %62, %61 : vector<8x128xf32>
    %64 = arith.mulf %47, %63 : vector<8x128xf32>
    %65 = vector.extract_strided_slice %9 {offsets = [3, 0], sizes = [1, 128], strides = [1, 1]} : vector<32x128xf32> to vector<1x128xf32>
    %cst_19 = arith.constant 1.000000e+00 : f32
    %66 = vector.broadcast %cst_19 : f32 to vector<1x128xf32>
    %67 = arith.subf %66, %65 : vector<1x128xf32>
    %68 = vector.extract_strided_slice %10 {offsets = [0, 3], sizes = [8, 1], strides = [1, 1]} : vector<8x32xf32> to vector<8x1xf32>
    %69 = vector.extract_strided_slice %11 {offsets = [0, 3], sizes = [8, 1], strides = [1, 1]} : vector<8x32xf32> to vector<8x1xf32>
    %70 = vector.broadcast %68 : vector<8x1xf32> to vector<8x128xf32>
    %71 = vector.broadcast %67 : vector<1x128xf32> to vector<8x128xf32>
    %72 = arith.mulf %70, %71 : vector<8x128xf32>
    %cst_20 = arith.constant 1.000000e+00 : f32
    %73 = vector.broadcast %cst_20 : f32 to vector<8x128xf32>
    %74 = arith.subf %73, %72 : vector<8x128xf32>
    %75 = arith.mulf %58, %74 : vector<8x128xf32>
    %76 = vector.broadcast %69 : vector<8x1xf32> to vector<8x128xf32>
    %77 = vector.broadcast %65 : vector<1x128xf32> to vector<8x128xf32>
    %78 = arith.mulf %76, %77 : vector<8x128xf32>
    %cst_21 = arith.constant 1.000000e+00 : f32
    %79 = vector.broadcast %cst_21 : f32 to vector<8x128xf32>
    %80 = arith.subf %79, %78 : vector<8x128xf32>
    %81 = arith.mulf %64, %80 : vector<8x128xf32>
    %82 = vector.extract_strided_slice %9 {offsets = [4, 0], sizes = [1, 128], strides = [1, 1]} : vector<32x128xf32> to vector<1x128xf32>
    %cst_22 = arith.constant 1.000000e+00 : f32
    %83 = vector.broadcast %cst_22 : f32 to vector<1x128xf32>
    %84 = arith.subf %83, %82 : vector<1x128xf32>
    %85 = vector.extract_strided_slice %10 {offsets = [0, 4], sizes = [8, 1], strides = [1, 1]} : vector<8x32xf32> to vector<8x1xf32>
    %86 = vector.extract_strided_slice %11 {offsets = [0, 4], sizes = [8, 1], strides = [1, 1]} : vector<8x32xf32> to vector<8x1xf32>
    %87 = vector.broadcast %85 : vector<8x1xf32> to vector<8x128xf32>
    %88 = vector.broadcast %84 : vector<1x128xf32> to vector<8x128xf32>
    %89 = arith.mulf %87, %88 : vector<8x128xf32>
    %cst_23 = arith.constant 1.000000e+00 : f32
    %90 = vector.broadcast %cst_23 : f32 to vector<8x128xf32>
    %91 = arith.subf %90, %89 : vector<8x128xf32>
    %92 = arith.mulf %75, %91 : vector<8x128xf32>
    %93 = vector.broadcast %86 : vector<8x1xf32> to vector<8x128xf32>
    %94 = vector.broadcast %82 : vector<1x128xf32> to vector<8x128xf32>
    %95 = arith.mulf %93, %94 : vector<8x128xf32>
    %cst_24 = arith.constant 1.000000e+00 : f32
    %96 = vector.broadcast %cst_24 : f32 to vector<8x128xf32>
    %97 = arith.subf %96, %95 : vector<8x128xf32>
    %98 = arith.mulf %81, %97 : vector<8x128xf32>
    %99 = vector.extract_strided_slice %9 {offsets = [5, 0], sizes = [1, 128], strides = [1, 1]} : vector<32x128xf32> to vector<1x128xf32>
    %cst_25 = arith.constant 1.000000e+00 : f32
    %100 = vector.broadcast %cst_25 : f32 to vector<1x128xf32>
    %101 = arith.subf %100, %99 : vector<1x128xf32>
    %102 = vector.extract_strided_slice %10 {offsets = [0, 5], sizes = [8, 1], strides = [1, 1]} : vector<8x32xf32> to vector<8x1xf32>
    %103 = vector.extract_strided_slice %11 {offsets = [0, 5], sizes = [8, 1], strides = [1, 1]} : vector<8x32xf32> to vector<8x1xf32>
    %104 = vector.broadcast %102 : vector<8x1xf32> to vector<8x128xf32>
    %105 = vector.broadcast %101 : vector<1x128xf32> to vector<8x128xf32>
    %106 = arith.mulf %104, %105 : vector<8x128xf32>
    %cst_26 = arith.constant 1.000000e+00 : f32
    %107 = vector.broadcast %cst_26 : f32 to vector<8x128xf32>
    %108 = arith.subf %107, %106 : vector<8x128xf32>
    %109 = arith.mulf %92, %108 : vector<8x128xf32>
    %110 = vector.broadcast %103 : vector<8x1xf32> to vector<8x128xf32>
    %111 = vector.broadcast %99 : vector<1x128xf32> to vector<8x128xf32>
    %112 = arith.mulf %110, %111 : vector<8x128xf32>
    %cst_27 = arith.constant 1.000000e+00 : f32
    %113 = vector.broadcast %cst_27 : f32 to vector<8x128xf32>
    %114 = arith.subf %113, %112 : vector<8x128xf32>
    %115 = arith.mulf %98, %114 : vector<8x128xf32>
    %116 = vector.extract_strided_slice %9 {offsets = [6, 0], sizes = [1, 128], strides = [1, 1]} : vector<32x128xf32> to vector<1x128xf32>
    %cst_28 = arith.constant 1.000000e+00 : f32
    %117 = vector.broadcast %cst_28 : f32 to vector<1x128xf32>
    %118 = arith.subf %117, %116 : vector<1x128xf32>
    %119 = vector.extract_strided_slice %10 {offsets = [0, 6], sizes = [8, 1], strides = [1, 1]} : vector<8x32xf32> to vector<8x1xf32>
    %120 = vector.extract_strided_slice %11 {offsets = [0, 6], sizes = [8, 1], strides = [1, 1]} : vector<8x32xf32> to vector<8x1xf32>
    %121 = vector.broadcast %119 : vector<8x1xf32> to vector<8x128xf32>
    %122 = vector.broadcast %118 : vector<1x128xf32> to vector<8x128xf32>
    %123 = arith.mulf %121, %122 : vector<8x128xf32>
    %cst_29 = arith.constant 1.000000e+00 : f32
    %124 = vector.broadcast %cst_29 : f32 to vector<8x128xf32>
    %125 = arith.subf %124, %123 : vector<8x128xf32>
    %126 = arith.mulf %109, %125 : vector<8x128xf32>
    %127 = vector.broadcast %120 : vector<8x1xf32> to vector<8x128xf32>
    %128 = vector.broadcast %116 : vector<1x128xf32> to vector<8x128xf32>
    %129 = arith.mulf %127, %128 : vector<8x128xf32>
    %cst_30 = arith.constant 1.000000e+00 : f32
    %130 = vector.broadcast %cst_30 : f32 to vector<8x128xf32>
    %131 = arith.subf %130, %129 : vector<8x128xf32>
    %132 = arith.mulf %115, %131 : vector<8x128xf32>
    %133 = vector.extract_strided_slice %9 {offsets = [7, 0], sizes = [1, 128], strides = [1, 1]} : vector<32x128xf32> to vector<1x128xf32>
    %cst_31 = arith.constant 1.000000e+00 : f32
    %134 = vector.broadcast %cst_31 : f32 to vector<1x128xf32>
    %135 = arith.subf %134, %133 : vector<1x128xf32>
    %136 = vector.extract_strided_slice %10 {offsets = [0, 7], sizes = [8, 1], strides = [1, 1]} : vector<8x32xf32> to vector<8x1xf32>
    %137 = vector.extract_strided_slice %11 {offsets = [0, 7], sizes = [8, 1], strides = [1, 1]} : vector<8x32xf32> to vector<8x1xf32>
    %138 = vector.broadcast %136 : vector<8x1xf32> to vector<8x128xf32>
    %139 = vector.broadcast %135 : vector<1x128xf32> to vector<8x128xf32>
    %140 = arith.mulf %138, %139 : vector<8x128xf32>
    %cst_32 = arith.constant 1.000000e+00 : f32
    %141 = vector.broadcast %cst_32 : f32 to vector<8x128xf32>
    %142 = arith.subf %141, %140 : vector<8x128xf32>
    %143 = arith.mulf %126, %142 : vector<8x128xf32>
    %144 = vector.broadcast %137 : vector<8x1xf32> to vector<8x128xf32>
    %145 = vector.broadcast %133 : vector<1x128xf32> to vector<8x128xf32>
    %146 = arith.mulf %144, %145 : vector<8x128xf32>
    %cst_33 = arith.constant 1.000000e+00 : f32
    %147 = vector.broadcast %cst_33 : f32 to vector<8x128xf32>
    %148 = arith.subf %147, %146 : vector<8x128xf32>
    %149 = arith.mulf %132, %148 : vector<8x128xf32>
    %150 = vector.extract_strided_slice %9 {offsets = [8, 0], sizes = [1, 128], strides = [1, 1]} : vector<32x128xf32> to vector<1x128xf32>
    %cst_34 = arith.constant 1.000000e+00 : f32
    %151 = vector.broadcast %cst_34 : f32 to vector<1x128xf32>
    %152 = arith.subf %151, %150 : vector<1x128xf32>
    %153 = vector.extract_strided_slice %10 {offsets = [0, 8], sizes = [8, 1], strides = [1, 1]} : vector<8x32xf32> to vector<8x1xf32>
    %154 = vector.extract_strided_slice %11 {offsets = [0, 8], sizes = [8, 1], strides = [1, 1]} : vector<8x32xf32> to vector<8x1xf32>
    %155 = vector.broadcast %153 : vector<8x1xf32> to vector<8x128xf32>
    %156 = vector.broadcast %152 : vector<1x128xf32> to vector<8x128xf32>
    %157 = arith.mulf %155, %156 : vector<8x128xf32>
    %cst_35 = arith.constant 1.000000e+00 : f32
    %158 = vector.broadcast %cst_35 : f32 to vector<8x128xf32>
    %159 = arith.subf %158, %157 : vector<8x128xf32>
    %160 = arith.mulf %143, %159 : vector<8x128xf32>
    %161 = vector.broadcast %154 : vector<8x1xf32> to vector<8x128xf32>
    %162 = vector.broadcast %150 : vector<1x128xf32> to vector<8x128xf32>
    %163 = arith.mulf %161, %162 : vector<8x128xf32>
    %cst_36 = arith.constant 1.000000e+00 : f32
    %164 = vector.broadcast %cst_36 : f32 to vector<8x128xf32>
    %165 = arith.subf %164, %163 : vector<8x128xf32>
    %166 = arith.mulf %149, %165 : vector<8x128xf32>
    %167 = vector.extract_strided_slice %9 {offsets = [9, 0], sizes = [1, 128], strides = [1, 1]} : vector<32x128xf32> to vector<1x128xf32>
    %cst_37 = arith.constant 1.000000e+00 : f32
    %168 = vector.broadcast %cst_37 : f32 to vector<1x128xf32>
    %169 = arith.subf %168, %167 : vector<1x128xf32>
    %170 = vector.extract_strided_slice %10 {offsets = [0, 9], sizes = [8, 1], strides = [1, 1]} : vector<8x32xf32> to vector<8x1xf32>
    %171 = vector.extract_strided_slice %11 {offsets = [0, 9], sizes = [8, 1], strides = [1, 1]} : vector<8x32xf32> to vector<8x1xf32>
    %172 = vector.broadcast %170 : vector<8x1xf32> to vector<8x128xf32>
    %173 = vector.broadcast %169 : vector<1x128xf32> to vector<8x128xf32>
    %174 = arith.mulf %172, %173 : vector<8x128xf32>
    %cst_38 = arith.constant 1.000000e+00 : f32
    %175 = vector.broadcast %cst_38 : f32 to vector<8x128xf32>
    %176 = arith.subf %175, %174 : vector<8x128xf32>
    %177 = arith.mulf %160, %176 : vector<8x128xf32>
    %178 = vector.broadcast %171 : vector<8x1xf32> to vector<8x128xf32>
    %179 = vector.broadcast %167 : vector<1x128xf32> to vector<8x128xf32>
    %180 = arith.mulf %178, %179 : vector<8x128xf32>
    %cst_39 = arith.constant 1.000000e+00 : f32
    %181 = vector.broadcast %cst_39 : f32 to vector<8x128xf32>
    %182 = arith.subf %181, %180 : vector<8x128xf32>
    %183 = arith.mulf %166, %182 : vector<8x128xf32>
    %184 = vector.extract_strided_slice %9 {offsets = [10, 0], sizes = [1, 128], strides = [1, 1]} : vector<32x128xf32> to vector<1x128xf32>
    %cst_40 = arith.constant 1.000000e+00 : f32
    %185 = vector.broadcast %cst_40 : f32 to vector<1x128xf32>
    %186 = arith.subf %185, %184 : vector<1x128xf32>
    %187 = vector.extract_strided_slice %10 {offsets = [0, 10], sizes = [8, 1], strides = [1, 1]} : vector<8x32xf32> to vector<8x1xf32>
    %188 = vector.extract_strided_slice %11 {offsets = [0, 10], sizes = [8, 1], strides = [1, 1]} : vector<8x32xf32> to vector<8x1xf32>
    %189 = vector.broadcast %187 : vector<8x1xf32> to vector<8x128xf32>
    %190 = vector.broadcast %186 : vector<1x128xf32> to vector<8x128xf32>
    %191 = arith.mulf %189, %190 : vector<8x128xf32>
    %cst_41 = arith.constant 1.000000e+00 : f32
    %192 = vector.broadcast %cst_41 : f32 to vector<8x128xf32>
    %193 = arith.subf %192, %191 : vector<8x128xf32>
    %194 = arith.mulf %177, %193 : vector<8x128xf32>
    %195 = vector.broadcast %188 : vector<8x1xf32> to vector<8x128xf32>
    %196 = vector.broadcast %184 : vector<1x128xf32> to vector<8x128xf32>
    %197 = arith.mulf %195, %196 : vector<8x128xf32>
    %cst_42 = arith.constant 1.000000e+00 : f32
    %198 = vector.broadcast %cst_42 : f32 to vector<8x128xf32>
    %199 = arith.subf %198, %197 : vector<8x128xf32>
    %200 = arith.mulf %183, %199 : vector<8x128xf32>
    %201 = vector.extract_strided_slice %9 {offsets = [11, 0], sizes = [1, 128], strides = [1, 1]} : vector<32x128xf32> to vector<1x128xf32>
    %cst_43 = arith.constant 1.000000e+00 : f32
    %202 = vector.broadcast %cst_43 : f32 to vector<1x128xf32>
    %203 = arith.subf %202, %201 : vector<1x128xf32>
    %204 = vector.extract_strided_slice %10 {offsets = [0, 11], sizes = [8, 1], strides = [1, 1]} : vector<8x32xf32> to vector<8x1xf32>
    %205 = vector.extract_strided_slice %11 {offsets = [0, 11], sizes = [8, 1], strides = [1, 1]} : vector<8x32xf32> to vector<8x1xf32>
    %206 = vector.broadcast %204 : vector<8x1xf32> to vector<8x128xf32>
    %207 = vector.broadcast %203 : vector<1x128xf32> to vector<8x128xf32>
    %208 = arith.mulf %206, %207 : vector<8x128xf32>
    %cst_44 = arith.constant 1.000000e+00 : f32
    %209 = vector.broadcast %cst_44 : f32 to vector<8x128xf32>
    %210 = arith.subf %209, %208 : vector<8x128xf32>
    %211 = arith.mulf %194, %210 : vector<8x128xf32>
    %212 = vector.broadcast %205 : vector<8x1xf32> to vector<8x128xf32>
    %213 = vector.broadcast %201 : vector<1x128xf32> to vector<8x128xf32>
    %214 = arith.mulf %212, %213 : vector<8x128xf32>
    %cst_45 = arith.constant 1.000000e+00 : f32
    %215 = vector.broadcast %cst_45 : f32 to vector<8x128xf32>
    %216 = arith.subf %215, %214 : vector<8x128xf32>
    %217 = arith.mulf %200, %216 : vector<8x128xf32>
    %218 = vector.extract_strided_slice %9 {offsets = [12, 0], sizes = [1, 128], strides = [1, 1]} : vector<32x128xf32> to vector<1x128xf32>
    %cst_46 = arith.constant 1.000000e+00 : f32
    %219 = vector.broadcast %cst_46 : f32 to vector<1x128xf32>
    %220 = arith.subf %219, %218 : vector<1x128xf32>
    %221 = vector.extract_strided_slice %10 {offsets = [0, 12], sizes = [8, 1], strides = [1, 1]} : vector<8x32xf32> to vector<8x1xf32>
    %222 = vector.extract_strided_slice %11 {offsets = [0, 12], sizes = [8, 1], strides = [1, 1]} : vector<8x32xf32> to vector<8x1xf32>
    %223 = vector.broadcast %221 : vector<8x1xf32> to vector<8x128xf32>
    %224 = vector.broadcast %220 : vector<1x128xf32> to vector<8x128xf32>
    %225 = arith.mulf %223, %224 : vector<8x128xf32>
    %cst_47 = arith.constant 1.000000e+00 : f32
    %226 = vector.broadcast %cst_47 : f32 to vector<8x128xf32>
    %227 = arith.subf %226, %225 : vector<8x128xf32>
    %228 = arith.mulf %211, %227 : vector<8x128xf32>
    %229 = vector.broadcast %222 : vector<8x1xf32> to vector<8x128xf32>
    %230 = vector.broadcast %218 : vector<1x128xf32> to vector<8x128xf32>
    %231 = arith.mulf %229, %230 : vector<8x128xf32>
    %cst_48 = arith.constant 1.000000e+00 : f32
    %232 = vector.broadcast %cst_48 : f32 to vector<8x128xf32>
    %233 = arith.subf %232, %231 : vector<8x128xf32>
    %234 = arith.mulf %217, %233 : vector<8x128xf32>
    %235 = vector.extract_strided_slice %9 {offsets = [13, 0], sizes = [1, 128], strides = [1, 1]} : vector<32x128xf32> to vector<1x128xf32>
    %cst_49 = arith.constant 1.000000e+00 : f32
    %236 = vector.broadcast %cst_49 : f32 to vector<1x128xf32>
    %237 = arith.subf %236, %235 : vector<1x128xf32>
    %238 = vector.extract_strided_slice %10 {offsets = [0, 13], sizes = [8, 1], strides = [1, 1]} : vector<8x32xf32> to vector<8x1xf32>
    %239 = vector.extract_strided_slice %11 {offsets = [0, 13], sizes = [8, 1], strides = [1, 1]} : vector<8x32xf32> to vector<8x1xf32>
    %240 = vector.broadcast %238 : vector<8x1xf32> to vector<8x128xf32>
    %241 = vector.broadcast %237 : vector<1x128xf32> to vector<8x128xf32>
    %242 = arith.mulf %240, %241 : vector<8x128xf32>
    %cst_50 = arith.constant 1.000000e+00 : f32
    %243 = vector.broadcast %cst_50 : f32 to vector<8x128xf32>
    %244 = arith.subf %243, %242 : vector<8x128xf32>
    %245 = arith.mulf %228, %244 : vector<8x128xf32>
    %246 = vector.broadcast %239 : vector<8x1xf32> to vector<8x128xf32>
    %247 = vector.broadcast %235 : vector<1x128xf32> to vector<8x128xf32>
    %248 = arith.mulf %246, %247 : vector<8x128xf32>
    %cst_51 = arith.constant 1.000000e+00 : f32
    %249 = vector.broadcast %cst_51 : f32 to vector<8x128xf32>
    %250 = arith.subf %249, %248 : vector<8x128xf32>
    %251 = arith.mulf %234, %250 : vector<8x128xf32>
    %252 = vector.extract_strided_slice %9 {offsets = [14, 0], sizes = [1, 128], strides = [1, 1]} : vector<32x128xf32> to vector<1x128xf32>
    %cst_52 = arith.constant 1.000000e+00 : f32
    %253 = vector.broadcast %cst_52 : f32 to vector<1x128xf32>
    %254 = arith.subf %253, %252 : vector<1x128xf32>
    %255 = vector.extract_strided_slice %10 {offsets = [0, 14], sizes = [8, 1], strides = [1, 1]} : vector<8x32xf32> to vector<8x1xf32>
    %256 = vector.extract_strided_slice %11 {offsets = [0, 14], sizes = [8, 1], strides = [1, 1]} : vector<8x32xf32> to vector<8x1xf32>
    %257 = vector.broadcast %255 : vector<8x1xf32> to vector<8x128xf32>
    %258 = vector.broadcast %254 : vector<1x128xf32> to vector<8x128xf32>
    %259 = arith.mulf %257, %258 : vector<8x128xf32>
    %cst_53 = arith.constant 1.000000e+00 : f32
    %260 = vector.broadcast %cst_53 : f32 to vector<8x128xf32>
    %261 = arith.subf %260, %259 : vector<8x128xf32>
    %262 = arith.mulf %245, %261 : vector<8x128xf32>
    %263 = vector.broadcast %256 : vector<8x1xf32> to vector<8x128xf32>
    %264 = vector.broadcast %252 : vector<1x128xf32> to vector<8x128xf32>
    %265 = arith.mulf %263, %264 : vector<8x128xf32>
    %cst_54 = arith.constant 1.000000e+00 : f32
    %266 = vector.broadcast %cst_54 : f32 to vector<8x128xf32>
    %267 = arith.subf %266, %265 : vector<8x128xf32>
    %268 = arith.mulf %251, %267 : vector<8x128xf32>
    %269 = vector.extract_strided_slice %9 {offsets = [15, 0], sizes = [1, 128], strides = [1, 1]} : vector<32x128xf32> to vector<1x128xf32>
    %cst_55 = arith.constant 1.000000e+00 : f32
    %270 = vector.broadcast %cst_55 : f32 to vector<1x128xf32>
    %271 = arith.subf %270, %269 : vector<1x128xf32>
    %272 = vector.extract_strided_slice %10 {offsets = [0, 15], sizes = [8, 1], strides = [1, 1]} : vector<8x32xf32> to vector<8x1xf32>
    %273 = vector.extract_strided_slice %11 {offsets = [0, 15], sizes = [8, 1], strides = [1, 1]} : vector<8x32xf32> to vector<8x1xf32>
    %274 = vector.broadcast %272 : vector<8x1xf32> to vector<8x128xf32>
    %275 = vector.broadcast %271 : vector<1x128xf32> to vector<8x128xf32>
    %276 = arith.mulf %274, %275 : vector<8x128xf32>
    %cst_56 = arith.constant 1.000000e+00 : f32
    %277 = vector.broadcast %cst_56 : f32 to vector<8x128xf32>
    %278 = arith.subf %277, %276 : vector<8x128xf32>
    %279 = arith.mulf %262, %278 : vector<8x128xf32>
    %280 = vector.broadcast %273 : vector<8x1xf32> to vector<8x128xf32>
    %281 = vector.broadcast %269 : vector<1x128xf32> to vector<8x128xf32>
    %282 = arith.mulf %280, %281 : vector<8x128xf32>
    %cst_57 = arith.constant 1.000000e+00 : f32
    %283 = vector.broadcast %cst_57 : f32 to vector<8x128xf32>
    %284 = arith.subf %283, %282 : vector<8x128xf32>
    %285 = arith.mulf %268, %284 : vector<8x128xf32>
    %286 = vector.extract_strided_slice %9 {offsets = [16, 0], sizes = [1, 128], strides = [1, 1]} : vector<32x128xf32> to vector<1x128xf32>
    %cst_58 = arith.constant 1.000000e+00 : f32
    %287 = vector.broadcast %cst_58 : f32 to vector<1x128xf32>
    %288 = arith.subf %287, %286 : vector<1x128xf32>
    %289 = vector.extract_strided_slice %10 {offsets = [0, 16], sizes = [8, 1], strides = [1, 1]} : vector<8x32xf32> to vector<8x1xf32>
    %290 = vector.extract_strided_slice %11 {offsets = [0, 16], sizes = [8, 1], strides = [1, 1]} : vector<8x32xf32> to vector<8x1xf32>
    %291 = vector.broadcast %289 : vector<8x1xf32> to vector<8x128xf32>
    %292 = vector.broadcast %288 : vector<1x128xf32> to vector<8x128xf32>
    %293 = arith.mulf %291, %292 : vector<8x128xf32>
    %cst_59 = arith.constant 1.000000e+00 : f32
    %294 = vector.broadcast %cst_59 : f32 to vector<8x128xf32>
    %295 = arith.subf %294, %293 : vector<8x128xf32>
    %296 = arith.mulf %279, %295 : vector<8x128xf32>
    %297 = vector.broadcast %290 : vector<8x1xf32> to vector<8x128xf32>
    %298 = vector.broadcast %286 : vector<1x128xf32> to vector<8x128xf32>
    %299 = arith.mulf %297, %298 : vector<8x128xf32>
    %cst_60 = arith.constant 1.000000e+00 : f32
    %300 = vector.broadcast %cst_60 : f32 to vector<8x128xf32>
    %301 = arith.subf %300, %299 : vector<8x128xf32>
    %302 = arith.mulf %285, %301 : vector<8x128xf32>
    %303 = vector.extract_strided_slice %9 {offsets = [17, 0], sizes = [1, 128], strides = [1, 1]} : vector<32x128xf32> to vector<1x128xf32>
    %cst_61 = arith.constant 1.000000e+00 : f32
    %304 = vector.broadcast %cst_61 : f32 to vector<1x128xf32>
    %305 = arith.subf %304, %303 : vector<1x128xf32>
    %306 = vector.extract_strided_slice %10 {offsets = [0, 17], sizes = [8, 1], strides = [1, 1]} : vector<8x32xf32> to vector<8x1xf32>
    %307 = vector.extract_strided_slice %11 {offsets = [0, 17], sizes = [8, 1], strides = [1, 1]} : vector<8x32xf32> to vector<8x1xf32>
    %308 = vector.broadcast %306 : vector<8x1xf32> to vector<8x128xf32>
    %309 = vector.broadcast %305 : vector<1x128xf32> to vector<8x128xf32>
    %310 = arith.mulf %308, %309 : vector<8x128xf32>
    %cst_62 = arith.constant 1.000000e+00 : f32
    %311 = vector.broadcast %cst_62 : f32 to vector<8x128xf32>
    %312 = arith.subf %311, %310 : vector<8x128xf32>
    %313 = arith.mulf %296, %312 : vector<8x128xf32>
    %314 = vector.broadcast %307 : vector<8x1xf32> to vector<8x128xf32>
    %315 = vector.broadcast %303 : vector<1x128xf32> to vector<8x128xf32>
    %316 = arith.mulf %314, %315 : vector<8x128xf32>
    %cst_63 = arith.constant 1.000000e+00 : f32
    %317 = vector.broadcast %cst_63 : f32 to vector<8x128xf32>
    %318 = arith.subf %317, %316 : vector<8x128xf32>
    %319 = arith.mulf %302, %318 : vector<8x128xf32>
    %320 = vector.extract_strided_slice %9 {offsets = [18, 0], sizes = [1, 128], strides = [1, 1]} : vector<32x128xf32> to vector<1x128xf32>
    %cst_64 = arith.constant 1.000000e+00 : f32
    %321 = vector.broadcast %cst_64 : f32 to vector<1x128xf32>
    %322 = arith.subf %321, %320 : vector<1x128xf32>
    %323 = vector.extract_strided_slice %10 {offsets = [0, 18], sizes = [8, 1], strides = [1, 1]} : vector<8x32xf32> to vector<8x1xf32>
    %324 = vector.extract_strided_slice %11 {offsets = [0, 18], sizes = [8, 1], strides = [1, 1]} : vector<8x32xf32> to vector<8x1xf32>
    %325 = vector.broadcast %323 : vector<8x1xf32> to vector<8x128xf32>
    %326 = vector.broadcast %322 : vector<1x128xf32> to vector<8x128xf32>
    %327 = arith.mulf %325, %326 : vector<8x128xf32>
    %cst_65 = arith.constant 1.000000e+00 : f32
    %328 = vector.broadcast %cst_65 : f32 to vector<8x128xf32>
    %329 = arith.subf %328, %327 : vector<8x128xf32>
    %330 = arith.mulf %313, %329 : vector<8x128xf32>
    %331 = vector.broadcast %324 : vector<8x1xf32> to vector<8x128xf32>
    %332 = vector.broadcast %320 : vector<1x128xf32> to vector<8x128xf32>
    %333 = arith.mulf %331, %332 : vector<8x128xf32>
    %cst_66 = arith.constant 1.000000e+00 : f32
    %334 = vector.broadcast %cst_66 : f32 to vector<8x128xf32>
    %335 = arith.subf %334, %333 : vector<8x128xf32>
    %336 = arith.mulf %319, %335 : vector<8x128xf32>
    %337 = vector.extract_strided_slice %9 {offsets = [19, 0], sizes = [1, 128], strides = [1, 1]} : vector<32x128xf32> to vector<1x128xf32>
    %cst_67 = arith.constant 1.000000e+00 : f32
    %338 = vector.broadcast %cst_67 : f32 to vector<1x128xf32>
    %339 = arith.subf %338, %337 : vector<1x128xf32>
    %340 = vector.extract_strided_slice %10 {offsets = [0, 19], sizes = [8, 1], strides = [1, 1]} : vector<8x32xf32> to vector<8x1xf32>
    %341 = vector.extract_strided_slice %11 {offsets = [0, 19], sizes = [8, 1], strides = [1, 1]} : vector<8x32xf32> to vector<8x1xf32>
    %342 = vector.broadcast %340 : vector<8x1xf32> to vector<8x128xf32>
    %343 = vector.broadcast %339 : vector<1x128xf32> to vector<8x128xf32>
    %344 = arith.mulf %342, %343 : vector<8x128xf32>
    %cst_68 = arith.constant 1.000000e+00 : f32
    %345 = vector.broadcast %cst_68 : f32 to vector<8x128xf32>
    %346 = arith.subf %345, %344 : vector<8x128xf32>
    %347 = arith.mulf %330, %346 : vector<8x128xf32>
    %348 = vector.broadcast %341 : vector<8x1xf32> to vector<8x128xf32>
    %349 = vector.broadcast %337 : vector<1x128xf32> to vector<8x128xf32>
    %350 = arith.mulf %348, %349 : vector<8x128xf32>
    %cst_69 = arith.constant 1.000000e+00 : f32
    %351 = vector.broadcast %cst_69 : f32 to vector<8x128xf32>
    %352 = arith.subf %351, %350 : vector<8x128xf32>
    %353 = arith.mulf %336, %352 : vector<8x128xf32>
    %354 = vector.extract_strided_slice %9 {offsets = [20, 0], sizes = [1, 128], strides = [1, 1]} : vector<32x128xf32> to vector<1x128xf32>
    %cst_70 = arith.constant 1.000000e+00 : f32
    %355 = vector.broadcast %cst_70 : f32 to vector<1x128xf32>
    %356 = arith.subf %355, %354 : vector<1x128xf32>
    %357 = vector.extract_strided_slice %10 {offsets = [0, 20], sizes = [8, 1], strides = [1, 1]} : vector<8x32xf32> to vector<8x1xf32>
    %358 = vector.extract_strided_slice %11 {offsets = [0, 20], sizes = [8, 1], strides = [1, 1]} : vector<8x32xf32> to vector<8x1xf32>
    %359 = vector.broadcast %357 : vector<8x1xf32> to vector<8x128xf32>
    %360 = vector.broadcast %356 : vector<1x128xf32> to vector<8x128xf32>
    %361 = arith.mulf %359, %360 : vector<8x128xf32>
    %cst_71 = arith.constant 1.000000e+00 : f32
    %362 = vector.broadcast %cst_71 : f32 to vector<8x128xf32>
    %363 = arith.subf %362, %361 : vector<8x128xf32>
    %364 = arith.mulf %347, %363 : vector<8x128xf32>
    %365 = vector.broadcast %358 : vector<8x1xf32> to vector<8x128xf32>
    %366 = vector.broadcast %354 : vector<1x128xf32> to vector<8x128xf32>
    %367 = arith.mulf %365, %366 : vector<8x128xf32>
    %cst_72 = arith.constant 1.000000e+00 : f32
    %368 = vector.broadcast %cst_72 : f32 to vector<8x128xf32>
    %369 = arith.subf %368, %367 : vector<8x128xf32>
    %370 = arith.mulf %353, %369 : vector<8x128xf32>
    %371 = vector.extract_strided_slice %9 {offsets = [21, 0], sizes = [1, 128], strides = [1, 1]} : vector<32x128xf32> to vector<1x128xf32>
    %cst_73 = arith.constant 1.000000e+00 : f32
    %372 = vector.broadcast %cst_73 : f32 to vector<1x128xf32>
    %373 = arith.subf %372, %371 : vector<1x128xf32>
    %374 = vector.extract_strided_slice %10 {offsets = [0, 21], sizes = [8, 1], strides = [1, 1]} : vector<8x32xf32> to vector<8x1xf32>
    %375 = vector.extract_strided_slice %11 {offsets = [0, 21], sizes = [8, 1], strides = [1, 1]} : vector<8x32xf32> to vector<8x1xf32>
    %376 = vector.broadcast %374 : vector<8x1xf32> to vector<8x128xf32>
    %377 = vector.broadcast %373 : vector<1x128xf32> to vector<8x128xf32>
    %378 = arith.mulf %376, %377 : vector<8x128xf32>
    %cst_74 = arith.constant 1.000000e+00 : f32
    %379 = vector.broadcast %cst_74 : f32 to vector<8x128xf32>
    %380 = arith.subf %379, %378 : vector<8x128xf32>
    %381 = arith.mulf %364, %380 : vector<8x128xf32>
    %382 = vector.broadcast %375 : vector<8x1xf32> to vector<8x128xf32>
    %383 = vector.broadcast %371 : vector<1x128xf32> to vector<8x128xf32>
    %384 = arith.mulf %382, %383 : vector<8x128xf32>
    %cst_75 = arith.constant 1.000000e+00 : f32
    %385 = vector.broadcast %cst_75 : f32 to vector<8x128xf32>
    %386 = arith.subf %385, %384 : vector<8x128xf32>
    %387 = arith.mulf %370, %386 : vector<8x128xf32>
    %388 = vector.extract_strided_slice %9 {offsets = [22, 0], sizes = [1, 128], strides = [1, 1]} : vector<32x128xf32> to vector<1x128xf32>
    %cst_76 = arith.constant 1.000000e+00 : f32
    %389 = vector.broadcast %cst_76 : f32 to vector<1x128xf32>
    %390 = arith.subf %389, %388 : vector<1x128xf32>
    %391 = vector.extract_strided_slice %10 {offsets = [0, 22], sizes = [8, 1], strides = [1, 1]} : vector<8x32xf32> to vector<8x1xf32>
    %392 = vector.extract_strided_slice %11 {offsets = [0, 22], sizes = [8, 1], strides = [1, 1]} : vector<8x32xf32> to vector<8x1xf32>
    %393 = vector.broadcast %391 : vector<8x1xf32> to vector<8x128xf32>
    %394 = vector.broadcast %390 : vector<1x128xf32> to vector<8x128xf32>
    %395 = arith.mulf %393, %394 : vector<8x128xf32>
    %cst_77 = arith.constant 1.000000e+00 : f32
    %396 = vector.broadcast %cst_77 : f32 to vector<8x128xf32>
    %397 = arith.subf %396, %395 : vector<8x128xf32>
    %398 = arith.mulf %381, %397 : vector<8x128xf32>
    %399 = vector.broadcast %392 : vector<8x1xf32> to vector<8x128xf32>
    %400 = vector.broadcast %388 : vector<1x128xf32> to vector<8x128xf32>
    %401 = arith.mulf %399, %400 : vector<8x128xf32>
    %cst_78 = arith.constant 1.000000e+00 : f32
    %402 = vector.broadcast %cst_78 : f32 to vector<8x128xf32>
    %403 = arith.subf %402, %401 : vector<8x128xf32>
    %404 = arith.mulf %387, %403 : vector<8x128xf32>
    %405 = vector.extract_strided_slice %9 {offsets = [23, 0], sizes = [1, 128], strides = [1, 1]} : vector<32x128xf32> to vector<1x128xf32>
    %cst_79 = arith.constant 1.000000e+00 : f32
    %406 = vector.broadcast %cst_79 : f32 to vector<1x128xf32>
    %407 = arith.subf %406, %405 : vector<1x128xf32>
    %408 = vector.extract_strided_slice %10 {offsets = [0, 23], sizes = [8, 1], strides = [1, 1]} : vector<8x32xf32> to vector<8x1xf32>
    %409 = vector.extract_strided_slice %11 {offsets = [0, 23], sizes = [8, 1], strides = [1, 1]} : vector<8x32xf32> to vector<8x1xf32>
    %410 = vector.broadcast %408 : vector<8x1xf32> to vector<8x128xf32>
    %411 = vector.broadcast %407 : vector<1x128xf32> to vector<8x128xf32>
    %412 = arith.mulf %410, %411 : vector<8x128xf32>
    %cst_80 = arith.constant 1.000000e+00 : f32
    %413 = vector.broadcast %cst_80 : f32 to vector<8x128xf32>
    %414 = arith.subf %413, %412 : vector<8x128xf32>
    %415 = arith.mulf %398, %414 : vector<8x128xf32>
    %416 = vector.broadcast %409 : vector<8x1xf32> to vector<8x128xf32>
    %417 = vector.broadcast %405 : vector<1x128xf32> to vector<8x128xf32>
    %418 = arith.mulf %416, %417 : vector<8x128xf32>
    %cst_81 = arith.constant 1.000000e+00 : f32
    %419 = vector.broadcast %cst_81 : f32 to vector<8x128xf32>
    %420 = arith.subf %419, %418 : vector<8x128xf32>
    %421 = arith.mulf %404, %420 : vector<8x128xf32>
    %422 = vector.extract_strided_slice %9 {offsets = [24, 0], sizes = [1, 128], strides = [1, 1]} : vector<32x128xf32> to vector<1x128xf32>
    %cst_82 = arith.constant 1.000000e+00 : f32
    %423 = vector.broadcast %cst_82 : f32 to vector<1x128xf32>
    %424 = arith.subf %423, %422 : vector<1x128xf32>
    %425 = vector.extract_strided_slice %10 {offsets = [0, 24], sizes = [8, 1], strides = [1, 1]} : vector<8x32xf32> to vector<8x1xf32>
    %426 = vector.extract_strided_slice %11 {offsets = [0, 24], sizes = [8, 1], strides = [1, 1]} : vector<8x32xf32> to vector<8x1xf32>
    %427 = vector.broadcast %425 : vector<8x1xf32> to vector<8x128xf32>
    %428 = vector.broadcast %424 : vector<1x128xf32> to vector<8x128xf32>
    %429 = arith.mulf %427, %428 : vector<8x128xf32>
    %cst_83 = arith.constant 1.000000e+00 : f32
    %430 = vector.broadcast %cst_83 : f32 to vector<8x128xf32>
    %431 = arith.subf %430, %429 : vector<8x128xf32>
    %432 = arith.mulf %415, %431 : vector<8x128xf32>
    %433 = vector.broadcast %426 : vector<8x1xf32> to vector<8x128xf32>
    %434 = vector.broadcast %422 : vector<1x128xf32> to vector<8x128xf32>
    %435 = arith.mulf %433, %434 : vector<8x128xf32>
    %cst_84 = arith.constant 1.000000e+00 : f32
    %436 = vector.broadcast %cst_84 : f32 to vector<8x128xf32>
    %437 = arith.subf %436, %435 : vector<8x128xf32>
    %438 = arith.mulf %421, %437 : vector<8x128xf32>
    %439 = vector.extract_strided_slice %9 {offsets = [25, 0], sizes = [1, 128], strides = [1, 1]} : vector<32x128xf32> to vector<1x128xf32>
    %cst_85 = arith.constant 1.000000e+00 : f32
    %440 = vector.broadcast %cst_85 : f32 to vector<1x128xf32>
    %441 = arith.subf %440, %439 : vector<1x128xf32>
    %442 = vector.extract_strided_slice %10 {offsets = [0, 25], sizes = [8, 1], strides = [1, 1]} : vector<8x32xf32> to vector<8x1xf32>
    %443 = vector.extract_strided_slice %11 {offsets = [0, 25], sizes = [8, 1], strides = [1, 1]} : vector<8x32xf32> to vector<8x1xf32>
    %444 = vector.broadcast %442 : vector<8x1xf32> to vector<8x128xf32>
    %445 = vector.broadcast %441 : vector<1x128xf32> to vector<8x128xf32>
    %446 = arith.mulf %444, %445 : vector<8x128xf32>
    %cst_86 = arith.constant 1.000000e+00 : f32
    %447 = vector.broadcast %cst_86 : f32 to vector<8x128xf32>
    %448 = arith.subf %447, %446 : vector<8x128xf32>
    %449 = arith.mulf %432, %448 : vector<8x128xf32>
    %450 = vector.broadcast %443 : vector<8x1xf32> to vector<8x128xf32>
    %451 = vector.broadcast %439 : vector<1x128xf32> to vector<8x128xf32>
    %452 = arith.mulf %450, %451 : vector<8x128xf32>
    %cst_87 = arith.constant 1.000000e+00 : f32
    %453 = vector.broadcast %cst_87 : f32 to vector<8x128xf32>
    %454 = arith.subf %453, %452 : vector<8x128xf32>
    %455 = arith.mulf %438, %454 : vector<8x128xf32>
    %456 = vector.extract_strided_slice %9 {offsets = [26, 0], sizes = [1, 128], strides = [1, 1]} : vector<32x128xf32> to vector<1x128xf32>
    %cst_88 = arith.constant 1.000000e+00 : f32
    %457 = vector.broadcast %cst_88 : f32 to vector<1x128xf32>
    %458 = arith.subf %457, %456 : vector<1x128xf32>
    %459 = vector.extract_strided_slice %10 {offsets = [0, 26], sizes = [8, 1], strides = [1, 1]} : vector<8x32xf32> to vector<8x1xf32>
    %460 = vector.extract_strided_slice %11 {offsets = [0, 26], sizes = [8, 1], strides = [1, 1]} : vector<8x32xf32> to vector<8x1xf32>
    %461 = vector.broadcast %459 : vector<8x1xf32> to vector<8x128xf32>
    %462 = vector.broadcast %458 : vector<1x128xf32> to vector<8x128xf32>
    %463 = arith.mulf %461, %462 : vector<8x128xf32>
    %cst_89 = arith.constant 1.000000e+00 : f32
    %464 = vector.broadcast %cst_89 : f32 to vector<8x128xf32>
    %465 = arith.subf %464, %463 : vector<8x128xf32>
    %466 = arith.mulf %449, %465 : vector<8x128xf32>
    %467 = vector.broadcast %460 : vector<8x1xf32> to vector<8x128xf32>
    %468 = vector.broadcast %456 : vector<1x128xf32> to vector<8x128xf32>
    %469 = arith.mulf %467, %468 : vector<8x128xf32>
    %cst_90 = arith.constant 1.000000e+00 : f32
    %470 = vector.broadcast %cst_90 : f32 to vector<8x128xf32>
    %471 = arith.subf %470, %469 : vector<8x128xf32>
    %472 = arith.mulf %455, %471 : vector<8x128xf32>
    %473 = vector.extract_strided_slice %9 {offsets = [27, 0], sizes = [1, 128], strides = [1, 1]} : vector<32x128xf32> to vector<1x128xf32>
    %cst_91 = arith.constant 1.000000e+00 : f32
    %474 = vector.broadcast %cst_91 : f32 to vector<1x128xf32>
    %475 = arith.subf %474, %473 : vector<1x128xf32>
    %476 = vector.extract_strided_slice %10 {offsets = [0, 27], sizes = [8, 1], strides = [1, 1]} : vector<8x32xf32> to vector<8x1xf32>
    %477 = vector.extract_strided_slice %11 {offsets = [0, 27], sizes = [8, 1], strides = [1, 1]} : vector<8x32xf32> to vector<8x1xf32>
    %478 = vector.broadcast %476 : vector<8x1xf32> to vector<8x128xf32>
    %479 = vector.broadcast %475 : vector<1x128xf32> to vector<8x128xf32>
    %480 = arith.mulf %478, %479 : vector<8x128xf32>
    %cst_92 = arith.constant 1.000000e+00 : f32
    %481 = vector.broadcast %cst_92 : f32 to vector<8x128xf32>
    %482 = arith.subf %481, %480 : vector<8x128xf32>
    %483 = arith.mulf %466, %482 : vector<8x128xf32>
    %484 = vector.broadcast %477 : vector<8x1xf32> to vector<8x128xf32>
    %485 = vector.broadcast %473 : vector<1x128xf32> to vector<8x128xf32>
    %486 = arith.mulf %484, %485 : vector<8x128xf32>
    %cst_93 = arith.constant 1.000000e+00 : f32
    %487 = vector.broadcast %cst_93 : f32 to vector<8x128xf32>
    %488 = arith.subf %487, %486 : vector<8x128xf32>
    %489 = arith.mulf %472, %488 : vector<8x128xf32>
    %490 = vector.extract_strided_slice %9 {offsets = [28, 0], sizes = [1, 128], strides = [1, 1]} : vector<32x128xf32> to vector<1x128xf32>
    %cst_94 = arith.constant 1.000000e+00 : f32
    %491 = vector.broadcast %cst_94 : f32 to vector<1x128xf32>
    %492 = arith.subf %491, %490 : vector<1x128xf32>
    %493 = vector.extract_strided_slice %10 {offsets = [0, 28], sizes = [8, 1], strides = [1, 1]} : vector<8x32xf32> to vector<8x1xf32>
    %494 = vector.extract_strided_slice %11 {offsets = [0, 28], sizes = [8, 1], strides = [1, 1]} : vector<8x32xf32> to vector<8x1xf32>
    %495 = vector.broadcast %493 : vector<8x1xf32> to vector<8x128xf32>
    %496 = vector.broadcast %492 : vector<1x128xf32> to vector<8x128xf32>
    %497 = arith.mulf %495, %496 : vector<8x128xf32>
    %cst_95 = arith.constant 1.000000e+00 : f32
    %498 = vector.broadcast %cst_95 : f32 to vector<8x128xf32>
    %499 = arith.subf %498, %497 : vector<8x128xf32>
    %500 = arith.mulf %483, %499 : vector<8x128xf32>
    %501 = vector.broadcast %494 : vector<8x1xf32> to vector<8x128xf32>
    %502 = vector.broadcast %490 : vector<1x128xf32> to vector<8x128xf32>
    %503 = arith.mulf %501, %502 : vector<8x128xf32>
    %cst_96 = arith.constant 1.000000e+00 : f32
    %504 = vector.broadcast %cst_96 : f32 to vector<8x128xf32>
    %505 = arith.subf %504, %503 : vector<8x128xf32>
    %506 = arith.mulf %489, %505 : vector<8x128xf32>
    %507 = vector.extract_strided_slice %9 {offsets = [29, 0], sizes = [1, 128], strides = [1, 1]} : vector<32x128xf32> to vector<1x128xf32>
    %cst_97 = arith.constant 1.000000e+00 : f32
    %508 = vector.broadcast %cst_97 : f32 to vector<1x128xf32>
    %509 = arith.subf %508, %507 : vector<1x128xf32>
    %510 = vector.extract_strided_slice %10 {offsets = [0, 29], sizes = [8, 1], strides = [1, 1]} : vector<8x32xf32> to vector<8x1xf32>
    %511 = vector.extract_strided_slice %11 {offsets = [0, 29], sizes = [8, 1], strides = [1, 1]} : vector<8x32xf32> to vector<8x1xf32>
    %512 = vector.broadcast %510 : vector<8x1xf32> to vector<8x128xf32>
    %513 = vector.broadcast %509 : vector<1x128xf32> to vector<8x128xf32>
    %514 = arith.mulf %512, %513 : vector<8x128xf32>
    %cst_98 = arith.constant 1.000000e+00 : f32
    %515 = vector.broadcast %cst_98 : f32 to vector<8x128xf32>
    %516 = arith.subf %515, %514 : vector<8x128xf32>
    %517 = arith.mulf %500, %516 : vector<8x128xf32>
    %518 = vector.broadcast %511 : vector<8x1xf32> to vector<8x128xf32>
    %519 = vector.broadcast %507 : vector<1x128xf32> to vector<8x128xf32>
    %520 = arith.mulf %518, %519 : vector<8x128xf32>
    %cst_99 = arith.constant 1.000000e+00 : f32
    %521 = vector.broadcast %cst_99 : f32 to vector<8x128xf32>
    %522 = arith.subf %521, %520 : vector<8x128xf32>
    %523 = arith.mulf %506, %522 : vector<8x128xf32>
    %524 = vector.extract_strided_slice %9 {offsets = [30, 0], sizes = [1, 128], strides = [1, 1]} : vector<32x128xf32> to vector<1x128xf32>
    %cst_100 = arith.constant 1.000000e+00 : f32
    %525 = vector.broadcast %cst_100 : f32 to vector<1x128xf32>
    %526 = arith.subf %525, %524 : vector<1x128xf32>
    %527 = vector.extract_strided_slice %10 {offsets = [0, 30], sizes = [8, 1], strides = [1, 1]} : vector<8x32xf32> to vector<8x1xf32>
    %528 = vector.extract_strided_slice %11 {offsets = [0, 30], sizes = [8, 1], strides = [1, 1]} : vector<8x32xf32> to vector<8x1xf32>
    %529 = vector.broadcast %527 : vector<8x1xf32> to vector<8x128xf32>
    %530 = vector.broadcast %526 : vector<1x128xf32> to vector<8x128xf32>
    %531 = arith.mulf %529, %530 : vector<8x128xf32>
    %cst_101 = arith.constant 1.000000e+00 : f32
    %532 = vector.broadcast %cst_101 : f32 to vector<8x128xf32>
    %533 = arith.subf %532, %531 : vector<8x128xf32>
    %534 = arith.mulf %517, %533 : vector<8x128xf32>
    %535 = vector.broadcast %528 : vector<8x1xf32> to vector<8x128xf32>
    %536 = vector.broadcast %524 : vector<1x128xf32> to vector<8x128xf32>
    %537 = arith.mulf %535, %536 : vector<8x128xf32>
    %cst_102 = arith.constant 1.000000e+00 : f32
    %538 = vector.broadcast %cst_102 : f32 to vector<8x128xf32>
    %539 = arith.subf %538, %537 : vector<8x128xf32>
    %540 = arith.mulf %523, %539 : vector<8x128xf32>
    %541 = vector.extract_strided_slice %9 {offsets = [31, 0], sizes = [1, 128], strides = [1, 1]} : vector<32x128xf32> to vector<1x128xf32>
    %cst_103 = arith.constant 1.000000e+00 : f32
    %542 = vector.broadcast %cst_103 : f32 to vector<1x128xf32>
    %543 = arith.subf %542, %541 : vector<1x128xf32>
    %544 = vector.extract_strided_slice %10 {offsets = [0, 31], sizes = [8, 1], strides = [1, 1]} : vector<8x32xf32> to vector<8x1xf32>
    %545 = vector.extract_strided_slice %11 {offsets = [0, 31], sizes = [8, 1], strides = [1, 1]} : vector<8x32xf32> to vector<8x1xf32>
    %546 = vector.broadcast %544 : vector<8x1xf32> to vector<8x128xf32>
    %547 = vector.broadcast %543 : vector<1x128xf32> to vector<8x128xf32>
    %548 = arith.mulf %546, %547 : vector<8x128xf32>
    %cst_104 = arith.constant 1.000000e+00 : f32
    %549 = vector.broadcast %cst_104 : f32 to vector<8x128xf32>
    %550 = arith.subf %549, %548 : vector<8x128xf32>
    %551 = arith.mulf %534, %550 : vector<8x128xf32>
    %552 = vector.broadcast %545 : vector<8x1xf32> to vector<8x128xf32>
    %553 = vector.broadcast %541 : vector<1x128xf32> to vector<8x128xf32>
    %554 = arith.mulf %552, %553 : vector<8x128xf32>
    %cst_105 = arith.constant 1.000000e+00 : f32
    %555 = vector.broadcast %cst_105 : f32 to vector<8x128xf32>
    %556 = arith.subf %555, %554 : vector<8x128xf32>
    %557 = arith.mulf %540, %556 : vector<8x128xf32>
    %c0_106 = arith.constant 0 : index
    %c0_107 = arith.constant 0 : index
    %558 = vector.load %arg5[%c0_106, %c0_107] : memref<8x1xf32, #tpu.memory_space<vmem>>, vector<8x1xf32>
    %cst_108 = arith.constant 1.000000e+00 : f32
    %559 = vector.broadcast %cst_108 : f32 to vector<8x1xf32>
    %560 = arith.subf %559, %558 : vector<8x1xf32>
    %561 = vector.broadcast %560 : vector<8x1xf32> to vector<8x128xf32>
    %562 = arith.mulf %561, %551 : vector<8x128xf32>
    %cst_109 = arith.constant 1.000000e+00 : f32
    %563 = vector.broadcast %cst_109 : f32 to vector<8x128xf32>
    %564 = arith.subf %563, %557 : vector<8x128xf32>
    %565 = vector.broadcast %558 : vector<8x1xf32> to vector<8x128xf32>
    %566 = arith.mulf %565, %564 : vector<8x128xf32>
    %567 = arith.addf %562, %566 : vector<8x128xf32>
    %c0_110 = arith.constant 0 : index
    %c0_111 = arith.constant 0 : index
    %568 = vector.load %arg6[%c0_110, %c0_111] : memref<8x128xf32, #tpu.memory_space<vmem>>, vector<8x128xf32>
    tpu.vector_store %arg6[%c0_110, %c0_111], %567 {strides = array<i32>} : memref<8x128xf32, #tpu.memory_space<vmem>>, vector<8x128xf32>,
    return
  }
  func.func @transform_0(%arg0: i32) -> (i32, i32) {
    %c0_i32 = arith.constant 0 : i32
    %c0_i32_0 = arith.constant 0 : i32
    return %c0_i32, %arg0 : i32, i32
  }
  func.func @transform_1(%arg0: i32) -> (i32, i32) {
    %c0_i32 = arith.constant 0 : i32
    %c0_i32_0 = arith.constant 0 : i32
    %c0_i32_1 = arith.constant 0 : i32
    return %c0_i32, %c0_i32_0 : i32, i32
  }
  func.func @transform_2(%arg0: i32) -> (i32, i32) {
    %c0_i32 = arith.constant 0 : i32
    %c0_i32_0 = arith.constant 0 : i32
    %c0_i32_1 = arith.constant 0 : i32
    return %c0_i32, %c0_i32_0 : i32, i32
  }
  func.func @transform_3(%arg0: i32) -> (i32, i32) {
    %c0_i32 = arith.constant 0 : i32
    %c0_i32_0 = arith.constant 0 : i32
    %c0_i32_1 = arith.constant 0 : i32
    return %c0_i32, %c0_i32_0 : i32, i32
  }
  func.func @transform_4(%arg0: i32) -> (i32, i32) {
    %c0_i32 = arith.constant 0 : i32
    %c0_i32_0 = arith.constant 0 : i32
    %c0_i32_1 = arith.constant 0 : i32
    return %c0_i32, %c0_i32_0 : i32, i32
  }
  func.func @transform_5(%arg0: i32) -> (i32, i32) {
    %c0_i32 = arith.constant 0 : i32
    %c0_i32_0 = arith.constant 0 : i32
    return %c0_i32, %arg0 : i32, i32
  }
}

</mosaic_0001>

<llo_original>
// kernel: neural_logic_network.3
$region0: #{neural_logic_network.3}
  #allocation0 [shape = 'u32[]', space=smem, size = 0x4, offset = 0x4, fixed_abs, tag = 'smem constant byte address 0x4 - core index']
  #allocation1 [shape = 'u32[144,128]{1,0:T(1,128)}', space=vmem, size = 0x12000, scoped, tag = 'internal scratch']
  %s0 = inlined_call_operand.vmem [shape: f32[16,256], index: 0, kind: input, shape index: {}]
  %s1 = inlined_call_operand.vmem [shape: f32[32,16], index: 1, kind: input, shape index: {}]
  %s2 = inlined_call_operand.vmem [shape: f32[32,16], index: 2, kind: input, shape index: {}]
  %s3 = inlined_call_operand.vmem [shape: f32[16,1], index: 3, kind: input, shape index: {}]
  %s4 = inlined_call_operand.vmem [shape: f32[32,1], index: 4, kind: input, shape index: {}]
  %s5 = inlined_call_operand.vmem [shape: f32[32,256], index: 5, kind: output, shape index: {}]
  %s6 = sld [smem:[#allocation0]]
  $region125: #{neural_logic_network.3} parent=0
    _
  %s8 = ssub.s32 1, %s6
  %s9 = scalar_select 0, %s8, %s6
  $region1: #{neural_logic_network.3} parent=0
    #allocation2 [shape = 'u8[16384]{0}', space=vmem, size = 0x4000, scoped, tag = 'input window, operand 0']
    #allocation3 [shape = 'u8[32768]{0}', space=vmem, size = 0x8000, scoped, tag = 'output window, operand 0']
    loop: start=0, step=1, limit=4
    $region2: #{neural_logic_network.3} parent=1 // loop_pre_header
      _
    $region3: #{neural_logic_network.3} parent=1 // loop_header
      %s11 = sphi 0, %s15
      %p12 = scmp.ge.s32.totalorder %s11, 4
      %s21 = sphi 0, %s23
      %s24 = sphi 0, %s21
      %s25 = sphi 0, %s24
      %s41 = sphi 0, %s25
      %s45 = sphi 0, %s45
      %s47 = sphi 0, %s45
      %s48 = sphi 0, %s47
      %s62 = sphi 0, %s48
      %s66 = sphi 0, %s66
      %s68 = sphi 0, %s66
      %s69 = sphi 0, %s68
      %s83 = sphi 0, %s69
      %s87 = sphi 0, %s87
      %s89 = sphi 0, %s87
      %s90 = sphi 0, %s89
      %s104 = sphi 0, %s90
      %s108 = sphi 0, %s108
      %s110 = sphi 0, %s108
      %s111 = sphi 0, %s110
      %s125 = sphi 0, %s111
      %s131 = sphi 0, %s133
      %s134 = sphi 0, %s131
      %s135 = sphi 0, %s134
      %s151 = sphi 0, %s135
    $region4: #{neural_logic_network.3} parent=1 // loop_header_branch
      %14 = sbr.rel (%p12) target = $region8
    $region5: #{neural_logic_network.3} parent=1 // loop_body
      %s16 = ssub.s32 %s11, 1
      %s17 = ssub.s32 %s11, 2
      %s18 = sadd.s32 %s11, 1
      %s19 = ssub.s32 %s11, %s18
      %p20 = scmp.eq.s32.totalorder %s19, 0
      %s22 = sadd.s32 %s21, 1
      %s23 = scalar_select %p20, %s21, %s22
      %p26 = pneg %p20
      %p27 = scmp.eq.s32.totalorder %s11, 1
      %p28 = por %p26, %p27
      %p29 = scmp.ne.s32.totalorder %s21, %s24
      %p30 = scmp.eq.s32.totalorder %s11, 0
      %p31 = por %p29, %p30
      %p32 = scmp.ne.s32.totalorder %s21, %s24
      %p33 = scmp.eq.s32.totalorder %s16, 1
      %p34 = por %p32, %p33
      %p35 = scmp.ne.s32.totalorder %s24, %s25
      %p36 = scmp.eq.s32.totalorder %s16, 0
      %p37 = por %p35, %p36
      %p38 = scmp.ne.s32.totalorder %s24, %s25
      %p39 = scmp.eq.s32.totalorder %s17, 1
      %p40 = por %p38, %p39
      %p42 = scmp.ne.s32.totalorder %s25, %s41
      %p43 = scmp.eq.s32.totalorder %s17, 0
      %p44 = por %p42, %p43
      %s46 = sadd.s32 %s45, 1
      %p49 = scmp.eq.s32.totalorder %s11, 1
      %p50 = scmp.ne.s32.totalorder %s45, %s47
      %p51 = scmp.eq.s32.totalorder %s11, 0
      %p52 = por %p50, %p51
      %p53 = scmp.ne.s32.totalorder %s45, %s47
      %p54 = scmp.eq.s32.totalorder %s16, 1
      %p55 = por %p53, %p54
      %p56 = scmp.ne.s32.totalorder %s47, %s48
      %p57 = scmp.eq.s32.totalorder %s16, 0
      %p58 = por %p56, %p57
      %p59 = scmp.ne.s32.totalorder %s47, %s48
      %p60 = scmp.eq.s32.totalorder %s17, 1
      %p61 = por %p59, %p60
      %p63 = scmp.ne.s32.totalorder %s48, %s62
      %p64 = scmp.eq.s32.totalorder %s17, 0
      %p65 = por %p63, %p64
      %s67 = sadd.s32 %s66, 1
      %p70 = scmp.eq.s32.totalorder %s11, 1
      %p71 = scmp.ne.s32.totalorder %s66, %s68
      %p72 = scmp.eq.s32.totalorder %s11, 0
      %p73 = por %p71, %p72
      %p74 = scmp.ne.s32.totalorder %s66, %s68
      %p75 = scmp.eq.s32.totalorder %s16, 1
      %p76 = por %p74, %p75
      %p77 = scmp.ne.s32.totalorder %s68, %s69
      %p78 = scmp.eq.s32.totalorder %s16, 0
      %p79 = por %p77, %p78
      %p80 = scmp.ne.s32.totalorder %s68, %s69
      %p81 = scmp.eq.s32.totalorder %s17, 1
      %p82 = por %p80, %p81
      %p84 = scmp.ne.s32.totalorder %s69, %s83
      %p85 = scmp.eq.s32.totalorder %s17, 0
      %p86 = por %p84, %p85
      %s88 = sadd.s32 %s87, 1
      %p91 = scmp.eq.s32.totalorder %s11, 1
      %p92 = scmp.ne.s32.totalorder %s87, %s89
      %p93 = scmp.eq.s32.totalorder %s11, 0
      %p94 = por %p92, %p93
      %p95 = scmp.ne.s32.totalorder %s87, %s89
      %p96 = scmp.eq.s32.totalorder %s16, 1
      %p97 = por %p95, %p96
      %p98 = scmp.ne.s32.totalorder %s89, %s90
      %p99 = scmp.eq.s32.totalorder %s16, 0
      %p100 = por %p98, %p99
      %p101 = scmp.ne.s32.totalorder %s89, %s90
      %p102 = scmp.eq.s32.totalorder %s17, 1
      %p103 = por %p101, %p102
      %p105 = scmp.ne.s32.totalorder %s90, %s104
      %p106 = scmp.eq.s32.totalorder %s17, 0
      %p107 = por %p105, %p106
      %s109 = sadd.s32 %s108, 1
      %p112 = scmp.eq.s32.totalorder %s11, 1
      %p113 = scmp.ne.s32.totalorder %s108, %s110
      %p114 = scmp.eq.s32.totalorder %s11, 0
      %p115 = por %p113, %p114
      %p116 = scmp.ne.s32.totalorder %s108, %s110
      %p117 = scmp.eq.s32.totalorder %s16, 1
      %p118 = por %p116, %p117
      %p119 = scmp.ne.s32.totalorder %s110, %s111
      %p120 = scmp.eq.s32.totalorder %s16, 0
      %p121 = por %p119, %p120
      %p122 = scmp.ne.s32.totalorder %s110, %s111
      %p123 = scmp.eq.s32.totalorder %s17, 1
      %p124 = por %p122, %p123
      %p126 = scmp.ne.s32.totalorder %s111, %s125
      %p127 = scmp.eq.s32.totalorder %s17, 0
      %p128 = por %p126, %p127
      %s129 = ssub.s32 %s11, %s18
      %p130 = scmp.eq.s32.totalorder %s129, 0
      %s132 = sadd.s32 %s131, 1
      %s133 = scalar_select %p130, %s131, %s132
      %p136 = pneg %p130
      %p137 = scmp.eq.s32.totalorder %s11, 1
      %p138 = por %p136, %p137
      %p139 = scmp.ne.s32.totalorder %s131, %s134
      %p140 = scmp.eq.s32.totalorder %s11, 0
      %p141 = por %p139, %p140
      %p142 = scmp.ne.s32.totalorder %s131, %s134
      %p143 = scmp.eq.s32.totalorder %s16, 1
      %p144 = por %p142, %p143
      %p145 = scmp.ne.s32.totalorder %s134, %s135
      %p146 = scmp.eq.s32.totalorder %s16, 0
      %p147 = por %p145, %p146
      %p148 = scmp.ne.s32.totalorder %s134, %s135
      %p149 = scmp.eq.s32.totalorder %s17, 1
      %p150 = por %p148, %p149
      %p152 = scmp.ne.s32.totalorder %s135, %s151
      %p153 = scmp.eq.s32.totalorder %s17, 0
      %p154 = por %p152, %p153
      %p155 = scmp.le.s32.totalorder 1, %s11
      %p156 = scmp.lt.s32.totalorder %s11, 3
      %p157 = pnand %p155, %p156
      %p158 = pneg %p157
      // Predicated region
      $region9: #{neural_logic_network.3} parent=5 // pred_check
        _
      $region10: #{neural_logic_network.3} parent=5 // pred_check_branch
        %160 = sbr.rel (%p157) target = $region12
      $region11: #{neural_logic_network.3} parent=5 // pred_region
        %s161 = ssub.s32 %s11, 1
        // Predicated region
        $region13: #{neural_logic_network.3} parent=11 // pred_check
          %p162 = pneg %p58
        $region14: #{neural_logic_network.3} parent=11 // pred_check_branch
          %164 = sbr.rel (%p162) target = $region16
        $region15: #{neural_logic_network.3} parent=11 // pred_region
          _
        $region16: #{neural_logic_network.3} parent=11 // pred_fallthru
          _
        // Predicated region
        $region17: #{neural_logic_network.3} parent=11 // pred_check
          %p165 = pneg %p79
        $region18: #{neural_logic_network.3} parent=11 // pred_check_branch
          %167 = sbr.rel (%p165) target = $region20
        $region19: #{neural_logic_network.3} parent=11 // pred_region
          _
        $region20: #{neural_logic_network.3} parent=11 // pred_fallthru
          _
        // Predicated region
        $region21: #{neural_logic_network.3} parent=11 // pred_check
          %p168 = pneg %p100
        $region22: #{neural_logic_network.3} parent=11 // pred_check_branch
          %170 = sbr.rel (%p168) target = $region24
        $region23: #{neural_logic_network.3} parent=11 // pred_region
          _
        $region24: #{neural_logic_network.3} parent=11 // pred_fallthru
          _
        // Predicated region
        $region25: #{neural_logic_network.3} parent=11 // pred_check
          %p171 = pneg %p121
        $region26: #{neural_logic_network.3} parent=11 // pred_check_branch
          %173 = sbr.rel (%p171) target = $region28
        $region27: #{neural_logic_network.3} parent=11 // pred_region
          _
        $region28: #{neural_logic_network.3} parent=11 // pred_fallthru
          _
      $region12: #{neural_logic_network.3} parent=5 // pred_fallthru
        _
      %p174 = scmp.lt.s32.totalorder %s11, 2
      // Predicated region
      $region29: #{neural_logic_network.3} parent=5 // pred_check
        %p175 = pneg %p174
      $region30: #{neural_logic_network.3} parent=5 // pred_check_branch
        %177 = sbr.rel (%p175) target = $region32
      $region31: #{neural_logic_network.3} parent=5 // pred_region
        // Predicated region
        $region33: #{neural_logic_network.3} parent=31 // pred_check
          %p178 = pneg %p31
        $region34: #{neural_logic_network.3} parent=31 // pred_check_branch
          %180 = sbr.rel (%p178) target = $region36
        $region35: #{neural_logic_network.3} parent=31 // pred_region
          %s181 = sand.u32 %s21, 1
          %s182 = sand.u32 %s21, 1
          %s183 = smul.addr %s182, 16
          %s184 = scalar_lea.vmem [#allocation2], %s183
          %s185 = smul.addr %s11, 8
          %s186 = scalar_lea.vmem %s0, %s185
          // Predicated region
          $region37: #{neural_logic_network.3} parent=35 // pred_check
            _
          $region38: #{neural_logic_network.3} parent=35 // pred_check_branch
            %188 = sbr.rel (0) target = $region40
          $region39: #{neural_logic_network.3} parent=35 // pred_region
            // Predicated region
            $region41: #{neural_logic_network.3} parent=39 // pred_check
              _
            $region42: #{neural_logic_network.3} parent=39 // pred_check_branch
              %190 = sbr.rel (0) target = $region44
            $region43: #{neural_logic_network.3} parent=39 // pred_region
              // Predicated region
              $region56: #{neural_logic_network.3} parent=43 // pred_check
                _
              $region57: #{neural_logic_network.3} parent=43 // pred_check_branch
                %207 = sbr.rel (0) target = $region59
              $region58: #{neural_logic_network.3} parent=43 // pred_region
                loop: start=0, step=1, limit=1
                $region60: #{neural_logic_network.3} parent=58 // loop_pre_header
                  _
                $region61: #{neural_logic_network.3} parent=58 // loop_header
                  %s209 = sphi 0, %s213
                  %p210 = scmp.ge.s32.totalorder %s209, 1
                  %s214 = sphi %s186, %s186
                  %s215 = sphi %s184, %s184
                $region62: #{neural_logic_network.3} parent=58 // loop_header_branch
                  %212 = sbr.rel (%p210) target = $region66
                $region63: #{neural_logic_network.3} parent=58 // loop_body
                  %v216 = vld [vmem:[%s214] sm:$0xff]
                  %217 = vst [vmem:[%s215] sm:$0xff] %v216
                  %v218 = vld [vmem:[%s214 + $0x10] sm:$0xff]
                  %219 = vst [vmem:[%s215 + $0x8] sm:$0xff] %v218
                $region64: #{neural_logic_network.3} parent=58 // loop_footer
                  %s213 = sadd.s32 1, %s209
                $region65: #{neural_logic_network.3} parent=58 // loop_footer_branch
                  %208 = sbr.rel target = $region61
                $region66: #{neural_logic_network.3} parent=58 // loop_exit
                  _
              $region59: #{neural_logic_network.3} parent=43 // pred_fallthru
                _
              // Predicated region
              $region67: #{neural_logic_network.3} parent=43 // pred_check
                _
              $region68: #{neural_logic_network.3} parent=43 // pred_check_branch
                %221 = sbr.rel target = $region70
              $region69: #{neural_logic_network.3} parent=43 // pred_region
                _
              $region70: #{neural_logic_network.3} parent=43 // pred_fallthru
                _
            $region44: #{neural_logic_network.3} parent=39 // pred_fallthru
              _
            // Predicated region
            $region45: #{neural_logic_network.3} parent=39 // pred_check
              _
            $region46: #{neural_logic_network.3} parent=39 // pred_check_branch
              %192 = sbr.rel target = $region48
            $region47: #{neural_logic_network.3} parent=39 // pred_region
              loop: start=0, step=1, limit=1
              $region49: #{neural_logic_network.3} parent=47 // loop_pre_header
                _
              $region50: #{neural_logic_network.3} parent=47 // loop_header
                %s195 = sphi 0, %s199
                %p196 = scmp.ge.s32.totalorder %s195, 1
                %s200 = sphi %s186, %s186
                %s201 = sphi %s184, %s184
              $region51: #{neural_logic_network.3} parent=47 // loop_header_branch
                %198 = sbr.rel (%p196) target = $region55
              $region52: #{neural_logic_network.3} parent=47 // loop_body
                %v202 = vld [vmem:[%s200] sm:$0xff]
                %203 = vst [vmem:[%s201] sm:$0xff] %v202
                %v204 = vld [vmem:[%s200 + $0x10] sm:$0xff]
                %205 = vst [vmem:[%s201 + $0x8] sm:$0xff] %v204
              $region53: #{neural_logic_network.3} parent=47 // loop_footer
                %s199 = sadd.s32 1, %s195
              $region54: #{neural_logic_network.3} parent=47 // loop_footer_branch
                %194 = sbr.rel target = $region50
              $region55: #{neural_logic_network.3} parent=47 // loop_exit
                _
            $region48: #{neural_logic_network.3} parent=39 // pred_fallthru
              _
          $region40: #{neural_logic_network.3} parent=35 // pred_fallthru
            _
          %222 = vnop
        $region36: #{neural_logic_network.3} parent=31 // pred_fallthru
          _
      $region32: #{neural_logic_network.3} parent=5 // pred_fallthru
        _
      %p223 = scmp.le.s32.totalorder 1, %s11
      %p224 = scmp.lt.s32.totalorder %s11, 3
      %p225 = pnand %p223, %p224
      %p226 = pneg %p225
      // Predicated region
      $region71: #{neural_logic_network.3} parent=5 // pred_check
        _
      $region72: #{neural_logic_network.3} parent=5 // pred_check_branch
        %228 = sbr.rel (%p225) target = $region74
      $region73: #{neural_logic_network.3} parent=5 // pred_region
        %s229 = ssub.s32 %s11, 1
        %s230 = sand.u32 %s24, 1
        %s231 = sand.u32 %s24, 1
        %s232 = smul.addr %s231, 16
        %s233 = scalar_lea.vmem [#allocation2], %s232
        // Predicated region
        $region75: #{neural_logic_network.3} parent=73 // pred_check
          %p234 = pneg %p37
        $region76: #{neural_logic_network.3} parent=73 // pred_check_branch
          %236 = sbr.rel (%p234) target = $region78
        $region77: #{neural_logic_network.3} parent=73 // pred_region
          _
        $region78: #{neural_logic_network.3} parent=73 // pred_fallthru
          _
        %s237 = sand.u32 %s24, 1
        %s238 = sand.u32 %s24, 1
        %s239 = smul.addr %s238, 16
        %s240 = scalar_lea.vmem [#allocation2], %s239
        %p241 = pneg %p37
        %p242 = pneg %p34
        %p243 = pneg %p58
        %p244 = pneg %p55
        %p245 = pneg %p79
        %p246 = pneg %p76
        %p247 = pneg %p100
        %p248 = pneg %p97
        %p249 = pneg %p121
        %p250 = pneg %p118
        %p251 = pneg %p147
        %p252 = pneg %p144
        %s253 = sand.u32 %s134, 1
        %s254 = sand.u32 %s134, 1
        %s255 = smul.addr %s254, 32
        %s256 = scalar_lea.vmem [#allocation3], %s255
        %v257 = vld [vmem:[%s233] sm:$0xff]
        %v258 = vld [vmem:[%s233 + $0x8] sm:$0xff]
        %v259 = vld [vmem:[%s3] sm:$0xff]
        %v260 = vld [vmem:[%s3 + $0x8] sm:$0xff]
        %v261 = vmul.f32 %v259, 2.0
        %v262 = vmul.f32 %v260, 2.0
        %v263 = vsub.f32 1.0, %v261
        %v264 = vsub.f32 1.0, %v262
        %266 = vset.pattern.permute.xlu0 0
        %267 = vperm.xlu0 %266, %v263
        %v268 = vpop.permute.xlu0 %267
        %271 = vset.pattern.permute.xlu0 0
        %272 = vperm.xlu0 %271, %v264
        %v273 = vpop.permute.xlu0 %272
        %v275 = vmul.f32 %v268, %v257
        %v276 = vmul.f32 %v273, %v258
        %278 = vset.pattern.permute.xlu0 0
        %279 = vperm.xlu0 %278, %v259
        %v280 = vpop.permute.xlu0 %279
        %283 = vset.pattern.permute.xlu0 0
        %284 = vperm.xlu0 %283, %v260
        %v285 = vpop.permute.xlu0 %284
        %v287 = vadd.f32 %v280, %v275
        %v288 = vadd.f32 %v285, %v276
        %v289 = vld [vmem:[%s1] sm:$0xff]
        %v290 = vld [vmem:[%s1 + $0x8] sm:$0xff]
        %v291 = vld [vmem:[%s1 + $0x10] sm:$0xff]
        %v292 = vld [vmem:[%s1 + $0x18] sm:$0xff]
        %v293 = vld [vmem:[%s2] sm:$0xff]
        %v294 = vld [vmem:[%s2 + $0x8] sm:$0xff]
        %v295 = vld [vmem:[%s2 + $0x10] sm:$0xff]
        %v296 = vld [vmem:[%s2 + $0x18] sm:$0xff]
        %v297 = vsub.f32 1.0, %v287
        %299 = vset.pattern.permute.xlu0 0
        %300 = vperm.xlu0 %299, %v289
        %v301 = vpop.permute.xlu0 %300
        %304 = vset.pattern.permute.xlu0 0
        %305 = vperm.xlu0 %304, %v290
        %v306 = vpop.permute.xlu0 %305
        %309 = vset.pattern.permute.xlu0 0
        %310 = vperm.xlu0 %309, %v291
        %v311 = vpop.permute.xlu0 %310
        %314 = vset.pattern.permute.xlu0 0
        %315 = vperm.xlu0 %314, %v292
        %v316 = vpop.permute.xlu0 %315
        %v318 = vlaneseq
        %v319 = vshrl.u32 %v318, 7
        %v320 = vsub.s32 0, %v319
        %v321 = vrot.slane %v297, %v320
        %v322 = vmul.f32 %v301, %v321
        %v323 = vmul.f32 %v306, %v321
        %v324 = vmul.f32 %v311, %v321
        %v325 = vmul.f32 %v316, %v321
        %v326 = vsub.f32 1.0, %v322
        %v327 = vsub.f32 1.0, %v323
        %v328 = vsub.f32 1.0, %v324
        %v329 = vsub.f32 1.0, %v325
        %331 = vset.pattern.permute.xlu0 0
        %332 = vperm.xlu0 %331, %v293
        %v333 = vpop.permute.xlu0 %332
        %336 = vset.pattern.permute.xlu0 0
        %337 = vperm.xlu0 %336, %v294
        %v338 = vpop.permute.xlu0 %337
        %341 = vset.pattern.permute.xlu0 0
        %342 = vperm.xlu0 %341, %v295
        %v343 = vpop.permute.xlu0 %342
        %346 = vset.pattern.permute.xlu0 0
        %347 = vperm.xlu0 %346, %v296
        %v348 = vpop.permute.xlu0 %347
        %v350 = vlaneseq
        %v351 = vshrl.u32 %v350, 7
        %v352 = vsub.s32 0, %v351
        %v353 = vrot.slane %v287, %v352
        %v354 = vmul.f32 %v333, %v353
        %v355 = vmul.f32 %v338, %v353
        %v356 = vmul.f32 %v343, %v353
        %v357 = vmul.f32 %v348, %v353
        %v358 = vsub.f32 1.0, %v354
        %v359 = vsub.f32 1.0, %v355
        %v360 = vsub.f32 1.0, %v356
        %v361 = vsub.f32 1.0, %v357
        %362 = vset.pattern.permute.xlu0 1
        %363 = vperm.xlu0 %362, %v289
        %v364 = vpop.permute.xlu0 %363
        %366 = vset.pattern.permute.xlu0 1
        %367 = vperm.xlu0 %366, %v290
        %v368 = vpop.permute.xlu0 %367
        %370 = vset.pattern.permute.xlu0 1
        %371 = vperm.xlu0 %370, %v291
        %v372 = vpop.permute.xlu0 %371
        %374 = vset.pattern.permute.xlu0 1
        %375 = vperm.xlu0 %374, %v292
        %v376 = vpop.permute.xlu0 %375
        %v378 = vlaneseq
        %v379 = vshrl.u32 %v378, 7
        %v380 = vsub.s32 1, %v379
        %v381 = vrot.slane %v297, %v380
        %v382 = vmul.f32 %v364, %v381
        %v383 = vmul.f32 %v368, %v381
        %v384 = vmul.f32 %v372, %v381
        %v385 = vmul.f32 %v376, %v381
        %v386 = vsub.f32 1.0, %v382
        %v387 = vsub.f32 1.0, %v383
        %v388 = vsub.f32 1.0, %v384
        %v389 = vsub.f32 1.0, %v385
        %v390 = vmul.f32 %v326, %v386
        %v391 = vmul.f32 %v327, %v387
        %v392 = vmul.f32 %v328, %v388
        %v393 = vmul.f32 %v329, %v389
        %394 = vset.pattern.permute.xlu0 1
        %395 = vperm.xlu0 %394, %v293
        %v396 = vpop.permute.xlu0 %395
        %398 = vset.pattern.permute.xlu0 1
        %399 = vperm.xlu0 %398, %v294
        %v400 = vpop.permute.xlu0 %399
        %402 = vset.pattern.permute.xlu0 1
        %403 = vperm.xlu0 %402, %v295
        %v404 = vpop.permute.xlu0 %403
        %406 = vset.pattern.permute.xlu0 1
        %407 = vperm.xlu0 %406, %v296
        %v408 = vpop.permute.xlu0 %407
        %v410 = vlaneseq
        %v411 = vshrl.u32 %v410, 7
        %v412 = vsub.s32 1, %v411
        %v413 = vrot.slane %v287, %v412
        %v414 = vmul.f32 %v396, %v413
        %v415 = vmul.f32 %v400, %v413
        %v416 = vmul.f32 %v404, %v413
        %v417 = vmul.f32 %v408, %v413
        %v418 = vsub.f32 1.0, %v414
        %v419 = vsub.f32 1.0, %v415
        %v420 = vsub.f32 1.0, %v416
        %v421 = vsub.f32 1.0, %v417
        %v422 = vmul.f32 %v358, %v418
        %v423 = vmul.f32 %v359, %v419
        %v424 = vmul.f32 %v360, %v420
        %v425 = vmul.f32 %v361, %v421
        %426 = vset.pattern.permute.xlu0 2
        %427 = vperm.xlu0 %426, %v289
        %v428 = vpop.permute.xlu0 %427
        %430 = vset.pattern.permute.xlu0 2
        %431 = vperm.xlu0 %430, %v290
        %v432 = vpop.permute.xlu0 %431
        %434 = vset.pattern.permute.xlu0 2
        %435 = vperm.xlu0 %434, %v291
        %v436 = vpop.permute.xlu0 %435
        %438 = vset.pattern.permute.xlu0 2
        %439 = vperm.xlu0 %438, %v292
        %v440 = vpop.permute.xlu0 %439
        %v442 = vlaneseq
        %v443 = vshrl.u32 %v442, 7
        %v444 = vsub.s32 2, %v443
        %v445 = vrot.slane %v297, %v444
        %v446 = vmul.f32 %v428, %v445
        %v447 = vmul.f32 %v432, %v445
        %v448 = vmul.f32 %v436, %v445
        %v449 = vmul.f32 %v440, %v445
        %v450 = vsub.f32 1.0, %v446
        %v451 = vsub.f32 1.0, %v447
        %v452 = vsub.f32 1.0, %v448
        %v453 = vsub.f32 1.0, %v449
        %v454 = vmul.f32 %v390, %v450
        %v455 = vmul.f32 %v391, %v451
        %v456 = vmul.f32 %v392, %v452
        %v457 = vmul.f32 %v393, %v453
        %458 = vset.pattern.permute.xlu0 2
        %459 = vperm.xlu0 %458, %v293
        %v460 = vpop.permute.xlu0 %459
        %462 = vset.pattern.permute.xlu0 2
        %463 = vperm.xlu0 %462, %v294
        %v464 = vpop.permute.xlu0 %463
        %466 = vset.pattern.permute.xlu0 2
        %467 = vperm.xlu0 %466, %v295
        %v468 = vpop.permute.xlu0 %467
        %470 = vset.pattern.permute.xlu0 2
        %471 = vperm.xlu0 %470, %v296
        %v472 = vpop.permute.xlu0 %471
        %v474 = vlaneseq
        %v475 = vshrl.u32 %v474, 7
        %v476 = vsub.s32 2, %v475
        %v477 = vrot.slane %v287, %v476
        %v478 = vmul.f32 %v460, %v477
        %v479 = vmul.f32 %v464, %v477
        %v480 = vmul.f32 %v468, %v477
        %v481 = vmul.f32 %v472, %v477
        %v482 = vsub.f32 1.0, %v478
        %v483 = vsub.f32 1.0, %v479
        %v484 = vsub.f32 1.0, %v480
        %v485 = vsub.f32 1.0, %v481
        %v486 = vmul.f32 %v422, %v482
        %v487 = vmul.f32 %v423, %v483
        %v488 = vmul.f32 %v424, %v484
        %v489 = vmul.f32 %v425, %v485
        %490 = vset.pattern.permute.xlu0 3
        %491 = vperm.xlu0 %490, %v289
        %v492 = vpop.permute.xlu0 %491
        %494 = vset.pattern.permute.xlu0 3
        %495 = vperm.xlu0 %494, %v290
        %v496 = vpop.permute.xlu0 %495
        %498 = vset.pattern.permute.xlu0 3
        %499 = vperm.xlu0 %498, %v291
        %v500 = vpop.permute.xlu0 %499
        %502 = vset.pattern.permute.xlu0 3
        %503 = vperm.xlu0 %502, %v292
        %v504 = vpop.permute.xlu0 %503
        %v506 = vlaneseq
        %v507 = vshrl.u32 %v506, 7
        %v508 = vsub.s32 3, %v507
        %v509 = vrot.slane %v297, %v508
        %v510 = vmul.f32 %v492, %v509
        %v511 = vmul.f32 %v496, %v509
        %v512 = vmul.f32 %v500, %v509
        %v513 = vmul.f32 %v504, %v509
        %v514 = vsub.f32 1.0, %v510
        %v515 = vsub.f32 1.0, %v511
        %v516 = vsub.f32 1.0, %v512
        %v517 = vsub.f32 1.0, %v513
        %v518 = vmul.f32 %v454, %v514
        %v519 = vmul.f32 %v455, %v515
        %v520 = vmul.f32 %v456, %v516
        %v521 = vmul.f32 %v457, %v517
        %522 = vset.pattern.permute.xlu0 3
        %523 = vperm.xlu0 %522, %v293
        %v524 = vpop.permute.xlu0 %523
        %526 = vset.pattern.permute.xlu0 3
        %527 = vperm.xlu0 %526, %v294
        %v528 = vpop.permute.xlu0 %527
        %530 = vset.pattern.permute.xlu0 3
        %531 = vperm.xlu0 %530, %v295
        %v532 = vpop.permute.xlu0 %531
        %534 = vset.pattern.permute.xlu0 3
        %535 = vperm.xlu0 %534, %v296
        %v536 = vpop.permute.xlu0 %535
        %v538 = vlaneseq
        %v539 = vshrl.u32 %v538, 7
        %v540 = vsub.s32 3, %v539
        %v541 = vrot.slane %v287, %v540
        %v542 = vmul.f32 %v524, %v541
        %v543 = vmul.f32 %v528, %v541
        %v544 = vmul.f32 %v532, %v541
        %v545 = vmul.f32 %v536, %v541
        %v546 = vsub.f32 1.0, %v542
        %v547 = vsub.f32 1.0, %v543
        %v548 = vsub.f32 1.0, %v544
        %v549 = vsub.f32 1.0, %v545
        %v550 = vmul.f32 %v486, %v546
        %v551 = vmul.f32 %v487, %v547
        %v552 = vmul.f32 %v488, %v548
        %v553 = vmul.f32 %v489, %v549
        %554 = vset.pattern.permute.xlu0 4
        %555 = vperm.xlu0 %554, %v289
        %v556 = vpop.permute.xlu0 %555
        %558 = vset.pattern.permute.xlu0 4
        %559 = vperm.xlu0 %558, %v290
        %v560 = vpop.permute.xlu0 %559
        %562 = vset.pattern.permute.xlu0 4
        %563 = vperm.xlu0 %562, %v291
        %v564 = vpop.permute.xlu0 %563
        %566 = vset.pattern.permute.xlu0 4
        %567 = vperm.xlu0 %566, %v292
        %v568 = vpop.permute.xlu0 %567
        %v570 = vlaneseq
        %v571 = vshrl.u32 %v570, 7
        %v572 = vsub.s32 4, %v571
        %v573 = vrot.slane %v297, %v572
        %v574 = vmul.f32 %v556, %v573
        %v575 = vmul.f32 %v560, %v573
        %v576 = vmul.f32 %v564, %v573
        %v577 = vmul.f32 %v568, %v573
        %v578 = vsub.f32 1.0, %v574
        %v579 = vsub.f32 1.0, %v575
        %v580 = vsub.f32 1.0, %v576
        %v581 = vsub.f32 1.0, %v577
        %v582 = vmul.f32 %v518, %v578
        %v583 = vmul.f32 %v519, %v579
        %v584 = vmul.f32 %v520, %v580
        %v585 = vmul.f32 %v521, %v581
        %586 = vset.pattern.permute.xlu0 4
        %587 = vperm.xlu0 %586, %v293
        %v588 = vpop.permute.xlu0 %587
        %590 = vset.pattern.permute.xlu0 4
        %591 = vperm.xlu0 %590, %v294
        %v592 = vpop.permute.xlu0 %591
        %594 = vset.pattern.permute.xlu0 4
        %595 = vperm.xlu0 %594, %v295
        %v596 = vpop.permute.xlu0 %595
        %598 = vset.pattern.permute.xlu0 4
        %599 = vperm.xlu0 %598, %v296
        %v600 = vpop.permute.xlu0 %599
        %v602 = vlaneseq
        %v603 = vshrl.u32 %v602, 7
        %v604 = vsub.s32 4, %v603
        %v605 = vrot.slane %v287, %v604
        %v606 = vmul.f32 %v588, %v605
        %v607 = vmul.f32 %v592, %v605
        %v608 = vmul.f32 %v596, %v605
        %v609 = vmul.f32 %v600, %v605
        %v610 = vsub.f32 1.0, %v606
        %v611 = vsub.f32 1.0, %v607
        %v612 = vsub.f32 1.0, %v608
        %v613 = vsub.f32 1.0, %v609
        %v614 = vmul.f32 %v550, %v610
        %v615 = vmul.f32 %v551, %v611
        %v616 = vmul.f32 %v552, %v612
        %v617 = vmul.f32 %v553, %v613
        %618 = vset.pattern.permute.xlu0 5
        %619 = vperm.xlu0 %618, %v289
        %v620 = vpop.permute.xlu0 %619
        %622 = vset.pattern.permute.xlu0 5
        %623 = vperm.xlu0 %622, %v290
        %v624 = vpop.permute.xlu0 %623
        %626 = vset.pattern.permute.xlu0 5
        %627 = vperm.xlu0 %626, %v291
        %v628 = vpop.permute.xlu0 %627
        %630 = vset.pattern.permute.xlu0 5
        %631 = vperm.xlu0 %630, %v292
        %v632 = vpop.permute.xlu0 %631
        %v634 = vlaneseq
        %v635 = vshrl.u32 %v634, 7
        %v636 = vsub.s32 5, %v635
        %v637 = vrot.slane %v297, %v636
        %v638 = vmul.f32 %v620, %v637
        %v639 = vmul.f32 %v624, %v637
        %v640 = vmul.f32 %v628, %v637
        %v641 = vmul.f32 %v632, %v637
        %v642 = vsub.f32 1.0, %v638
        %v643 = vsub.f32 1.0, %v639
        %v644 = vsub.f32 1.0, %v640
        %v645 = vsub.f32 1.0, %v641
        %v646 = vmul.f32 %v582, %v642
        %v647 = vmul.f32 %v583, %v643
        %v648 = vmul.f32 %v584, %v644
        %v649 = vmul.f32 %v585, %v645
        %650 = vset.pattern.permute.xlu0 5
        %651 = vperm.xlu0 %650, %v293
        %v652 = vpop.permute.xlu0 %651
        %654 = vset.pattern.permute.xlu0 5
        %655 = vperm.xlu0 %654, %v294
        %v656 = vpop.permute.xlu0 %655
        %658 = vset.pattern.permute.xlu0 5
        %659 = vperm.xlu0 %658, %v295
        %v660 = vpop.permute.xlu0 %659
        %662 = vset.pattern.permute.xlu0 5
        %663 = vperm.xlu0 %662, %v296
        %v664 = vpop.permute.xlu0 %663
        %v666 = vlaneseq
        %v667 = vshrl.u32 %v666, 7
        %v668 = vsub.s32 5, %v667
        %v669 = vrot.slane %v287, %v668
        %v670 = vmul.f32 %v652, %v669
        %v671 = vmul.f32 %v656, %v669
        %v672 = vmul.f32 %v660, %v669
        %v673 = vmul.f32 %v664, %v669
        %v674 = vsub.f32 1.0, %v670
        %v675 = vsub.f32 1.0, %v671
        %v676 = vsub.f32 1.0, %v672
        %v677 = vsub.f32 1.0, %v673
        %v678 = vmul.f32 %v614, %v674
        %v679 = vmul.f32 %v615, %v675
        %v680 = vmul.f32 %v616, %v676
        %v681 = vmul.f32 %v617, %v677
        %682 = vset.pattern.permute.xlu0 6
        %683 = vperm.xlu0 %682, %v289
        %v684 = vpop.permute.xlu0 %683
        %686 = vset.pattern.permute.xlu0 6
        %687 = vperm.xlu0 %686, %v290
        %v688 = vpop.permute.xlu0 %687
        %690 = vset.pattern.permute.xlu0 6
        %691 = vperm.xlu0 %690, %v291
        %v692 = vpop.permute.xlu0 %691
        %694 = vset.pattern.permute.xlu0 6
        %695 = vperm.xlu0 %694, %v292
        %v696 = vpop.permute.xlu0 %695
        %v698 = vlaneseq
        %v699 = vshrl.u32 %v698, 7
        %v700 = vsub.s32 6, %v699
        %v701 = vrot.slane %v297, %v700
        %v702 = vmul.f32 %v684, %v701
        %v703 = vmul.f32 %v688, %v701
        %v704 = vmul.f32 %v692, %v701
        %v705 = vmul.f32 %v696, %v701
        %v706 = vsub.f32 1.0, %v702
        %v707 = vsub.f32 1.0, %v703
        %v708 = vsub.f32 1.0, %v704
        %v709 = vsub.f32 1.0, %v705
        %v710 = vmul.f32 %v646, %v706
        %v711 = vmul.f32 %v647, %v707
        %v712 = vmul.f32 %v648, %v708
        %v713 = vmul.f32 %v649, %v709
        %714 = vset.pattern.permute.xlu0 6
        %715 = vperm.xlu0 %714, %v293
        %v716 = vpop.permute.xlu0 %715
        %718 = vset.pattern.permute.xlu0 6
        %719 = vperm.xlu0 %718, %v294
        %v720 = vpop.permute.xlu0 %719
        %722 = vset.pattern.permute.xlu0 6
        %723 = vperm.xlu0 %722, %v295
        %v724 = vpop.permute.xlu0 %723
        %726 = vset.pattern.permute.xlu0 6
        %727 = vperm.xlu0 %726, %v296
        %v728 = vpop.permute.xlu0 %727
        %v730 = vlaneseq
        %v731 = vshrl.u32 %v730, 7
        %v732 = vsub.s32 6, %v731
        %v733 = vrot.slane %v287, %v732
        %v734 = vmul.f32 %v716, %v733
        %v735 = vmul.f32 %v720, %v733
        %v736 = vmul.f32 %v724, %v733
        %v737 = vmul.f32 %v728, %v733
        %v738 = vsub.f32 1.0, %v734
        %v739 = vsub.f32 1.0, %v735
        %v740 = vsub.f32 1.0, %v736
        %v741 = vsub.f32 1.0, %v737
        %v742 = vmul.f32 %v678, %v738
        %v743 = vmul.f32 %v679, %v739
        %v744 = vmul.f32 %v680, %v740
        %v745 = vmul.f32 %v681, %v741
        %746 = vset.pattern.permute.xlu0 7
        %747 = vperm.xlu0 %746, %v289
        %v748 = vpop.permute.xlu0 %747
        %750 = vset.pattern.permute.xlu0 7
        %751 = vperm.xlu0 %750, %v290
        %v752 = vpop.permute.xlu0 %751
        %754 = vset.pattern.permute.xlu0 7
        %755 = vperm.xlu0 %754, %v291
        %v756 = vpop.permute.xlu0 %755
        %758 = vset.pattern.permute.xlu0 7
        %759 = vperm.xlu0 %758, %v292
        %v760 = vpop.permute.xlu0 %759
        %v762 = vlaneseq
        %v763 = vshrl.u32 %v762, 7
        %v764 = vsub.s32 7, %v763
        %v765 = vrot.slane %v297, %v764
        %v766 = vmul.f32 %v748, %v765
        %v767 = vmul.f32 %v752, %v765
        %v768 = vmul.f32 %v756, %v765
        %v769 = vmul.f32 %v760, %v765
        %v770 = vsub.f32 1.0, %v766
        %v771 = vsub.f32 1.0, %v767
        %v772 = vsub.f32 1.0, %v768
        %v773 = vsub.f32 1.0, %v769
        %v774 = vmul.f32 %v710, %v770
        %v775 = vmul.f32 %v711, %v771
        %v776 = vmul.f32 %v712, %v772
        %v777 = vmul.f32 %v713, %v773
        %778 = vset.pattern.permute.xlu0 7
        %779 = vperm.xlu0 %778, %v293
        %v780 = vpop.permute.xlu0 %779
        %782 = vset.pattern.permute.xlu0 7
        %783 = vperm.xlu0 %782, %v294
        %v784 = vpop.permute.xlu0 %783
        %786 = vset.pattern.permute.xlu0 7
        %787 = vperm.xlu0 %786, %v295
        %v788 = vpop.permute.xlu0 %787
        %790 = vset.pattern.permute.xlu0 7
        %791 = vperm.xlu0 %790, %v296
        %v792 = vpop.permute.xlu0 %791
        %v794 = vlaneseq
        %v795 = vshrl.u32 %v794, 7
        %v796 = vsub.s32 7, %v795
        %v797 = vrot.slane %v287, %v796
        %v798 = vmul.f32 %v780, %v797
        %v799 = vmul.f32 %v784, %v797
        %v800 = vmul.f32 %v788, %v797
        %v801 = vmul.f32 %v792, %v797
        %v802 = vsub.f32 1.0, %v798
        %v803 = vsub.f32 1.0, %v799
        %v804 = vsub.f32 1.0, %v800
        %v805 = vsub.f32 1.0, %v801
        %v806 = vmul.f32 %v742, %v802
        %v807 = vmul.f32 %v743, %v803
        %v808 = vmul.f32 %v744, %v804
        %v809 = vmul.f32 %v745, %v805
        %v810 = vsub.f32 1.0, %v288
        %811 = vset.pattern.permute.xlu0 8
        %812 = vperm.xlu0 %811, %v289
        %v813 = vpop.permute.xlu0 %812
        %815 = vset.pattern.permute.xlu0 8
        %816 = vperm.xlu0 %815, %v290
        %v817 = vpop.permute.xlu0 %816
        %819 = vset.pattern.permute.xlu0 8
        %820 = vperm.xlu0 %819, %v291
        %v821 = vpop.permute.xlu0 %820
        %823 = vset.pattern.permute.xlu0 8
        %824 = vperm.xlu0 %823, %v292
        %v825 = vpop.permute.xlu0 %824
        %v827 = vlaneseq
        %v828 = vshrl.u32 %v827, 7
        %v829 = vsub.s32 0, %v828
        %v830 = vrot.slane %v810, %v829
        %v831 = vmul.f32 %v813, %v830
        %v832 = vmul.f32 %v817, %v830
        %v833 = vmul.f32 %v821, %v830
        %v834 = vmul.f32 %v825, %v830
        %v835 = vsub.f32 1.0, %v831
        %v836 = vsub.f32 1.0, %v832
        %v837 = vsub.f32 1.0, %v833
        %v838 = vsub.f32 1.0, %v834
        %v839 = vmul.f32 %v774, %v835
        %v840 = vmul.f32 %v775, %v836
        %v841 = vmul.f32 %v776, %v837
        %v842 = vmul.f32 %v777, %v838
        %843 = vset.pattern.permute.xlu0 8
        %844 = vperm.xlu0 %843, %v293
        %v845 = vpop.permute.xlu0 %844
        %847 = vset.pattern.permute.xlu0 8
        %848 = vperm.xlu0 %847, %v294
        %v849 = vpop.permute.xlu0 %848
        %851 = vset.pattern.permute.xlu0 8
        %852 = vperm.xlu0 %851, %v295
        %v853 = vpop.permute.xlu0 %852
        %855 = vset.pattern.permute.xlu0 8
        %856 = vperm.xlu0 %855, %v296
        %v857 = vpop.permute.xlu0 %856
        %v859 = vlaneseq
        %v860 = vshrl.u32 %v859, 7
        %v861 = vsub.s32 0, %v860
        %v862 = vrot.slane %v288, %v861
        %v863 = vmul.f32 %v845, %v862
        %v864 = vmul.f32 %v849, %v862
        %v865 = vmul.f32 %v853, %v862
        %v866 = vmul.f32 %v857, %v862
        %v867 = vsub.f32 1.0, %v863
        %v868 = vsub.f32 1.0, %v864
        %v869 = vsub.f32 1.0, %v865
        %v870 = vsub.f32 1.0, %v866
        %v871 = vmul.f32 %v806, %v867
        %v872 = vmul.f32 %v807, %v868
        %v873 = vmul.f32 %v808, %v869
        %v874 = vmul.f32 %v809, %v870
        %875 = vset.pattern.permute.xlu0 9
        %876 = vperm.xlu0 %875, %v289
        %v877 = vpop.permute.xlu0 %876
        %879 = vset.pattern.permute.xlu0 9
        %880 = vperm.xlu0 %879, %v290
        %v881 = vpop.permute.xlu0 %880
        %883 = vset.pattern.permute.xlu0 9
        %884 = vperm.xlu0 %883, %v291
        %v885 = vpop.permute.xlu0 %884
        %887 = vset.pattern.permute.xlu0 9
        %888 = vperm.xlu0 %887, %v292
        %v889 = vpop.permute.xlu0 %888
        %v891 = vlaneseq
        %v892 = vshrl.u32 %v891, 7
        %v893 = vsub.s32 1, %v892
        %v894 = vrot.slane %v810, %v893
        %v895 = vmul.f32 %v877, %v894
        %v896 = vmul.f32 %v881, %v894
        %v897 = vmul.f32 %v885, %v894
        %v898 = vmul.f32 %v889, %v894
        %v899 = vsub.f32 1.0, %v895
        %v900 = vsub.f32 1.0, %v896
        %v901 = vsub.f32 1.0, %v897
        %v902 = vsub.f32 1.0, %v898
        %v903 = vmul.f32 %v839, %v899
        %v904 = vmul.f32 %v840, %v900
        %v905 = vmul.f32 %v841, %v901
        %v906 = vmul.f32 %v842, %v902
        %907 = vset.pattern.permute.xlu0 9
        %908 = vperm.xlu0 %907, %v293
        %v909 = vpop.permute.xlu0 %908
        %911 = vset.pattern.permute.xlu0 9
        %912 = vperm.xlu0 %911, %v294
        %v913 = vpop.permute.xlu0 %912
        %915 = vset.pattern.permute.xlu0 9
        %916 = vperm.xlu0 %915, %v295
        %v917 = vpop.permute.xlu0 %916
        %919 = vset.pattern.permute.xlu0 9
        %920 = vperm.xlu0 %919, %v296
        %v921 = vpop.permute.xlu0 %920
        %v923 = vlaneseq
        %v924 = vshrl.u32 %v923, 7
        %v925 = vsub.s32 1, %v924
        %v926 = vrot.slane %v288, %v925
        %v927 = vmul.f32 %v909, %v926
        %v928 = vmul.f32 %v913, %v926
        %v929 = vmul.f32 %v917, %v926
        %v930 = vmul.f32 %v921, %v926
        %v931 = vsub.f32 1.0, %v927
        %v932 = vsub.f32 1.0, %v928
        %v933 = vsub.f32 1.0, %v929
        %v934 = vsub.f32 1.0, %v930
        %v935 = vmul.f32 %v871, %v931
        %v936 = vmul.f32 %v872, %v932
        %v937 = vmul.f32 %v873, %v933
        %v938 = vmul.f32 %v874, %v934
        %939 = vset.pattern.permute.xlu0 10
        %940 = vperm.xlu0 %939, %v289
        %v941 = vpop.permute.xlu0 %940
        %943 = vset.pattern.permute.xlu0 10
        %944 = vperm.xlu0 %943, %v290
        %v945 = vpop.permute.xlu0 %944
        %947 = vset.pattern.permute.xlu0 10
        %948 = vperm.xlu0 %947, %v291
        %v949 = vpop.permute.xlu0 %948
        %951 = vset.pattern.permute.xlu0 10
        %952 = vperm.xlu0 %951, %v292
        %v953 = vpop.permute.xlu0 %952
        %v955 = vlaneseq
        %v956 = vshrl.u32 %v955, 7
        %v957 = vsub.s32 2, %v956
        %v958 = vrot.slane %v810, %v957
        %v959 = vmul.f32 %v941, %v958
        %v960 = vmul.f32 %v945, %v958
        %v961 = vmul.f32 %v949, %v958
        %v962 = vmul.f32 %v953, %v958
        %v963 = vsub.f32 1.0, %v959
        %v964 = vsub.f32 1.0, %v960
        %v965 = vsub.f32 1.0, %v961
        %v966 = vsub.f32 1.0, %v962
        %v967 = vmul.f32 %v903, %v963
        %v968 = vmul.f32 %v904, %v964
        %v969 = vmul.f32 %v905, %v965
        %v970 = vmul.f32 %v906, %v966
        %971 = vset.pattern.permute.xlu0 10
        %972 = vperm.xlu0 %971, %v293
        %v973 = vpop.permute.xlu0 %972
        %975 = vset.pattern.permute.xlu0 10
        %976 = vperm.xlu0 %975, %v294
        %v977 = vpop.permute.xlu0 %976
        %979 = vset.pattern.permute.xlu0 10
        %980 = vperm.xlu0 %979, %v295
        %v981 = vpop.permute.xlu0 %980
        %983 = vset.pattern.permute.xlu0 10
        %984 = vperm.xlu0 %983, %v296
        %v985 = vpop.permute.xlu0 %984
        %v987 = vlaneseq
        %v988 = vshrl.u32 %v987, 7
        %v989 = vsub.s32 2, %v988
        %v990 = vrot.slane %v288, %v989
        %v991 = vmul.f32 %v973, %v990
        %v992 = vmul.f32 %v977, %v990
        %v993 = vmul.f32 %v981, %v990
        %v994 = vmul.f32 %v985, %v990
        %v995 = vsub.f32 1.0, %v991
        %v996 = vsub.f32 1.0, %v992
        %v997 = vsub.f32 1.0, %v993
        %v998 = vsub.f32 1.0, %v994
        %v999 = vmul.f32 %v935, %v995
        %v1000 = vmul.f32 %v936, %v996
        %v1001 = vmul.f32 %v937, %v997
        %v1002 = vmul.f32 %v938, %v998
        %1003 = vset.pattern.permute.xlu0 11
        %1004 = vperm.xlu0 %1003, %v289
        %v1005 = vpop.permute.xlu0 %1004
        %1007 = vset.pattern.permute.xlu0 11
        %1008 = vperm.xlu0 %1007, %v290
        %v1009 = vpop.permute.xlu0 %1008
        %1011 = vset.pattern.permute.xlu0 11
        %1012 = vperm.xlu0 %1011, %v291
        %v1013 = vpop.permute.xlu0 %1012
        %1015 = vset.pattern.permute.xlu0 11
        %1016 = vperm.xlu0 %1015, %v292
        %v1017 = vpop.permute.xlu0 %1016
        %v1019 = vlaneseq
        %v1020 = vshrl.u32 %v1019, 7
        %v1021 = vsub.s32 3, %v1020
        %v1022 = vrot.slane %v810, %v1021
        %v1023 = vmul.f32 %v1005, %v1022
        %v1024 = vmul.f32 %v1009, %v1022
        %v1025 = vmul.f32 %v1013, %v1022
        %v1026 = vmul.f32 %v1017, %v1022
        %v1027 = vsub.f32 1.0, %v1023
        %v1028 = vsub.f32 1.0, %v1024
        %v1029 = vsub.f32 1.0, %v1025
        %v1030 = vsub.f32 1.0, %v1026
        %v1031 = vmul.f32 %v967, %v1027
        %v1032 = vmul.f32 %v968, %v1028
        %v1033 = vmul.f32 %v969, %v1029
        %v1034 = vmul.f32 %v970, %v1030
        %1035 = vset.pattern.permute.xlu0 11
        %1036 = vperm.xlu0 %1035, %v293
        %v1037 = vpop.permute.xlu0 %1036
        %1039 = vset.pattern.permute.xlu0 11
        %1040 = vperm.xlu0 %1039, %v294
        %v1041 = vpop.permute.xlu0 %1040
        %1043 = vset.pattern.permute.xlu0 11
        %1044 = vperm.xlu0 %1043, %v295
        %v1045 = vpop.permute.xlu0 %1044
        %1047 = vset.pattern.permute.xlu0 11
        %1048 = vperm.xlu0 %1047, %v296
        %v1049 = vpop.permute.xlu0 %1048
        %v1051 = vlaneseq
        %v1052 = vshrl.u32 %v1051, 7
        %v1053 = vsub.s32 3, %v1052
        %v1054 = vrot.slane %v288, %v1053
        %v1055 = vmul.f32 %v1037, %v1054
        %v1056 = vmul.f32 %v1041, %v1054
        %v1057 = vmul.f32 %v1045, %v1054
        %v1058 = vmul.f32 %v1049, %v1054
        %v1059 = vsub.f32 1.0, %v1055
        %v1060 = vsub.f32 1.0, %v1056
        %v1061 = vsub.f32 1.0, %v1057
        %v1062 = vsub.f32 1.0, %v1058
        %v1063 = vmul.f32 %v999, %v1059
        %v1064 = vmul.f32 %v1000, %v1060
        %v1065 = vmul.f32 %v1001, %v1061
        %v1066 = vmul.f32 %v1002, %v1062
        %1067 = vset.pattern.permute.xlu0 12
        %1068 = vperm.xlu0 %1067, %v289
        %v1069 = vpop.permute.xlu0 %1068
        %1071 = vset.pattern.permute.xlu0 12
        %1072 = vperm.xlu0 %1071, %v290
        %v1073 = vpop.permute.xlu0 %1072
        %1075 = vset.pattern.permute.xlu0 12
        %1076 = vperm.xlu0 %1075, %v291
        %v1077 = vpop.permute.xlu0 %1076
        %1079 = vset.pattern.permute.xlu0 12
        %1080 = vperm.xlu0 %1079, %v292
        %v1081 = vpop.permute.xlu0 %1080
        %v1083 = vlaneseq
        %v1084 = vshrl.u32 %v1083, 7
        %v1085 = vsub.s32 4, %v1084
        %v1086 = vrot.slane %v810, %v1085
        %v1087 = vmul.f32 %v1069, %v1086
        %v1088 = vmul.f32 %v1073, %v1086
        %v1089 = vmul.f32 %v1077, %v1086
        %v1090 = vmul.f32 %v1081, %v1086
        %v1091 = vsub.f32 1.0, %v1087
        %v1092 = vsub.f32 1.0, %v1088
        %v1093 = vsub.f32 1.0, %v1089
        %v1094 = vsub.f32 1.0, %v1090
        %v1095 = vmul.f32 %v1031, %v1091
        %v1096 = vmul.f32 %v1032, %v1092
        %v1097 = vmul.f32 %v1033, %v1093
        %v1098 = vmul.f32 %v1034, %v1094
        %1099 = vset.pattern.permute.xlu0 12
        %1100 = vperm.xlu0 %1099, %v293
        %v1101 = vpop.permute.xlu0 %1100
        %1103 = vset.pattern.permute.xlu0 12
        %1104 = vperm.xlu0 %1103, %v294
        %v1105 = vpop.permute.xlu0 %1104
        %1107 = vset.pattern.permute.xlu0 12
        %1108 = vperm.xlu0 %1107, %v295
        %v1109 = vpop.permute.xlu0 %1108
        %1111 = vset.pattern.permute.xlu0 12
        %1112 = vperm.xlu0 %1111, %v296
        %v1113 = vpop.permute.xlu0 %1112
        %v1115 = vlaneseq
        %v1116 = vshrl.u32 %v1115, 7
        %v1117 = vsub.s32 4, %v1116
        %v1118 = vrot.slane %v288, %v1117
        %v1119 = vmul.f32 %v1101, %v1118
        %v1120 = vmul.f32 %v1105, %v1118
        %v1121 = vmul.f32 %v1109, %v1118
        %v1122 = vmul.f32 %v1113, %v1118
        %v1123 = vsub.f32 1.0, %v1119
        %v1124 = vsub.f32 1.0, %v1120
        %v1125 = vsub.f32 1.0, %v1121
        %v1126 = vsub.f32 1.0, %v1122
        %v1127 = vmul.f32 %v1063, %v1123
        %v1128 = vmul.f32 %v1064, %v1124
        %v1129 = vmul.f32 %v1065, %v1125
        %v1130 = vmul.f32 %v1066, %v1126
        %1131 = vset.pattern.permute.xlu0 13
        %1132 = vperm.xlu0 %1131, %v289
        %v1133 = vpop.permute.xlu0 %1132
        %1135 = vset.pattern.permute.xlu0 13
        %1136 = vperm.xlu0 %1135, %v290
        %v1137 = vpop.permute.xlu0 %1136
        %1139 = vset.pattern.permute.xlu0 13
        %1140 = vperm.xlu0 %1139, %v291
        %v1141 = vpop.permute.xlu0 %1140
        %1143 = vset.pattern.permute.xlu0 13
        %1144 = vperm.xlu0 %1143, %v292
        %v1145 = vpop.permute.xlu0 %1144
        %v1147 = vlaneseq
        %v1148 = vshrl.u32 %v1147, 7
        %v1149 = vsub.s32 5, %v1148
        %v1150 = vrot.slane %v810, %v1149
        %v1151 = vmul.f32 %v1133, %v1150
        %v1152 = vmul.f32 %v1137, %v1150
        %v1153 = vmul.f32 %v1141, %v1150
        %v1154 = vmul.f32 %v1145, %v1150
        %v1155 = vsub.f32 1.0, %v1151
        %v1156 = vsub.f32 1.0, %v1152
        %v1157 = vsub.f32 1.0, %v1153
        %v1158 = vsub.f32 1.0, %v1154
        %v1159 = vmul.f32 %v1095, %v1155
        %v1160 = vmul.f32 %v1096, %v1156
        %v1161 = vmul.f32 %v1097, %v1157
        %v1162 = vmul.f32 %v1098, %v1158
        %1163 = vset.pattern.permute.xlu0 13
        %1164 = vperm.xlu0 %1163, %v293
        %v1165 = vpop.permute.xlu0 %1164
        %1167 = vset.pattern.permute.xlu0 13
        %1168 = vperm.xlu0 %1167, %v294
        %v1169 = vpop.permute.xlu0 %1168
        %1171 = vset.pattern.permute.xlu0 13
        %1172 = vperm.xlu0 %1171, %v295
        %v1173 = vpop.permute.xlu0 %1172
        %1175 = vset.pattern.permute.xlu0 13
        %1176 = vperm.xlu0 %1175, %v296
        %v1177 = vpop.permute.xlu0 %1176
        %v1179 = vlaneseq
        %v1180 = vshrl.u32 %v1179, 7
        %v1181 = vsub.s32 5, %v1180
        %v1182 = vrot.slane %v288, %v1181
        %v1183 = vmul.f32 %v1165, %v1182
        %v1184 = vmul.f32 %v1169, %v1182
        %v1185 = vmul.f32 %v1173, %v1182
        %v1186 = vmul.f32 %v1177, %v1182
        %v1187 = vsub.f32 1.0, %v1183
        %v1188 = vsub.f32 1.0, %v1184
        %v1189 = vsub.f32 1.0, %v1185
        %v1190 = vsub.f32 1.0, %v1186
        %v1191 = vmul.f32 %v1127, %v1187
        %v1192 = vmul.f32 %v1128, %v1188
        %v1193 = vmul.f32 %v1129, %v1189
        %v1194 = vmul.f32 %v1130, %v1190
        %1195 = vset.pattern.permute.xlu0 14
        %1196 = vperm.xlu0 %1195, %v289
        %v1197 = vpop.permute.xlu0 %1196
        %1199 = vset.pattern.permute.xlu0 14
        %1200 = vperm.xlu0 %1199, %v290
        %v1201 = vpop.permute.xlu0 %1200
        %1203 = vset.pattern.permute.xlu0 14
        %1204 = vperm.xlu0 %1203, %v291
        %v1205 = vpop.permute.xlu0 %1204
        %1207 = vset.pattern.permute.xlu0 14
        %1208 = vperm.xlu0 %1207, %v292
        %v1209 = vpop.permute.xlu0 %1208
        %v1211 = vlaneseq
        %v1212 = vshrl.u32 %v1211, 7
        %v1213 = vsub.s32 6, %v1212
        %v1214 = vrot.slane %v810, %v1213
        %v1215 = vmul.f32 %v1197, %v1214
        %v1216 = vmul.f32 %v1201, %v1214
        %v1217 = vmul.f32 %v1205, %v1214
        %v1218 = vmul.f32 %v1209, %v1214
        %v1219 = vsub.f32 1.0, %v1215
        %v1220 = vsub.f32 1.0, %v1216
        %v1221 = vsub.f32 1.0, %v1217
        %v1222 = vsub.f32 1.0, %v1218
        %v1223 = vmul.f32 %v1159, %v1219
        %v1224 = vmul.f32 %v1160, %v1220
        %v1225 = vmul.f32 %v1161, %v1221
        %v1226 = vmul.f32 %v1162, %v1222
        %1227 = vset.pattern.permute.xlu0 14
        %1228 = vperm.xlu0 %1227, %v293
        %v1229 = vpop.permute.xlu0 %1228
        %1231 = vset.pattern.permute.xlu0 14
        %1232 = vperm.xlu0 %1231, %v294
        %v1233 = vpop.permute.xlu0 %1232
        %1235 = vset.pattern.permute.xlu0 14
        %1236 = vperm.xlu0 %1235, %v295
        %v1237 = vpop.permute.xlu0 %1236
        %1239 = vset.pattern.permute.xlu0 14
        %1240 = vperm.xlu0 %1239, %v296
        %v1241 = vpop.permute.xlu0 %1240
        %v1243 = vlaneseq
        %v1244 = vshrl.u32 %v1243, 7
        %v1245 = vsub.s32 6, %v1244
        %v1246 = vrot.slane %v288, %v1245
        %v1247 = vmul.f32 %v1229, %v1246
        %v1248 = vmul.f32 %v1233, %v1246
        %v1249 = vmul.f32 %v1237, %v1246
        %v1250 = vmul.f32 %v1241, %v1246
        %v1251 = vsub.f32 1.0, %v1247
        %v1252 = vsub.f32 1.0, %v1248
        %v1253 = vsub.f32 1.0, %v1249
        %v1254 = vsub.f32 1.0, %v1250
        %v1255 = vmul.f32 %v1191, %v1251
        %v1256 = vmul.f32 %v1192, %v1252
        %v1257 = vmul.f32 %v1193, %v1253
        %v1258 = vmul.f32 %v1194, %v1254
        %1259 = vset.pattern.permute.xlu0 15
        %1260 = vperm.xlu0 %1259, %v289
        %v1261 = vpop.permute.xlu0 %1260
        %1263 = vset.pattern.permute.xlu0 15
        %1264 = vperm.xlu0 %1263, %v290
        %v1265 = vpop.permute.xlu0 %1264
        %1267 = vset.pattern.permute.xlu0 15
        %1268 = vperm.xlu0 %1267, %v291
        %v1269 = vpop.permute.xlu0 %1268
        %1271 = vset.pattern.permute.xlu0 15
        %1272 = vperm.xlu0 %1271, %v292
        %v1273 = vpop.permute.xlu0 %1272
        %v1275 = vlaneseq
        %v1276 = vshrl.u32 %v1275, 7
        %v1277 = vsub.s32 7, %v1276
        %v1278 = vrot.slane %v810, %v1277
        %v1279 = vmul.f32 %v1261, %v1278
        %v1280 = vmul.f32 %v1265, %v1278
        %v1281 = vmul.f32 %v1269, %v1278
        %v1282 = vmul.f32 %v1273, %v1278
        %v1283 = vsub.f32 1.0, %v1279
        %v1284 = vsub.f32 1.0, %v1280
        %v1285 = vsub.f32 1.0, %v1281
        %v1286 = vsub.f32 1.0, %v1282
        %v1287 = vmul.f32 %v1223, %v1283
        %v1288 = vmul.f32 %v1224, %v1284
        %v1289 = vmul.f32 %v1225, %v1285
        %v1290 = vmul.f32 %v1226, %v1286
        %1291 = vset.pattern.permute.xlu0 15
        %1292 = vperm.xlu0 %1291, %v293
        %v1293 = vpop.permute.xlu0 %1292
        %1295 = vset.pattern.permute.xlu0 15
        %1296 = vperm.xlu0 %1295, %v294
        %v1297 = vpop.permute.xlu0 %1296
        %1299 = vset.pattern.permute.xlu0 15
        %1300 = vperm.xlu0 %1299, %v295
        %v1301 = vpop.permute.xlu0 %1300
        %1303 = vset.pattern.permute.xlu0 15
        %1304 = vperm.xlu0 %1303, %v296
        %v1305 = vpop.permute.xlu0 %1304
        %v1307 = vlaneseq
        %v1308 = vshrl.u32 %v1307, 7
        %v1309 = vsub.s32 7, %v1308
        %v1310 = vrot.slane %v288, %v1309
        %v1311 = vmul.f32 %v1293, %v1310
        %v1312 = vmul.f32 %v1297, %v1310
        %v1313 = vmul.f32 %v1301, %v1310
        %v1314 = vmul.f32 %v1305, %v1310
        %v1315 = vsub.f32 1.0, %v1311
        %v1316 = vsub.f32 1.0, %v1312
        %v1317 = vsub.f32 1.0, %v1313
        %v1318 = vsub.f32 1.0, %v1314
        %v1319 = vmul.f32 %v1255, %v1315
        %v1320 = vmul.f32 %v1256, %v1316
        %v1321 = vmul.f32 %v1257, %v1317
        %v1322 = vmul.f32 %v1258, %v1318
        %v1323 = vld [vmem:[%s4] sm:$0xff]
        %v1324 = vld [vmem:[%s4 + $0x8] sm:$0xff]
        %v1325 = vld [vmem:[%s4 + $0x10] sm:$0xff]
        %v1326 = vld [vmem:[%s4 + $0x18] sm:$0xff]
        %v1327 = vsub.f32 1.0, %v1323
        %v1328 = vsub.f32 1.0, %v1324
        %v1329 = vsub.f32 1.0, %v1325
        %v1330 = vsub.f32 1.0, %v1326
        %1332 = vset.pattern.permute.xlu0 0
        %1333 = vperm.xlu0 %1332, %v1327
        %v1334 = vpop.permute.xlu0 %1333
        %1337 = vset.pattern.permute.xlu0 0
        %1338 = vperm.xlu0 %1337, %v1328
        %v1339 = vpop.permute.xlu0 %1338
        %1342 = vset.pattern.permute.xlu0 0
        %1343 = vperm.xlu0 %1342, %v1329
        %v1344 = vpop.permute.xlu0 %1343
        %1347 = vset.pattern.permute.xlu0 0
        %1348 = vperm.xlu0 %1347, %v1330
        %v1349 = vpop.permute.xlu0 %1348
        %v1351 = vmul.f32 %v1334, %v1287
        %v1352 = vmul.f32 %v1339, %v1288
        %v1353 = vmul.f32 %v1344, %v1289
        %v1354 = vmul.f32 %v1349, %v1290
        %v1355 = vsub.f32 1.0, %v1319
        %v1356 = vsub.f32 1.0, %v1320
        %v1357 = vsub.f32 1.0, %v1321
        %v1358 = vsub.f32 1.0, %v1322
        %1360 = vset.pattern.permute.xlu0 0
        %1361 = vperm.xlu0 %1360, %v1323
        %v1362 = vpop.permute.xlu0 %1361
        %1365 = vset.pattern.permute.xlu0 0
        %1366 = vperm.xlu0 %1365, %v1324
        %v1367 = vpop.permute.xlu0 %1366
        %1370 = vset.pattern.permute.xlu0 0
        %1371 = vperm.xlu0 %1370, %v1325
        %v1372 = vpop.permute.xlu0 %1371
        %1375 = vset.pattern.permute.xlu0 0
        %1376 = vperm.xlu0 %1375, %v1326
        %v1377 = vpop.permute.xlu0 %1376
        %v1379 = vmul.f32 %v1362, %v1355
        %v1380 = vmul.f32 %v1367, %v1356
        %v1381 = vmul.f32 %v1372, %v1357
        %v1382 = vmul.f32 %v1377, %v1358
        %v1383 = vadd.f32 %v1351, %v1379
        %v1384 = vadd.f32 %v1352, %v1380
        %v1385 = vadd.f32 %v1353, %v1381
        %v1386 = vadd.f32 %v1354, %v1382
        %1387 = vst [vmem:[%s256] sm:$0xff] %v1383
        %1388 = vst [vmem:[%s256 + $0x8] sm:$0xff] %v1384
        %1389 = vst [vmem:[%s256 + $0x10] sm:$0xff] %v1385
        %1390 = vst [vmem:[%s256 + $0x18] sm:$0xff] %v1386
        %s1391 = sand.u32 %s134, 1
        %s1392 = sand.u32 %s134, 1
        %s1393 = smul.addr %s1392, 32
        %s1394 = scalar_lea.vmem [#allocation3], %s1393
        // Predicated region
        $region79: #{neural_logic_network.3} parent=73 // pred_check
          %p1395 = pneg %p144
        $region80: #{neural_logic_network.3} parent=73 // pred_check_branch
          %1397 = sbr.rel (%p1395) target = $region82
        $region81: #{neural_logic_network.3} parent=73 // pred_region
          %s1398 = smul.addr %s16, 8
          %s1399 = scalar_lea.vmem %s5, %s1398
          // Predicated region
          $region83: #{neural_logic_network.3} parent=81 // pred_check
            _
          $region84: #{neural_logic_network.3} parent=81 // pred_check_branch
            %1401 = sbr.rel (0) target = $region86
          $region85: #{neural_logic_network.3} parent=81 // pred_region
            // Predicated region
            $region87: #{neural_logic_network.3} parent=85 // pred_check
              _
            $region88: #{neural_logic_network.3} parent=85 // pred_check_branch
              %1403 = sbr.rel (0) target = $region90
            $region89: #{neural_logic_network.3} parent=85 // pred_region
              // Predicated region
              $region102: #{neural_logic_network.3} parent=89 // pred_check
                _
              $region103: #{neural_logic_network.3} parent=89 // pred_check_branch
                %1424 = sbr.rel (0) target = $region105
              $region104: #{neural_logic_network.3} parent=89 // pred_region
                loop: start=0, step=1, limit=1
                $region106: #{neural_logic_network.3} parent=104 // loop_pre_header
                  _
                $region107: #{neural_logic_network.3} parent=104 // loop_header
                  %s1426 = sphi 0, %s1430
                  %p1427 = scmp.ge.s32.totalorder %s1426, 1
                  %s1431 = sphi %s1394, %s1394
                  %s1432 = sphi %s1399, %s1399
                $region108: #{neural_logic_network.3} parent=104 // loop_header_branch
                  %1429 = sbr.rel (%p1427) target = $region112
                $region109: #{neural_logic_network.3} parent=104 // loop_body
                  %v1433 = vld [vmem:[%s1431] sm:$0xff]
                  %1434 = vst [vmem:[%s1432] sm:$0xff] %v1433
                  %v1435 = vld [vmem:[%s1431 + $0x8] sm:$0xff]
                  %1436 = vst [vmem:[%s1432 + $0x10] sm:$0xff] %v1435
                  %v1437 = vld [vmem:[%s1431 + $0x10] sm:$0xff]
                  %1438 = vst [vmem:[%s1432 + $0x20] sm:$0xff] %v1437
                  %v1439 = vld [vmem:[%s1431 + $0x18] sm:$0xff]
                  %1440 = vst [vmem:[%s1432 + $0x30] sm:$0xff] %v1439
                $region110: #{neural_logic_network.3} parent=104 // loop_footer
                  %s1430 = sadd.s32 1, %s1426
                $region111: #{neural_logic_network.3} parent=104 // loop_footer_branch
                  %1425 = sbr.rel target = $region107
                $region112: #{neural_logic_network.3} parent=104 // loop_exit
                  _
              $region105: #{neural_logic_network.3} parent=89 // pred_fallthru
                _
              // Predicated region
              $region113: #{neural_logic_network.3} parent=89 // pred_check
                _
              $region114: #{neural_logic_network.3} parent=89 // pred_check_branch
                %1442 = sbr.rel target = $region116
              $region115: #{neural_logic_network.3} parent=89 // pred_region
                _
              $region116: #{neural_logic_network.3} parent=89 // pred_fallthru
                _
            $region90: #{neural_logic_network.3} parent=85 // pred_fallthru
              _
            // Predicated region
            $region91: #{neural_logic_network.3} parent=85 // pred_check
              _
            $region92: #{neural_logic_network.3} parent=85 // pred_check_branch
              %1405 = sbr.rel target = $region94
            $region93: #{neural_logic_network.3} parent=85 // pred_region
              loop: start=0, step=1, limit=1
              $region95: #{neural_logic_network.3} parent=93 // loop_pre_header
                _
              $region96: #{neural_logic_network.3} parent=93 // loop_header
                %s1408 = sphi 0, %s1412
                %p1409 = scmp.ge.s32.totalorder %s1408, 1
                %s1413 = sphi %s1394, %s1394
                %s1414 = sphi %s1399, %s1399
              $region97: #{neural_logic_network.3} parent=93 // loop_header_branch
                %1411 = sbr.rel (%p1409) target = $region101
              $region98: #{neural_logic_network.3} parent=93 // loop_body
                %v1415 = vld [vmem:[%s1413] sm:$0xff]
                %1416 = vst [vmem:[%s1414] sm:$0xff] %v1415
                %v1417 = vld [vmem:[%s1413 + $0x8] sm:$0xff]
                %1418 = vst [vmem:[%s1414 + $0x10] sm:$0xff] %v1417
                %v1419 = vld [vmem:[%s1413 + $0x10] sm:$0xff]
                %1420 = vst [vmem:[%s1414 + $0x20] sm:$0xff] %v1419
                %v1421 = vld [vmem:[%s1413 + $0x18] sm:$0xff]
                %1422 = vst [vmem:[%s1414 + $0x30] sm:$0xff] %v1421
              $region99: #{neural_logic_network.3} parent=93 // loop_footer
                %s1412 = sadd.s32 1, %s1408
              $region100: #{neural_logic_network.3} parent=93 // loop_footer_branch
                %1407 = sbr.rel target = $region96
              $region101: #{neural_logic_network.3} parent=93 // loop_exit
                _
            $region94: #{neural_logic_network.3} parent=85 // pred_fallthru
              _
          $region86: #{neural_logic_network.3} parent=81 // pred_fallthru
            _
          %1443 = vnop
        $region82: #{neural_logic_network.3} parent=73 // pred_fallthru
          _
      $region74: #{neural_logic_network.3} parent=5 // pred_fallthru
        _
      %p1444 = scmp.le.s32.totalorder 2, %s11
      // Predicated region
      $region117: #{neural_logic_network.3} parent=5 // pred_check
        %p1445 = pneg %p1444
      $region118: #{neural_logic_network.3} parent=5 // pred_check_branch
        %1447 = sbr.rel (%p1445) target = $region120
      $region119: #{neural_logic_network.3} parent=5 // pred_region
        %s1448 = ssub.s32 %s11, 2
        // Predicated region
        $region121: #{neural_logic_network.3} parent=119 // pred_check
          %p1449 = pneg %p150
        $region122: #{neural_logic_network.3} parent=119 // pred_check_branch
          %1451 = sbr.rel (%p1449) target = $region124
        $region123: #{neural_logic_network.3} parent=119 // pred_region
          %s1452 = sand.u32 %s135, 1
          %s1453 = sand.u32 %s135, 1
          %s1454 = smul.addr %s1453, 32
          %s1455 = scalar_lea.vmem [#allocation3], %s1454
        $region124: #{neural_logic_network.3} parent=119 // pred_fallthru
          _
      $region120: #{neural_logic_network.3} parent=5 // pred_fallthru
        _
    $region6: #{neural_logic_network.3} parent=1 // loop_footer
      %s15 = sadd.s32 1, %s11
    $region7: #{neural_logic_network.3} parent=1 // loop_footer_branch
      %10 = sbr.rel target = $region3
    $region8: #{neural_logic_network.3} parent=1 // loop_exit
      _

// kernel: neural_logic_network.5
$region0: #{neural_logic_network.5}
  #allocation0 [shape = 'u32[]', space=smem, size = 0x4, offset = 0x4, fixed_abs, tag = 'smem constant byte address 0x4 - core index']
  #allocation1 [shape = 'u32[144,128]{1,0:T(1,128)}', space=vmem, size = 0x12000, scoped, tag = 'internal scratch']
  %s0 = inlined_call_operand.vmem [shape: f32[32,256], index: 0, kind: input, shape index: {}]
  %s1 = inlined_call_operand.vmem [shape: f32[8,32], index: 1, kind: input, shape index: {}]
  %s2 = inlined_call_operand.vmem [shape: f32[8,32], index: 2, kind: input, shape index: {}]
  %s3 = inlined_call_operand.vmem [shape: f32[32,1], index: 3, kind: input, shape index: {}]
  %s4 = inlined_call_operand.vmem [shape: f32[8,1], index: 4, kind: input, shape index: {}]
  %s5 = inlined_call_operand.hbm [shape: f32[8,256], index: 5, kind: output, shape index: {}]
  %s6 = sld [smem:[#allocation0]]
  $region91: #{neural_logic_network.5} parent=0
    _
  %s8 = ssub.s32 1, %s6
  %s9 = scalar_select 0, %s8, %s6
  $region1: #{neural_logic_network.5} parent=0
    #allocation2 [shape = 'u8[32768]{0}', space=vmem, size = 0x8000, scoped, tag = 'input window, operand 0']
    #allocation3 [shape = 'u8[8192]{0}', space=vmem, size = 0x2000, scoped, tag = 'output window, operand 0']
    #allocation4 [shape = 's32[2]{0}', space=sflag, size = 0x8, scoped, tag = 'scoped memory for neural_logic_network.5']
    %10 = vsyncpa [#allocation4], 0
    %s11 = scalar_lea.sflag [#allocation4], 1
    %12 = vsyncpa %s11, 0
    loop: start=0, step=1, limit=4
    $region2: #{neural_logic_network.5} parent=1 // loop_pre_header
      _
    $region3: #{neural_logic_network.5} parent=1 // loop_header
      %s14 = sphi 0, %s18
      %p15 = scmp.ge.s32.totalorder %s14, 4
      %s24 = sphi 0, %s26
      %s27 = sphi 0, %s24
      %s28 = sphi 0, %s27
      %s44 = sphi 0, %s28
      %s48 = sphi 0, %s48
      %s50 = sphi 0, %s48
      %s51 = sphi 0, %s50
      %s65 = sphi 0, %s51
      %s69 = sphi 0, %s69
      %s71 = sphi 0, %s69
      %s72 = sphi 0, %s71
      %s86 = sphi 0, %s72
      %s90 = sphi 0, %s90
      %s92 = sphi 0, %s90
      %s93 = sphi 0, %s92
      %s107 = sphi 0, %s93
      %s111 = sphi 0, %s111
      %s113 = sphi 0, %s111
      %s114 = sphi 0, %s113
      %s128 = sphi 0, %s114
      %s134 = sphi 0, %s136
      %s137 = sphi 0, %s134
      %s138 = sphi 0, %s137
      %s154 = sphi 0, %s138
    $region4: #{neural_logic_network.5} parent=1 // loop_header_branch
      %17 = sbr.rel (%p15) target = $region8
    $region5: #{neural_logic_network.5} parent=1 // loop_body
      %s19 = ssub.s32 %s14, 1
      %s20 = ssub.s32 %s14, 2
      %s21 = sadd.s32 %s14, 1
      %s22 = ssub.s32 %s14, %s21
      %p23 = scmp.eq.s32.totalorder %s22, 0
      %s25 = sadd.s32 %s24, 1
      %s26 = scalar_select %p23, %s24, %s25
      %p29 = pneg %p23
      %p30 = scmp.eq.s32.totalorder %s14, 1
      %p31 = por %p29, %p30
      %p32 = scmp.ne.s32.totalorder %s24, %s27
      %p33 = scmp.eq.s32.totalorder %s14, 0
      %p34 = por %p32, %p33
      %p35 = scmp.ne.s32.totalorder %s24, %s27
      %p36 = scmp.eq.s32.totalorder %s19, 1
      %p37 = por %p35, %p36
      %p38 = scmp.ne.s32.totalorder %s27, %s28
      %p39 = scmp.eq.s32.totalorder %s19, 0
      %p40 = por %p38, %p39
      %p41 = scmp.ne.s32.totalorder %s27, %s28
      %p42 = scmp.eq.s32.totalorder %s20, 1
      %p43 = por %p41, %p42
      %p45 = scmp.ne.s32.totalorder %s28, %s44
      %p46 = scmp.eq.s32.totalorder %s20, 0
      %p47 = por %p45, %p46
      %s49 = sadd.s32 %s48, 1
      %p52 = scmp.eq.s32.totalorder %s14, 1
      %p53 = scmp.ne.s32.totalorder %s48, %s50
      %p54 = scmp.eq.s32.totalorder %s14, 0
      %p55 = por %p53, %p54
      %p56 = scmp.ne.s32.totalorder %s48, %s50
      %p57 = scmp.eq.s32.totalorder %s19, 1
      %p58 = por %p56, %p57
      %p59 = scmp.ne.s32.totalorder %s50, %s51
      %p60 = scmp.eq.s32.totalorder %s19, 0
      %p61 = por %p59, %p60
      %p62 = scmp.ne.s32.totalorder %s50, %s51
      %p63 = scmp.eq.s32.totalorder %s20, 1
      %p64 = por %p62, %p63
      %p66 = scmp.ne.s32.totalorder %s51, %s65
      %p67 = scmp.eq.s32.totalorder %s20, 0
      %p68 = por %p66, %p67
      %s70 = sadd.s32 %s69, 1
      %p73 = scmp.eq.s32.totalorder %s14, 1
      %p74 = scmp.ne.s32.totalorder %s69, %s71
      %p75 = scmp.eq.s32.totalorder %s14, 0
      %p76 = por %p74, %p75
      %p77 = scmp.ne.s32.totalorder %s69, %s71
      %p78 = scmp.eq.s32.totalorder %s19, 1
      %p79 = por %p77, %p78
      %p80 = scmp.ne.s32.totalorder %s71, %s72
      %p81 = scmp.eq.s32.totalorder %s19, 0
      %p82 = por %p80, %p81
      %p83 = scmp.ne.s32.totalorder %s71, %s72
      %p84 = scmp.eq.s32.totalorder %s20, 1
      %p85 = por %p83, %p84
      %p87 = scmp.ne.s32.totalorder %s72, %s86
      %p88 = scmp.eq.s32.totalorder %s20, 0
      %p89 = por %p87, %p88
      %s91 = sadd.s32 %s90, 1
      %p94 = scmp.eq.s32.totalorder %s14, 1
      %p95 = scmp.ne.s32.totalorder %s90, %s92
      %p96 = scmp.eq.s32.totalorder %s14, 0
      %p97 = por %p95, %p96
      %p98 = scmp.ne.s32.totalorder %s90, %s92
      %p99 = scmp.eq.s32.totalorder %s19, 1
      %p100 = por %p98, %p99
      %p101 = scmp.ne.s32.totalorder %s92, %s93
      %p102 = scmp.eq.s32.totalorder %s19, 0
      %p103 = por %p101, %p102
      %p104 = scmp.ne.s32.totalorder %s92, %s93
      %p105 = scmp.eq.s32.totalorder %s20, 1
      %p106 = por %p104, %p105
      %p108 = scmp.ne.s32.totalorder %s93, %s107
      %p109 = scmp.eq.s32.totalorder %s20, 0
      %p110 = por %p108, %p109
      %s112 = sadd.s32 %s111, 1
      %p115 = scmp.eq.s32.totalorder %s14, 1
      %p116 = scmp.ne.s32.totalorder %s111, %s113
      %p117 = scmp.eq.s32.totalorder %s14, 0
      %p118 = por %p116, %p117
      %p119 = scmp.ne.s32.totalorder %s111, %s113
      %p120 = scmp.eq.s32.totalorder %s19, 1
      %p121 = por %p119, %p120
      %p122 = scmp.ne.s32.totalorder %s113, %s114
      %p123 = scmp.eq.s32.totalorder %s19, 0
      %p124 = por %p122, %p123
      %p125 = scmp.ne.s32.totalorder %s113, %s114
      %p126 = scmp.eq.s32.totalorder %s20, 1
      %p127 = por %p125, %p126
      %p129 = scmp.ne.s32.totalorder %s114, %s128
      %p130 = scmp.eq.s32.totalorder %s20, 0
      %p131 = por %p129, %p130
      %s132 = ssub.s32 %s14, %s21
      %p133 = scmp.eq.s32.totalorder %s132, 0
      %s135 = sadd.s32 %s134, 1
      %s136 = scalar_select %p133, %s134, %s135
      %p139 = pneg %p133
      %p140 = scmp.eq.s32.totalorder %s14, 1
      %p141 = por %p139, %p140
      %p142 = scmp.ne.s32.totalorder %s134, %s137
      %p143 = scmp.eq.s32.totalorder %s14, 0
      %p144 = por %p142, %p143
      %p145 = scmp.ne.s32.totalorder %s134, %s137
      %p146 = scmp.eq.s32.totalorder %s19, 1
      %p147 = por %p145, %p146
      %p148 = scmp.ne.s32.totalorder %s137, %s138
      %p149 = scmp.eq.s32.totalorder %s19, 0
      %p150 = por %p148, %p149
      %p151 = scmp.ne.s32.totalorder %s137, %s138
      %p152 = scmp.eq.s32.totalorder %s20, 1
      %p153 = por %p151, %p152
      %p155 = scmp.ne.s32.totalorder %s138, %s154
      %p156 = scmp.eq.s32.totalorder %s20, 0
      %p157 = por %p155, %p156
      %p158 = scmp.le.s32.totalorder 1, %s14
      %p159 = scmp.lt.s32.totalorder %s14, 3
      %p160 = pnand %p158, %p159
      %p161 = pneg %p160
      // Predicated region
      $region9: #{neural_logic_network.5} parent=5 // pred_check
        _
      $region10: #{neural_logic_network.5} parent=5 // pred_check_branch
        %163 = sbr.rel (%p160) target = $region12
      $region11: #{neural_logic_network.5} parent=5 // pred_region
        %s164 = ssub.s32 %s14, 1
        // Predicated region
        $region13: #{neural_logic_network.5} parent=11 // pred_check
          %p165 = pneg %p61
        $region14: #{neural_logic_network.5} parent=11 // pred_check_branch
          %167 = sbr.rel (%p165) target = $region16
        $region15: #{neural_logic_network.5} parent=11 // pred_region
          _
        $region16: #{neural_logic_network.5} parent=11 // pred_fallthru
          _
        // Predicated region
        $region17: #{neural_logic_network.5} parent=11 // pred_check
          %p168 = pneg %p82
        $region18: #{neural_logic_network.5} parent=11 // pred_check_branch
          %170 = sbr.rel (%p168) target = $region20
        $region19: #{neural_logic_network.5} parent=11 // pred_region
          _
        $region20: #{neural_logic_network.5} parent=11 // pred_fallthru
          _
        // Predicated region
        $region21: #{neural_logic_network.5} parent=11 // pred_check
          %p171 = pneg %p103
        $region22: #{neural_logic_network.5} parent=11 // pred_check_branch
          %173 = sbr.rel (%p171) target = $region24
        $region23: #{neural_logic_network.5} parent=11 // pred_region
          _
        $region24: #{neural_logic_network.5} parent=11 // pred_fallthru
          _
        // Predicated region
        $region25: #{neural_logic_network.5} parent=11 // pred_check
          %p174 = pneg %p124
        $region26: #{neural_logic_network.5} parent=11 // pred_check_branch
          %176 = sbr.rel (%p174) target = $region28
        $region27: #{neural_logic_network.5} parent=11 // pred_region
          _
        $region28: #{neural_logic_network.5} parent=11 // pred_fallthru
          _
      $region12: #{neural_logic_network.5} parent=5 // pred_fallthru
        _
      %p177 = scmp.lt.s32.totalorder %s14, 2
      // Predicated region
      $region29: #{neural_logic_network.5} parent=5 // pred_check
        %p178 = pneg %p177
      $region30: #{neural_logic_network.5} parent=5 // pred_check_branch
        %180 = sbr.rel (%p178) target = $region32
      $region31: #{neural_logic_network.5} parent=5 // pred_region
        // Predicated region
        $region33: #{neural_logic_network.5} parent=31 // pred_check
          %p181 = pneg %p34
        $region34: #{neural_logic_network.5} parent=31 // pred_check_branch
          %183 = sbr.rel (%p181) target = $region36
        $region35: #{neural_logic_network.5} parent=31 // pred_region
          %s184 = sand.u32 %s24, 1
          %s185 = sand.u32 %s24, 1
          %s186 = smul.addr %s185, 32
          %s187 = scalar_lea.vmem [#allocation2], %s186
          %s188 = smul.addr %s14, 8
          %s189 = scalar_lea.vmem %s0, %s188
          // Predicated region
          $region37: #{neural_logic_network.5} parent=35 // pred_check
            _
          $region38: #{neural_logic_network.5} parent=35 // pred_check_branch
            %191 = sbr.rel (0) target = $region40
          $region39: #{neural_logic_network.5} parent=35 // pred_region
            // Predicated region
            $region41: #{neural_logic_network.5} parent=39 // pred_check
              _
            $region42: #{neural_logic_network.5} parent=39 // pred_check_branch
              %193 = sbr.rel (0) target = $region44
            $region43: #{neural_logic_network.5} parent=39 // pred_region
              // Predicated region
              $region56: #{neural_logic_network.5} parent=43 // pred_check
                _
              $region57: #{neural_logic_network.5} parent=43 // pred_check_branch
                %214 = sbr.rel (0) target = $region59
              $region58: #{neural_logic_network.5} parent=43 // pred_region
                loop: start=0, step=1, limit=1
                $region60: #{neural_logic_network.5} parent=58 // loop_pre_header
                  _
                $region61: #{neural_logic_network.5} parent=58 // loop_header
                  %s216 = sphi 0, %s220
                  %p217 = scmp.ge.s32.totalorder %s216, 1
                  %s221 = sphi %s189, %s189
                  %s222 = sphi %s187, %s187
                $region62: #{neural_logic_network.5} parent=58 // loop_header_branch
                  %219 = sbr.rel (%p217) target = $region66
                $region63: #{neural_logic_network.5} parent=58 // loop_body
                  %v223 = vld [vmem:[%s221] sm:$0xff]
                  %224 = vst [vmem:[%s222] sm:$0xff] %v223
                  %v225 = vld [vmem:[%s221 + $0x10] sm:$0xff]
                  %226 = vst [vmem:[%s222 + $0x8] sm:$0xff] %v225
                  %v227 = vld [vmem:[%s221 + $0x20] sm:$0xff]
                  %228 = vst [vmem:[%s222 + $0x10] sm:$0xff] %v227
                  %v229 = vld [vmem:[%s221 + $0x30] sm:$0xff]
                  %230 = vst [vmem:[%s222 + $0x18] sm:$0xff] %v229
                $region64: #{neural_logic_network.5} parent=58 // loop_footer
                  %s220 = sadd.s32 1, %s216
                $region65: #{neural_logic_network.5} parent=58 // loop_footer_branch
                  %215 = sbr.rel target = $region61
                $region66: #{neural_logic_network.5} parent=58 // loop_exit
                  _
              $region59: #{neural_logic_network.5} parent=43 // pred_fallthru
                _
              // Predicated region
              $region67: #{neural_logic_network.5} parent=43 // pred_check
                _
              $region68: #{neural_logic_network.5} parent=43 // pred_check_branch
                %232 = sbr.rel target = $region70
              $region69: #{neural_logic_network.5} parent=43 // pred_region
                _
              $region70: #{neural_logic_network.5} parent=43 // pred_fallthru
                _
            $region44: #{neural_logic_network.5} parent=39 // pred_fallthru
              _
            // Predicated region
            $region45: #{neural_logic_network.5} parent=39 // pred_check
              _
            $region46: #{neural_logic_network.5} parent=39 // pred_check_branch
              %195 = sbr.rel target = $region48
            $region47: #{neural_logic_network.5} parent=39 // pred_region
              loop: start=0, step=1, limit=1
              $region49: #{neural_logic_network.5} parent=47 // loop_pre_header
                _
              $region50: #{neural_logic_network.5} parent=47 // loop_header
                %s198 = sphi 0, %s202
                %p199 = scmp.ge.s32.totalorder %s198, 1
                %s203 = sphi %s189, %s189
                %s204 = sphi %s187, %s187
              $region51: #{neural_logic_network.5} parent=47 // loop_header_branch
                %201 = sbr.rel (%p199) target = $region55
              $region52: #{neural_logic_network.5} parent=47 // loop_body
                %v205 = vld [vmem:[%s203] sm:$0xff]
                %206 = vst [vmem:[%s204] sm:$0xff] %v205
                %v207 = vld [vmem:[%s203 + $0x10] sm:$0xff]
                %208 = vst [vmem:[%s204 + $0x8] sm:$0xff] %v207
                %v209 = vld [vmem:[%s203 + $0x20] sm:$0xff]
                %210 = vst [vmem:[%s204 + $0x10] sm:$0xff] %v209
                %v211 = vld [vmem:[%s203 + $0x30] sm:$0xff]
                %212 = vst [vmem:[%s204 + $0x18] sm:$0xff] %v211
              $region53: #{neural_logic_network.5} parent=47 // loop_footer
                %s202 = sadd.s32 1, %s198
              $region54: #{neural_logic_network.5} parent=47 // loop_footer_branch
                %197 = sbr.rel target = $region50
              $region55: #{neural_logic_network.5} parent=47 // loop_exit
                _
            $region48: #{neural_logic_network.5} parent=39 // pred_fallthru
              _
          $region40: #{neural_logic_network.5} parent=35 // pred_fallthru
            _
          %233 = vnop
        $region36: #{neural_logic_network.5} parent=31 // pred_fallthru
          _
      $region32: #{neural_logic_network.5} parent=5 // pred_fallthru
        _
      %p234 = scmp.le.s32.totalorder 1, %s14
      %p235 = scmp.lt.s32.totalorder %s14, 3
      %p236 = pnand %p234, %p235
      %p237 = pneg %p236
      // Predicated region
      $region71: #{neural_logic_network.5} parent=5 // pred_check
        _
      $region72: #{neural_logic_network.5} parent=5 // pred_check_branch
        %239 = sbr.rel (%p236) target = $region74
      $region73: #{neural_logic_network.5} parent=5 // pred_region
        %s240 = ssub.s32 %s14, 1
        %s241 = sand.u32 %s27, 1
        %s242 = sand.u32 %s27, 1
        %s243 = smul.addr %s242, 32
        %s244 = scalar_lea.vmem [#allocation2], %s243
        // Predicated region
        $region75: #{neural_logic_network.5} parent=73 // pred_check
          %p245 = pneg %p40
        $region76: #{neural_logic_network.5} parent=73 // pred_check_branch
          %247 = sbr.rel (%p245) target = $region78
        $region77: #{neural_logic_network.5} parent=73 // pred_region
          _
        $region78: #{neural_logic_network.5} parent=73 // pred_fallthru
          _
        %s248 = sand.u32 %s27, 1
        %s249 = sand.u32 %s27, 1
        %s250 = smul.addr %s249, 32
        %s251 = scalar_lea.vmem [#allocation2], %s250
        %p252 = pneg %p40
        %p253 = pneg %p37
        %p254 = pneg %p61
        %p255 = pneg %p58
        %p256 = pneg %p82
        %p257 = pneg %p79
        %p258 = pneg %p103
        %p259 = pneg %p100
        %p260 = pneg %p124
        %p261 = pneg %p121
        %p262 = pneg %p150
        %p263 = pneg %p147
        %s264 = sand.u32 %s137, 1
        %s265 = scalar_lea.sflag [#allocation4], %s264
        %s266 = sand.u32 %s137, 1
        %s267 = smul.addr %s266, 8
        %s268 = scalar_lea.vmem [#allocation3], %s267
        %v269 = vld [vmem:[%s244] sm:$0xff]
        %v270 = vld [vmem:[%s244 + $0x8] sm:$0xff]
        %v271 = vld [vmem:[%s244 + $0x10] sm:$0xff]
        %v272 = vld [vmem:[%s244 + $0x18] sm:$0xff]
        %v273 = vld [vmem:[%s3] sm:$0xff]
        %v274 = vld [vmem:[%s3 + $0x8] sm:$0xff]
        %v275 = vld [vmem:[%s3 + $0x10] sm:$0xff]
        %v276 = vld [vmem:[%s3 + $0x18] sm:$0xff]
        %v277 = vmul.f32 %v273, 2.0
        %v278 = vmul.f32 %v274, 2.0
        %v279 = vmul.f32 %v275, 2.0
        %v280 = vmul.f32 %v276, 2.0
        %v281 = vsub.f32 1.0, %v277
        %v282 = vsub.f32 1.0, %v278
        %v283 = vsub.f32 1.0, %v279
        %v284 = vsub.f32 1.0, %v280
        %286 = vset.pattern.permute.xlu0 0
        %287 = vperm.xlu0 %286, %v281
        %v288 = vpop.permute.xlu0 %287
        %291 = vset.pattern.permute.xlu0 0
        %292 = vperm.xlu0 %291, %v282
        %v293 = vpop.permute.xlu0 %292
        %296 = vset.pattern.permute.xlu0 0
        %297 = vperm.xlu0 %296, %v283
        %v298 = vpop.permute.xlu0 %297
        %301 = vset.pattern.permute.xlu0 0
        %302 = vperm.xlu0 %301, %v284
        %v303 = vpop.permute.xlu0 %302
        %v305 = vmul.f32 %v288, %v269
        %v306 = vmul.f32 %v293, %v270
        %v307 = vmul.f32 %v298, %v271
        %v308 = vmul.f32 %v303, %v272
        %310 = vset.pattern.permute.xlu0 0
        %311 = vperm.xlu0 %310, %v273
        %v312 = vpop.permute.xlu0 %311
        %315 = vset.pattern.permute.xlu0 0
        %316 = vperm.xlu0 %315, %v274
        %v317 = vpop.permute.xlu0 %316
        %320 = vset.pattern.permute.xlu0 0
        %321 = vperm.xlu0 %320, %v275
        %v322 = vpop.permute.xlu0 %321
        %325 = vset.pattern.permute.xlu0 0
        %326 = vperm.xlu0 %325, %v276
        %v327 = vpop.permute.xlu0 %326
        %v329 = vadd.f32 %v312, %v305
        %v330 = vadd.f32 %v317, %v306
        %v331 = vadd.f32 %v322, %v307
        %v332 = vadd.f32 %v327, %v308
        %v333 = vld [vmem:[%s1] sm:$0xff]
        %v334 = vld [vmem:[%s2] sm:$0xff]
        %v335 = vsub.f32 1.0, %v329
        %337 = vset.pattern.permute.xlu0 0
        %338 = vperm.xlu0 %337, %v333
        %v339 = vpop.permute.xlu0 %338
        %v341 = vlaneseq
        %v342 = vshrl.u32 %v341, 7
        %v343 = vsub.s32 0, %v342
        %v344 = vrot.slane %v335, %v343
        %v345 = vmul.f32 %v339, %v344
        %v346 = vsub.f32 1.0, %v345
        %348 = vset.pattern.permute.xlu0 0
        %349 = vperm.xlu0 %348, %v334
        %v350 = vpop.permute.xlu0 %349
        %v352 = vlaneseq
        %v353 = vshrl.u32 %v352, 7
        %v354 = vsub.s32 0, %v353
        %v355 = vrot.slane %v329, %v354
        %v356 = vmul.f32 %v350, %v355
        %v357 = vsub.f32 1.0, %v356
        %358 = vset.pattern.permute.xlu0 1
        %359 = vperm.xlu0 %358, %v333
        %v360 = vpop.permute.xlu0 %359
        %v362 = vlaneseq
        %v363 = vshrl.u32 %v362, 7
        %v364 = vsub.s32 1, %v363
        %v365 = vrot.slane %v335, %v364
        %v366 = vmul.f32 %v360, %v365
        %v367 = vsub.f32 1.0, %v366
        %v368 = vmul.f32 %v346, %v367
        %369 = vset.pattern.permute.xlu0 1
        %370 = vperm.xlu0 %369, %v334
        %v371 = vpop.permute.xlu0 %370
        %v373 = vlaneseq
        %v374 = vshrl.u32 %v373, 7
        %v375 = vsub.s32 1, %v374
        %v376 = vrot.slane %v329, %v375
        %v377 = vmul.f32 %v371, %v376
        %v378 = vsub.f32 1.0, %v377
        %v379 = vmul.f32 %v357, %v378
        %380 = vset.pattern.permute.xlu0 2
        %381 = vperm.xlu0 %380, %v333
        %v382 = vpop.permute.xlu0 %381
        %v384 = vlaneseq
        %v385 = vshrl.u32 %v384, 7
        %v386 = vsub.s32 2, %v385
        %v387 = vrot.slane %v335, %v386
        %v388 = vmul.f32 %v382, %v387
        %v389 = vsub.f32 1.0, %v388
        %v390 = vmul.f32 %v368, %v389
        %391 = vset.pattern.permute.xlu0 2
        %392 = vperm.xlu0 %391, %v334
        %v393 = vpop.permute.xlu0 %392
        %v395 = vlaneseq
        %v396 = vshrl.u32 %v395, 7
        %v397 = vsub.s32 2, %v396
        %v398 = vrot.slane %v329, %v397
        %v399 = vmul.f32 %v393, %v398
        %v400 = vsub.f32 1.0, %v399
        %v401 = vmul.f32 %v379, %v400
        %402 = vset.pattern.permute.xlu0 3
        %403 = vperm.xlu0 %402, %v333
        %v404 = vpop.permute.xlu0 %403
        %v406 = vlaneseq
        %v407 = vshrl.u32 %v406, 7
        %v408 = vsub.s32 3, %v407
        %v409 = vrot.slane %v335, %v408
        %v410 = vmul.f32 %v404, %v409
        %v411 = vsub.f32 1.0, %v410
        %v412 = vmul.f32 %v390, %v411
        %413 = vset.pattern.permute.xlu0 3
        %414 = vperm.xlu0 %413, %v334
        %v415 = vpop.permute.xlu0 %414
        %v417 = vlaneseq
        %v418 = vshrl.u32 %v417, 7
        %v419 = vsub.s32 3, %v418
        %v420 = vrot.slane %v329, %v419
        %v421 = vmul.f32 %v415, %v420
        %v422 = vsub.f32 1.0, %v421
        %v423 = vmul.f32 %v401, %v422
        %424 = vset.pattern.permute.xlu0 4
        %425 = vperm.xlu0 %424, %v333
        %v426 = vpop.permute.xlu0 %425
        %v428 = vlaneseq
        %v429 = vshrl.u32 %v428, 7
        %v430 = vsub.s32 4, %v429
        %v431 = vrot.slane %v335, %v430
        %v432 = vmul.f32 %v426, %v431
        %v433 = vsub.f32 1.0, %v432
        %v434 = vmul.f32 %v412, %v433
        %435 = vset.pattern.permute.xlu0 4
        %436 = vperm.xlu0 %435, %v334
        %v437 = vpop.permute.xlu0 %436
        %v439 = vlaneseq
        %v440 = vshrl.u32 %v439, 7
        %v441 = vsub.s32 4, %v440
        %v442 = vrot.slane %v329, %v441
        %v443 = vmul.f32 %v437, %v442
        %v444 = vsub.f32 1.0, %v443
        %v445 = vmul.f32 %v423, %v444
        %446 = vset.pattern.permute.xlu0 5
        %447 = vperm.xlu0 %446, %v333
        %v448 = vpop.permute.xlu0 %447
        %v450 = vlaneseq
        %v451 = vshrl.u32 %v450, 7
        %v452 = vsub.s32 5, %v451
        %v453 = vrot.slane %v335, %v452
        %v454 = vmul.f32 %v448, %v453
        %v455 = vsub.f32 1.0, %v454
        %v456 = vmul.f32 %v434, %v455
        %457 = vset.pattern.permute.xlu0 5
        %458 = vperm.xlu0 %457, %v334
        %v459 = vpop.permute.xlu0 %458
        %v461 = vlaneseq
        %v462 = vshrl.u32 %v461, 7
        %v463 = vsub.s32 5, %v462
        %v464 = vrot.slane %v329, %v463
        %v465 = vmul.f32 %v459, %v464
        %v466 = vsub.f32 1.0, %v465
        %v467 = vmul.f32 %v445, %v466
        %468 = vset.pattern.permute.xlu0 6
        %469 = vperm.xlu0 %468, %v333
        %v470 = vpop.permute.xlu0 %469
        %v472 = vlaneseq
        %v473 = vshrl.u32 %v472, 7
        %v474 = vsub.s32 6, %v473
        %v475 = vrot.slane %v335, %v474
        %v476 = vmul.f32 %v470, %v475
        %v477 = vsub.f32 1.0, %v476
        %v478 = vmul.f32 %v456, %v477
        %479 = vset.pattern.permute.xlu0 6
        %480 = vperm.xlu0 %479, %v334
        %v481 = vpop.permute.xlu0 %480
        %v483 = vlaneseq
        %v484 = vshrl.u32 %v483, 7
        %v485 = vsub.s32 6, %v484
        %v486 = vrot.slane %v329, %v485
        %v487 = vmul.f32 %v481, %v486
        %v488 = vsub.f32 1.0, %v487
        %v489 = vmul.f32 %v467, %v488
        %490 = vset.pattern.permute.xlu0 7
        %491 = vperm.xlu0 %490, %v333
        %v492 = vpop.permute.xlu0 %491
        %v494 = vlaneseq
        %v495 = vshrl.u32 %v494, 7
        %v496 = vsub.s32 7, %v495
        %v497 = vrot.slane %v335, %v496
        %v498 = vmul.f32 %v492, %v497
        %v499 = vsub.f32 1.0, %v498
        %v500 = vmul.f32 %v478, %v499
        %501 = vset.pattern.permute.xlu0 7
        %502 = vperm.xlu0 %501, %v334
        %v503 = vpop.permute.xlu0 %502
        %v505 = vlaneseq
        %v506 = vshrl.u32 %v505, 7
        %v507 = vsub.s32 7, %v506
        %v508 = vrot.slane %v329, %v507
        %v509 = vmul.f32 %v503, %v508
        %v510 = vsub.f32 1.0, %v509
        %v511 = vmul.f32 %v489, %v510
        %v512 = vsub.f32 1.0, %v330
        %513 = vset.pattern.permute.xlu0 8
        %514 = vperm.xlu0 %513, %v333
        %v515 = vpop.permute.xlu0 %514
        %v517 = vlaneseq
        %v518 = vshrl.u32 %v517, 7
        %v519 = vsub.s32 0, %v518
        %v520 = vrot.slane %v512, %v519
        %v521 = vmul.f32 %v515, %v520
        %v522 = vsub.f32 1.0, %v521
        %v523 = vmul.f32 %v500, %v522
        %524 = vset.pattern.permute.xlu0 8
        %525 = vperm.xlu0 %524, %v334
        %v526 = vpop.permute.xlu0 %525
        %v528 = vlaneseq
        %v529 = vshrl.u32 %v528, 7
        %v530 = vsub.s32 0, %v529
        %v531 = vrot.slane %v330, %v530
        %v532 = vmul.f32 %v526, %v531
        %v533 = vsub.f32 1.0, %v532
        %v534 = vmul.f32 %v511, %v533
        %535 = vset.pattern.permute.xlu0 9
        %536 = vperm.xlu0 %535, %v333
        %v537 = vpop.permute.xlu0 %536
        %v539 = vlaneseq
        %v540 = vshrl.u32 %v539, 7
        %v541 = vsub.s32 1, %v540
        %v542 = vrot.slane %v512, %v541
        %v543 = vmul.f32 %v537, %v542
        %v544 = vsub.f32 1.0, %v543
        %v545 = vmul.f32 %v523, %v544
        %546 = vset.pattern.permute.xlu0 9
        %547 = vperm.xlu0 %546, %v334
        %v548 = vpop.permute.xlu0 %547
        %v550 = vlaneseq
        %v551 = vshrl.u32 %v550, 7
        %v552 = vsub.s32 1, %v551
        %v553 = vrot.slane %v330, %v552
        %v554 = vmul.f32 %v548, %v553
        %v555 = vsub.f32 1.0, %v554
        %v556 = vmul.f32 %v534, %v555
        %557 = vset.pattern.permute.xlu0 10
        %558 = vperm.xlu0 %557, %v333
        %v559 = vpop.permute.xlu0 %558
        %v561 = vlaneseq
        %v562 = vshrl.u32 %v561, 7
        %v563 = vsub.s32 2, %v562
        %v564 = vrot.slane %v512, %v563
        %v565 = vmul.f32 %v559, %v564
        %v566 = vsub.f32 1.0, %v565
        %v567 = vmul.f32 %v545, %v566
        %568 = vset.pattern.permute.xlu0 10
        %569 = vperm.xlu0 %568, %v334
        %v570 = vpop.permute.xlu0 %569
        %v572 = vlaneseq
        %v573 = vshrl.u32 %v572, 7
        %v574 = vsub.s32 2, %v573
        %v575 = vrot.slane %v330, %v574
        %v576 = vmul.f32 %v570, %v575
        %v577 = vsub.f32 1.0, %v576
        %v578 = vmul.f32 %v556, %v577
        %579 = vset.pattern.permute.xlu0 11
        %580 = vperm.xlu0 %579, %v333
        %v581 = vpop.permute.xlu0 %580
        %v583 = vlaneseq
        %v584 = vshrl.u32 %v583, 7
        %v585 = vsub.s32 3, %v584
        %v586 = vrot.slane %v512, %v585
        %v587 = vmul.f32 %v581, %v586
        %v588 = vsub.f32 1.0, %v587
        %v589 = vmul.f32 %v567, %v588
        %590 = vset.pattern.permute.xlu0 11
        %591 = vperm.xlu0 %590, %v334
        %v592 = vpop.permute.xlu0 %591
        %v594 = vlaneseq
        %v595 = vshrl.u32 %v594, 7
        %v596 = vsub.s32 3, %v595
        %v597 = vrot.slane %v330, %v596
        %v598 = vmul.f32 %v592, %v597
        %v599 = vsub.f32 1.0, %v598
        %v600 = vmul.f32 %v578, %v599
        %601 = vset.pattern.permute.xlu0 12
        %602 = vperm.xlu0 %601, %v333
        %v603 = vpop.permute.xlu0 %602
        %v605 = vlaneseq
        %v606 = vshrl.u32 %v605, 7
        %v607 = vsub.s32 4, %v606
        %v608 = vrot.slane %v512, %v607
        %v609 = vmul.f32 %v603, %v608
        %v610 = vsub.f32 1.0, %v609
        %v611 = vmul.f32 %v589, %v610
        %612 = vset.pattern.permute.xlu0 12
        %613 = vperm.xlu0 %612, %v334
        %v614 = vpop.permute.xlu0 %613
        %v616 = vlaneseq
        %v617 = vshrl.u32 %v616, 7
        %v618 = vsub.s32 4, %v617
        %v619 = vrot.slane %v330, %v618
        %v620 = vmul.f32 %v614, %v619
        %v621 = vsub.f32 1.0, %v620
        %v622 = vmul.f32 %v600, %v621
        %623 = vset.pattern.permute.xlu0 13
        %624 = vperm.xlu0 %623, %v333
        %v625 = vpop.permute.xlu0 %624
        %v627 = vlaneseq
        %v628 = vshrl.u32 %v627, 7
        %v629 = vsub.s32 5, %v628
        %v630 = vrot.slane %v512, %v629
        %v631 = vmul.f32 %v625, %v630
        %v632 = vsub.f32 1.0, %v631
        %v633 = vmul.f32 %v611, %v632
        %634 = vset.pattern.permute.xlu0 13
        %635 = vperm.xlu0 %634, %v334
        %v636 = vpop.permute.xlu0 %635
        %v638 = vlaneseq
        %v639 = vshrl.u32 %v638, 7
        %v640 = vsub.s32 5, %v639
        %v641 = vrot.slane %v330, %v640
        %v642 = vmul.f32 %v636, %v641
        %v643 = vsub.f32 1.0, %v642
        %v644 = vmul.f32 %v622, %v643
        %645 = vset.pattern.permute.xlu0 14
        %646 = vperm.xlu0 %645, %v333
        %v647 = vpop.permute.xlu0 %646
        %v649 = vlaneseq
        %v650 = vshrl.u32 %v649, 7
        %v651 = vsub.s32 6, %v650
        %v652 = vrot.slane %v512, %v651
        %v653 = vmul.f32 %v647, %v652
        %v654 = vsub.f32 1.0, %v653
        %v655 = vmul.f32 %v633, %v654
        %656 = vset.pattern.permute.xlu0 14
        %657 = vperm.xlu0 %656, %v334
        %v658 = vpop.permute.xlu0 %657
        %v660 = vlaneseq
        %v661 = vshrl.u32 %v660, 7
        %v662 = vsub.s32 6, %v661
        %v663 = vrot.slane %v330, %v662
        %v664 = vmul.f32 %v658, %v663
        %v665 = vsub.f32 1.0, %v664
        %v666 = vmul.f32 %v644, %v665
        %667 = vset.pattern.permute.xlu0 15
        %668 = vperm.xlu0 %667, %v333
        %v669 = vpop.permute.xlu0 %668
        %v671 = vlaneseq
        %v672 = vshrl.u32 %v671, 7
        %v673 = vsub.s32 7, %v672
        %v674 = vrot.slane %v512, %v673
        %v675 = vmul.f32 %v669, %v674
        %v676 = vsub.f32 1.0, %v675
        %v677 = vmul.f32 %v655, %v676
        %678 = vset.pattern.permute.xlu0 15
        %679 = vperm.xlu0 %678, %v334
        %v680 = vpop.permute.xlu0 %679
        %v682 = vlaneseq
        %v683 = vshrl.u32 %v682, 7
        %v684 = vsub.s32 7, %v683
        %v685 = vrot.slane %v330, %v684
        %v686 = vmul.f32 %v680, %v685
        %v687 = vsub.f32 1.0, %v686
        %v688 = vmul.f32 %v666, %v687
        %v689 = vsub.f32 1.0, %v331
        %690 = vset.pattern.permute.xlu0 16
        %691 = vperm.xlu0 %690, %v333
        %v692 = vpop.permute.xlu0 %691
        %v694 = vlaneseq
        %v695 = vshrl.u32 %v694, 7
        %v696 = vsub.s32 0, %v695
        %v697 = vrot.slane %v689, %v696
        %v698 = vmul.f32 %v692, %v697
        %v699 = vsub.f32 1.0, %v698
        %v700 = vmul.f32 %v677, %v699
        %701 = vset.pattern.permute.xlu0 16
        %702 = vperm.xlu0 %701, %v334
        %v703 = vpop.permute.xlu0 %702
        %v705 = vlaneseq
        %v706 = vshrl.u32 %v705, 7
        %v707 = vsub.s32 0, %v706
        %v708 = vrot.slane %v331, %v707
        %v709 = vmul.f32 %v703, %v708
        %v710 = vsub.f32 1.0, %v709
        %v711 = vmul.f32 %v688, %v710
        %712 = vset.pattern.permute.xlu0 17
        %713 = vperm.xlu0 %712, %v333
        %v714 = vpop.permute.xlu0 %713
        %v716 = vlaneseq
        %v717 = vshrl.u32 %v716, 7
        %v718 = vsub.s32 1, %v717
        %v719 = vrot.slane %v689, %v718
        %v720 = vmul.f32 %v714, %v719
        %v721 = vsub.f32 1.0, %v720
        %v722 = vmul.f32 %v700, %v721
        %723 = vset.pattern.permute.xlu0 17
        %724 = vperm.xlu0 %723, %v334
        %v725 = vpop.permute.xlu0 %724
        %v727 = vlaneseq
        %v728 = vshrl.u32 %v727, 7
        %v729 = vsub.s32 1, %v728
        %v730 = vrot.slane %v331, %v729
        %v731 = vmul.f32 %v725, %v730
        %v732 = vsub.f32 1.0, %v731
        %v733 = vmul.f32 %v711, %v732
        %734 = vset.pattern.permute.xlu0 18
        %735 = vperm.xlu0 %734, %v333
        %v736 = vpop.permute.xlu0 %735
        %v738 = vlaneseq
        %v739 = vshrl.u32 %v738, 7
        %v740 = vsub.s32 2, %v739
        %v741 = vrot.slane %v689, %v740
        %v742 = vmul.f32 %v736, %v741
        %v743 = vsub.f32 1.0, %v742
        %v744 = vmul.f32 %v722, %v743
        %745 = vset.pattern.permute.xlu0 18
        %746 = vperm.xlu0 %745, %v334
        %v747 = vpop.permute.xlu0 %746
        %v749 = vlaneseq
        %v750 = vshrl.u32 %v749, 7
        %v751 = vsub.s32 2, %v750
        %v752 = vrot.slane %v331, %v751
        %v753 = vmul.f32 %v747, %v752
        %v754 = vsub.f32 1.0, %v753
        %v755 = vmul.f32 %v733, %v754
        %756 = vset.pattern.permute.xlu0 19
        %757 = vperm.xlu0 %756, %v333
        %v758 = vpop.permute.xlu0 %757
        %v760 = vlaneseq
        %v761 = vshrl.u32 %v760, 7
        %v762 = vsub.s32 3, %v761
        %v763 = vrot.slane %v689, %v762
        %v764 = vmul.f32 %v758, %v763
        %v765 = vsub.f32 1.0, %v764
        %v766 = vmul.f32 %v744, %v765
        %767 = vset.pattern.permute.xlu0 19
        %768 = vperm.xlu0 %767, %v334
        %v769 = vpop.permute.xlu0 %768
        %v771 = vlaneseq
        %v772 = vshrl.u32 %v771, 7
        %v773 = vsub.s32 3, %v772
        %v774 = vrot.slane %v331, %v773
        %v775 = vmul.f32 %v769, %v774
        %v776 = vsub.f32 1.0, %v775
        %v777 = vmul.f32 %v755, %v776
        %778 = vset.pattern.permute.xlu0 20
        %779 = vperm.xlu0 %778, %v333
        %v780 = vpop.permute.xlu0 %779
        %v782 = vlaneseq
        %v783 = vshrl.u32 %v782, 7
        %v784 = vsub.s32 4, %v783
        %v785 = vrot.slane %v689, %v784
        %v786 = vmul.f32 %v780, %v785
        %v787 = vsub.f32 1.0, %v786
        %v788 = vmul.f32 %v766, %v787
        %789 = vset.pattern.permute.xlu0 20
        %790 = vperm.xlu0 %789, %v334
        %v791 = vpop.permute.xlu0 %790
        %v793 = vlaneseq
        %v794 = vshrl.u32 %v793, 7
        %v795 = vsub.s32 4, %v794
        %v796 = vrot.slane %v331, %v795
        %v797 = vmul.f32 %v791, %v796
        %v798 = vsub.f32 1.0, %v797
        %v799 = vmul.f32 %v777, %v798
        %800 = vset.pattern.permute.xlu0 21
        %801 = vperm.xlu0 %800, %v333
        %v802 = vpop.permute.xlu0 %801
        %v804 = vlaneseq
        %v805 = vshrl.u32 %v804, 7
        %v806 = vsub.s32 5, %v805
        %v807 = vrot.slane %v689, %v806
        %v808 = vmul.f32 %v802, %v807
        %v809 = vsub.f32 1.0, %v808
        %v810 = vmul.f32 %v788, %v809
        %811 = vset.pattern.permute.xlu0 21
        %812 = vperm.xlu0 %811, %v334
        %v813 = vpop.permute.xlu0 %812
        %v815 = vlaneseq
        %v816 = vshrl.u32 %v815, 7
        %v817 = vsub.s32 5, %v816
        %v818 = vrot.slane %v331, %v817
        %v819 = vmul.f32 %v813, %v818
        %v820 = vsub.f32 1.0, %v819
        %v821 = vmul.f32 %v799, %v820
        %822 = vset.pattern.permute.xlu0 22
        %823 = vperm.xlu0 %822, %v333
        %v824 = vpop.permute.xlu0 %823
        %v826 = vlaneseq
        %v827 = vshrl.u32 %v826, 7
        %v828 = vsub.s32 6, %v827
        %v829 = vrot.slane %v689, %v828
        %v830 = vmul.f32 %v824, %v829
        %v831 = vsub.f32 1.0, %v830
        %v832 = vmul.f32 %v810, %v831
        %833 = vset.pattern.permute.xlu0 22
        %834 = vperm.xlu0 %833, %v334
        %v835 = vpop.permute.xlu0 %834
        %v837 = vlaneseq
        %v838 = vshrl.u32 %v837, 7
        %v839 = vsub.s32 6, %v838
        %v840 = vrot.slane %v331, %v839
        %v841 = vmul.f32 %v835, %v840
        %v842 = vsub.f32 1.0, %v841
        %v843 = vmul.f32 %v821, %v842
        %844 = vset.pattern.permute.xlu0 23
        %845 = vperm.xlu0 %844, %v333
        %v846 = vpop.permute.xlu0 %845
        %v848 = vlaneseq
        %v849 = vshrl.u32 %v848, 7
        %v850 = vsub.s32 7, %v849
        %v851 = vrot.slane %v689, %v850
        %v852 = vmul.f32 %v846, %v851
        %v853 = vsub.f32 1.0, %v852
        %v854 = vmul.f32 %v832, %v853
        %855 = vset.pattern.permute.xlu0 23
        %856 = vperm.xlu0 %855, %v334
        %v857 = vpop.permute.xlu0 %856
        %v859 = vlaneseq
        %v860 = vshrl.u32 %v859, 7
        %v861 = vsub.s32 7, %v860
        %v862 = vrot.slane %v331, %v861
        %v863 = vmul.f32 %v857, %v862
        %v864 = vsub.f32 1.0, %v863
        %v865 = vmul.f32 %v843, %v864
        %v866 = vsub.f32 1.0, %v332
        %867 = vset.pattern.permute.xlu0 24
        %868 = vperm.xlu0 %867, %v333
        %v869 = vpop.permute.xlu0 %868
        %v871 = vlaneseq
        %v872 = vshrl.u32 %v871, 7
        %v873 = vsub.s32 0, %v872
        %v874 = vrot.slane %v866, %v873
        %v875 = vmul.f32 %v869, %v874
        %v876 = vsub.f32 1.0, %v875
        %v877 = vmul.f32 %v854, %v876
        %878 = vset.pattern.permute.xlu0 24
        %879 = vperm.xlu0 %878, %v334
        %v880 = vpop.permute.xlu0 %879
        %v882 = vlaneseq
        %v883 = vshrl.u32 %v882, 7
        %v884 = vsub.s32 0, %v883
        %v885 = vrot.slane %v332, %v884
        %v886 = vmul.f32 %v880, %v885
        %v887 = vsub.f32 1.0, %v886
        %v888 = vmul.f32 %v865, %v887
        %889 = vset.pattern.permute.xlu0 25
        %890 = vperm.xlu0 %889, %v333
        %v891 = vpop.permute.xlu0 %890
        %v893 = vlaneseq
        %v894 = vshrl.u32 %v893, 7
        %v895 = vsub.s32 1, %v894
        %v896 = vrot.slane %v866, %v895
        %v897 = vmul.f32 %v891, %v896
        %v898 = vsub.f32 1.0, %v897
        %v899 = vmul.f32 %v877, %v898
        %900 = vset.pattern.permute.xlu0 25
        %901 = vperm.xlu0 %900, %v334
        %v902 = vpop.permute.xlu0 %901
        %v904 = vlaneseq
        %v905 = vshrl.u32 %v904, 7
        %v906 = vsub.s32 1, %v905
        %v907 = vrot.slane %v332, %v906
        %v908 = vmul.f32 %v902, %v907
        %v909 = vsub.f32 1.0, %v908
        %v910 = vmul.f32 %v888, %v909
        %911 = vset.pattern.permute.xlu0 26
        %912 = vperm.xlu0 %911, %v333
        %v913 = vpop.permute.xlu0 %912
        %v915 = vlaneseq
        %v916 = vshrl.u32 %v915, 7
        %v917 = vsub.s32 2, %v916
        %v918 = vrot.slane %v866, %v917
        %v919 = vmul.f32 %v913, %v918
        %v920 = vsub.f32 1.0, %v919
        %v921 = vmul.f32 %v899, %v920
        %922 = vset.pattern.permute.xlu0 26
        %923 = vperm.xlu0 %922, %v334
        %v924 = vpop.permute.xlu0 %923
        %v926 = vlaneseq
        %v927 = vshrl.u32 %v926, 7
        %v928 = vsub.s32 2, %v927
        %v929 = vrot.slane %v332, %v928
        %v930 = vmul.f32 %v924, %v929
        %v931 = vsub.f32 1.0, %v930
        %v932 = vmul.f32 %v910, %v931
        %933 = vset.pattern.permute.xlu0 27
        %934 = vperm.xlu0 %933, %v333
        %v935 = vpop.permute.xlu0 %934
        %v937 = vlaneseq
        %v938 = vshrl.u32 %v937, 7
        %v939 = vsub.s32 3, %v938
        %v940 = vrot.slane %v866, %v939
        %v941 = vmul.f32 %v935, %v940
        %v942 = vsub.f32 1.0, %v941
        %v943 = vmul.f32 %v921, %v942
        %944 = vset.pattern.permute.xlu0 27
        %945 = vperm.xlu0 %944, %v334
        %v946 = vpop.permute.xlu0 %945
        %v948 = vlaneseq
        %v949 = vshrl.u32 %v948, 7
        %v950 = vsub.s32 3, %v949
        %v951 = vrot.slane %v332, %v950
        %v952 = vmul.f32 %v946, %v951
        %v953 = vsub.f32 1.0, %v952
        %v954 = vmul.f32 %v932, %v953
        %955 = vset.pattern.permute.xlu0 28
        %956 = vperm.xlu0 %955, %v333
        %v957 = vpop.permute.xlu0 %956
        %v959 = vlaneseq
        %v960 = vshrl.u32 %v959, 7
        %v961 = vsub.s32 4, %v960
        %v962 = vrot.slane %v866, %v961
        %v963 = vmul.f32 %v957, %v962
        %v964 = vsub.f32 1.0, %v963
        %v965 = vmul.f32 %v943, %v964
        %966 = vset.pattern.permute.xlu0 28
        %967 = vperm.xlu0 %966, %v334
        %v968 = vpop.permute.xlu0 %967
        %v970 = vlaneseq
        %v971 = vshrl.u32 %v970, 7
        %v972 = vsub.s32 4, %v971
        %v973 = vrot.slane %v332, %v972
        %v974 = vmul.f32 %v968, %v973
        %v975 = vsub.f32 1.0, %v974
        %v976 = vmul.f32 %v954, %v975
        %977 = vset.pattern.permute.xlu0 29
        %978 = vperm.xlu0 %977, %v333
        %v979 = vpop.permute.xlu0 %978
        %v981 = vlaneseq
        %v982 = vshrl.u32 %v981, 7
        %v983 = vsub.s32 5, %v982
        %v984 = vrot.slane %v866, %v983
        %v985 = vmul.f32 %v979, %v984
        %v986 = vsub.f32 1.0, %v985
        %v987 = vmul.f32 %v965, %v986
        %988 = vset.pattern.permute.xlu0 29
        %989 = vperm.xlu0 %988, %v334
        %v990 = vpop.permute.xlu0 %989
        %v992 = vlaneseq
        %v993 = vshrl.u32 %v992, 7
        %v994 = vsub.s32 5, %v993
        %v995 = vrot.slane %v332, %v994
        %v996 = vmul.f32 %v990, %v995
        %v997 = vsub.f32 1.0, %v996
        %v998 = vmul.f32 %v976, %v997
        %999 = vset.pattern.permute.xlu0 30
        %1000 = vperm.xlu0 %999, %v333
        %v1001 = vpop.permute.xlu0 %1000
        %v1003 = vlaneseq
        %v1004 = vshrl.u32 %v1003, 7
        %v1005 = vsub.s32 6, %v1004
        %v1006 = vrot.slane %v866, %v1005
        %v1007 = vmul.f32 %v1001, %v1006
        %v1008 = vsub.f32 1.0, %v1007
        %v1009 = vmul.f32 %v987, %v1008
        %1010 = vset.pattern.permute.xlu0 30
        %1011 = vperm.xlu0 %1010, %v334
        %v1012 = vpop.permute.xlu0 %1011
        %v1014 = vlaneseq
        %v1015 = vshrl.u32 %v1014, 7
        %v1016 = vsub.s32 6, %v1015
        %v1017 = vrot.slane %v332, %v1016
        %v1018 = vmul.f32 %v1012, %v1017
        %v1019 = vsub.f32 1.0, %v1018
        %v1020 = vmul.f32 %v998, %v1019
        %1021 = vset.pattern.permute.xlu0 31
        %1022 = vperm.xlu0 %1021, %v333
        %v1023 = vpop.permute.xlu0 %1022
        %v1025 = vlaneseq
        %v1026 = vshrl.u32 %v1025, 7
        %v1027 = vsub.s32 7, %v1026
        %v1028 = vrot.slane %v866, %v1027
        %v1029 = vmul.f32 %v1023, %v1028
        %v1030 = vsub.f32 1.0, %v1029
        %v1031 = vmul.f32 %v1009, %v1030
        %1032 = vset.pattern.permute.xlu0 31
        %1033 = vperm.xlu0 %1032, %v334
        %v1034 = vpop.permute.xlu0 %1033
        %v1036 = vlaneseq
        %v1037 = vshrl.u32 %v1036, 7
        %v1038 = vsub.s32 7, %v1037
        %v1039 = vrot.slane %v332, %v1038
        %v1040 = vmul.f32 %v1034, %v1039
        %v1041 = vsub.f32 1.0, %v1040
        %v1042 = vmul.f32 %v1020, %v1041
        %v1043 = vld [vmem:[%s4] sm:$0xff]
        %v1044 = vsub.f32 1.0, %v1043
        %1046 = vset.pattern.permute.xlu0 0
        %1047 = vperm.xlu0 %1046, %v1044
        %v1048 = vpop.permute.xlu0 %1047
        %v1050 = vmul.f32 %v1048, %v1031
        %v1051 = vsub.f32 1.0, %v1042
        %1053 = vset.pattern.permute.xlu0 0
        %1054 = vperm.xlu0 %1053, %v1043
        %v1055 = vpop.permute.xlu0 %1054
        %v1057 = vmul.f32 %v1055, %v1051
        %v1058 = vadd.f32 %v1050, %v1057
        %1059 = vst [vmem:[%s268] sm:$0xff] %v1058
        %s1060 = sand.u32 %s137, 1
        %s1061 = scalar_lea.sflag [#allocation4], %s1060
        %s1062 = sand.u32 %s137, 1
        %s1063 = smul.addr %s1062, 8
        %s1064 = scalar_lea.vmem [#allocation3], %s1063
        // Predicated region
        $region79: #{neural_logic_network.5} parent=73 // pred_check
          %p1065 = pneg %p147
        $region80: #{neural_logic_network.5} parent=73 // pred_check_branch
          %1067 = sbr.rel (%p1065) target = $region82
        $region81: #{neural_logic_network.5} parent=73 // pred_region
          %s1069 = ssub.s32 128, 128
          %1070 = vsyncadd %s1061, %s1069
          %s1071 = smul.addr %s19, 128
          %s1072 = scalar_lea.hbm %s5, %s1071
          %s1074 = sshll.u32 %s1064, 4
          %s1075 = int_to_ptr.vmem [resolvable:$true] %s1074
          %1077 = dma.vmem_to_hbm [thread:$0]  %s1075, 128, %s1072, %s1061
        $region82: #{neural_logic_network.5} parent=73 // pred_fallthru
          _
      $region74: #{neural_logic_network.5} parent=5 // pred_fallthru
        _
      %p1078 = scmp.le.s32.totalorder 2, %s14
      // Predicated region
      $region83: #{neural_logic_network.5} parent=5 // pred_check
        %p1079 = pneg %p1078
      $region84: #{neural_logic_network.5} parent=5 // pred_check_branch
        %1081 = sbr.rel (%p1079) target = $region86
      $region85: #{neural_logic_network.5} parent=5 // pred_region
        %s1082 = ssub.s32 %s14, 2
        // Predicated region
        $region87: #{neural_logic_network.5} parent=85 // pred_check
          %p1083 = pneg %p153
        $region88: #{neural_logic_network.5} parent=85 // pred_check_branch
          %1085 = sbr.rel (%p1083) target = $region90
        $region89: #{neural_logic_network.5} parent=85 // pred_region
          %s1086 = sand.u32 %s138, 1
          %s1087 = scalar_lea.sflag [#allocation4], %s1086
          %s1088 = sand.u32 %s138, 1
          %s1089 = smul.addr %s1088, 8
          %s1090 = scalar_lea.vmem [#allocation3], %s1089
          %1091 = dma.done %s1087, 128
        $region90: #{neural_logic_network.5} parent=85 // pred_fallthru
          _
      $region86: #{neural_logic_network.5} parent=5 // pred_fallthru
        _
    $region6: #{neural_logic_network.5} parent=1 // loop_footer
      %s18 = sadd.s32 1, %s14
    $region7: #{neural_logic_network.5} parent=1 // loop_footer_branch
      %13 = sbr.rel target = $region3
    $region8: #{neural_logic_network.5} parent=1 // loop_exit
      _
    %1092 = vsyncpa [#allocation4], 1
    %s1093 = scalar_lea.sflag [#allocation4], 1
    %1094 = vsyncpa %s1093, 1

// kernel: neural_logic_network.4
$region0: #{neural_logic_network.4}
  #allocation0 [shape = 'u32[]', space=smem, size = 0x4, offset = 0x4, fixed_abs, tag = 'smem constant byte address 0x4 - core index']
  #allocation1 [shape = 'u32[144,128]{1,0:T(1,128)}', space=vmem, size = 0x12000, scoped, tag = 'internal scratch']
  %s0 = inlined_call_operand.vmem [shape: f32[32,256], index: 0, kind: input, shape index: {}]
  %s1 = inlined_call_operand.vmem [shape: f32[32,32], index: 1, kind: input, shape index: {}]
  %s2 = inlined_call_operand.vmem [shape: f32[32,32], index: 2, kind: input, shape index: {}]
  %s3 = inlined_call_operand.vmem [shape: f32[32,1], index: 3, kind: input, shape index: {}]
  %s4 = inlined_call_operand.vmem [shape: f32[32,1], index: 4, kind: input, shape index: {}]
  %s5 = inlined_call_operand.vmem [shape: f32[32,256], index: 5, kind: output, shape index: {}]
  %s6 = sld [smem:[#allocation0]]
  $region125: #{neural_logic_network.4} parent=0
    _
  %s8 = ssub.s32 1, %s6
  %s9 = scalar_select 0, %s8, %s6
  $region1: #{neural_logic_network.4} parent=0
    #allocation2 [shape = 'u8[32768]{0}', space=vmem, size = 0x8000, scoped, tag = 'input window, operand 0']
    #allocation3 [shape = 'u8[32768]{0}', space=vmem, size = 0x8000, scoped, tag = 'output window, operand 0']
    loop: start=0, step=1, limit=4
    $region2: #{neural_logic_network.4} parent=1 // loop_pre_header
      _
    $region3: #{neural_logic_network.4} parent=1 // loop_header
      %s11 = sphi 0, %s15
      %p12 = scmp.ge.s32.totalorder %s11, 4
      %s21 = sphi 0, %s23
      %s24 = sphi 0, %s21
      %s25 = sphi 0, %s24
      %s41 = sphi 0, %s25
      %s45 = sphi 0, %s45
      %s47 = sphi 0, %s45
      %s48 = sphi 0, %s47
      %s62 = sphi 0, %s48
      %s66 = sphi 0, %s66
      %s68 = sphi 0, %s66
      %s69 = sphi 0, %s68
      %s83 = sphi 0, %s69
      %s87 = sphi 0, %s87
      %s89 = sphi 0, %s87
      %s90 = sphi 0, %s89
      %s104 = sphi 0, %s90
      %s108 = sphi 0, %s108
      %s110 = sphi 0, %s108
      %s111 = sphi 0, %s110
      %s125 = sphi 0, %s111
      %s131 = sphi 0, %s133
      %s134 = sphi 0, %s131
      %s135 = sphi 0, %s134
      %s151 = sphi 0, %s135
    $region4: #{neural_logic_network.4} parent=1 // loop_header_branch
      %14 = sbr.rel (%p12) target = $region8
    $region5: #{neural_logic_network.4} parent=1 // loop_body
      %s16 = ssub.s32 %s11, 1
      %s17 = ssub.s32 %s11, 2
      %s18 = sadd.s32 %s11, 1
      %s19 = ssub.s32 %s11, %s18
      %p20 = scmp.eq.s32.totalorder %s19, 0
      %s22 = sadd.s32 %s21, 1
      %s23 = scalar_select %p20, %s21, %s22
      %p26 = pneg %p20
      %p27 = scmp.eq.s32.totalorder %s11, 1
      %p28 = por %p26, %p27
      %p29 = scmp.ne.s32.totalorder %s21, %s24
      %p30 = scmp.eq.s32.totalorder %s11, 0
      %p31 = por %p29, %p30
      %p32 = scmp.ne.s32.totalorder %s21, %s24
      %p33 = scmp.eq.s32.totalorder %s16, 1
      %p34 = por %p32, %p33
      %p35 = scmp.ne.s32.totalorder %s24, %s25
      %p36 = scmp.eq.s32.totalorder %s16, 0
      %p37 = por %p35, %p36
      %p38 = scmp.ne.s32.totalorder %s24, %s25
      %p39 = scmp.eq.s32.totalorder %s17, 1
      %p40 = por %p38, %p39
      %p42 = scmp.ne.s32.totalorder %s25, %s41
      %p43 = scmp.eq.s32.totalorder %s17, 0
      %p44 = por %p42, %p43
      %s46 = sadd.s32 %s45, 1
      %p49 = scmp.eq.s32.totalorder %s11, 1
      %p50 = scmp.ne.s32.totalorder %s45, %s47
      %p51 = scmp.eq.s32.totalorder %s11, 0
      %p52 = por %p50, %p51
      %p53 = scmp.ne.s32.totalorder %s45, %s47
      %p54 = scmp.eq.s32.totalorder %s16, 1
      %p55 = por %p53, %p54
      %p56 = scmp.ne.s32.totalorder %s47, %s48
      %p57 = scmp.eq.s32.totalorder %s16, 0
      %p58 = por %p56, %p57
      %p59 = scmp.ne.s32.totalorder %s47, %s48
      %p60 = scmp.eq.s32.totalorder %s17, 1
      %p61 = por %p59, %p60
      %p63 = scmp.ne.s32.totalorder %s48, %s62
      %p64 = scmp.eq.s32.totalorder %s17, 0
      %p65 = por %p63, %p64
      %s67 = sadd.s32 %s66, 1
      %p70 = scmp.eq.s32.totalorder %s11, 1
      %p71 = scmp.ne.s32.totalorder %s66, %s68
      %p72 = scmp.eq.s32.totalorder %s11, 0
      %p73 = por %p71, %p72
      %p74 = scmp.ne.s32.totalorder %s66, %s68
      %p75 = scmp.eq.s32.totalorder %s16, 1
      %p76 = por %p74, %p75
      %p77 = scmp.ne.s32.totalorder %s68, %s69
      %p78 = scmp.eq.s32.totalorder %s16, 0
      %p79 = por %p77, %p78
      %p80 = scmp.ne.s32.totalorder %s68, %s69
      %p81 = scmp.eq.s32.totalorder %s17, 1
      %p82 = por %p80, %p81
      %p84 = scmp.ne.s32.totalorder %s69, %s83
      %p85 = scmp.eq.s32.totalorder %s17, 0
      %p86 = por %p84, %p85
      %s88 = sadd.s32 %s87, 1
      %p91 = scmp.eq.s32.totalorder %s11, 1
      %p92 = scmp.ne.s32.totalorder %s87, %s89
      %p93 = scmp.eq.s32.totalorder %s11, 0
      %p94 = por %p92, %p93
      %p95 = scmp.ne.s32.totalorder %s87, %s89
      %p96 = scmp.eq.s32.totalorder %s16, 1
      %p97 = por %p95, %p96
      %p98 = scmp.ne.s32.totalorder %s89, %s90
      %p99 = scmp.eq.s32.totalorder %s16, 0
      %p100 = por %p98, %p99
      %p101 = scmp.ne.s32.totalorder %s89, %s90
      %p102 = scmp.eq.s32.totalorder %s17, 1
      %p103 = por %p101, %p102
      %p105 = scmp.ne.s32.totalorder %s90, %s104
      %p106 = scmp.eq.s32.totalorder %s17, 0
      %p107 = por %p105, %p106
      %s109 = sadd.s32 %s108, 1
      %p112 = scmp.eq.s32.totalorder %s11, 1
      %p113 = scmp.ne.s32.totalorder %s108, %s110
      %p114 = scmp.eq.s32.totalorder %s11, 0
      %p115 = por %p113, %p114
      %p116 = scmp.ne.s32.totalorder %s108, %s110
      %p117 = scmp.eq.s32.totalorder %s16, 1
      %p118 = por %p116, %p117
      %p119 = scmp.ne.s32.totalorder %s110, %s111
      %p120 = scmp.eq.s32.totalorder %s16, 0
      %p121 = por %p119, %p120
      %p122 = scmp.ne.s32.totalorder %s110, %s111
      %p123 = scmp.eq.s32.totalorder %s17, 1
      %p124 = por %p122, %p123
      %p126 = scmp.ne.s32.totalorder %s111, %s125
      %p127 = scmp.eq.s32.totalorder %s17, 0
      %p128 = por %p126, %p127
      %s129 = ssub.s32 %s11, %s18
      %p130 = scmp.eq.s32.totalorder %s129, 0
      %s132 = sadd.s32 %s131, 1
      %s133 = scalar_select %p130, %s131, %s132
      %p136 = pneg %p130
      %p137 = scmp.eq.s32.totalorder %s11, 1
      %p138 = por %p136, %p137
      %p139 = scmp.ne.s32.totalorder %s131, %s134
      %p140 = scmp.eq.s32.totalorder %s11, 0
      %p141 = por %p139, %p140
      %p142 = scmp.ne.s32.totalorder %s131, %s134
      %p143 = scmp.eq.s32.totalorder %s16, 1
      %p144 = por %p142, %p143
      %p145 = scmp.ne.s32.totalorder %s134, %s135
      %p146 = scmp.eq.s32.totalorder %s16, 0
      %p147 = por %p145, %p146
      %p148 = scmp.ne.s32.totalorder %s134, %s135
      %p149 = scmp.eq.s32.totalorder %s17, 1
      %p150 = por %p148, %p149
      %p152 = scmp.ne.s32.totalorder %s135, %s151
      %p153 = scmp.eq.s32.totalorder %s17, 0
      %p154 = por %p152, %p153
      %p155 = scmp.le.s32.totalorder 1, %s11
      %p156 = scmp.lt.s32.totalorder %s11, 3
      %p157 = pnand %p155, %p156
      %p158 = pneg %p157
      // Predicated region
      $region9: #{neural_logic_network.4} parent=5 // pred_check
        _
      $region10: #{neural_logic_network.4} parent=5 // pred_check_branch
        %160 = sbr.rel (%p157) target = $region12
      $region11: #{neural_logic_network.4} parent=5 // pred_region
        %s161 = ssub.s32 %s11, 1
        // Predicated region
        $region13: #{neural_logic_network.4} parent=11 // pred_check
          %p162 = pneg %p58
        $region14: #{neural_logic_network.4} parent=11 // pred_check_branch
          %164 = sbr.rel (%p162) target = $region16
        $region15: #{neural_logic_network.4} parent=11 // pred_region
          _
        $region16: #{neural_logic_network.4} parent=11 // pred_fallthru
          _
        // Predicated region
        $region17: #{neural_logic_network.4} parent=11 // pred_check
          %p165 = pneg %p79
        $region18: #{neural_logic_network.4} parent=11 // pred_check_branch
          %167 = sbr.rel (%p165) target = $region20
        $region19: #{neural_logic_network.4} parent=11 // pred_region
          _
        $region20: #{neural_logic_network.4} parent=11 // pred_fallthru
          _
        // Predicated region
        $region21: #{neural_logic_network.4} parent=11 // pred_check
          %p168 = pneg %p100
        $region22: #{neural_logic_network.4} parent=11 // pred_check_branch
          %170 = sbr.rel (%p168) target = $region24
        $region23: #{neural_logic_network.4} parent=11 // pred_region
          _
        $region24: #{neural_logic_network.4} parent=11 // pred_fallthru
          _
        // Predicated region
        $region25: #{neural_logic_network.4} parent=11 // pred_check
          %p171 = pneg %p121
        $region26: #{neural_logic_network.4} parent=11 // pred_check_branch
          %173 = sbr.rel (%p171) target = $region28
        $region27: #{neural_logic_network.4} parent=11 // pred_region
          _
        $region28: #{neural_logic_network.4} parent=11 // pred_fallthru
          _
      $region12: #{neural_logic_network.4} parent=5 // pred_fallthru
        _
      %p174 = scmp.lt.s32.totalorder %s11, 2
      // Predicated region
      $region29: #{neural_logic_network.4} parent=5 // pred_check
        %p175 = pneg %p174
      $region30: #{neural_logic_network.4} parent=5 // pred_check_branch
        %177 = sbr.rel (%p175) target = $region32
      $region31: #{neural_logic_network.4} parent=5 // pred_region
        // Predicated region
        $region33: #{neural_logic_network.4} parent=31 // pred_check
          %p178 = pneg %p31
        $region34: #{neural_logic_network.4} parent=31 // pred_check_branch
          %180 = sbr.rel (%p178) target = $region36
        $region35: #{neural_logic_network.4} parent=31 // pred_region
          %s181 = sand.u32 %s21, 1
          %s182 = sand.u32 %s21, 1
          %s183 = smul.addr %s182, 32
          %s184 = scalar_lea.vmem [#allocation2], %s183
          %s185 = smul.addr %s11, 8
          %s186 = scalar_lea.vmem %s0, %s185
          // Predicated region
          $region37: #{neural_logic_network.4} parent=35 // pred_check
            _
          $region38: #{neural_logic_network.4} parent=35 // pred_check_branch
            %188 = sbr.rel (0) target = $region40
          $region39: #{neural_logic_network.4} parent=35 // pred_region
            // Predicated region
            $region41: #{neural_logic_network.4} parent=39 // pred_check
              _
            $region42: #{neural_logic_network.4} parent=39 // pred_check_branch
              %190 = sbr.rel (0) target = $region44
            $region43: #{neural_logic_network.4} parent=39 // pred_region
              // Predicated region
              $region56: #{neural_logic_network.4} parent=43 // pred_check
                _
              $region57: #{neural_logic_network.4} parent=43 // pred_check_branch
                %211 = sbr.rel (0) target = $region59
              $region58: #{neural_logic_network.4} parent=43 // pred_region
                loop: start=0, step=1, limit=1
                $region60: #{neural_logic_network.4} parent=58 // loop_pre_header
                  _
                $region61: #{neural_logic_network.4} parent=58 // loop_header
                  %s213 = sphi 0, %s217
                  %p214 = scmp.ge.s32.totalorder %s213, 1
                  %s218 = sphi %s186, %s186
                  %s219 = sphi %s184, %s184
                $region62: #{neural_logic_network.4} parent=58 // loop_header_branch
                  %216 = sbr.rel (%p214) target = $region66
                $region63: #{neural_logic_network.4} parent=58 // loop_body
                  %v220 = vld [vmem:[%s218] sm:$0xff]
                  %221 = vst [vmem:[%s219] sm:$0xff] %v220
                  %v222 = vld [vmem:[%s218 + $0x10] sm:$0xff]
                  %223 = vst [vmem:[%s219 + $0x8] sm:$0xff] %v222
                  %v224 = vld [vmem:[%s218 + $0x20] sm:$0xff]
                  %225 = vst [vmem:[%s219 + $0x10] sm:$0xff] %v224
                  %v226 = vld [vmem:[%s218 + $0x30] sm:$0xff]
                  %227 = vst [vmem:[%s219 + $0x18] sm:$0xff] %v226
                $region64: #{neural_logic_network.4} parent=58 // loop_footer
                  %s217 = sadd.s32 1, %s213
                $region65: #{neural_logic_network.4} parent=58 // loop_footer_branch
                  %212 = sbr.rel target = $region61
                $region66: #{neural_logic_network.4} parent=58 // loop_exit
                  _
              $region59: #{neural_logic_network.4} parent=43 // pred_fallthru
                _
              // Predicated region
              $region67: #{neural_logic_network.4} parent=43 // pred_check
                _
              $region68: #{neural_logic_network.4} parent=43 // pred_check_branch
                %229 = sbr.rel target = $region70
              $region69: #{neural_logic_network.4} parent=43 // pred_region
                _
              $region70: #{neural_logic_network.4} parent=43 // pred_fallthru
                _
            $region44: #{neural_logic_network.4} parent=39 // pred_fallthru
              _
            // Predicated region
            $region45: #{neural_logic_network.4} parent=39 // pred_check
              _
            $region46: #{neural_logic_network.4} parent=39 // pred_check_branch
              %192 = sbr.rel target = $region48
            $region47: #{neural_logic_network.4} parent=39 // pred_region
              loop: start=0, step=1, limit=1
              $region49: #{neural_logic_network.4} parent=47 // loop_pre_header
                _
              $region50: #{neural_logic_network.4} parent=47 // loop_header
                %s195 = sphi 0, %s199
                %p196 = scmp.ge.s32.totalorder %s195, 1
                %s200 = sphi %s186, %s186
                %s201 = sphi %s184, %s184
              $region51: #{neural_logic_network.4} parent=47 // loop_header_branch
                %198 = sbr.rel (%p196) target = $region55
              $region52: #{neural_logic_network.4} parent=47 // loop_body
                %v202 = vld [vmem:[%s200] sm:$0xff]
                %203 = vst [vmem:[%s201] sm:$0xff] %v202
                %v204 = vld [vmem:[%s200 + $0x10] sm:$0xff]
                %205 = vst [vmem:[%s201 + $0x8] sm:$0xff] %v204
                %v206 = vld [vmem:[%s200 + $0x20] sm:$0xff]
                %207 = vst [vmem:[%s201 + $0x10] sm:$0xff] %v206
                %v208 = vld [vmem:[%s200 + $0x30] sm:$0xff]
                %209 = vst [vmem:[%s201 + $0x18] sm:$0xff] %v208
              $region53: #{neural_logic_network.4} parent=47 // loop_footer
                %s199 = sadd.s32 1, %s195
              $region54: #{neural_logic_network.4} parent=47 // loop_footer_branch
                %194 = sbr.rel target = $region50
              $region55: #{neural_logic_network.4} parent=47 // loop_exit
                _
            $region48: #{neural_logic_network.4} parent=39 // pred_fallthru
              _
          $region40: #{neural_logic_network.4} parent=35 // pred_fallthru
            _
          %230 = vnop
        $region36: #{neural_logic_network.4} parent=31 // pred_fallthru
          _
      $region32: #{neural_logic_network.4} parent=5 // pred_fallthru
        _
      %p231 = scmp.le.s32.totalorder 1, %s11
      %p232 = scmp.lt.s32.totalorder %s11, 3
      %p233 = pnand %p231, %p232
      %p234 = pneg %p233
      // Predicated region
      $region71: #{neural_logic_network.4} parent=5 // pred_check
        _
      $region72: #{neural_logic_network.4} parent=5 // pred_check_branch
        %236 = sbr.rel (%p233) target = $region74
      $region73: #{neural_logic_network.4} parent=5 // pred_region
        %s237 = ssub.s32 %s11, 1
        %s238 = sand.u32 %s24, 1
        %s239 = sand.u32 %s24, 1
        %s240 = smul.addr %s239, 32
        %s241 = scalar_lea.vmem [#allocation2], %s240
        // Predicated region
        $region75: #{neural_logic_network.4} parent=73 // pred_check
          %p242 = pneg %p37
        $region76: #{neural_logic_network.4} parent=73 // pred_check_branch
          %244 = sbr.rel (%p242) target = $region78
        $region77: #{neural_logic_network.4} parent=73 // pred_region
          _
        $region78: #{neural_logic_network.4} parent=73 // pred_fallthru
          _
        %s245 = sand.u32 %s24, 1
        %s246 = sand.u32 %s24, 1
        %s247 = smul.addr %s246, 32
        %s248 = scalar_lea.vmem [#allocation2], %s247
        %p249 = pneg %p37
        %p250 = pneg %p34
        %p251 = pneg %p58
        %p252 = pneg %p55
        %p253 = pneg %p79
        %p254 = pneg %p76
        %p255 = pneg %p100
        %p256 = pneg %p97
        %p257 = pneg %p121
        %p258 = pneg %p118
        %p259 = pneg %p147
        %p260 = pneg %p144
        %s261 = sand.u32 %s134, 1
        %s262 = sand.u32 %s134, 1
        %s263 = smul.addr %s262, 32
        %s264 = scalar_lea.vmem [#allocation3], %s263
        %v265 = vld [vmem:[%s241] sm:$0xff]
        %v266 = vld [vmem:[%s241 + $0x8] sm:$0xff]
        %v267 = vld [vmem:[%s241 + $0x10] sm:$0xff]
        %v268 = vld [vmem:[%s241 + $0x18] sm:$0xff]
        %v269 = vld [vmem:[%s3] sm:$0xff]
        %v270 = vld [vmem:[%s3 + $0x8] sm:$0xff]
        %v271 = vld [vmem:[%s3 + $0x10] sm:$0xff]
        %v272 = vld [vmem:[%s3 + $0x18] sm:$0xff]
        %v273 = vmul.f32 %v269, 2.0
        %v274 = vmul.f32 %v270, 2.0
        %v275 = vmul.f32 %v271, 2.0
        %v276 = vmul.f32 %v272, 2.0
        %v277 = vsub.f32 1.0, %v273
        %v278 = vsub.f32 1.0, %v274
        %v279 = vsub.f32 1.0, %v275
        %v280 = vsub.f32 1.0, %v276
        %282 = vset.pattern.permute.xlu0 0
        %283 = vperm.xlu0 %282, %v277
        %v284 = vpop.permute.xlu0 %283
        %287 = vset.pattern.permute.xlu0 0
        %288 = vperm.xlu0 %287, %v278
        %v289 = vpop.permute.xlu0 %288
        %292 = vset.pattern.permute.xlu0 0
        %293 = vperm.xlu0 %292, %v279
        %v294 = vpop.permute.xlu0 %293
        %297 = vset.pattern.permute.xlu0 0
        %298 = vperm.xlu0 %297, %v280
        %v299 = vpop.permute.xlu0 %298
        %v301 = vmul.f32 %v284, %v265
        %v302 = vmul.f32 %v289, %v266
        %v303 = vmul.f32 %v294, %v267
        %v304 = vmul.f32 %v299, %v268
        %306 = vset.pattern.permute.xlu0 0
        %307 = vperm.xlu0 %306, %v269
        %v308 = vpop.permute.xlu0 %307
        %311 = vset.pattern.permute.xlu0 0
        %312 = vperm.xlu0 %311, %v270
        %v313 = vpop.permute.xlu0 %312
        %316 = vset.pattern.permute.xlu0 0
        %317 = vperm.xlu0 %316, %v271
        %v318 = vpop.permute.xlu0 %317
        %321 = vset.pattern.permute.xlu0 0
        %322 = vperm.xlu0 %321, %v272
        %v323 = vpop.permute.xlu0 %322
        %v325 = vadd.f32 %v308, %v301
        %v326 = vadd.f32 %v313, %v302
        %v327 = vadd.f32 %v318, %v303
        %v328 = vadd.f32 %v323, %v304
        %v329 = vld [vmem:[%s1] sm:$0xff]
        %v330 = vld [vmem:[%s1 + $0x8] sm:$0xff]
        %v331 = vld [vmem:[%s1 + $0x10] sm:$0xff]
        %v332 = vld [vmem:[%s1 + $0x18] sm:$0xff]
        %v333 = vld [vmem:[%s2] sm:$0xff]
        %v334 = vld [vmem:[%s2 + $0x8] sm:$0xff]
        %v335 = vld [vmem:[%s2 + $0x10] sm:$0xff]
        %v336 = vld [vmem:[%s2 + $0x18] sm:$0xff]
        %v337 = vsub.f32 1.0, %v325
        %339 = vset.pattern.permute.xlu0 0
        %340 = vperm.xlu0 %339, %v329
        %v341 = vpop.permute.xlu0 %340
        %344 = vset.pattern.permute.xlu0 0
        %345 = vperm.xlu0 %344, %v330
        %v346 = vpop.permute.xlu0 %345
        %349 = vset.pattern.permute.xlu0 0
        %350 = vperm.xlu0 %349, %v331
        %v351 = vpop.permute.xlu0 %350
        %354 = vset.pattern.permute.xlu0 0
        %355 = vperm.xlu0 %354, %v332
        %v356 = vpop.permute.xlu0 %355
        %v358 = vlaneseq
        %v359 = vshrl.u32 %v358, 7
        %v360 = vsub.s32 0, %v359
        %v361 = vrot.slane %v337, %v360
        %v362 = vmul.f32 %v341, %v361
        %v363 = vmul.f32 %v346, %v361
        %v364 = vmul.f32 %v351, %v361
        %v365 = vmul.f32 %v356, %v361
        %v366 = vsub.f32 1.0, %v362
        %v367 = vsub.f32 1.0, %v363
        %v368 = vsub.f32 1.0, %v364
        %v369 = vsub.f32 1.0, %v365
        %371 = vset.pattern.permute.xlu0 0
        %372 = vperm.xlu0 %371, %v333
        %v373 = vpop.permute.xlu0 %372
        %376 = vset.pattern.permute.xlu0 0
        %377 = vperm.xlu0 %376, %v334
        %v378 = vpop.permute.xlu0 %377
        %381 = vset.pattern.permute.xlu0 0
        %382 = vperm.xlu0 %381, %v335
        %v383 = vpop.permute.xlu0 %382
        %386 = vset.pattern.permute.xlu0 0
        %387 = vperm.xlu0 %386, %v336
        %v388 = vpop.permute.xlu0 %387
        %v390 = vlaneseq
        %v391 = vshrl.u32 %v390, 7
        %v392 = vsub.s32 0, %v391
        %v393 = vrot.slane %v325, %v392
        %v394 = vmul.f32 %v373, %v393
        %v395 = vmul.f32 %v378, %v393
        %v396 = vmul.f32 %v383, %v393
        %v397 = vmul.f32 %v388, %v393
        %v398 = vsub.f32 1.0, %v394
        %v399 = vsub.f32 1.0, %v395
        %v400 = vsub.f32 1.0, %v396
        %v401 = vsub.f32 1.0, %v397
        %402 = vset.pattern.permute.xlu0 1
        %403 = vperm.xlu0 %402, %v329
        %v404 = vpop.permute.xlu0 %403
        %406 = vset.pattern.permute.xlu0 1
        %407 = vperm.xlu0 %406, %v330
        %v408 = vpop.permute.xlu0 %407
        %410 = vset.pattern.permute.xlu0 1
        %411 = vperm.xlu0 %410, %v331
        %v412 = vpop.permute.xlu0 %411
        %414 = vset.pattern.permute.xlu0 1
        %415 = vperm.xlu0 %414, %v332
        %v416 = vpop.permute.xlu0 %415
        %v418 = vlaneseq
        %v419 = vshrl.u32 %v418, 7
        %v420 = vsub.s32 1, %v419
        %v421 = vrot.slane %v337, %v420
        %v422 = vmul.f32 %v404, %v421
        %v423 = vmul.f32 %v408, %v421
        %v424 = vmul.f32 %v412, %v421
        %v425 = vmul.f32 %v416, %v421
        %v426 = vsub.f32 1.0, %v422
        %v427 = vsub.f32 1.0, %v423
        %v428 = vsub.f32 1.0, %v424
        %v429 = vsub.f32 1.0, %v425
        %v430 = vmul.f32 %v366, %v426
        %v431 = vmul.f32 %v367, %v427
        %v432 = vmul.f32 %v368, %v428
        %v433 = vmul.f32 %v369, %v429
        %434 = vset.pattern.permute.xlu0 1
        %435 = vperm.xlu0 %434, %v333
        %v436 = vpop.permute.xlu0 %435
        %438 = vset.pattern.permute.xlu0 1
        %439 = vperm.xlu0 %438, %v334
        %v440 = vpop.permute.xlu0 %439
        %442 = vset.pattern.permute.xlu0 1
        %443 = vperm.xlu0 %442, %v335
        %v444 = vpop.permute.xlu0 %443
        %446 = vset.pattern.permute.xlu0 1
        %447 = vperm.xlu0 %446, %v336
        %v448 = vpop.permute.xlu0 %447
        %v450 = vlaneseq
        %v451 = vshrl.u32 %v450, 7
        %v452 = vsub.s32 1, %v451
        %v453 = vrot.slane %v325, %v452
        %v454 = vmul.f32 %v436, %v453
        %v455 = vmul.f32 %v440, %v453
        %v456 = vmul.f32 %v444, %v453
        %v457 = vmul.f32 %v448, %v453
        %v458 = vsub.f32 1.0, %v454
        %v459 = vsub.f32 1.0, %v455
        %v460 = vsub.f32 1.0, %v456
        %v461 = vsub.f32 1.0, %v457
        %v462 = vmul.f32 %v398, %v458
        %v463 = vmul.f32 %v399, %v459
        %v464 = vmul.f32 %v400, %v460
        %v465 = vmul.f32 %v401, %v461
        %466 = vset.pattern.permute.xlu0 2
        %467 = vperm.xlu0 %466, %v329
        %v468 = vpop.permute.xlu0 %467
        %470 = vset.pattern.permute.xlu0 2
        %471 = vperm.xlu0 %470, %v330
        %v472 = vpop.permute.xlu0 %471
        %474 = vset.pattern.permute.xlu0 2
        %475 = vperm.xlu0 %474, %v331
        %v476 = vpop.permute.xlu0 %475
        %478 = vset.pattern.permute.xlu0 2
        %479 = vperm.xlu0 %478, %v332
        %v480 = vpop.permute.xlu0 %479
        %v482 = vlaneseq
        %v483 = vshrl.u32 %v482, 7
        %v484 = vsub.s32 2, %v483
        %v485 = vrot.slane %v337, %v484
        %v486 = vmul.f32 %v468, %v485
        %v487 = vmul.f32 %v472, %v485
        %v488 = vmul.f32 %v476, %v485
        %v489 = vmul.f32 %v480, %v485
        %v490 = vsub.f32 1.0, %v486
        %v491 = vsub.f32 1.0, %v487
        %v492 = vsub.f32 1.0, %v488
        %v493 = vsub.f32 1.0, %v489
        %v494 = vmul.f32 %v430, %v490
        %v495 = vmul.f32 %v431, %v491
        %v496 = vmul.f32 %v432, %v492
        %v497 = vmul.f32 %v433, %v493
        %498 = vset.pattern.permute.xlu0 2
        %499 = vperm.xlu0 %498, %v333
        %v500 = vpop.permute.xlu0 %499
        %502 = vset.pattern.permute.xlu0 2
        %503 = vperm.xlu0 %502, %v334
        %v504 = vpop.permute.xlu0 %503
        %506 = vset.pattern.permute.xlu0 2
        %507 = vperm.xlu0 %506, %v335
        %v508 = vpop.permute.xlu0 %507
        %510 = vset.pattern.permute.xlu0 2
        %511 = vperm.xlu0 %510, %v336
        %v512 = vpop.permute.xlu0 %511
        %v514 = vlaneseq
        %v515 = vshrl.u32 %v514, 7
        %v516 = vsub.s32 2, %v515
        %v517 = vrot.slane %v325, %v516
        %v518 = vmul.f32 %v500, %v517
        %v519 = vmul.f32 %v504, %v517
        %v520 = vmul.f32 %v508, %v517
        %v521 = vmul.f32 %v512, %v517
        %v522 = vsub.f32 1.0, %v518
        %v523 = vsub.f32 1.0, %v519
        %v524 = vsub.f32 1.0, %v520
        %v525 = vsub.f32 1.0, %v521
        %v526 = vmul.f32 %v462, %v522
        %v527 = vmul.f32 %v463, %v523
        %v528 = vmul.f32 %v464, %v524
        %v529 = vmul.f32 %v465, %v525
        %530 = vset.pattern.permute.xlu0 3
        %531 = vperm.xlu0 %530, %v329
        %v532 = vpop.permute.xlu0 %531
        %534 = vset.pattern.permute.xlu0 3
        %535 = vperm.xlu0 %534, %v330
        %v536 = vpop.permute.xlu0 %535
        %538 = vset.pattern.permute.xlu0 3
        %539 = vperm.xlu0 %538, %v331
        %v540 = vpop.permute.xlu0 %539
        %542 = vset.pattern.permute.xlu0 3
        %543 = vperm.xlu0 %542, %v332
        %v544 = vpop.permute.xlu0 %543
        %v546 = vlaneseq
        %v547 = vshrl.u32 %v546, 7
        %v548 = vsub.s32 3, %v547
        %v549 = vrot.slane %v337, %v548
        %v550 = vmul.f32 %v532, %v549
        %v551 = vmul.f32 %v536, %v549
        %v552 = vmul.f32 %v540, %v549
        %v553 = vmul.f32 %v544, %v549
        %v554 = vsub.f32 1.0, %v550
        %v555 = vsub.f32 1.0, %v551
        %v556 = vsub.f32 1.0, %v552
        %v557 = vsub.f32 1.0, %v553
        %v558 = vmul.f32 %v494, %v554
        %v559 = vmul.f32 %v495, %v555
        %v560 = vmul.f32 %v496, %v556
        %v561 = vmul.f32 %v497, %v557
        %562 = vset.pattern.permute.xlu0 3
        %563 = vperm.xlu0 %562, %v333
        %v564 = vpop.permute.xlu0 %563
        %566 = vset.pattern.permute.xlu0 3
        %567 = vperm.xlu0 %566, %v334
        %v568 = vpop.permute.xlu0 %567
        %570 = vset.pattern.permute.xlu0 3
        %571 = vperm.xlu0 %570, %v335
        %v572 = vpop.permute.xlu0 %571
        %574 = vset.pattern.permute.xlu0 3
        %575 = vperm.xlu0 %574, %v336
        %v576 = vpop.permute.xlu0 %575
        %v578 = vlaneseq
        %v579 = vshrl.u32 %v578, 7
        %v580 = vsub.s32 3, %v579
        %v581 = vrot.slane %v325, %v580
        %v582 = vmul.f32 %v564, %v581
        %v583 = vmul.f32 %v568, %v581
        %v584 = vmul.f32 %v572, %v581
        %v585 = vmul.f32 %v576, %v581
        %v586 = vsub.f32 1.0, %v582
        %v587 = vsub.f32 1.0, %v583
        %v588 = vsub.f32 1.0, %v584
        %v589 = vsub.f32 1.0, %v585
        %v590 = vmul.f32 %v526, %v586
        %v591 = vmul.f32 %v527, %v587
        %v592 = vmul.f32 %v528, %v588
        %v593 = vmul.f32 %v529, %v589
        %594 = vset.pattern.permute.xlu0 4
        %595 = vperm.xlu0 %594, %v329
        %v596 = vpop.permute.xlu0 %595
        %598 = vset.pattern.permute.xlu0 4
        %599 = vperm.xlu0 %598, %v330
        %v600 = vpop.permute.xlu0 %599
        %602 = vset.pattern.permute.xlu0 4
        %603 = vperm.xlu0 %602, %v331
        %v604 = vpop.permute.xlu0 %603
        %606 = vset.pattern.permute.xlu0 4
        %607 = vperm.xlu0 %606, %v332
        %v608 = vpop.permute.xlu0 %607
        %v610 = vlaneseq
        %v611 = vshrl.u32 %v610, 7
        %v612 = vsub.s32 4, %v611
        %v613 = vrot.slane %v337, %v612
        %v614 = vmul.f32 %v596, %v613
        %v615 = vmul.f32 %v600, %v613
        %v616 = vmul.f32 %v604, %v613
        %v617 = vmul.f32 %v608, %v613
        %v618 = vsub.f32 1.0, %v614
        %v619 = vsub.f32 1.0, %v615
        %v620 = vsub.f32 1.0, %v616
        %v621 = vsub.f32 1.0, %v617
        %v622 = vmul.f32 %v558, %v618
        %v623 = vmul.f32 %v559, %v619
        %v624 = vmul.f32 %v560, %v620
        %v625 = vmul.f32 %v561, %v621
        %626 = vset.pattern.permute.xlu0 4
        %627 = vperm.xlu0 %626, %v333
        %v628 = vpop.permute.xlu0 %627
        %630 = vset.pattern.permute.xlu0 4
        %631 = vperm.xlu0 %630, %v334
        %v632 = vpop.permute.xlu0 %631
        %634 = vset.pattern.permute.xlu0 4
        %635 = vperm.xlu0 %634, %v335
        %v636 = vpop.permute.xlu0 %635
        %638 = vset.pattern.permute.xlu0 4
        %639 = vperm.xlu0 %638, %v336
        %v640 = vpop.permute.xlu0 %639
        %v642 = vlaneseq
        %v643 = vshrl.u32 %v642, 7
        %v644 = vsub.s32 4, %v643
        %v645 = vrot.slane %v325, %v644
        %v646 = vmul.f32 %v628, %v645
        %v647 = vmul.f32 %v632, %v645
        %v648 = vmul.f32 %v636, %v645
        %v649 = vmul.f32 %v640, %v645
        %v650 = vsub.f32 1.0, %v646
        %v651 = vsub.f32 1.0, %v647
        %v652 = vsub.f32 1.0, %v648
        %v653 = vsub.f32 1.0, %v649
        %v654 = vmul.f32 %v590, %v650
        %v655 = vmul.f32 %v591, %v651
        %v656 = vmul.f32 %v592, %v652
        %v657 = vmul.f32 %v593, %v653
        %658 = vset.pattern.permute.xlu0 5
        %659 = vperm.xlu0 %658, %v329
        %v660 = vpop.permute.xlu0 %659
        %662 = vset.pattern.permute.xlu0 5
        %663 = vperm.xlu0 %662, %v330
        %v664 = vpop.permute.xlu0 %663
        %666 = vset.pattern.permute.xlu0 5
        %667 = vperm.xlu0 %666, %v331
        %v668 = vpop.permute.xlu0 %667
        %670 = vset.pattern.permute.xlu0 5
        %671 = vperm.xlu0 %670, %v332
        %v672 = vpop.permute.xlu0 %671
        %v674 = vlaneseq
        %v675 = vshrl.u32 %v674, 7
        %v676 = vsub.s32 5, %v675
        %v677 = vrot.slane %v337, %v676
        %v678 = vmul.f32 %v660, %v677
        %v679 = vmul.f32 %v664, %v677
        %v680 = vmul.f32 %v668, %v677
        %v681 = vmul.f32 %v672, %v677
        %v682 = vsub.f32 1.0, %v678
        %v683 = vsub.f32 1.0, %v679
        %v684 = vsub.f32 1.0, %v680
        %v685 = vsub.f32 1.0, %v681
        %v686 = vmul.f32 %v622, %v682
        %v687 = vmul.f32 %v623, %v683
        %v688 = vmul.f32 %v624, %v684
        %v689 = vmul.f32 %v625, %v685
        %690 = vset.pattern.permute.xlu0 5
        %691 = vperm.xlu0 %690, %v333
        %v692 = vpop.permute.xlu0 %691
        %694 = vset.pattern.permute.xlu0 5
        %695 = vperm.xlu0 %694, %v334
        %v696 = vpop.permute.xlu0 %695
        %698 = vset.pattern.permute.xlu0 5
        %699 = vperm.xlu0 %698, %v335
        %v700 = vpop.permute.xlu0 %699
        %702 = vset.pattern.permute.xlu0 5
        %703 = vperm.xlu0 %702, %v336
        %v704 = vpop.permute.xlu0 %703
        %v706 = vlaneseq
        %v707 = vshrl.u32 %v706, 7
        %v708 = vsub.s32 5, %v707
        %v709 = vrot.slane %v325, %v708
        %v710 = vmul.f32 %v692, %v709
        %v711 = vmul.f32 %v696, %v709
        %v712 = vmul.f32 %v700, %v709
        %v713 = vmul.f32 %v704, %v709
        %v714 = vsub.f32 1.0, %v710
        %v715 = vsub.f32 1.0, %v711
        %v716 = vsub.f32 1.0, %v712
        %v717 = vsub.f32 1.0, %v713
        %v718 = vmul.f32 %v654, %v714
        %v719 = vmul.f32 %v655, %v715
        %v720 = vmul.f32 %v656, %v716
        %v721 = vmul.f32 %v657, %v717
        %722 = vset.pattern.permute.xlu0 6
        %723 = vperm.xlu0 %722, %v329
        %v724 = vpop.permute.xlu0 %723
        %726 = vset.pattern.permute.xlu0 6
        %727 = vperm.xlu0 %726, %v330
        %v728 = vpop.permute.xlu0 %727
        %730 = vset.pattern.permute.xlu0 6
        %731 = vperm.xlu0 %730, %v331
        %v732 = vpop.permute.xlu0 %731
        %734 = vset.pattern.permute.xlu0 6
        %735 = vperm.xlu0 %734, %v332
        %v736 = vpop.permute.xlu0 %735
        %v738 = vlaneseq
        %v739 = vshrl.u32 %v738, 7
        %v740 = vsub.s32 6, %v739
        %v741 = vrot.slane %v337, %v740
        %v742 = vmul.f32 %v724, %v741
        %v743 = vmul.f32 %v728, %v741
        %v744 = vmul.f32 %v732, %v741
        %v745 = vmul.f32 %v736, %v741
        %v746 = vsub.f32 1.0, %v742
        %v747 = vsub.f32 1.0, %v743
        %v748 = vsub.f32 1.0, %v744
        %v749 = vsub.f32 1.0, %v745
        %v750 = vmul.f32 %v686, %v746
        %v751 = vmul.f32 %v687, %v747
        %v752 = vmul.f32 %v688, %v748
        %v753 = vmul.f32 %v689, %v749
        %754 = vset.pattern.permute.xlu0 6
        %755 = vperm.xlu0 %754, %v333
        %v756 = vpop.permute.xlu0 %755
        %758 = vset.pattern.permute.xlu0 6
        %759 = vperm.xlu0 %758, %v334
        %v760 = vpop.permute.xlu0 %759
        %762 = vset.pattern.permute.xlu0 6
        %763 = vperm.xlu0 %762, %v335
        %v764 = vpop.permute.xlu0 %763
        %766 = vset.pattern.permute.xlu0 6
        %767 = vperm.xlu0 %766, %v336
        %v768 = vpop.permute.xlu0 %767
        %v770 = vlaneseq
        %v771 = vshrl.u32 %v770, 7
        %v772 = vsub.s32 6, %v771
        %v773 = vrot.slane %v325, %v772
        %v774 = vmul.f32 %v756, %v773
        %v775 = vmul.f32 %v760, %v773
        %v776 = vmul.f32 %v764, %v773
        %v777 = vmul.f32 %v768, %v773
        %v778 = vsub.f32 1.0, %v774
        %v779 = vsub.f32 1.0, %v775
        %v780 = vsub.f32 1.0, %v776
        %v781 = vsub.f32 1.0, %v777
        %v782 = vmul.f32 %v718, %v778
        %v783 = vmul.f32 %v719, %v779
        %v784 = vmul.f32 %v720, %v780
        %v785 = vmul.f32 %v721, %v781
        %786 = vset.pattern.permute.xlu0 7
        %787 = vperm.xlu0 %786, %v329
        %v788 = vpop.permute.xlu0 %787
        %790 = vset.pattern.permute.xlu0 7
        %791 = vperm.xlu0 %790, %v330
        %v792 = vpop.permute.xlu0 %791
        %794 = vset.pattern.permute.xlu0 7
        %795 = vperm.xlu0 %794, %v331
        %v796 = vpop.permute.xlu0 %795
        %798 = vset.pattern.permute.xlu0 7
        %799 = vperm.xlu0 %798, %v332
        %v800 = vpop.permute.xlu0 %799
        %v802 = vlaneseq
        %v803 = vshrl.u32 %v802, 7
        %v804 = vsub.s32 7, %v803
        %v805 = vrot.slane %v337, %v804
        %v806 = vmul.f32 %v788, %v805
        %v807 = vmul.f32 %v792, %v805
        %v808 = vmul.f32 %v796, %v805
        %v809 = vmul.f32 %v800, %v805
        %v810 = vsub.f32 1.0, %v806
        %v811 = vsub.f32 1.0, %v807
        %v812 = vsub.f32 1.0, %v808
        %v813 = vsub.f32 1.0, %v809
        %v814 = vmul.f32 %v750, %v810
        %v815 = vmul.f32 %v751, %v811
        %v816 = vmul.f32 %v752, %v812
        %v817 = vmul.f32 %v753, %v813
        %818 = vset.pattern.permute.xlu0 7
        %819 = vperm.xlu0 %818, %v333
        %v820 = vpop.permute.xlu0 %819
        %822 = vset.pattern.permute.xlu0 7
        %823 = vperm.xlu0 %822, %v334
        %v824 = vpop.permute.xlu0 %823
        %826 = vset.pattern.permute.xlu0 7
        %827 = vperm.xlu0 %826, %v335
        %v828 = vpop.permute.xlu0 %827
        %830 = vset.pattern.permute.xlu0 7
        %831 = vperm.xlu0 %830, %v336
        %v832 = vpop.permute.xlu0 %831
        %v834 = vlaneseq
        %v835 = vshrl.u32 %v834, 7
        %v836 = vsub.s32 7, %v835
        %v837 = vrot.slane %v325, %v836
        %v838 = vmul.f32 %v820, %v837
        %v839 = vmul.f32 %v824, %v837
        %v840 = vmul.f32 %v828, %v837
        %v841 = vmul.f32 %v832, %v837
        %v842 = vsub.f32 1.0, %v838
        %v843 = vsub.f32 1.0, %v839
        %v844 = vsub.f32 1.0, %v840
        %v845 = vsub.f32 1.0, %v841
        %v846 = vmul.f32 %v782, %v842
        %v847 = vmul.f32 %v783, %v843
        %v848 = vmul.f32 %v784, %v844
        %v849 = vmul.f32 %v785, %v845
        %v850 = vsub.f32 1.0, %v326
        %851 = vset.pattern.permute.xlu0 8
        %852 = vperm.xlu0 %851, %v329
        %v853 = vpop.permute.xlu0 %852
        %855 = vset.pattern.permute.xlu0 8
        %856 = vperm.xlu0 %855, %v330
        %v857 = vpop.permute.xlu0 %856
        %859 = vset.pattern.permute.xlu0 8
        %860 = vperm.xlu0 %859, %v331
        %v861 = vpop.permute.xlu0 %860
        %863 = vset.pattern.permute.xlu0 8
        %864 = vperm.xlu0 %863, %v332
        %v865 = vpop.permute.xlu0 %864
        %v867 = vlaneseq
        %v868 = vshrl.u32 %v867, 7
        %v869 = vsub.s32 0, %v868
        %v870 = vrot.slane %v850, %v869
        %v871 = vmul.f32 %v853, %v870
        %v872 = vmul.f32 %v857, %v870
        %v873 = vmul.f32 %v861, %v870
        %v874 = vmul.f32 %v865, %v870
        %v875 = vsub.f32 1.0, %v871
        %v876 = vsub.f32 1.0, %v872
        %v877 = vsub.f32 1.0, %v873
        %v878 = vsub.f32 1.0, %v874
        %v879 = vmul.f32 %v814, %v875
        %v880 = vmul.f32 %v815, %v876
        %v881 = vmul.f32 %v816, %v877
        %v882 = vmul.f32 %v817, %v878
        %883 = vset.pattern.permute.xlu0 8
        %884 = vperm.xlu0 %883, %v333
        %v885 = vpop.permute.xlu0 %884
        %887 = vset.pattern.permute.xlu0 8
        %888 = vperm.xlu0 %887, %v334
        %v889 = vpop.permute.xlu0 %888
        %891 = vset.pattern.permute.xlu0 8
        %892 = vperm.xlu0 %891, %v335
        %v893 = vpop.permute.xlu0 %892
        %895 = vset.pattern.permute.xlu0 8
        %896 = vperm.xlu0 %895, %v336
        %v897 = vpop.permute.xlu0 %896
        %v899 = vlaneseq
        %v900 = vshrl.u32 %v899, 7
        %v901 = vsub.s32 0, %v900
        %v902 = vrot.slane %v326, %v901
        %v903 = vmul.f32 %v885, %v902
        %v904 = vmul.f32 %v889, %v902
        %v905 = vmul.f32 %v893, %v902
        %v906 = vmul.f32 %v897, %v902
        %v907 = vsub.f32 1.0, %v903
        %v908 = vsub.f32 1.0, %v904
        %v909 = vsub.f32 1.0, %v905
        %v910 = vsub.f32 1.0, %v906
        %v911 = vmul.f32 %v846, %v907
        %v912 = vmul.f32 %v847, %v908
        %v913 = vmul.f32 %v848, %v909
        %v914 = vmul.f32 %v849, %v910
        %915 = vset.pattern.permute.xlu0 9
        %916 = vperm.xlu0 %915, %v329
        %v917 = vpop.permute.xlu0 %916
        %919 = vset.pattern.permute.xlu0 9
        %920 = vperm.xlu0 %919, %v330
        %v921 = vpop.permute.xlu0 %920
        %923 = vset.pattern.permute.xlu0 9
        %924 = vperm.xlu0 %923, %v331
        %v925 = vpop.permute.xlu0 %924
        %927 = vset.pattern.permute.xlu0 9
        %928 = vperm.xlu0 %927, %v332
        %v929 = vpop.permute.xlu0 %928
        %v931 = vlaneseq
        %v932 = vshrl.u32 %v931, 7
        %v933 = vsub.s32 1, %v932
        %v934 = vrot.slane %v850, %v933
        %v935 = vmul.f32 %v917, %v934
        %v936 = vmul.f32 %v921, %v934
        %v937 = vmul.f32 %v925, %v934
        %v938 = vmul.f32 %v929, %v934
        %v939 = vsub.f32 1.0, %v935
        %v940 = vsub.f32 1.0, %v936
        %v941 = vsub.f32 1.0, %v937
        %v942 = vsub.f32 1.0, %v938
        %v943 = vmul.f32 %v879, %v939
        %v944 = vmul.f32 %v880, %v940
        %v945 = vmul.f32 %v881, %v941
        %v946 = vmul.f32 %v882, %v942
        %947 = vset.pattern.permute.xlu0 9
        %948 = vperm.xlu0 %947, %v333
        %v949 = vpop.permute.xlu0 %948
        %951 = vset.pattern.permute.xlu0 9
        %952 = vperm.xlu0 %951, %v334
        %v953 = vpop.permute.xlu0 %952
        %955 = vset.pattern.permute.xlu0 9
        %956 = vperm.xlu0 %955, %v335
        %v957 = vpop.permute.xlu0 %956
        %959 = vset.pattern.permute.xlu0 9
        %960 = vperm.xlu0 %959, %v336
        %v961 = vpop.permute.xlu0 %960
        %v963 = vlaneseq
        %v964 = vshrl.u32 %v963, 7
        %v965 = vsub.s32 1, %v964
        %v966 = vrot.slane %v326, %v965
        %v967 = vmul.f32 %v949, %v966
        %v968 = vmul.f32 %v953, %v966
        %v969 = vmul.f32 %v957, %v966
        %v970 = vmul.f32 %v961, %v966
        %v971 = vsub.f32 1.0, %v967
        %v972 = vsub.f32 1.0, %v968
        %v973 = vsub.f32 1.0, %v969
        %v974 = vsub.f32 1.0, %v970
        %v975 = vmul.f32 %v911, %v971
        %v976 = vmul.f32 %v912, %v972
        %v977 = vmul.f32 %v913, %v973
        %v978 = vmul.f32 %v914, %v974
        %979 = vset.pattern.permute.xlu0 10
        %980 = vperm.xlu0 %979, %v329
        %v981 = vpop.permute.xlu0 %980
        %983 = vset.pattern.permute.xlu0 10
        %984 = vperm.xlu0 %983, %v330
        %v985 = vpop.permute.xlu0 %984
        %987 = vset.pattern.permute.xlu0 10
        %988 = vperm.xlu0 %987, %v331
        %v989 = vpop.permute.xlu0 %988
        %991 = vset.pattern.permute.xlu0 10
        %992 = vperm.xlu0 %991, %v332
        %v993 = vpop.permute.xlu0 %992
        %v995 = vlaneseq
        %v996 = vshrl.u32 %v995, 7
        %v997 = vsub.s32 2, %v996
        %v998 = vrot.slane %v850, %v997
        %v999 = vmul.f32 %v981, %v998
        %v1000 = vmul.f32 %v985, %v998
        %v1001 = vmul.f32 %v989, %v998
        %v1002 = vmul.f32 %v993, %v998
        %v1003 = vsub.f32 1.0, %v999
        %v1004 = vsub.f32 1.0, %v1000
        %v1005 = vsub.f32 1.0, %v1001
        %v1006 = vsub.f32 1.0, %v1002
        %v1007 = vmul.f32 %v943, %v1003
        %v1008 = vmul.f32 %v944, %v1004
        %v1009 = vmul.f32 %v945, %v1005
        %v1010 = vmul.f32 %v946, %v1006
        %1011 = vset.pattern.permute.xlu0 10
        %1012 = vperm.xlu0 %1011, %v333
        %v1013 = vpop.permute.xlu0 %1012
        %1015 = vset.pattern.permute.xlu0 10
        %1016 = vperm.xlu0 %1015, %v334
        %v1017 = vpop.permute.xlu0 %1016
        %1019 = vset.pattern.permute.xlu0 10
        %1020 = vperm.xlu0 %1019, %v335
        %v1021 = vpop.permute.xlu0 %1020
        %1023 = vset.pattern.permute.xlu0 10
        %1024 = vperm.xlu0 %1023, %v336
        %v1025 = vpop.permute.xlu0 %1024
        %v1027 = vlaneseq
        %v1028 = vshrl.u32 %v1027, 7
        %v1029 = vsub.s32 2, %v1028
        %v1030 = vrot.slane %v326, %v1029
        %v1031 = vmul.f32 %v1013, %v1030
        %v1032 = vmul.f32 %v1017, %v1030
        %v1033 = vmul.f32 %v1021, %v1030
        %v1034 = vmul.f32 %v1025, %v1030
        %v1035 = vsub.f32 1.0, %v1031
        %v1036 = vsub.f32 1.0, %v1032
        %v1037 = vsub.f32 1.0, %v1033
        %v1038 = vsub.f32 1.0, %v1034
        %v1039 = vmul.f32 %v975, %v1035
        %v1040 = vmul.f32 %v976, %v1036
        %v1041 = vmul.f32 %v977, %v1037
        %v1042 = vmul.f32 %v978, %v1038
        %1043 = vset.pattern.permute.xlu0 11
        %1044 = vperm.xlu0 %1043, %v329
        %v1045 = vpop.permute.xlu0 %1044
        %1047 = vset.pattern.permute.xlu0 11
        %1048 = vperm.xlu0 %1047, %v330
        %v1049 = vpop.permute.xlu0 %1048
        %1051 = vset.pattern.permute.xlu0 11
        %1052 = vperm.xlu0 %1051, %v331
        %v1053 = vpop.permute.xlu0 %1052
        %1055 = vset.pattern.permute.xlu0 11
        %1056 = vperm.xlu0 %1055, %v332
        %v1057 = vpop.permute.xlu0 %1056
        %v1059 = vlaneseq
        %v1060 = vshrl.u32 %v1059, 7
        %v1061 = vsub.s32 3, %v1060
        %v1062 = vrot.slane %v850, %v1061
        %v1063 = vmul.f32 %v1045, %v1062
        %v1064 = vmul.f32 %v1049, %v1062
        %v1065 = vmul.f32 %v1053, %v1062
        %v1066 = vmul.f32 %v1057, %v1062
        %v1067 = vsub.f32 1.0, %v1063
        %v1068 = vsub.f32 1.0, %v1064
        %v1069 = vsub.f32 1.0, %v1065
        %v1070 = vsub.f32 1.0, %v1066
        %v1071 = vmul.f32 %v1007, %v1067
        %v1072 = vmul.f32 %v1008, %v1068
        %v1073 = vmul.f32 %v1009, %v1069
        %v1074 = vmul.f32 %v1010, %v1070
        %1075 = vset.pattern.permute.xlu0 11
        %1076 = vperm.xlu0 %1075, %v333
        %v1077 = vpop.permute.xlu0 %1076
        %1079 = vset.pattern.permute.xlu0 11
        %1080 = vperm.xlu0 %1079, %v334
        %v1081 = vpop.permute.xlu0 %1080
        %1083 = vset.pattern.permute.xlu0 11
        %1084 = vperm.xlu0 %1083, %v335
        %v1085 = vpop.permute.xlu0 %1084
        %1087 = vset.pattern.permute.xlu0 11
        %1088 = vperm.xlu0 %1087, %v336
        %v1089 = vpop.permute.xlu0 %1088
        %v1091 = vlaneseq
        %v1092 = vshrl.u32 %v1091, 7
        %v1093 = vsub.s32 3, %v1092
        %v1094 = vrot.slane %v326, %v1093
        %v1095 = vmul.f32 %v1077, %v1094
        %v1096 = vmul.f32 %v1081, %v1094
        %v1097 = vmul.f32 %v1085, %v1094
        %v1098 = vmul.f32 %v1089, %v1094
        %v1099 = vsub.f32 1.0, %v1095
        %v1100 = vsub.f32 1.0, %v1096
        %v1101 = vsub.f32 1.0, %v1097
        %v1102 = vsub.f32 1.0, %v1098
        %v1103 = vmul.f32 %v1039, %v1099
        %v1104 = vmul.f32 %v1040, %v1100
        %v1105 = vmul.f32 %v1041, %v1101
        %v1106 = vmul.f32 %v1042, %v1102
        %1107 = vset.pattern.permute.xlu0 12
        %1108 = vperm.xlu0 %1107, %v329
        %v1109 = vpop.permute.xlu0 %1108
        %1111 = vset.pattern.permute.xlu0 12
        %1112 = vperm.xlu0 %1111, %v330
        %v1113 = vpop.permute.xlu0 %1112
        %1115 = vset.pattern.permute.xlu0 12
        %1116 = vperm.xlu0 %1115, %v331
        %v1117 = vpop.permute.xlu0 %1116
        %1119 = vset.pattern.permute.xlu0 12
        %1120 = vperm.xlu0 %1119, %v332
        %v1121 = vpop.permute.xlu0 %1120
        %v1123 = vlaneseq
        %v1124 = vshrl.u32 %v1123, 7
        %v1125 = vsub.s32 4, %v1124
        %v1126 = vrot.slane %v850, %v1125
        %v1127 = vmul.f32 %v1109, %v1126
        %v1128 = vmul.f32 %v1113, %v1126
        %v1129 = vmul.f32 %v1117, %v1126
        %v1130 = vmul.f32 %v1121, %v1126
        %v1131 = vsub.f32 1.0, %v1127
        %v1132 = vsub.f32 1.0, %v1128
        %v1133 = vsub.f32 1.0, %v1129
        %v1134 = vsub.f32 1.0, %v1130
        %v1135 = vmul.f32 %v1071, %v1131
        %v1136 = vmul.f32 %v1072, %v1132
        %v1137 = vmul.f32 %v1073, %v1133
        %v1138 = vmul.f32 %v1074, %v1134
        %1139 = vset.pattern.permute.xlu0 12
        %1140 = vperm.xlu0 %1139, %v333
        %v1141 = vpop.permute.xlu0 %1140
        %1143 = vset.pattern.permute.xlu0 12
        %1144 = vperm.xlu0 %1143, %v334
        %v1145 = vpop.permute.xlu0 %1144
        %1147 = vset.pattern.permute.xlu0 12
        %1148 = vperm.xlu0 %1147, %v335
        %v1149 = vpop.permute.xlu0 %1148
        %1151 = vset.pattern.permute.xlu0 12
        %1152 = vperm.xlu0 %1151, %v336
        %v1153 = vpop.permute.xlu0 %1152
        %v1155 = vlaneseq
        %v1156 = vshrl.u32 %v1155, 7
        %v1157 = vsub.s32 4, %v1156
        %v1158 = vrot.slane %v326, %v1157
        %v1159 = vmul.f32 %v1141, %v1158
        %v1160 = vmul.f32 %v1145, %v1158
        %v1161 = vmul.f32 %v1149, %v1158
        %v1162 = vmul.f32 %v1153, %v1158
        %v1163 = vsub.f32 1.0, %v1159
        %v1164 = vsub.f32 1.0, %v1160
        %v1165 = vsub.f32 1.0, %v1161
        %v1166 = vsub.f32 1.0, %v1162
        %v1167 = vmul.f32 %v1103, %v1163
        %v1168 = vmul.f32 %v1104, %v1164
        %v1169 = vmul.f32 %v1105, %v1165
        %v1170 = vmul.f32 %v1106, %v1166
        %1171 = vset.pattern.permute.xlu0 13
        %1172 = vperm.xlu0 %1171, %v329
        %v1173 = vpop.permute.xlu0 %1172
        %1175 = vset.pattern.permute.xlu0 13
        %1176 = vperm.xlu0 %1175, %v330
        %v1177 = vpop.permute.xlu0 %1176
        %1179 = vset.pattern.permute.xlu0 13
        %1180 = vperm.xlu0 %1179, %v331
        %v1181 = vpop.permute.xlu0 %1180
        %1183 = vset.pattern.permute.xlu0 13
        %1184 = vperm.xlu0 %1183, %v332
        %v1185 = vpop.permute.xlu0 %1184
        %v1187 = vlaneseq
        %v1188 = vshrl.u32 %v1187, 7
        %v1189 = vsub.s32 5, %v1188
        %v1190 = vrot.slane %v850, %v1189
        %v1191 = vmul.f32 %v1173, %v1190
        %v1192 = vmul.f32 %v1177, %v1190
        %v1193 = vmul.f32 %v1181, %v1190
        %v1194 = vmul.f32 %v1185, %v1190
        %v1195 = vsub.f32 1.0, %v1191
        %v1196 = vsub.f32 1.0, %v1192
        %v1197 = vsub.f32 1.0, %v1193
        %v1198 = vsub.f32 1.0, %v1194
        %v1199 = vmul.f32 %v1135, %v1195
        %v1200 = vmul.f32 %v1136, %v1196
        %v1201 = vmul.f32 %v1137, %v1197
        %v1202 = vmul.f32 %v1138, %v1198
        %1203 = vset.pattern.permute.xlu0 13
        %1204 = vperm.xlu0 %1203, %v333
        %v1205 = vpop.permute.xlu0 %1204
        %1207 = vset.pattern.permute.xlu0 13
        %1208 = vperm.xlu0 %1207, %v334
        %v1209 = vpop.permute.xlu0 %1208
        %1211 = vset.pattern.permute.xlu0 13
        %1212 = vperm.xlu0 %1211, %v335
        %v1213 = vpop.permute.xlu0 %1212
        %1215 = vset.pattern.permute.xlu0 13
        %1216 = vperm.xlu0 %1215, %v336
        %v1217 = vpop.permute.xlu0 %1216
        %v1219 = vlaneseq
        %v1220 = vshrl.u32 %v1219, 7
        %v1221 = vsub.s32 5, %v1220
        %v1222 = vrot.slane %v326, %v1221
        %v1223 = vmul.f32 %v1205, %v1222
        %v1224 = vmul.f32 %v1209, %v1222
        %v1225 = vmul.f32 %v1213, %v1222
        %v1226 = vmul.f32 %v1217, %v1222
        %v1227 = vsub.f32 1.0, %v1223
        %v1228 = vsub.f32 1.0, %v1224
        %v1229 = vsub.f32 1.0, %v1225
        %v1230 = vsub.f32 1.0, %v1226
        %v1231 = vmul.f32 %v1167, %v1227
        %v1232 = vmul.f32 %v1168, %v1228
        %v1233 = vmul.f32 %v1169, %v1229
        %v1234 = vmul.f32 %v1170, %v1230
        %1235 = vset.pattern.permute.xlu0 14
        %1236 = vperm.xlu0 %1235, %v329
        %v1237 = vpop.permute.xlu0 %1236
        %1239 = vset.pattern.permute.xlu0 14
        %1240 = vperm.xlu0 %1239, %v330
        %v1241 = vpop.permute.xlu0 %1240
        %1243 = vset.pattern.permute.xlu0 14
        %1244 = vperm.xlu0 %1243, %v331
        %v1245 = vpop.permute.xlu0 %1244
        %1247 = vset.pattern.permute.xlu0 14
        %1248 = vperm.xlu0 %1247, %v332
        %v1249 = vpop.permute.xlu0 %1248
        %v1251 = vlaneseq
        %v1252 = vshrl.u32 %v1251, 7
        %v1253 = vsub.s32 6, %v1252
        %v1254 = vrot.slane %v850, %v1253
        %v1255 = vmul.f32 %v1237, %v1254
        %v1256 = vmul.f32 %v1241, %v1254
        %v1257 = vmul.f32 %v1245, %v1254
        %v1258 = vmul.f32 %v1249, %v1254
        %v1259 = vsub.f32 1.0, %v1255
        %v1260 = vsub.f32 1.0, %v1256
        %v1261 = vsub.f32 1.0, %v1257
        %v1262 = vsub.f32 1.0, %v1258
        %v1263 = vmul.f32 %v1199, %v1259
        %v1264 = vmul.f32 %v1200, %v1260
        %v1265 = vmul.f32 %v1201, %v1261
        %v1266 = vmul.f32 %v1202, %v1262
        %1267 = vset.pattern.permute.xlu0 14
        %1268 = vperm.xlu0 %1267, %v333
        %v1269 = vpop.permute.xlu0 %1268
        %1271 = vset.pattern.permute.xlu0 14
        %1272 = vperm.xlu0 %1271, %v334
        %v1273 = vpop.permute.xlu0 %1272
        %1275 = vset.pattern.permute.xlu0 14
        %1276 = vperm.xlu0 %1275, %v335
        %v1277 = vpop.permute.xlu0 %1276
        %1279 = vset.pattern.permute.xlu0 14
        %1280 = vperm.xlu0 %1279, %v336
        %v1281 = vpop.permute.xlu0 %1280
        %v1283 = vlaneseq
        %v1284 = vshrl.u32 %v1283, 7
        %v1285 = vsub.s32 6, %v1284
        %v1286 = vrot.slane %v326, %v1285
        %v1287 = vmul.f32 %v1269, %v1286
        %v1288 = vmul.f32 %v1273, %v1286
        %v1289 = vmul.f32 %v1277, %v1286
        %v1290 = vmul.f32 %v1281, %v1286
        %v1291 = vsub.f32 1.0, %v1287
        %v1292 = vsub.f32 1.0, %v1288
        %v1293 = vsub.f32 1.0, %v1289
        %v1294 = vsub.f32 1.0, %v1290
        %v1295 = vmul.f32 %v1231, %v1291
        %v1296 = vmul.f32 %v1232, %v1292
        %v1297 = vmul.f32 %v1233, %v1293
        %v1298 = vmul.f32 %v1234, %v1294
        %1299 = vset.pattern.permute.xlu0 15
        %1300 = vperm.xlu0 %1299, %v329
        %v1301 = vpop.permute.xlu0 %1300
        %1303 = vset.pattern.permute.xlu0 15
        %1304 = vperm.xlu0 %1303, %v330
        %v1305 = vpop.permute.xlu0 %1304
        %1307 = vset.pattern.permute.xlu0 15
        %1308 = vperm.xlu0 %1307, %v331
        %v1309 = vpop.permute.xlu0 %1308
        %1311 = vset.pattern.permute.xlu0 15
        %1312 = vperm.xlu0 %1311, %v332
        %v1313 = vpop.permute.xlu0 %1312
        %v1315 = vlaneseq
        %v1316 = vshrl.u32 %v1315, 7
        %v1317 = vsub.s32 7, %v1316
        %v1318 = vrot.slane %v850, %v1317
        %v1319 = vmul.f32 %v1301, %v1318
        %v1320 = vmul.f32 %v1305, %v1318
        %v1321 = vmul.f32 %v1309, %v1318
        %v1322 = vmul.f32 %v1313, %v1318
        %v1323 = vsub.f32 1.0, %v1319
        %v1324 = vsub.f32 1.0, %v1320
        %v1325 = vsub.f32 1.0, %v1321
        %v1326 = vsub.f32 1.0, %v1322
        %v1327 = vmul.f32 %v1263, %v1323
        %v1328 = vmul.f32 %v1264, %v1324
        %v1329 = vmul.f32 %v1265, %v1325
        %v1330 = vmul.f32 %v1266, %v1326
        %1331 = vset.pattern.permute.xlu0 15
        %1332 = vperm.xlu0 %1331, %v333
        %v1333 = vpop.permute.xlu0 %1332
        %1335 = vset.pattern.permute.xlu0 15
        %1336 = vperm.xlu0 %1335, %v334
        %v1337 = vpop.permute.xlu0 %1336
        %1339 = vset.pattern.permute.xlu0 15
        %1340 = vperm.xlu0 %1339, %v335
        %v1341 = vpop.permute.xlu0 %1340
        %1343 = vset.pattern.permute.xlu0 15
        %1344 = vperm.xlu0 %1343, %v336
        %v1345 = vpop.permute.xlu0 %1344
        %v1347 = vlaneseq
        %v1348 = vshrl.u32 %v1347, 7
        %v1349 = vsub.s32 7, %v1348
        %v1350 = vrot.slane %v326, %v1349
        %v1351 = vmul.f32 %v1333, %v1350
        %v1352 = vmul.f32 %v1337, %v1350
        %v1353 = vmul.f32 %v1341, %v1350
        %v1354 = vmul.f32 %v1345, %v1350
        %v1355 = vsub.f32 1.0, %v1351
        %v1356 = vsub.f32 1.0, %v1352
        %v1357 = vsub.f32 1.0, %v1353
        %v1358 = vsub.f32 1.0, %v1354
        %v1359 = vmul.f32 %v1295, %v1355
        %v1360 = vmul.f32 %v1296, %v1356
        %v1361 = vmul.f32 %v1297, %v1357
        %v1362 = vmul.f32 %v1298, %v1358
        %v1363 = vsub.f32 1.0, %v327
        %1364 = vset.pattern.permute.xlu0 16
        %1365 = vperm.xlu0 %1364, %v329
        %v1366 = vpop.permute.xlu0 %1365
        %1368 = vset.pattern.permute.xlu0 16
        %1369 = vperm.xlu0 %1368, %v330
        %v1370 = vpop.permute.xlu0 %1369
        %1372 = vset.pattern.permute.xlu0 16
        %1373 = vperm.xlu0 %1372, %v331
        %v1374 = vpop.permute.xlu0 %1373
        %1376 = vset.pattern.permute.xlu0 16
        %1377 = vperm.xlu0 %1376, %v332
        %v1378 = vpop.permute.xlu0 %1377
        %v1380 = vlaneseq
        %v1381 = vshrl.u32 %v1380, 7
        %v1382 = vsub.s32 0, %v1381
        %v1383 = vrot.slane %v1363, %v1382
        %v1384 = vmul.f32 %v1366, %v1383
        %v1385 = vmul.f32 %v1370, %v1383
        %v1386 = vmul.f32 %v1374, %v1383
        %v1387 = vmul.f32 %v1378, %v1383
        %v1388 = vsub.f32 1.0, %v1384
        %v1389 = vsub.f32 1.0, %v1385
        %v1390 = vsub.f32 1.0, %v1386
        %v1391 = vsub.f32 1.0, %v1387
        %v1392 = vmul.f32 %v1327, %v1388
        %v1393 = vmul.f32 %v1328, %v1389
        %v1394 = vmul.f32 %v1329, %v1390
        %v1395 = vmul.f32 %v1330, %v1391
        %1396 = vset.pattern.permute.xlu0 16
        %1397 = vperm.xlu0 %1396, %v333
        %v1398 = vpop.permute.xlu0 %1397
        %1400 = vset.pattern.permute.xlu0 16
        %1401 = vperm.xlu0 %1400, %v334
        %v1402 = vpop.permute.xlu0 %1401
        %1404 = vset.pattern.permute.xlu0 16
        %1405 = vperm.xlu0 %1404, %v335
        %v1406 = vpop.permute.xlu0 %1405
        %1408 = vset.pattern.permute.xlu0 16
        %1409 = vperm.xlu0 %1408, %v336
        %v1410 = vpop.permute.xlu0 %1409
        %v1412 = vlaneseq
        %v1413 = vshrl.u32 %v1412, 7
        %v1414 = vsub.s32 0, %v1413
        %v1415 = vrot.slane %v327, %v1414
        %v1416 = vmul.f32 %v1398, %v1415
        %v1417 = vmul.f32 %v1402, %v1415
        %v1418 = vmul.f32 %v1406, %v1415
        %v1419 = vmul.f32 %v1410, %v1415
        %v1420 = vsub.f32 1.0, %v1416
        %v1421 = vsub.f32 1.0, %v1417
        %v1422 = vsub.f32 1.0, %v1418
        %v1423 = vsub.f32 1.0, %v1419
        %v1424 = vmul.f32 %v1359, %v1420
        %v1425 = vmul.f32 %v1360, %v1421
        %v1426 = vmul.f32 %v1361, %v1422
        %v1427 = vmul.f32 %v1362, %v1423
        %1428 = vset.pattern.permute.xlu0 17
        %1429 = vperm.xlu0 %1428, %v329
        %v1430 = vpop.permute.xlu0 %1429
        %1432 = vset.pattern.permute.xlu0 17
        %1433 = vperm.xlu0 %1432, %v330
        %v1434 = vpop.permute.xlu0 %1433
        %1436 = vset.pattern.permute.xlu0 17
        %1437 = vperm.xlu0 %1436, %v331
        %v1438 = vpop.permute.xlu0 %1437
        %1440 = vset.pattern.permute.xlu0 17
        %1441 = vperm.xlu0 %1440, %v332
        %v1442 = vpop.permute.xlu0 %1441
        %v1444 = vlaneseq
        %v1445 = vshrl.u32 %v1444, 7
        %v1446 = vsub.s32 1, %v1445
        %v1447 = vrot.slane %v1363, %v1446
        %v1448 = vmul.f32 %v1430, %v1447
        %v1449 = vmul.f32 %v1434, %v1447
        %v1450 = vmul.f32 %v1438, %v1447
        %v1451 = vmul.f32 %v1442, %v1447
        %v1452 = vsub.f32 1.0, %v1448
        %v1453 = vsub.f32 1.0, %v1449
        %v1454 = vsub.f32 1.0, %v1450
        %v1455 = vsub.f32 1.0, %v1451
        %v1456 = vmul.f32 %v1392, %v1452
        %v1457 = vmul.f32 %v1393, %v1453
        %v1458 = vmul.f32 %v1394, %v1454
        %v1459 = vmul.f32 %v1395, %v1455
        %1460 = vset.pattern.permute.xlu0 17
        %1461 = vperm.xlu0 %1460, %v333
        %v1462 = vpop.permute.xlu0 %1461
        %1464 = vset.pattern.permute.xlu0 17
        %1465 = vperm.xlu0 %1464, %v334
        %v1466 = vpop.permute.xlu0 %1465
        %1468 = vset.pattern.permute.xlu0 17
        %1469 = vperm.xlu0 %1468, %v335
        %v1470 = vpop.permute.xlu0 %1469
        %1472 = vset.pattern.permute.xlu0 17
        %1473 = vperm.xlu0 %1472, %v336
        %v1474 = vpop.permute.xlu0 %1473
        %v1476 = vlaneseq
        %v1477 = vshrl.u32 %v1476, 7
        %v1478 = vsub.s32 1, %v1477
        %v1479 = vrot.slane %v327, %v1478
        %v1480 = vmul.f32 %v1462, %v1479
        %v1481 = vmul.f32 %v1466, %v1479
        %v1482 = vmul.f32 %v1470, %v1479
        %v1483 = vmul.f32 %v1474, %v1479
        %v1484 = vsub.f32 1.0, %v1480
        %v1485 = vsub.f32 1.0, %v1481
        %v1486 = vsub.f32 1.0, %v1482
        %v1487 = vsub.f32 1.0, %v1483
        %v1488 = vmul.f32 %v1424, %v1484
        %v1489 = vmul.f32 %v1425, %v1485
        %v1490 = vmul.f32 %v1426, %v1486
        %v1491 = vmul.f32 %v1427, %v1487
        %1492 = vset.pattern.permute.xlu0 18
        %1493 = vperm.xlu0 %1492, %v329
        %v1494 = vpop.permute.xlu0 %1493
        %1496 = vset.pattern.permute.xlu0 18
        %1497 = vperm.xlu0 %1496, %v330
        %v1498 = vpop.permute.xlu0 %1497
        %1500 = vset.pattern.permute.xlu0 18
        %1501 = vperm.xlu0 %1500, %v331
        %v1502 = vpop.permute.xlu0 %1501
        %1504 = vset.pattern.permute.xlu0 18
        %1505 = vperm.xlu0 %1504, %v332
        %v1506 = vpop.permute.xlu0 %1505
        %v1508 = vlaneseq
        %v1509 = vshrl.u32 %v1508, 7
        %v1510 = vsub.s32 2, %v1509
        %v1511 = vrot.slane %v1363, %v1510
        %v1512 = vmul.f32 %v1494, %v1511
        %v1513 = vmul.f32 %v1498, %v1511
        %v1514 = vmul.f32 %v1502, %v1511
        %v1515 = vmul.f32 %v1506, %v1511
        %v1516 = vsub.f32 1.0, %v1512
        %v1517 = vsub.f32 1.0, %v1513
        %v1518 = vsub.f32 1.0, %v1514
        %v1519 = vsub.f32 1.0, %v1515
        %v1520 = vmul.f32 %v1456, %v1516
        %v1521 = vmul.f32 %v1457, %v1517
        %v1522 = vmul.f32 %v1458, %v1518
        %v1523 = vmul.f32 %v1459, %v1519
        %1524 = vset.pattern.permute.xlu0 18
        %1525 = vperm.xlu0 %1524, %v333
        %v1526 = vpop.permute.xlu0 %1525
        %1528 = vset.pattern.permute.xlu0 18
        %1529 = vperm.xlu0 %1528, %v334
        %v1530 = vpop.permute.xlu0 %1529
        %1532 = vset.pattern.permute.xlu0 18
        %1533 = vperm.xlu0 %1532, %v335
        %v1534 = vpop.permute.xlu0 %1533
        %1536 = vset.pattern.permute.xlu0 18
        %1537 = vperm.xlu0 %1536, %v336
        %v1538 = vpop.permute.xlu0 %1537
        %v1540 = vlaneseq
        %v1541 = vshrl.u32 %v1540, 7
        %v1542 = vsub.s32 2, %v1541
        %v1543 = vrot.slane %v327, %v1542
        %v1544 = vmul.f32 %v1526, %v1543
        %v1545 = vmul.f32 %v1530, %v1543
        %v1546 = vmul.f32 %v1534, %v1543
        %v1547 = vmul.f32 %v1538, %v1543
        %v1548 = vsub.f32 1.0, %v1544
        %v1549 = vsub.f32 1.0, %v1545
        %v1550 = vsub.f32 1.0, %v1546
        %v1551 = vsub.f32 1.0, %v1547
        %v1552 = vmul.f32 %v1488, %v1548
        %v1553 = vmul.f32 %v1489, %v1549
        %v1554 = vmul.f32 %v1490, %v1550
        %v1555 = vmul.f32 %v1491, %v1551
        %1556 = vset.pattern.permute.xlu0 19
        %1557 = vperm.xlu0 %1556, %v329
        %v1558 = vpop.permute.xlu0 %1557
        %1560 = vset.pattern.permute.xlu0 19
        %1561 = vperm.xlu0 %1560, %v330
        %v1562 = vpop.permute.xlu0 %1561
        %1564 = vset.pattern.permute.xlu0 19
        %1565 = vperm.xlu0 %1564, %v331
        %v1566 = vpop.permute.xlu0 %1565
        %1568 = vset.pattern.permute.xlu0 19
        %1569 = vperm.xlu0 %1568, %v332
        %v1570 = vpop.permute.xlu0 %1569
        %v1572 = vlaneseq
        %v1573 = vshrl.u32 %v1572, 7
        %v1574 = vsub.s32 3, %v1573
        %v1575 = vrot.slane %v1363, %v1574
        %v1576 = vmul.f32 %v1558, %v1575
        %v1577 = vmul.f32 %v1562, %v1575
        %v1578 = vmul.f32 %v1566, %v1575
        %v1579 = vmul.f32 %v1570, %v1575
        %v1580 = vsub.f32 1.0, %v1576
        %v1581 = vsub.f32 1.0, %v1577
        %v1582 = vsub.f32 1.0, %v1578
        %v1583 = vsub.f32 1.0, %v1579
        %v1584 = vmul.f32 %v1520, %v1580
        %v1585 = vmul.f32 %v1521, %v1581
        %v1586 = vmul.f32 %v1522, %v1582
        %v1587 = vmul.f32 %v1523, %v1583
        %1588 = vset.pattern.permute.xlu0 19
        %1589 = vperm.xlu0 %1588, %v333
        %v1590 = vpop.permute.xlu0 %1589
        %1592 = vset.pattern.permute.xlu0 19
        %1593 = vperm.xlu0 %1592, %v334
        %v1594 = vpop.permute.xlu0 %1593
        %1596 = vset.pattern.permute.xlu0 19
        %1597 = vperm.xlu0 %1596, %v335
        %v1598 = vpop.permute.xlu0 %1597
        %1600 = vset.pattern.permute.xlu0 19
        %1601 = vperm.xlu0 %1600, %v336
        %v1602 = vpop.permute.xlu0 %1601
        %v1604 = vlaneseq
        %v1605 = vshrl.u32 %v1604, 7
        %v1606 = vsub.s32 3, %v1605
        %v1607 = vrot.slane %v327, %v1606
        %v1608 = vmul.f32 %v1590, %v1607
        %v1609 = vmul.f32 %v1594, %v1607
        %v1610 = vmul.f32 %v1598, %v1607
        %v1611 = vmul.f32 %v1602, %v1607
        %v1612 = vsub.f32 1.0, %v1608
        %v1613 = vsub.f32 1.0, %v1609
        %v1614 = vsub.f32 1.0, %v1610
        %v1615 = vsub.f32 1.0, %v1611
        %v1616 = vmul.f32 %v1552, %v1612
        %v1617 = vmul.f32 %v1553, %v1613
        %v1618 = vmul.f32 %v1554, %v1614
        %v1619 = vmul.f32 %v1555, %v1615
        %1620 = vset.pattern.permute.xlu0 20
        %1621 = vperm.xlu0 %1620, %v329
        %v1622 = vpop.permute.xlu0 %1621
        %1624 = vset.pattern.permute.xlu0 20
        %1625 = vperm.xlu0 %1624, %v330
        %v1626 = vpop.permute.xlu0 %1625
        %1628 = vset.pattern.permute.xlu0 20
        %1629 = vperm.xlu0 %1628, %v331
        %v1630 = vpop.permute.xlu0 %1629
        %1632 = vset.pattern.permute.xlu0 20
        %1633 = vperm.xlu0 %1632, %v332
        %v1634 = vpop.permute.xlu0 %1633
        %v1636 = vlaneseq
        %v1637 = vshrl.u32 %v1636, 7
        %v1638 = vsub.s32 4, %v1637
        %v1639 = vrot.slane %v1363, %v1638
        %v1640 = vmul.f32 %v1622, %v1639
        %v1641 = vmul.f32 %v1626, %v1639
        %v1642 = vmul.f32 %v1630, %v1639
        %v1643 = vmul.f32 %v1634, %v1639
        %v1644 = vsub.f32 1.0, %v1640
        %v1645 = vsub.f32 1.0, %v1641
        %v1646 = vsub.f32 1.0, %v1642
        %v1647 = vsub.f32 1.0, %v1643
        %v1648 = vmul.f32 %v1584, %v1644
        %v1649 = vmul.f32 %v1585, %v1645
        %v1650 = vmul.f32 %v1586, %v1646
        %v1651 = vmul.f32 %v1587, %v1647
        %1652 = vset.pattern.permute.xlu0 20
        %1653 = vperm.xlu0 %1652, %v333
        %v1654 = vpop.permute.xlu0 %1653
        %1656 = vset.pattern.permute.xlu0 20
        %1657 = vperm.xlu0 %1656, %v334
        %v1658 = vpop.permute.xlu0 %1657
        %1660 = vset.pattern.permute.xlu0 20
        %1661 = vperm.xlu0 %1660, %v335
        %v1662 = vpop.permute.xlu0 %1661
        %1664 = vset.pattern.permute.xlu0 20
        %1665 = vperm.xlu0 %1664, %v336
        %v1666 = vpop.permute.xlu0 %1665
        %v1668 = vlaneseq
        %v1669 = vshrl.u32 %v1668, 7
        %v1670 = vsub.s32 4, %v1669
        %v1671 = vrot.slane %v327, %v1670
        %v1672 = vmul.f32 %v1654, %v1671
        %v1673 = vmul.f32 %v1658, %v1671
        %v1674 = vmul.f32 %v1662, %v1671
        %v1675 = vmul.f32 %v1666, %v1671
        %v1676 = vsub.f32 1.0, %v1672
        %v1677 = vsub.f32 1.0, %v1673
        %v1678 = vsub.f32 1.0, %v1674
        %v1679 = vsub.f32 1.0, %v1675
        %v1680 = vmul.f32 %v1616, %v1676
        %v1681 = vmul.f32 %v1617, %v1677
        %v1682 = vmul.f32 %v1618, %v1678
        %v1683 = vmul.f32 %v1619, %v1679
        %1684 = vset.pattern.permute.xlu0 21
        %1685 = vperm.xlu0 %1684, %v329
        %v1686 = vpop.permute.xlu0 %1685
        %1688 = vset.pattern.permute.xlu0 21
        %1689 = vperm.xlu0 %1688, %v330
        %v1690 = vpop.permute.xlu0 %1689
        %1692 = vset.pattern.permute.xlu0 21
        %1693 = vperm.xlu0 %1692, %v331
        %v1694 = vpop.permute.xlu0 %1693
        %1696 = vset.pattern.permute.xlu0 21
        %1697 = vperm.xlu0 %1696, %v332
        %v1698 = vpop.permute.xlu0 %1697
        %v1700 = vlaneseq
        %v1701 = vshrl.u32 %v1700, 7
        %v1702 = vsub.s32 5, %v1701
        %v1703 = vrot.slane %v1363, %v1702
        %v1704 = vmul.f32 %v1686, %v1703
        %v1705 = vmul.f32 %v1690, %v1703
        %v1706 = vmul.f32 %v1694, %v1703
        %v1707 = vmul.f32 %v1698, %v1703
        %v1708 = vsub.f32 1.0, %v1704
        %v1709 = vsub.f32 1.0, %v1705
        %v1710 = vsub.f32 1.0, %v1706
        %v1711 = vsub.f32 1.0, %v1707
        %v1712 = vmul.f32 %v1648, %v1708
        %v1713 = vmul.f32 %v1649, %v1709
        %v1714 = vmul.f32 %v1650, %v1710
        %v1715 = vmul.f32 %v1651, %v1711
        %1716 = vset.pattern.permute.xlu0 21
        %1717 = vperm.xlu0 %1716, %v333
        %v1718 = vpop.permute.xlu0 %1717
        %1720 = vset.pattern.permute.xlu0 21
        %1721 = vperm.xlu0 %1720, %v334
        %v1722 = vpop.permute.xlu0 %1721
        %1724 = vset.pattern.permute.xlu0 21
        %1725 = vperm.xlu0 %1724, %v335
        %v1726 = vpop.permute.xlu0 %1725
        %1728 = vset.pattern.permute.xlu0 21
        %1729 = vperm.xlu0 %1728, %v336
        %v1730 = vpop.permute.xlu0 %1729
        %v1732 = vlaneseq
        %v1733 = vshrl.u32 %v1732, 7
        %v1734 = vsub.s32 5, %v1733
        %v1735 = vrot.slane %v327, %v1734
        %v1736 = vmul.f32 %v1718, %v1735
        %v1737 = vmul.f32 %v1722, %v1735
        %v1738 = vmul.f32 %v1726, %v1735
        %v1739 = vmul.f32 %v1730, %v1735
        %v1740 = vsub.f32 1.0, %v1736
        %v1741 = vsub.f32 1.0, %v1737
        %v1742 = vsub.f32 1.0, %v1738
        %v1743 = vsub.f32 1.0, %v1739
        %v1744 = vmul.f32 %v1680, %v1740
        %v1745 = vmul.f32 %v1681, %v1741
        %v1746 = vmul.f32 %v1682, %v1742
        %v1747 = vmul.f32 %v1683, %v1743
        %1748 = vset.pattern.permute.xlu0 22
        %1749 = vperm.xlu0 %1748, %v329
        %v1750 = vpop.permute.xlu0 %1749
        %1752 = vset.pattern.permute.xlu0 22
        %1753 = vperm.xlu0 %1752, %v330
        %v1754 = vpop.permute.xlu0 %1753
        %1756 = vset.pattern.permute.xlu0 22
        %1757 = vperm.xlu0 %1756, %v331
        %v1758 = vpop.permute.xlu0 %1757
        %1760 = vset.pattern.permute.xlu0 22
        %1761 = vperm.xlu0 %1760, %v332
        %v1762 = vpop.permute.xlu0 %1761
        %v1764 = vlaneseq
        %v1765 = vshrl.u32 %v1764, 7
        %v1766 = vsub.s32 6, %v1765
        %v1767 = vrot.slane %v1363, %v1766
        %v1768 = vmul.f32 %v1750, %v1767
        %v1769 = vmul.f32 %v1754, %v1767
        %v1770 = vmul.f32 %v1758, %v1767
        %v1771 = vmul.f32 %v1762, %v1767
        %v1772 = vsub.f32 1.0, %v1768
        %v1773 = vsub.f32 1.0, %v1769
        %v1774 = vsub.f32 1.0, %v1770
        %v1775 = vsub.f32 1.0, %v1771
        %v1776 = vmul.f32 %v1712, %v1772
        %v1777 = vmul.f32 %v1713, %v1773
        %v1778 = vmul.f32 %v1714, %v1774
        %v1779 = vmul.f32 %v1715, %v1775
        %1780 = vset.pattern.permute.xlu0 22
        %1781 = vperm.xlu0 %1780, %v333
        %v1782 = vpop.permute.xlu0 %1781
        %1784 = vset.pattern.permute.xlu0 22
        %1785 = vperm.xlu0 %1784, %v334
        %v1786 = vpop.permute.xlu0 %1785
        %1788 = vset.pattern.permute.xlu0 22
        %1789 = vperm.xlu0 %1788, %v335
        %v1790 = vpop.permute.xlu0 %1789
        %1792 = vset.pattern.permute.xlu0 22
        %1793 = vperm.xlu0 %1792, %v336
        %v1794 = vpop.permute.xlu0 %1793
        %v1796 = vlaneseq
        %v1797 = vshrl.u32 %v1796, 7
        %v1798 = vsub.s32 6, %v1797
        %v1799 = vrot.slane %v327, %v1798
        %v1800 = vmul.f32 %v1782, %v1799
        %v1801 = vmul.f32 %v1786, %v1799
        %v1802 = vmul.f32 %v1790, %v1799
        %v1803 = vmul.f32 %v1794, %v1799
        %v1804 = vsub.f32 1.0, %v1800
        %v1805 = vsub.f32 1.0, %v1801
        %v1806 = vsub.f32 1.0, %v1802
        %v1807 = vsub.f32 1.0, %v1803
        %v1808 = vmul.f32 %v1744, %v1804
        %v1809 = vmul.f32 %v1745, %v1805
        %v1810 = vmul.f32 %v1746, %v1806
        %v1811 = vmul.f32 %v1747, %v1807
        %1812 = vset.pattern.permute.xlu0 23
        %1813 = vperm.xlu0 %1812, %v329
        %v1814 = vpop.permute.xlu0 %1813
        %1816 = vset.pattern.permute.xlu0 23
        %1817 = vperm.xlu0 %1816, %v330
        %v1818 = vpop.permute.xlu0 %1817
        %1820 = vset.pattern.permute.xlu0 23
        %1821 = vperm.xlu0 %1820, %v331
        %v1822 = vpop.permute.xlu0 %1821
        %1824 = vset.pattern.permute.xlu0 23
        %1825 = vperm.xlu0 %1824, %v332
        %v1826 = vpop.permute.xlu0 %1825
        %v1828 = vlaneseq
        %v1829 = vshrl.u32 %v1828, 7
        %v1830 = vsub.s32 7, %v1829
        %v1831 = vrot.slane %v1363, %v1830
        %v1832 = vmul.f32 %v1814, %v1831
        %v1833 = vmul.f32 %v1818, %v1831
        %v1834 = vmul.f32 %v1822, %v1831
        %v1835 = vmul.f32 %v1826, %v1831
        %v1836 = vsub.f32 1.0, %v1832
        %v1837 = vsub.f32 1.0, %v1833
        %v1838 = vsub.f32 1.0, %v1834
        %v1839 = vsub.f32 1.0, %v1835
        %v1840 = vmul.f32 %v1776, %v1836
        %v1841 = vmul.f32 %v1777, %v1837
        %v1842 = vmul.f32 %v1778, %v1838
        %v1843 = vmul.f32 %v1779, %v1839
        %1844 = vset.pattern.permute.xlu0 23
        %1845 = vperm.xlu0 %1844, %v333
        %v1846 = vpop.permute.xlu0 %1845
        %1848 = vset.pattern.permute.xlu0 23
        %1849 = vperm.xlu0 %1848, %v334
        %v1850 = vpop.permute.xlu0 %1849
        %1852 = vset.pattern.permute.xlu0 23
        %1853 = vperm.xlu0 %1852, %v335
        %v1854 = vpop.permute.xlu0 %1853
        %1856 = vset.pattern.permute.xlu0 23
        %1857 = vperm.xlu0 %1856, %v336
        %v1858 = vpop.permute.xlu0 %1857
        %v1860 = vlaneseq
        %v1861 = vshrl.u32 %v1860, 7
        %v1862 = vsub.s32 7, %v1861
        %v1863 = vrot.slane %v327, %v1862
        %v1864 = vmul.f32 %v1846, %v1863
        %v1865 = vmul.f32 %v1850, %v1863
        %v1866 = vmul.f32 %v1854, %v1863
        %v1867 = vmul.f32 %v1858, %v1863
        %v1868 = vsub.f32 1.0, %v1864
        %v1869 = vsub.f32 1.0, %v1865
        %v1870 = vsub.f32 1.0, %v1866
        %v1871 = vsub.f32 1.0, %v1867
        %v1872 = vmul.f32 %v1808, %v1868
        %v1873 = vmul.f32 %v1809, %v1869
        %v1874 = vmul.f32 %v1810, %v1870
        %v1875 = vmul.f32 %v1811, %v1871
        %v1876 = vsub.f32 1.0, %v328
        %1877 = vset.pattern.permute.xlu0 24
        %1878 = vperm.xlu0 %1877, %v329
        %v1879 = vpop.permute.xlu0 %1878
        %1881 = vset.pattern.permute.xlu0 24
        %1882 = vperm.xlu0 %1881, %v330
        %v1883 = vpop.permute.xlu0 %1882
        %1885 = vset.pattern.permute.xlu0 24
        %1886 = vperm.xlu0 %1885, %v331
        %v1887 = vpop.permute.xlu0 %1886
        %1889 = vset.pattern.permute.xlu0 24
        %1890 = vperm.xlu0 %1889, %v332
        %v1891 = vpop.permute.xlu0 %1890
        %v1893 = vlaneseq
        %v1894 = vshrl.u32 %v1893, 7
        %v1895 = vsub.s32 0, %v1894
        %v1896 = vrot.slane %v1876, %v1895
        %v1897 = vmul.f32 %v1879, %v1896
        %v1898 = vmul.f32 %v1883, %v1896
        %v1899 = vmul.f32 %v1887, %v1896
        %v1900 = vmul.f32 %v1891, %v1896
        %v1901 = vsub.f32 1.0, %v1897
        %v1902 = vsub.f32 1.0, %v1898
        %v1903 = vsub.f32 1.0, %v1899
        %v1904 = vsub.f32 1.0, %v1900
        %v1905 = vmul.f32 %v1840, %v1901
        %v1906 = vmul.f32 %v1841, %v1902
        %v1907 = vmul.f32 %v1842, %v1903
        %v1908 = vmul.f32 %v1843, %v1904
        %1909 = vset.pattern.permute.xlu0 24
        %1910 = vperm.xlu0 %1909, %v333
        %v1911 = vpop.permute.xlu0 %1910
        %1913 = vset.pattern.permute.xlu0 24
        %1914 = vperm.xlu0 %1913, %v334
        %v1915 = vpop.permute.xlu0 %1914
        %1917 = vset.pattern.permute.xlu0 24
        %1918 = vperm.xlu0 %1917, %v335
        %v1919 = vpop.permute.xlu0 %1918
        %1921 = vset.pattern.permute.xlu0 24
        %1922 = vperm.xlu0 %1921, %v336
        %v1923 = vpop.permute.xlu0 %1922
        %v1925 = vlaneseq
        %v1926 = vshrl.u32 %v1925, 7
        %v1927 = vsub.s32 0, %v1926
        %v1928 = vrot.slane %v328, %v1927
        %v1929 = vmul.f32 %v1911, %v1928
        %v1930 = vmul.f32 %v1915, %v1928
        %v1931 = vmul.f32 %v1919, %v1928
        %v1932 = vmul.f32 %v1923, %v1928
        %v1933 = vsub.f32 1.0, %v1929
        %v1934 = vsub.f32 1.0, %v1930
        %v1935 = vsub.f32 1.0, %v1931
        %v1936 = vsub.f32 1.0, %v1932
        %v1937 = vmul.f32 %v1872, %v1933
        %v1938 = vmul.f32 %v1873, %v1934
        %v1939 = vmul.f32 %v1874, %v1935
        %v1940 = vmul.f32 %v1875, %v1936
        %1941 = vset.pattern.permute.xlu0 25
        %1942 = vperm.xlu0 %1941, %v329
        %v1943 = vpop.permute.xlu0 %1942
        %1945 = vset.pattern.permute.xlu0 25
        %1946 = vperm.xlu0 %1945, %v330
        %v1947 = vpop.permute.xlu0 %1946
        %1949 = vset.pattern.permute.xlu0 25
        %1950 = vperm.xlu0 %1949, %v331
        %v1951 = vpop.permute.xlu0 %1950
        %1953 = vset.pattern.permute.xlu0 25
        %1954 = vperm.xlu0 %1953, %v332
        %v1955 = vpop.permute.xlu0 %1954
        %v1957 = vlaneseq
        %v1958 = vshrl.u32 %v1957, 7
        %v1959 = vsub.s32 1, %v1958
        %v1960 = vrot.slane %v1876, %v1959
        %v1961 = vmul.f32 %v1943, %v1960
        %v1962 = vmul.f32 %v1947, %v1960
        %v1963 = vmul.f32 %v1951, %v1960
        %v1964 = vmul.f32 %v1955, %v1960
        %v1965 = vsub.f32 1.0, %v1961
        %v1966 = vsub.f32 1.0, %v1962
        %v1967 = vsub.f32 1.0, %v1963
        %v1968 = vsub.f32 1.0, %v1964
        %v1969 = vmul.f32 %v1905, %v1965
        %v1970 = vmul.f32 %v1906, %v1966
        %v1971 = vmul.f32 %v1907, %v1967
        %v1972 = vmul.f32 %v1908, %v1968
        %1973 = vset.pattern.permute.xlu0 25
        %1974 = vperm.xlu0 %1973, %v333
        %v1975 = vpop.permute.xlu0 %1974
        %1977 = vset.pattern.permute.xlu0 25
        %1978 = vperm.xlu0 %1977, %v334
        %v1979 = vpop.permute.xlu0 %1978
        %1981 = vset.pattern.permute.xlu0 25
        %1982 = vperm.xlu0 %1981, %v335
        %v1983 = vpop.permute.xlu0 %1982
        %1985 = vset.pattern.permute.xlu0 25
        %1986 = vperm.xlu0 %1985, %v336
        %v1987 = vpop.permute.xlu0 %1986
        %v1989 = vlaneseq
        %v1990 = vshrl.u32 %v1989, 7
        %v1991 = vsub.s32 1, %v1990
        %v1992 = vrot.slane %v328, %v1991
        %v1993 = vmul.f32 %v1975, %v1992
        %v1994 = vmul.f32 %v1979, %v1992
        %v1995 = vmul.f32 %v1983, %v1992
        %v1996 = vmul.f32 %v1987, %v1992
        %v1997 = vsub.f32 1.0, %v1993
        %v1998 = vsub.f32 1.0, %v1994
        %v1999 = vsub.f32 1.0, %v1995
        %v2000 = vsub.f32 1.0, %v1996
        %v2001 = vmul.f32 %v1937, %v1997
        %v2002 = vmul.f32 %v1938, %v1998
        %v2003 = vmul.f32 %v1939, %v1999
        %v2004 = vmul.f32 %v1940, %v2000
        %2005 = vset.pattern.permute.xlu0 26
        %2006 = vperm.xlu0 %2005, %v329
        %v2007 = vpop.permute.xlu0 %2006
        %2009 = vset.pattern.permute.xlu0 26
        %2010 = vperm.xlu0 %2009, %v330
        %v2011 = vpop.permute.xlu0 %2010
        %2013 = vset.pattern.permute.xlu0 26
        %2014 = vperm.xlu0 %2013, %v331
        %v2015 = vpop.permute.xlu0 %2014
        %2017 = vset.pattern.permute.xlu0 26
        %2018 = vperm.xlu0 %2017, %v332
        %v2019 = vpop.permute.xlu0 %2018
        %v2021 = vlaneseq
        %v2022 = vshrl.u32 %v2021, 7
        %v2023 = vsub.s32 2, %v2022
        %v2024 = vrot.slane %v1876, %v2023
        %v2025 = vmul.f32 %v2007, %v2024
        %v2026 = vmul.f32 %v2011, %v2024
        %v2027 = vmul.f32 %v2015, %v2024
        %v2028 = vmul.f32 %v2019, %v2024
        %v2029 = vsub.f32 1.0, %v2025
        %v2030 = vsub.f32 1.0, %v2026
        %v2031 = vsub.f32 1.0, %v2027
        %v2032 = vsub.f32 1.0, %v2028
        %v2033 = vmul.f32 %v1969, %v2029
        %v2034 = vmul.f32 %v1970, %v2030
        %v2035 = vmul.f32 %v1971, %v2031
        %v2036 = vmul.f32 %v1972, %v2032
        %2037 = vset.pattern.permute.xlu0 26
        %2038 = vperm.xlu0 %2037, %v333
        %v2039 = vpop.permute.xlu0 %2038
        %2041 = vset.pattern.permute.xlu0 26
        %2042 = vperm.xlu0 %2041, %v334
        %v2043 = vpop.permute.xlu0 %2042
        %2045 = vset.pattern.permute.xlu0 26
        %2046 = vperm.xlu0 %2045, %v335
        %v2047 = vpop.permute.xlu0 %2046
        %2049 = vset.pattern.permute.xlu0 26
        %2050 = vperm.xlu0 %2049, %v336
        %v2051 = vpop.permute.xlu0 %2050
        %v2053 = vlaneseq
        %v2054 = vshrl.u32 %v2053, 7
        %v2055 = vsub.s32 2, %v2054
        %v2056 = vrot.slane %v328, %v2055
        %v2057 = vmul.f32 %v2039, %v2056
        %v2058 = vmul.f32 %v2043, %v2056
        %v2059 = vmul.f32 %v2047, %v2056
        %v2060 = vmul.f32 %v2051, %v2056
        %v2061 = vsub.f32 1.0, %v2057
        %v2062 = vsub.f32 1.0, %v2058
        %v2063 = vsub.f32 1.0, %v2059
        %v2064 = vsub.f32 1.0, %v2060
        %v2065 = vmul.f32 %v2001, %v2061
        %v2066 = vmul.f32 %v2002, %v2062
        %v2067 = vmul.f32 %v2003, %v2063
        %v2068 = vmul.f32 %v2004, %v2064
        %2069 = vset.pattern.permute.xlu0 27
        %2070 = vperm.xlu0 %2069, %v329
        %v2071 = vpop.permute.xlu0 %2070
        %2073 = vset.pattern.permute.xlu0 27
        %2074 = vperm.xlu0 %2073, %v330
        %v2075 = vpop.permute.xlu0 %2074
        %2077 = vset.pattern.permute.xlu0 27
        %2078 = vperm.xlu0 %2077, %v331
        %v2079 = vpop.permute.xlu0 %2078
        %2081 = vset.pattern.permute.xlu0 27
        %2082 = vperm.xlu0 %2081, %v332
        %v2083 = vpop.permute.xlu0 %2082
        %v2085 = vlaneseq
        %v2086 = vshrl.u32 %v2085, 7
        %v2087 = vsub.s32 3, %v2086
        %v2088 = vrot.slane %v1876, %v2087
        %v2089 = vmul.f32 %v2071, %v2088
        %v2090 = vmul.f32 %v2075, %v2088
        %v2091 = vmul.f32 %v2079, %v2088
        %v2092 = vmul.f32 %v2083, %v2088
        %v2093 = vsub.f32 1.0, %v2089
        %v2094 = vsub.f32 1.0, %v2090
        %v2095 = vsub.f32 1.0, %v2091
        %v2096 = vsub.f32 1.0, %v2092
        %v2097 = vmul.f32 %v2033, %v2093
        %v2098 = vmul.f32 %v2034, %v2094
        %v2099 = vmul.f32 %v2035, %v2095
        %v2100 = vmul.f32 %v2036, %v2096
        %2101 = vset.pattern.permute.xlu0 27
        %2102 = vperm.xlu0 %2101, %v333
        %v2103 = vpop.permute.xlu0 %2102
        %2105 = vset.pattern.permute.xlu0 27
        %2106 = vperm.xlu0 %2105, %v334
        %v2107 = vpop.permute.xlu0 %2106
        %2109 = vset.pattern.permute.xlu0 27
        %2110 = vperm.xlu0 %2109, %v335
        %v2111 = vpop.permute.xlu0 %2110
        %2113 = vset.pattern.permute.xlu0 27
        %2114 = vperm.xlu0 %2113, %v336
        %v2115 = vpop.permute.xlu0 %2114
        %v2117 = vlaneseq
        %v2118 = vshrl.u32 %v2117, 7
        %v2119 = vsub.s32 3, %v2118
        %v2120 = vrot.slane %v328, %v2119
        %v2121 = vmul.f32 %v2103, %v2120
        %v2122 = vmul.f32 %v2107, %v2120
        %v2123 = vmul.f32 %v2111, %v2120
        %v2124 = vmul.f32 %v2115, %v2120
        %v2125 = vsub.f32 1.0, %v2121
        %v2126 = vsub.f32 1.0, %v2122
        %v2127 = vsub.f32 1.0, %v2123
        %v2128 = vsub.f32 1.0, %v2124
        %v2129 = vmul.f32 %v2065, %v2125
        %v2130 = vmul.f32 %v2066, %v2126
        %v2131 = vmul.f32 %v2067, %v2127
        %v2132 = vmul.f32 %v2068, %v2128
        %2133 = vset.pattern.permute.xlu0 28
        %2134 = vperm.xlu0 %2133, %v329
        %v2135 = vpop.permute.xlu0 %2134
        %2137 = vset.pattern.permute.xlu0 28
        %2138 = vperm.xlu0 %2137, %v330
        %v2139 = vpop.permute.xlu0 %2138
        %2141 = vset.pattern.permute.xlu0 28
        %2142 = vperm.xlu0 %2141, %v331
        %v2143 = vpop.permute.xlu0 %2142
        %2145 = vset.pattern.permute.xlu0 28
        %2146 = vperm.xlu0 %2145, %v332
        %v2147 = vpop.permute.xlu0 %2146
        %v2149 = vlaneseq
        %v2150 = vshrl.u32 %v2149, 7
        %v2151 = vsub.s32 4, %v2150
        %v2152 = vrot.slane %v1876, %v2151
        %v2153 = vmul.f32 %v2135, %v2152
        %v2154 = vmul.f32 %v2139, %v2152
        %v2155 = vmul.f32 %v2143, %v2152
        %v2156 = vmul.f32 %v2147, %v2152
        %v2157 = vsub.f32 1.0, %v2153
        %v2158 = vsub.f32 1.0, %v2154
        %v2159 = vsub.f32 1.0, %v2155
        %v2160 = vsub.f32 1.0, %v2156
        %v2161 = vmul.f32 %v2097, %v2157
        %v2162 = vmul.f32 %v2098, %v2158
        %v2163 = vmul.f32 %v2099, %v2159
        %v2164 = vmul.f32 %v2100, %v2160
        %2165 = vset.pattern.permute.xlu0 28
        %2166 = vperm.xlu0 %2165, %v333
        %v2167 = vpop.permute.xlu0 %2166
        %2169 = vset.pattern.permute.xlu0 28
        %2170 = vperm.xlu0 %2169, %v334
        %v2171 = vpop.permute.xlu0 %2170
        %2173 = vset.pattern.permute.xlu0 28
        %2174 = vperm.xlu0 %2173, %v335
        %v2175 = vpop.permute.xlu0 %2174
        %2177 = vset.pattern.permute.xlu0 28
        %2178 = vperm.xlu0 %2177, %v336
        %v2179 = vpop.permute.xlu0 %2178
        %v2181 = vlaneseq
        %v2182 = vshrl.u32 %v2181, 7
        %v2183 = vsub.s32 4, %v2182
        %v2184 = vrot.slane %v328, %v2183
        %v2185 = vmul.f32 %v2167, %v2184
        %v2186 = vmul.f32 %v2171, %v2184
        %v2187 = vmul.f32 %v2175, %v2184
        %v2188 = vmul.f32 %v2179, %v2184
        %v2189 = vsub.f32 1.0, %v2185
        %v2190 = vsub.f32 1.0, %v2186
        %v2191 = vsub.f32 1.0, %v2187
        %v2192 = vsub.f32 1.0, %v2188
        %v2193 = vmul.f32 %v2129, %v2189
        %v2194 = vmul.f32 %v2130, %v2190
        %v2195 = vmul.f32 %v2131, %v2191
        %v2196 = vmul.f32 %v2132, %v2192
        %2197 = vset.pattern.permute.xlu0 29
        %2198 = vperm.xlu0 %2197, %v329
        %v2199 = vpop.permute.xlu0 %2198
        %2201 = vset.pattern.permute.xlu0 29
        %2202 = vperm.xlu0 %2201, %v330
        %v2203 = vpop.permute.xlu0 %2202
        %2205 = vset.pattern.permute.xlu0 29
        %2206 = vperm.xlu0 %2205, %v331
        %v2207 = vpop.permute.xlu0 %2206
        %2209 = vset.pattern.permute.xlu0 29
        %2210 = vperm.xlu0 %2209, %v332
        %v2211 = vpop.permute.xlu0 %2210
        %v2213 = vlaneseq
        %v2214 = vshrl.u32 %v2213, 7
        %v2215 = vsub.s32 5, %v2214
        %v2216 = vrot.slane %v1876, %v2215
        %v2217 = vmul.f32 %v2199, %v2216
        %v2218 = vmul.f32 %v2203, %v2216
        %v2219 = vmul.f32 %v2207, %v2216
        %v2220 = vmul.f32 %v2211, %v2216
        %v2221 = vsub.f32 1.0, %v2217
        %v2222 = vsub.f32 1.0, %v2218
        %v2223 = vsub.f32 1.0, %v2219
        %v2224 = vsub.f32 1.0, %v2220
        %v2225 = vmul.f32 %v2161, %v2221
        %v2226 = vmul.f32 %v2162, %v2222
        %v2227 = vmul.f32 %v2163, %v2223
        %v2228 = vmul.f32 %v2164, %v2224
        %2229 = vset.pattern.permute.xlu0 29
        %2230 = vperm.xlu0 %2229, %v333
        %v2231 = vpop.permute.xlu0 %2230
        %2233 = vset.pattern.permute.xlu0 29
        %2234 = vperm.xlu0 %2233, %v334
        %v2235 = vpop.permute.xlu0 %2234
        %2237 = vset.pattern.permute.xlu0 29
        %2238 = vperm.xlu0 %2237, %v335
        %v2239 = vpop.permute.xlu0 %2238
        %2241 = vset.pattern.permute.xlu0 29
        %2242 = vperm.xlu0 %2241, %v336
        %v2243 = vpop.permute.xlu0 %2242
        %v2245 = vlaneseq
        %v2246 = vshrl.u32 %v2245, 7
        %v2247 = vsub.s32 5, %v2246
        %v2248 = vrot.slane %v328, %v2247
        %v2249 = vmul.f32 %v2231, %v2248
        %v2250 = vmul.f32 %v2235, %v2248
        %v2251 = vmul.f32 %v2239, %v2248
        %v2252 = vmul.f32 %v2243, %v2248
        %v2253 = vsub.f32 1.0, %v2249
        %v2254 = vsub.f32 1.0, %v2250
        %v2255 = vsub.f32 1.0, %v2251
        %v2256 = vsub.f32 1.0, %v2252
        %v2257 = vmul.f32 %v2193, %v2253
        %v2258 = vmul.f32 %v2194, %v2254
        %v2259 = vmul.f32 %v2195, %v2255
        %v2260 = vmul.f32 %v2196, %v2256
        %2261 = vset.pattern.permute.xlu0 30
        %2262 = vperm.xlu0 %2261, %v329
        %v2263 = vpop.permute.xlu0 %2262
        %2265 = vset.pattern.permute.xlu0 30
        %2266 = vperm.xlu0 %2265, %v330
        %v2267 = vpop.permute.xlu0 %2266
        %2269 = vset.pattern.permute.xlu0 30
        %2270 = vperm.xlu0 %2269, %v331
        %v2271 = vpop.permute.xlu0 %2270
        %2273 = vset.pattern.permute.xlu0 30
        %2274 = vperm.xlu0 %2273, %v332
        %v2275 = vpop.permute.xlu0 %2274
        %v2277 = vlaneseq
        %v2278 = vshrl.u32 %v2277, 7
        %v2279 = vsub.s32 6, %v2278
        %v2280 = vrot.slane %v1876, %v2279
        %v2281 = vmul.f32 %v2263, %v2280
        %v2282 = vmul.f32 %v2267, %v2280
        %v2283 = vmul.f32 %v2271, %v2280
        %v2284 = vmul.f32 %v2275, %v2280
        %v2285 = vsub.f32 1.0, %v2281
        %v2286 = vsub.f32 1.0, %v2282
        %v2287 = vsub.f32 1.0, %v2283
        %v2288 = vsub.f32 1.0, %v2284
        %v2289 = vmul.f32 %v2225, %v2285
        %v2290 = vmul.f32 %v2226, %v2286
        %v2291 = vmul.f32 %v2227, %v2287
        %v2292 = vmul.f32 %v2228, %v2288
        %2293 = vset.pattern.permute.xlu0 30
        %2294 = vperm.xlu0 %2293, %v333
        %v2295 = vpop.permute.xlu0 %2294
        %2297 = vset.pattern.permute.xlu0 30
        %2298 = vperm.xlu0 %2297, %v334
        %v2299 = vpop.permute.xlu0 %2298
        %2301 = vset.pattern.permute.xlu0 30
        %2302 = vperm.xlu0 %2301, %v335
        %v2303 = vpop.permute.xlu0 %2302
        %2305 = vset.pattern.permute.xlu0 30
        %2306 = vperm.xlu0 %2305, %v336
        %v2307 = vpop.permute.xlu0 %2306
        %v2309 = vlaneseq
        %v2310 = vshrl.u32 %v2309, 7
        %v2311 = vsub.s32 6, %v2310
        %v2312 = vrot.slane %v328, %v2311
        %v2313 = vmul.f32 %v2295, %v2312
        %v2314 = vmul.f32 %v2299, %v2312
        %v2315 = vmul.f32 %v2303, %v2312
        %v2316 = vmul.f32 %v2307, %v2312
        %v2317 = vsub.f32 1.0, %v2313
        %v2318 = vsub.f32 1.0, %v2314
        %v2319 = vsub.f32 1.0, %v2315
        %v2320 = vsub.f32 1.0, %v2316
        %v2321 = vmul.f32 %v2257, %v2317
        %v2322 = vmul.f32 %v2258, %v2318
        %v2323 = vmul.f32 %v2259, %v2319
        %v2324 = vmul.f32 %v2260, %v2320
        %2325 = vset.pattern.permute.xlu0 31
        %2326 = vperm.xlu0 %2325, %v329
        %v2327 = vpop.permute.xlu0 %2326
        %2329 = vset.pattern.permute.xlu0 31
        %2330 = vperm.xlu0 %2329, %v330
        %v2331 = vpop.permute.xlu0 %2330
        %2333 = vset.pattern.permute.xlu0 31
        %2334 = vperm.xlu0 %2333, %v331
        %v2335 = vpop.permute.xlu0 %2334
        %2337 = vset.pattern.permute.xlu0 31
        %2338 = vperm.xlu0 %2337, %v332
        %v2339 = vpop.permute.xlu0 %2338
        %v2341 = vlaneseq
        %v2342 = vshrl.u32 %v2341, 7
        %v2343 = vsub.s32 7, %v2342
        %v2344 = vrot.slane %v1876, %v2343
        %v2345 = vmul.f32 %v2327, %v2344
        %v2346 = vmul.f32 %v2331, %v2344
        %v2347 = vmul.f32 %v2335, %v2344
        %v2348 = vmul.f32 %v2339, %v2344
        %v2349 = vsub.f32 1.0, %v2345
        %v2350 = vsub.f32 1.0, %v2346
        %v2351 = vsub.f32 1.0, %v2347
        %v2352 = vsub.f32 1.0, %v2348
        %v2353 = vmul.f32 %v2289, %v2349
        %v2354 = vmul.f32 %v2290, %v2350
        %v2355 = vmul.f32 %v2291, %v2351
        %v2356 = vmul.f32 %v2292, %v2352
        %2357 = vset.pattern.permute.xlu0 31
        %2358 = vperm.xlu0 %2357, %v333
        %v2359 = vpop.permute.xlu0 %2358
        %2361 = vset.pattern.permute.xlu0 31
        %2362 = vperm.xlu0 %2361, %v334
        %v2363 = vpop.permute.xlu0 %2362
        %2365 = vset.pattern.permute.xlu0 31
        %2366 = vperm.xlu0 %2365, %v335
        %v2367 = vpop.permute.xlu0 %2366
        %2369 = vset.pattern.permute.xlu0 31
        %2370 = vperm.xlu0 %2369, %v336
        %v2371 = vpop.permute.xlu0 %2370
        %v2373 = vlaneseq
        %v2374 = vshrl.u32 %v2373, 7
        %v2375 = vsub.s32 7, %v2374
        %v2376 = vrot.slane %v328, %v2375
        %v2377 = vmul.f32 %v2359, %v2376
        %v2378 = vmul.f32 %v2363, %v2376
        %v2379 = vmul.f32 %v2367, %v2376
        %v2380 = vmul.f32 %v2371, %v2376
        %v2381 = vsub.f32 1.0, %v2377
        %v2382 = vsub.f32 1.0, %v2378
        %v2383 = vsub.f32 1.0, %v2379
        %v2384 = vsub.f32 1.0, %v2380
        %v2385 = vmul.f32 %v2321, %v2381
        %v2386 = vmul.f32 %v2322, %v2382
        %v2387 = vmul.f32 %v2323, %v2383
        %v2388 = vmul.f32 %v2324, %v2384
        %v2389 = vld [vmem:[%s4] sm:$0xff]
        %v2390 = vld [vmem:[%s4 + $0x8] sm:$0xff]
        %v2391 = vld [vmem:[%s4 + $0x10] sm:$0xff]
        %v2392 = vld [vmem:[%s4 + $0x18] sm:$0xff]
        %v2393 = vsub.f32 1.0, %v2389
        %v2394 = vsub.f32 1.0, %v2390
        %v2395 = vsub.f32 1.0, %v2391
        %v2396 = vsub.f32 1.0, %v2392
        %2398 = vset.pattern.permute.xlu0 0
        %2399 = vperm.xlu0 %2398, %v2393
        %v2400 = vpop.permute.xlu0 %2399
        %2403 = vset.pattern.permute.xlu0 0
        %2404 = vperm.xlu0 %2403, %v2394
        %v2405 = vpop.permute.xlu0 %2404
        %2408 = vset.pattern.permute.xlu0 0
        %2409 = vperm.xlu0 %2408, %v2395
        %v2410 = vpop.permute.xlu0 %2409
        %2413 = vset.pattern.permute.xlu0 0
        %2414 = vperm.xlu0 %2413, %v2396
        %v2415 = vpop.permute.xlu0 %2414
        %v2417 = vmul.f32 %v2400, %v2353
        %v2418 = vmul.f32 %v2405, %v2354
        %v2419 = vmul.f32 %v2410, %v2355
        %v2420 = vmul.f32 %v2415, %v2356
        %v2421 = vsub.f32 1.0, %v2385
        %v2422 = vsub.f32 1.0, %v2386
        %v2423 = vsub.f32 1.0, %v2387
        %v2424 = vsub.f32 1.0, %v2388
        %2426 = vset.pattern.permute.xlu0 0
        %2427 = vperm.xlu0 %2426, %v2389
        %v2428 = vpop.permute.xlu0 %2427
        %2431 = vset.pattern.permute.xlu0 0
        %2432 = vperm.xlu0 %2431, %v2390
        %v2433 = vpop.permute.xlu0 %2432
        %2436 = vset.pattern.permute.xlu0 0
        %2437 = vperm.xlu0 %2436, %v2391
        %v2438 = vpop.permute.xlu0 %2437
        %2441 = vset.pattern.permute.xlu0 0
        %2442 = vperm.xlu0 %2441, %v2392
        %v2443 = vpop.permute.xlu0 %2442
        %v2445 = vmul.f32 %v2428, %v2421
        %v2446 = vmul.f32 %v2433, %v2422
        %v2447 = vmul.f32 %v2438, %v2423
        %v2448 = vmul.f32 %v2443, %v2424
        %v2449 = vadd.f32 %v2417, %v2445
        %v2450 = vadd.f32 %v2418, %v2446
        %v2451 = vadd.f32 %v2419, %v2447
        %v2452 = vadd.f32 %v2420, %v2448
        %2453 = vst [vmem:[%s264] sm:$0xff] %v2449
        %2454 = vst [vmem:[%s264 + $0x8] sm:$0xff] %v2450
        %2455 = vst [vmem:[%s264 + $0x10] sm:$0xff] %v2451
        %2456 = vst [vmem:[%s264 + $0x18] sm:$0xff] %v2452
        %s2457 = sand.u32 %s134, 1
        %s2458 = sand.u32 %s134, 1
        %s2459 = smul.addr %s2458, 32
        %s2460 = scalar_lea.vmem [#allocation3], %s2459
        // Predicated region
        $region79: #{neural_logic_network.4} parent=73 // pred_check
          %p2461 = pneg %p144
        $region80: #{neural_logic_network.4} parent=73 // pred_check_branch
          %2463 = sbr.rel (%p2461) target = $region82
        $region81: #{neural_logic_network.4} parent=73 // pred_region
          %s2464 = smul.addr %s16, 8
          %s2465 = scalar_lea.vmem %s5, %s2464
          // Predicated region
          $region83: #{neural_logic_network.4} parent=81 // pred_check
            _
          $region84: #{neural_logic_network.4} parent=81 // pred_check_branch
            %2467 = sbr.rel (0) target = $region86
          $region85: #{neural_logic_network.4} parent=81 // pred_region
            // Predicated region
            $region87: #{neural_logic_network.4} parent=85 // pred_check
              _
            $region88: #{neural_logic_network.4} parent=85 // pred_check_branch
              %2469 = sbr.rel (0) target = $region90
            $region89: #{neural_logic_network.4} parent=85 // pred_region
              // Predicated region
              $region102: #{neural_logic_network.4} parent=89 // pred_check
                _
              $region103: #{neural_logic_network.4} parent=89 // pred_check_branch
                %2490 = sbr.rel (0) target = $region105
              $region104: #{neural_logic_network.4} parent=89 // pred_region
                loop: start=0, step=1, limit=1
                $region106: #{neural_logic_network.4} parent=104 // loop_pre_header
                  _
                $region107: #{neural_logic_network.4} parent=104 // loop_header
                  %s2492 = sphi 0, %s2496
                  %p2493 = scmp.ge.s32.totalorder %s2492, 1
                  %s2497 = sphi %s2460, %s2460
                  %s2498 = sphi %s2465, %s2465
                $region108: #{neural_logic_network.4} parent=104 // loop_header_branch
                  %2495 = sbr.rel (%p2493) target = $region112
                $region109: #{neural_logic_network.4} parent=104 // loop_body
                  %v2499 = vld [vmem:[%s2497] sm:$0xff]
                  %2500 = vst [vmem:[%s2498] sm:$0xff] %v2499
                  %v2501 = vld [vmem:[%s2497 + $0x8] sm:$0xff]
                  %2502 = vst [vmem:[%s2498 + $0x10] sm:$0xff] %v2501
                  %v2503 = vld [vmem:[%s2497 + $0x10] sm:$0xff]
                  %2504 = vst [vmem:[%s2498 + $0x20] sm:$0xff] %v2503
                  %v2505 = vld [vmem:[%s2497 + $0x18] sm:$0xff]
                  %2506 = vst [vmem:[%s2498 + $0x30] sm:$0xff] %v2505
                $region110: #{neural_logic_network.4} parent=104 // loop_footer
                  %s2496 = sadd.s32 1, %s2492
                $region111: #{neural_logic_network.4} parent=104 // loop_footer_branch
                  %2491 = sbr.rel target = $region107
                $region112: #{neural_logic_network.4} parent=104 // loop_exit
                  _
              $region105: #{neural_logic_network.4} parent=89 // pred_fallthru
                _
              // Predicated region
              $region113: #{neural_logic_network.4} parent=89 // pred_check
                _
              $region114: #{neural_logic_network.4} parent=89 // pred_check_branch
                %2508 = sbr.rel target = $region116
              $region115: #{neural_logic_network.4} parent=89 // pred_region
                _
              $region116: #{neural_logic_network.4} parent=89 // pred_fallthru
                _
            $region90: #{neural_logic_network.4} parent=85 // pred_fallthru
              _
            // Predicated region
            $region91: #{neural_logic_network.4} parent=85 // pred_check
              _
            $region92: #{neural_logic_network.4} parent=85 // pred_check_branch
              %2471 = sbr.rel target = $region94
            $region93: #{neural_logic_network.4} parent=85 // pred_region
              loop: start=0, step=1, limit=1
              $region95: #{neural_logic_network.4} parent=93 // loop_pre_header
                _
              $region96: #{neural_logic_network.4} parent=93 // loop_header
                %s2474 = sphi 0, %s2478
                %p2475 = scmp.ge.s32.totalorder %s2474, 1
                %s2479 = sphi %s2460, %s2460
                %s2480 = sphi %s2465, %s2465
              $region97: #{neural_logic_network.4} parent=93 // loop_header_branch
                %2477 = sbr.rel (%p2475) target = $region101
              $region98: #{neural_logic_network.4} parent=93 // loop_body
                %v2481 = vld [vmem:[%s2479] sm:$0xff]
                %2482 = vst [vmem:[%s2480] sm:$0xff] %v2481
                %v2483 = vld [vmem:[%s2479 + $0x8] sm:$0xff]
                %2484 = vst [vmem:[%s2480 + $0x10] sm:$0xff] %v2483
                %v2485 = vld [vmem:[%s2479 + $0x10] sm:$0xff]
                %2486 = vst [vmem:[%s2480 + $0x20] sm:$0xff] %v2485
                %v2487 = vld [vmem:[%s2479 + $0x18] sm:$0xff]
                %2488 = vst [vmem:[%s2480 + $0x30] sm:$0xff] %v2487
              $region99: #{neural_logic_network.4} parent=93 // loop_footer
                %s2478 = sadd.s32 1, %s2474
              $region100: #{neural_logic_network.4} parent=93 // loop_footer_branch
                %2473 = sbr.rel target = $region96
              $region101: #{neural_logic_network.4} parent=93 // loop_exit
                _
            $region94: #{neural_logic_network.4} parent=85 // pred_fallthru
              _
          $region86: #{neural_logic_network.4} parent=81 // pred_fallthru
            _
          %2509 = vnop
        $region82: #{neural_logic_network.4} parent=73 // pred_fallthru
          _
      $region74: #{neural_logic_network.4} parent=5 // pred_fallthru
        _
      %p2510 = scmp.le.s32.totalorder 2, %s11
      // Predicated region
      $region117: #{neural_logic_network.4} parent=5 // pred_check
        %p2511 = pneg %p2510
      $region118: #{neural_logic_network.4} parent=5 // pred_check_branch
        %2513 = sbr.rel (%p2511) target = $region120
      $region119: #{neural_logic_network.4} parent=5 // pred_region
        %s2514 = ssub.s32 %s11, 2
        // Predicated region
        $region121: #{neural_logic_network.4} parent=119 // pred_check
          %p2515 = pneg %p150
        $region122: #{neural_logic_network.4} parent=119 // pred_check_branch
          %2517 = sbr.rel (%p2515) target = $region124
        $region123: #{neural_logic_network.4} parent=119 // pred_region
          %s2518 = sand.u32 %s135, 1
          %s2519 = sand.u32 %s135, 1
          %s2520 = smul.addr %s2519, 32
          %s2521 = scalar_lea.vmem [#allocation3], %s2520
        $region124: #{neural_logic_network.4} parent=119 // pred_fallthru
          _
      $region120: #{neural_logic_network.4} parent=5 // pred_fallthru
        _
    $region6: #{neural_logic_network.4} parent=1 // loop_footer
      %s15 = sadd.s32 1, %s11
    $region7: #{neural_logic_network.4} parent=1 // loop_footer_branch
      %10 = sbr.rel target = $region3
    $region8: #{neural_logic_network.4} parent=1 // loop_exit
      _

</llo_original>
